<compile_context>
chip_gen: v7x
topology: tpu7x:2x2x1
jax: 0.10.0
libtpu: 0.0.40
codegen_flags: <defaults>
</compile_context>

<pallas_src>
import jax
import jax.numpy as jnp
from jax.experimental import pallas as pl
from jax.experimental.pallas import tpu as pltpu

# ----------------------------- config ---------------------------------------
BATCH = 2
IMG = 64
IN_CH = 3
BASE_CH = 32
FEAT = IMG // 4                     # 16
PATCH = 4
GRID_P = FEAT // PATCH              # 4
NUM_PATCH = GRID_P * GRID_P         # 16
NUM_KPT = 8
DIM = 64
HEADS = 4
HEAD_DIM = DIM // HEADS             # 16
DEPTH = 2
MLP_DIM = DIM * 2                   # 128
HEAT = 32
HEAT_DIM = HEAT * HEAT              # 1024
HID_HEAT_DIM = HEAT_DIM // 8        # 128
SEQ = NUM_KPT + NUM_PATCH           # 24
BSEQ = BATCH * SEQ                  # 48
EPS = 1e-5
STEM_K = PATCH * PATCH * IN_CH      # 48  (4x4 stride-4 conv as a matmul)
POS_PER_PATCH = PATCH * PATCH       # 16  intra-patch positions (p1 p2)
PATCH_DIM = POS_PER_PATCH * BASE_CH # 512 (p1 p2 c)
STEM_BLK_K = PATCH * STEM_K         # 192 (p2 kh kw c)
STEM_BLK_N = PATCH * BASE_CH        # 128 (p2 c)
NTOK = BATCH * NUM_PATCH            # 32  patch tokens (all batches)
KPT_ROWS = BATCH * NUM_KPT          # 16  keypoint tokens (all batches)
SCALE = HEAD_DIM ** -0.5

KPT_SHIFT = NUM_KPT.bit_length() - 1      # 3
PATCH_SHIFT = NUM_PATCH.bit_length() - 1  # 4
assert (1 << KPT_SHIFT) == NUM_KPT and (1 << PATCH_SHIFT) == NUM_PATCH


# --------------------------- kernel helpers ----------------------------------
def _norm(x):
    """LayerNorm without affine (gamma/beta are folded into the next matmul)."""
    mu = jnp.mean(x, axis=-1, keepdims=True)
    var = jnp.mean((x - mu) ** 2, axis=-1, keepdims=True)
    return (x - mu) * jax.lax.rsqrt(var + EPS)


def _wdot(a, w_bf16):
    """activation (f32) x weight (bf16) matmul -> f32 accumulate on the MXU."""
    return jnp.dot(a.astype(jnp.bfloat16), w_bf16,
                   preferred_element_type=jnp.float32)


# ------------------------------ fused kernel ---------------------------------
def tokenpose_fused_kernel(
    stem_ref, w_stem_ref, b_stem_ref, w_patch_ref, b_patch_ref,
    kpt_ref, pos_pat_ref,
    wqkv_ref, bqkv_ref, wo_ref, bo_ref, w1_ref, b1_ref, w2_ref, b2_ref,
    hw1_ref, hb1_ref, hb2_ref, hw2_hbm_ref,
    out_ref,
    hw2_vmem, hw2_sem,
):
    # --- overlap the big head weight DMA with the whole forward pass ---------
    hw2_cp = pltpu.make_async_copy(hw2_hbm_ref, hw2_vmem, hw2_sem)
    hw2_cp.start()

    # --- stem conv (preprocess folded into weights): ONE dense matmul --------
    # rows of stem_ref are ordered (p1, token); weight is block-diag over p2.
    res = jnp.dot(stem_ref[...], w_stem_ref[...],
                  preferred_element_type=jnp.float32)            # (128, 128)
    # rebuild (token, p1 p2 c) layout: 4 tile-aligned 128-lane concats
    pe = jnp.concatenate(
        [res[p * NTOK:(p + 1) * NTOK, :] for p in range(PATCH)], axis=-1)  # (32, 512)
    pe = jnp.maximum(pe + b_stem_ref[...], 0.0)

    # --- patch_to_embedding ----------------------------------------------------
    tok = _wdot(pe, w_patch_ref[...]) + b_patch_ref[...]         # (32, 64)

    # --- token assembly: rows [0,16) keypoint tokens, [16,48) patch tokens -----
    # (kpt tokens + their pos-emb and the tiled patch pos-emb are prefolded)
    x = jnp.concatenate([kpt_ref[...], tok + pos_pat_ref[...]], axis=0)  # (48, 64)

    # --- block-diagonal (per-batch) additive attention mask, built in-kernel ---
    r = jax.lax.broadcasted_iota(jnp.int32, (BSEQ, BSEQ), 0)
    c = jax.lax.broadcasted_iota(jnp.int32, (BSEQ, BSEQ), 1)

    def _bid(i):  # batch id of a token row under the reordered layout
        return jnp.where(i < KPT_ROWS, i >> KPT_SHIFT,
                         (i - KPT_ROWS) >> PATCH_SHIFT)

    neg_mask = jnp.where(_bid(r) == _bid(c),
                         jnp.float32(0.0), jnp.float32(-1e30))   # (48, 48) f32

    # --- transformer encoder ----------------------------------------------------
    for d in range(DEPTH):
        # x + Wo(MHSA(LN(x)))   (LN affine folded into wqkv)
        n1 = _norm(x)
        qkv = _wdot(n1, wqkv_ref[d]) + bqkv_ref[d]               # (48, 192)
        heads = []
        for h in range(HEADS):
            lo = h * HEAD_DIM
            hi = lo + HEAD_DIM
            q_h = qkv[:, lo:hi]
            k_h = qkv[:, DIM + lo:DIM + hi]
            v_h = qkv[:, 2 * DIM + lo:2 * DIM + hi]
            s = jax.lax.dot_general(q_h, k_h, (((1,), (1,)), ((), ())),
                                    preferred_element_type=jnp.float32)
            s = s * SCALE + neg_mask
            s = s - jnp.max(s, axis=-1, keepdims=True)
            p = jnp.exp(s)
            p = p * pl.reciprocal(jnp.sum(p, axis=-1, keepdims=True), approx=True)
            heads.append(jnp.dot(p, v_h, preferred_element_type=jnp.float32))
        o = jnp.concatenate(heads, axis=-1)                      # (48, 64)
        x = x + _wdot(o, wo_ref[d]) + bo_ref[d]                  # single K=64 proj

        # x + W2(GELU(W1 LN(x)))   (LN affine folded into w1)
        n2 = _norm(x)
        hmid = _wdot(n2, w1_ref[d]) + b1_ref[d]
        hmid = jax.nn.gelu(hmid, approximate=True)
        x = x + _wdot(hmid, w2_ref[d]) + b2_ref[d]

    # --- keypoint heatmap head (keypoint tokens are rows [0, 16)) --------------
    kp = x[0:KPT_ROWS, :]                                        # free static view
    y = _wdot(_norm(kp), hw1_ref[...]) + hb1_ref[...]            # (16, 128)
    yn = _norm(y)
    hw2_cp.wait()                                                # hw2 now resident
    out_ref[...] = _wdot(yn, hw2_vmem[...]) + hb2_ref[...]       # (16, 1024)


# ------------------------------ wrapper ---------------------------------------
def token_pose_b_forward(x_nchw, kparams):
    b = x_nchw.shape[0]
    assert b == BATCH
    # NCHW -> NHWC, then im2col with rows ordered (p1, b, gh, gw) and columns
    # (p2, kh, kw, c) so ONE dense matmul against the (192,128) block-diag-over-p2
    # stem weight yields the patch-embedding layout after aligned lane concats.
    x = jnp.transpose(x_nchw, (0, 2, 3, 1)).astype(jnp.float32)     # (B, 64, 64, 3)
    x = x.reshape(b, GRID_P, PATCH, PATCH, GRID_P, PATCH, PATCH, IN_CH)
    #             b   gh    p1     kh     gw     p2     kw    c
    x = x.transpose(2, 0, 1, 4, 5, 3, 6, 7)                         # p1 b gh gw p2 kh kw c
    stem_in = x.reshape(PATCH * b * NUM_PATCH, STEM_BLK_K).astype(jnp.bfloat16)  # (128,192)

    vmem_spec = pl.BlockSpec(memory_space=pltpu.MemorySpace.VMEM)
    n_in = 1 + len(kparams)
    in_specs = [vmem_spec] * (n_in - 1) + [pl.BlockSpec(memory_space=pl.ANY)]  # hw2 in HBM

    hm = pl.pallas_call(
        tokenpose_fused_kernel,
        out_shape=jax.ShapeDtypeStruct((b * NUM_KPT, HEAT_DIM), jnp.float32),
        in_specs=in_specs,
        out_specs=pl.BlockSpec(memory_space=pltpu.MemorySpace.VMEM),
        scratch_shapes=[
            pltpu.VMEM((HID_HEAT_DIM, HEAT_DIM), jnp.bfloat16),   # hw2 landing buffer
            pltpu.SemaphoreType.DMA(()),
        ],
    )(stem_in, *kparams)
    return hm.reshape(b, NUM_KPT, HEAT, HEAT)


# --------------------------- parameter init -----------------------------------
def init_params(key):
    keys = iter(jax.random.split(key, 64))

    def nrm(shape, scale=0.02):
        return scale * jax.random.normal(next(keys), shape, dtype=jnp.float32)

    params = {
        "w_stem": nrm((STEM_K, BASE_CH)),
        "b_stem": jnp.zeros((1, BASE_CH), jnp.float32),
        "w_patch": nrm((PATCH_DIM, DIM)),
        "b_patch": jnp.zeros((1, DIM), jnp.float32),
        "kpt_token": nrm((1, NUM_KPT, DIM)),
        "pos_emb": nrm((1, SEQ, DIM)),
        # head
        "h_ln1g": jnp.ones((1, DIM), jnp.float32),
        "h_ln1b": jnp.zeros((1, DIM), jnp.float32),
        "h_w1": nrm((DIM, HID_HEAT_DIM)),
        "h_b1": jnp.zeros((1, HID_HEAT_DIM), jnp.float32),
        "h_ln2g": jnp.ones((1, HID_HEAT_DIM), jnp.float32),
        "h_ln2b": jnp.zeros((1, HID_HEAT_DIM), jnp.float32),
        "h_w2": nrm((HID_HEAT_DIM, HEAT_DIM)),
        "h_b2": jnp.zeros((1, HEAT_DIM), jnp.float32),
        "layers": [],
    }
    for _ in range(DEPTH):
        params["layers"].append({
            "ln1g": jnp.ones((1, DIM), jnp.float32),
            "ln1b": jnp.zeros((1, DIM), jnp.float32),
            "wqkv": nrm((DIM, 3 * DIM)),        # bias-free like TokenPose to_qkv
            "wo": nrm((DIM, DIM)),
            "bo": jnp.zeros((1, DIM), jnp.float32),
            "ln2g": jnp.ones((1, DIM), jnp.float32),
            "ln2b": jnp.zeros((1, DIM), jnp.float32),
            "w1": nrm((DIM, MLP_DIM)),
            "b1": jnp.zeros((1, MLP_DIM), jnp.float32),
            "w2": nrm((MLP_DIM, DIM)),
            "b2": jnp.zeros((1, DIM), jnp.float32),
        })
    return params


def prepare_kernel_params(params):
    """One-time folding of preprocess constants, LayerNorm affines, token/pos
    tiling; weight matrices cast to bf16 (biases stay f32)."""
    bf16 = jnp.bfloat16
    # fold (x - mean)/std into the stem conv:  x@(W/std) + (b - (mean/std)@W)
    mean = jnp.array([0.485, 0.456, 0.406], jnp.float32)
    std = jnp.array([0.229, 0.224, 0.225], jnp.float32)
    mean_vec = jnp.tile(mean, POS_PER_PATCH)                     # (48,) (kh kw c)
    std_vec = jnp.tile(std, POS_PER_PATCH)
    w_stem_f = params["w_stem"] / std_vec[:, None]               # (48, 32)
    b_stem_f = params["b_stem"] - (mean_vec / std_vec) @ params["w_stem"]  # (1, 32)
    # block-diagonal over p2 only, shared across p1 (48 KiB vs old 1.5 MiB)
    w_stem_blk = jax.scipy.linalg.block_diag(*([w_stem_f] * PATCH)).astype(bf16)  # (192,128)
    b_stem_full = jnp.tile(b_stem_f, (1, POS_PER_PATCH))         # (1, 512) f32

    # pre-tiled keypoint tokens (+ their pos emb) and patch pos emb
    pos = params["pos_emb"].reshape(SEQ, DIM)
    kpt = params["kpt_token"].reshape(NUM_KPT, DIM) + pos[0:NUM_KPT]
    kpt_full = jnp.tile(kpt, (BATCH, 1))                         # (16, 64)
    pos_pat_full = jnp.tile(pos[NUM_KPT:SEQ], (BATCH, 1))        # (32, 64)

    # fold LayerNorm affine into the following projection: LN(x)@W = n(x)@(g*W) + beta@W
    wqkv_l, bqkv_l, wo_l, bo_l, w1_l, b1_l, w2_l, b2_l = ([] for _ in range(8))
    for lp in params["layers"]:
        g1, beta1 = lp["ln1g"].reshape(-1), lp["ln1b"].reshape(-1)
        g2, beta2 = lp["ln2g"].reshape(-1), lp["ln2b"].reshape(-1)
        wqkv_l.append(g1[:, None] * lp["wqkv"])
        bqkv_l.append((beta1 @ lp["wqkv"])[None, :])
        wo_l.append(lp["wo"])
        bo_l.append(lp["bo"])
        w1_l.append(g2[:, None] * lp["w1"])
        b1_l.append(lp["b1"] + (beta2 @ lp["w1"])[None, :])
        w2_l.append(lp["w2"])
        b2_l.append(lp["b2"])
    stack_w = lambda xs: jnp.stack(xs, axis=0).astype(bf16)
    stack_b = lambda xs: jnp.stack(xs, axis=0).astype(jnp.float32)

    g1h, b1h = params["h_ln1g"].reshape(-1), params["h_ln1b"].reshape(-1)
    g2h, b2h = params["h_ln2g"].reshape(-1), params["h_ln2b"].reshape(-1)
    hw1 = (g1h[:, None] * params["h_w1"]).astype(bf16)
    hb1 = params["h_b1"] + (b1h @ params["h_w1"])[None, :]
    hw2 = (g2h[:, None] * params["h_w2"]).astype(bf16)
    hb2 = params["h_b2"] + (b2h @ params["h_w2"])[None, :]

    return (
        w_stem_blk, b_stem_full,
        params["w_patch"].astype(bf16), params["b_patch"],
        kpt_full, pos_pat_full,
        stack_w(wqkv_l), stack_b(bqkv_l), stack_w(wo_l), stack_b(bo_l),
        stack_w(w1_l), stack_b(b1_l), stack_w(w2_l), stack_b(b2_l),
        hw1, hb1, hb2, hw2,          # hw2 LAST: taken with memory_space=pl.ANY
    )


# ------------------------------ main -------------------------------------------
if __name__ == "__main__":
    key = jax.random.PRNGKey(0)
    kx, kparam_key = jax.random.split(key)
    x = jax.random.uniform(kx, (BATCH, IN_CH, IMG, IMG), dtype=jnp.float32)
    params = init_params(kparam_key)
    kparams = prepare_kernel_params(params)

    fwd = jax.jit(token_pose_b_forward)
    out = fwd(x, kparams)
    out = jax.block_until_ready(out)
    assert out.shape == (BATCH, NUM_KPT, HEAT, HEAT), out.shape
    assert bool(jnp.all(jnp.isfinite(out)))
    print("KERNEL_OK")
</pallas_src>

<mosaic_0001>
module attributes {stable_mosaic.version = 11 : i64} {
  func.func @tokenpose_fused_kernel(%arg0: memref<128x192xbf16, #tpu.memory_space<vmem>>, %arg1: memref<192x128xbf16, #tpu.memory_space<vmem>>, %arg2: memref<1x512xf32, #tpu.memory_space<vmem>>, %arg3: memref<512x64xbf16, #tpu.memory_space<vmem>>, %arg4: memref<1x64xf32, #tpu.memory_space<vmem>>, %arg5: memref<16x64xf32, #tpu.memory_space<vmem>>, %arg6: memref<32x64xf32, #tpu.memory_space<vmem>>, %arg7: memref<2x64x192xbf16, #tpu.memory_space<vmem>>, %arg8: memref<2x1x192xf32, #tpu.memory_space<vmem>>, %arg9: memref<2x64x64xbf16, #tpu.memory_space<vmem>>, %arg10: memref<2x1x64xf32, #tpu.memory_space<vmem>>, %arg11: memref<2x64x128xbf16, #tpu.memory_space<vmem>>, %arg12: memref<2x1x128xf32, #tpu.memory_space<vmem>>, %arg13: memref<2x128x64xbf16, #tpu.memory_space<vmem>>, %arg14: memref<2x1x64xf32, #tpu.memory_space<vmem>>, %arg15: memref<64x128xbf16, #tpu.memory_space<vmem>>, %arg16: memref<1x128xf32, #tpu.memory_space<vmem>>, %arg17: memref<1x1024xf32, #tpu.memory_space<vmem>>, %arg18: memref<128x1024xbf16, #tpu.memory_space<any>>, %arg19: memref<16x1024xf32, #tpu.memory_space<vmem>>, %arg20: memref<128x1024xbf16, #tpu.memory_space<vmem>>, %arg21: memref<!tpu.dma_semaphore, #tpu.memory_space<semaphore_mem>>) attributes {dimension_semantics = [], scalar_prefetch = 0 : i64, scratch_operands = 2 : i64, tpu.core_type = #tpu.core_type<tc>} {
    tpu.enqueue_dma source(%arg18 : memref<128x1024xbf16, #tpu.memory_space<any>>) target(%arg20 : memref<128x1024xbf16, #tpu.memory_space<vmem>>) target_semaphore(%arg21 : memref<!tpu.dma_semaphore, #tpu.memory_space<semaphore_mem>>)
    %c0 = arith.constant 0 : index
    %c0_0 = arith.constant 0 : index
    %0 = vector.load %arg0[%c0, %c0_0] : memref<128x192xbf16, #tpu.memory_space<vmem>>, vector<128x192xbf16>
    %c0_1 = arith.constant 0 : index
    %c0_2 = arith.constant 0 : index
    %1 = vector.load %arg1[%c0_1, %c0_2] : memref<192x128xbf16, #tpu.memory_space<vmem>>, vector<192x128xbf16>
    %cst = arith.constant dense<0.000000e+00> : vector<128x128xf32>
    %2 = tpu.matmul %0, %1, %cst {dimension_numbers = #tpu.dot_dimension_numbers<[1], [0], [0], [1], [0, 0, 1, 1], [], []>} : vector<128x192xbf16>, vector<192x128xbf16>, vector<128x128xf32> -> vector<128x128xf32>
    %3 = vector.extract_strided_slice %2 {offsets = [0, 0], sizes = [32, 128], strides = [1, 1]} : vector<128x128xf32> to vector<32x128xf32>
    %4 = vector.extract_strided_slice %2 {offsets = [32, 0], sizes = [32, 128], strides = [1, 1]} : vector<128x128xf32> to vector<32x128xf32>
    %5 = vector.extract_strided_slice %2 {offsets = [64, 0], sizes = [32, 128], strides = [1, 1]} : vector<128x128xf32> to vector<32x128xf32>
    %6 = vector.extract_strided_slice %2 {offsets = [96, 0], sizes = [32, 128], strides = [1, 1]} : vector<128x128xf32> to vector<32x128xf32>
    %7 = tpu.concatenate %3, %4, %5, %6 in 1 : vector<32x128xf32>, vector<32x128xf32>, vector<32x128xf32>, vector<32x128xf32> -> vector<32x512xf32>
    %c0_3 = arith.constant 0 : index
    %c0_4 = arith.constant 0 : index
    %8 = vector.load %arg2[%c0_3, %c0_4] : memref<1x512xf32, #tpu.memory_space<vmem>>, vector<1x512xf32>
    %9 = vector.broadcast %8 : vector<1x512xf32> to vector<32x512xf32>
    %10 = arith.addf %7, %9 : vector<32x512xf32>
    %cst_5 = arith.constant 0.000000e+00 : f32
    %11 = vector.broadcast %cst_5 : f32 to vector<32x512xf32>
    %12 = arith.maximumf %10, %11 : vector<32x512xf32>
    %c0_6 = arith.constant 0 : index
    %c0_7 = arith.constant 0 : index
    %13 = vector.load %arg3[%c0_6, %c0_7] : memref<512x64xbf16, #tpu.memory_space<vmem>>, vector<512x64xbf16>
    %14 = arith.truncf %12 : vector<32x512xf32> to vector<32x512xbf16>
    %cst_8 = arith.constant dense<0.000000e+00> : vector<32x64xf32>
    %15 = tpu.matmul %14, %13, %cst_8 {dimension_numbers = #tpu.dot_dimension_numbers<[1], [0], [0], [1], [0, 0, 1, 1], [], []>} : vector<32x512xbf16>, vector<512x64xbf16>, vector<32x64xf32> -> vector<32x64xf32>
    %c0_9 = arith.constant 0 : index
    %c0_10 = arith.constant 0 : index
    %16 = vector.load %arg4[%c0_9, %c0_10] : memref<1x64xf32, #tpu.memory_space<vmem>>, vector<1x64xf32>
    %17 = vector.broadcast %16 : vector<1x64xf32> to vector<32x64xf32>
    %18 = arith.addf %15, %17 : vector<32x64xf32>
    %c0_11 = arith.constant 0 : index
    %c0_12 = arith.constant 0 : index
    %19 = vector.load %arg5[%c0_11, %c0_12] : memref<16x64xf32, #tpu.memory_space<vmem>>, vector<16x64xf32>
    %c0_13 = arith.constant 0 : index
    %c0_14 = arith.constant 0 : index
    %20 = vector.load %arg6[%c0_13, %c0_14] : memref<32x64xf32, #tpu.memory_space<vmem>>, vector<32x64xf32>
    %21 = arith.addf %18, %20 : vector<32x64xf32>
    %22 = tpu.concatenate %19, %21 in 0 : vector<16x64xf32>, vector<32x64xf32> -> vector<48x64xf32>
    %23 = tpu.iota {dimensions = array<i32: 0>} : vector<48x48xi32>
    %24 = tpu.iota {dimensions = array<i32: 1>} : vector<48x48xi32>
    %c16_i32 = arith.constant 16 : i32
    %25 = vector.broadcast %c16_i32 : i32 to vector<48x48xi32>
    %26 = arith.cmpi slt, %23, %25 : vector<48x48xi32>
    %c3_i32 = arith.constant 3 : i32
    %27 = vector.broadcast %c3_i32 : i32 to vector<48x48xi32>
    %28 = arith.shrsi %23, %27 : vector<48x48xi32>
    %c16_i32_15 = arith.constant 16 : i32
    %29 = vector.broadcast %c16_i32_15 : i32 to vector<48x48xi32>
    %30 = arith.subi %23, %29 : vector<48x48xi32>
    %c4_i32 = arith.constant 4 : i32
    %31 = vector.broadcast %c4_i32 : i32 to vector<48x48xi32>
    %32 = arith.shrsi %30, %31 : vector<48x48xi32>
    %33 = arith.select %26, %28, %32 : vector<48x48xi1>, vector<48x48xi32>
    %c16_i32_16 = arith.constant 16 : i32
    %34 = vector.broadcast %c16_i32_16 : i32 to vector<48x48xi32>
    %35 = arith.cmpi slt, %24, %34 : vector<48x48xi32>
    %c3_i32_17 = arith.constant 3 : i32
    %36 = vector.broadcast %c3_i32_17 : i32 to vector<48x48xi32>
    %37 = arith.shrsi %24, %36 : vector<48x48xi32>
    %c16_i32_18 = arith.constant 16 : i32
    %38 = vector.broadcast %c16_i32_18 : i32 to vector<48x48xi32>
    %39 = arith.subi %24, %38 : vector<48x48xi32>
    %c4_i32_19 = arith.constant 4 : i32
    %40 = vector.broadcast %c4_i32_19 : i32 to vector<48x48xi32>
    %41 = arith.shrsi %39, %40 : vector<48x48xi32>
    %42 = arith.select %35, %37, %41 : vector<48x48xi1>, vector<48x48xi32>
    %43 = arith.cmpi eq, %33, %42 : vector<48x48xi32>
    %cst_20 = arith.constant 0.000000e+00 : f32
    %cst_21 = arith.constant -1.000000e+30 : f32
    %44 = vector.broadcast %cst_20 : f32 to vector<48x48xf32>
    %45 = vector.broadcast %cst_21 : f32 to vector<48x48xf32>
    %46 = arith.select %43, %44, %45 : vector<48x48xi1>, vector<48x48xf32>
    %cst_22 = arith.constant dense<0.000000e+00> : vector<48xf32>
    %47 = vector.multi_reduction <add>, %22, %cst_22 [1] : vector<48x64xf32> to vector<48xf32>
    %48 = vector.shape_cast %47 : vector<48xf32> to vector<48x1xf32>
    %cst_23 = arith.constant 6.400000e+01 : f32
    %49 = vector.broadcast %cst_23 : f32 to vector<48x1xf32>
    %50 = arith.divf %48, %49 : vector<48x1xf32>
    %51 = vector.broadcast %50 : vector<48x1xf32> to vector<48x64xf32>
    %52 = arith.subf %22, %51 : vector<48x64xf32>
    %53 = arith.mulf %52, %52 : vector<48x64xf32>
    %cst_24 = arith.constant dense<0.000000e+00> : vector<48xf32>
    %54 = vector.multi_reduction <add>, %53, %cst_24 [1] : vector<48x64xf32> to vector<48xf32>
    %55 = vector.shape_cast %54 : vector<48xf32> to vector<48x1xf32>
    %cst_25 = arith.constant 6.400000e+01 : f32
    %56 = vector.broadcast %cst_25 : f32 to vector<48x1xf32>
    %57 = arith.divf %55, %56 : vector<48x1xf32>
    %58 = vector.broadcast %50 : vector<48x1xf32> to vector<48x64xf32>
    %59 = arith.subf %22, %58 : vector<48x64xf32>
    %cst_26 = arith.constant 9.99999974E-6 : f32
    %60 = vector.broadcast %cst_26 : f32 to vector<48x1xf32>
    %61 = arith.addf %57, %60 : vector<48x1xf32>
    %62 = math.rsqrt %61 : vector<48x1xf32>
    %63 = vector.broadcast %62 : vector<48x1xf32> to vector<48x64xf32>
    %64 = arith.mulf %59, %63 : vector<48x64xf32>
    %c0_27 = arith.constant 0 : index
    %c0_28 = arith.constant 0 : index
    %c0_29 = arith.constant 0 : index
    %65 = vector.load %arg7[%c0_27, %c0_28, %c0_29] : memref<2x64x192xbf16, #tpu.memory_space<vmem>>, vector<1x64x192xbf16>
    %66 = vector.shape_cast %65 : vector<1x64x192xbf16> to vector<64x192xbf16>
    %67 = arith.truncf %64 : vector<48x64xf32> to vector<48x64xbf16>
    %cst_30 = arith.constant dense<0.000000e+00> : vector<48x192xf32>
    %68 = tpu.matmul %67, %66, %cst_30 {dimension_numbers = #tpu.dot_dimension_numbers<[1], [0], [0], [1], [0, 0, 1, 1], [], []>} : vector<48x64xbf16>, vector<64x192xbf16>, vector<48x192xf32> -> vector<48x192xf32>
    %c0_31 = arith.constant 0 : index
    %c0_32 = arith.constant 0 : index
    %c0_33 = arith.constant 0 : index
    %69 = vector.load %arg8[%c0_31, %c0_32, %c0_33] : memref<2x1x192xf32, #tpu.memory_space<vmem>>, vector<1x1x192xf32>
    %70 = vector.shape_cast %69 : vector<1x1x192xf32> to vector<1x192xf32>
    %71 = vector.broadcast %70 : vector<1x192xf32> to vector<48x192xf32>
    %72 = arith.addf %68, %71 : vector<48x192xf32>
    %73 = vector.extract_strided_slice %72 {offsets = [0, 0], sizes = [48, 16], strides = [1, 1]} : vector<48x192xf32> to vector<48x16xf32>
    %74 = vector.extract_strided_slice %72 {offsets = [0, 64], sizes = [48, 16], strides = [1, 1]} : vector<48x192xf32> to vector<48x16xf32>
    %75 = vector.extract_strided_slice %72 {offsets = [0, 128], sizes = [48, 16], strides = [1, 1]} : vector<48x192xf32> to vector<48x16xf32>
    %cst_34 = arith.constant dense<0.000000e+00> : vector<48x48xf32>
    %76 = tpu.matmul %73, %74, %cst_34 {dimension_numbers = #tpu.dot_dimension_numbers<[1], [1], [0], [0], [0, 0, 1, 0], [], []>} : vector<48x16xf32>, vector<48x16xf32>, vector<48x48xf32> -> vector<48x48xf32>
    %cst_35 = arith.constant 2.500000e-01 : f32
    %77 = vector.broadcast %cst_35 : f32 to vector<48x48xf32>
    %78 = arith.mulf %76, %77 : vector<48x48xf32>
    %79 = arith.addf %78, %46 : vector<48x48xf32>
    %cst_36 = arith.constant dense<0xFF800000> : vector<48xf32>
    %80 = vector.multi_reduction <maximumf>, %79, %cst_36 [1] : vector<48x48xf32> to vector<48xf32>
    %81 = vector.shape_cast %80 : vector<48xf32> to vector<48x1xf32>
    %82 = vector.broadcast %81 : vector<48x1xf32> to vector<48x48xf32>
    %83 = arith.subf %79, %82 : vector<48x48xf32>
    %84 = math.exp %83 : vector<48x48xf32>
    %cst_37 = arith.constant dense<0.000000e+00> : vector<48xf32>
    %85 = vector.multi_reduction <add>, %84, %cst_37 [1] : vector<48x48xf32> to vector<48xf32>
    %86 = vector.shape_cast %85 : vector<48xf32> to vector<48x1xf32>
    %87 = tpu.reciprocal %86 {approx = true} : vector<48x1xf32> -> vector<48x1xf32>
    %88 = vector.broadcast %87 : vector<48x1xf32> to vector<48x48xf32>
    %89 = arith.mulf %84, %88 : vector<48x48xf32>
    %cst_38 = arith.constant dense<0.000000e+00> : vector<48x16xf32>
    %90 = tpu.matmul %89, %75, %cst_38 {dimension_numbers = #tpu.dot_dimension_numbers<[1], [0], [0], [1], [0, 0, 1, 1], [], []>} : vector<48x48xf32>, vector<48x16xf32>, vector<48x16xf32> -> vector<48x16xf32>
    %91 = vector.extract_strided_slice %72 {offsets = [0, 16], sizes = [48, 16], strides = [1, 1]} : vector<48x192xf32> to vector<48x16xf32>
    %92 = vector.extract_strided_slice %72 {offsets = [0, 80], sizes = [48, 16], strides = [1, 1]} : vector<48x192xf32> to vector<48x16xf32>
    %93 = vector.extract_strided_slice %72 {offsets = [0, 144], sizes = [48, 16], strides = [1, 1]} : vector<48x192xf32> to vector<48x16xf32>
    %cst_39 = arith.constant dense<0.000000e+00> : vector<48x48xf32>
    %94 = tpu.matmul %91, %92, %cst_39 {dimension_numbers = #tpu.dot_dimension_numbers<[1], [1], [0], [0], [0, 0, 1, 0], [], []>} : vector<48x16xf32>, vector<48x16xf32>, vector<48x48xf32> -> vector<48x48xf32>
    %cst_40 = arith.constant 2.500000e-01 : f32
    %95 = vector.broadcast %cst_40 : f32 to vector<48x48xf32>
    %96 = arith.mulf %94, %95 : vector<48x48xf32>
    %97 = arith.addf %96, %46 : vector<48x48xf32>
    %cst_41 = arith.constant dense<0xFF800000> : vector<48xf32>
    %98 = vector.multi_reduction <maximumf>, %97, %cst_41 [1] : vector<48x48xf32> to vector<48xf32>
    %99 = vector.shape_cast %98 : vector<48xf32> to vector<48x1xf32>
    %100 = vector.broadcast %99 : vector<48x1xf32> to vector<48x48xf32>
    %101 = arith.subf %97, %100 : vector<48x48xf32>
    %102 = math.exp %101 : vector<48x48xf32>
    %cst_42 = arith.constant dense<0.000000e+00> : vector<48xf32>
    %103 = vector.multi_reduction <add>, %102, %cst_42 [1] : vector<48x48xf32> to vector<48xf32>
    %104 = vector.shape_cast %103 : vector<48xf32> to vector<48x1xf32>
    %105 = tpu.reciprocal %104 {approx = true} : vector<48x1xf32> -> vector<48x1xf32>
    %106 = vector.broadcast %105 : vector<48x1xf32> to vector<48x48xf32>
    %107 = arith.mulf %102, %106 : vector<48x48xf32>
    %cst_43 = arith.constant dense<0.000000e+00> : vector<48x16xf32>
    %108 = tpu.matmul %107, %93, %cst_43 {dimension_numbers = #tpu.dot_dimension_numbers<[1], [0], [0], [1], [0, 0, 1, 1], [], []>} : vector<48x48xf32>, vector<48x16xf32>, vector<48x16xf32> -> vector<48x16xf32>
    %109 = vector.extract_strided_slice %72 {offsets = [0, 32], sizes = [48, 16], strides = [1, 1]} : vector<48x192xf32> to vector<48x16xf32>
    %110 = vector.extract_strided_slice %72 {offsets = [0, 96], sizes = [48, 16], strides = [1, 1]} : vector<48x192xf32> to vector<48x16xf32>
    %111 = vector.extract_strided_slice %72 {offsets = [0, 160], sizes = [48, 16], strides = [1, 1]} : vector<48x192xf32> to vector<48x16xf32>
    %cst_44 = arith.constant dense<0.000000e+00> : vector<48x48xf32>
    %112 = tpu.matmul %109, %110, %cst_44 {dimension_numbers = #tpu.dot_dimension_numbers<[1], [1], [0], [0], [0, 0, 1, 0], [], []>} : vector<48x16xf32>, vector<48x16xf32>, vector<48x48xf32> -> vector<48x48xf32>
    %cst_45 = arith.constant 2.500000e-01 : f32
    %113 = vector.broadcast %cst_45 : f32 to vector<48x48xf32>
    %114 = arith.mulf %112, %113 : vector<48x48xf32>
    %115 = arith.addf %114, %46 : vector<48x48xf32>
    %cst_46 = arith.constant dense<0xFF800000> : vector<48xf32>
    %116 = vector.multi_reduction <maximumf>, %115, %cst_46 [1] : vector<48x48xf32> to vector<48xf32>
    %117 = vector.shape_cast %116 : vector<48xf32> to vector<48x1xf32>
    %118 = vector.broadcast %117 : vector<48x1xf32> to vector<48x48xf32>
    %119 = arith.subf %115, %118 : vector<48x48xf32>
    %120 = math.exp %119 : vector<48x48xf32>
    %cst_47 = arith.constant dense<0.000000e+00> : vector<48xf32>
    %121 = vector.multi_reduction <add>, %120, %cst_47 [1] : vector<48x48xf32> to vector<48xf32>
    %122 = vector.shape_cast %121 : vector<48xf32> to vector<48x1xf32>
    %123 = tpu.reciprocal %122 {approx = true} : vector<48x1xf32> -> vector<48x1xf32>
    %124 = vector.broadcast %123 : vector<48x1xf32> to vector<48x48xf32>
    %125 = arith.mulf %120, %124 : vector<48x48xf32>
    %cst_48 = arith.constant dense<0.000000e+00> : vector<48x16xf32>
    %126 = tpu.matmul %125, %111, %cst_48 {dimension_numbers = #tpu.dot_dimension_numbers<[1], [0], [0], [1], [0, 0, 1, 1], [], []>} : vector<48x48xf32>, vector<48x16xf32>, vector<48x16xf32> -> vector<48x16xf32>
    %127 = vector.extract_strided_slice %72 {offsets = [0, 48], sizes = [48, 16], strides = [1, 1]} : vector<48x192xf32> to vector<48x16xf32>
    %128 = vector.extract_strided_slice %72 {offsets = [0, 112], sizes = [48, 16], strides = [1, 1]} : vector<48x192xf32> to vector<48x16xf32>
    %129 = vector.extract_strided_slice %72 {offsets = [0, 176], sizes = [48, 16], strides = [1, 1]} : vector<48x192xf32> to vector<48x16xf32>
    %cst_49 = arith.constant dense<0.000000e+00> : vector<48x48xf32>
    %130 = tpu.matmul %127, %128, %cst_49 {dimension_numbers = #tpu.dot_dimension_numbers<[1], [1], [0], [0], [0, 0, 1, 0], [], []>} : vector<48x16xf32>, vector<48x16xf32>, vector<48x48xf32> -> vector<48x48xf32>
    %cst_50 = arith.constant 2.500000e-01 : f32
    %131 = vector.broadcast %cst_50 : f32 to vector<48x48xf32>
    %132 = arith.mulf %130, %131 : vector<48x48xf32>
    %133 = arith.addf %132, %46 : vector<48x48xf32>
    %cst_51 = arith.constant dense<0xFF800000> : vector<48xf32>
    %134 = vector.multi_reduction <maximumf>, %133, %cst_51 [1] : vector<48x48xf32> to vector<48xf32>
    %135 = vector.shape_cast %134 : vector<48xf32> to vector<48x1xf32>
    %136 = vector.broadcast %135 : vector<48x1xf32> to vector<48x48xf32>
    %137 = arith.subf %133, %136 : vector<48x48xf32>
    %138 = math.exp %137 : vector<48x48xf32>
    %cst_52 = arith.constant dense<0.000000e+00> : vector<48xf32>
    %139 = vector.multi_reduction <add>, %138, %cst_52 [1] : vector<48x48xf32> to vector<48xf32>
    %140 = vector.shape_cast %139 : vector<48xf32> to vector<48x1xf32>
    %141 = tpu.reciprocal %140 {approx = true} : vector<48x1xf32> -> vector<48x1xf32>
    %142 = vector.broadcast %141 : vector<48x1xf32> to vector<48x48xf32>
    %143 = arith.mulf %138, %142 : vector<48x48xf32>
    %cst_53 = arith.constant dense<0.000000e+00> : vector<48x16xf32>
    %144 = tpu.matmul %143, %129, %cst_53 {dimension_numbers = #tpu.dot_dimension_numbers<[1], [0], [0], [1], [0, 0, 1, 1], [], []>} : vector<48x48xf32>, vector<48x16xf32>, vector<48x16xf32> -> vector<48x16xf32>
    %145 = tpu.concatenate %90, %108, %126, %144 in 1 : vector<48x16xf32>, vector<48x16xf32>, vector<48x16xf32>, vector<48x16xf32> -> vector<48x64xf32>
    %c0_54 = arith.constant 0 : index
    %c0_55 = arith.constant 0 : index
    %c0_56 = arith.constant 0 : index
    %146 = vector.load %arg9[%c0_54, %c0_55, %c0_56] : memref<2x64x64xbf16, #tpu.memory_space<vmem>>, vector<1x64x64xbf16>
    %147 = vector.shape_cast %146 : vector<1x64x64xbf16> to vector<64x64xbf16>
    %148 = arith.truncf %145 : vector<48x64xf32> to vector<48x64xbf16>
    %cst_57 = arith.constant dense<0.000000e+00> : vector<48x64xf32>
    %149 = tpu.matmul %148, %147, %cst_57 {dimension_numbers = #tpu.dot_dimension_numbers<[1], [0], [0], [1], [0, 0, 1, 1], [], []>} : vector<48x64xbf16>, vector<64x64xbf16>, vector<48x64xf32> -> vector<48x64xf32>
    %150 = arith.addf %22, %149 : vector<48x64xf32>
    %c0_58 = arith.constant 0 : index
    %c0_59 = arith.constant 0 : index
    %c0_60 = arith.constant 0 : index
    %151 = vector.load %arg10[%c0_58, %c0_59, %c0_60] : memref<2x1x64xf32, #tpu.memory_space<vmem>>, vector<1x1x64xf32>
    %152 = vector.shape_cast %151 : vector<1x1x64xf32> to vector<1x64xf32>
    %153 = vector.broadcast %152 : vector<1x64xf32> to vector<48x64xf32>
    %154 = arith.addf %150, %153 : vector<48x64xf32>
    %cst_61 = arith.constant dense<0.000000e+00> : vector<48xf32>
    %155 = vector.multi_reduction <add>, %154, %cst_61 [1] : vector<48x64xf32> to vector<48xf32>
    %156 = vector.shape_cast %155 : vector<48xf32> to vector<48x1xf32>
    %cst_62 = arith.constant 6.400000e+01 : f32
    %157 = vector.broadcast %cst_62 : f32 to vector<48x1xf32>
    %158 = arith.divf %156, %157 : vector<48x1xf32>
    %159 = vector.broadcast %158 : vector<48x1xf32> to vector<48x64xf32>
    %160 = arith.subf %154, %159 : vector<48x64xf32>
    %161 = arith.mulf %160, %160 : vector<48x64xf32>
    %cst_63 = arith.constant dense<0.000000e+00> : vector<48xf32>
    %162 = vector.multi_reduction <add>, %161, %cst_63 [1] : vector<48x64xf32> to vector<48xf32>
    %163 = vector.shape_cast %162 : vector<48xf32> to vector<48x1xf32>
    %cst_64 = arith.constant 6.400000e+01 : f32
    %164 = vector.broadcast %cst_64 : f32 to vector<48x1xf32>
    %165 = arith.divf %163, %164 : vector<48x1xf32>
    %166 = vector.broadcast %158 : vector<48x1xf32> to vector<48x64xf32>
    %167 = arith.subf %154, %166 : vector<48x64xf32>
    %cst_65 = arith.constant 9.99999974E-6 : f32
    %168 = vector.broadcast %cst_65 : f32 to vector<48x1xf32>
    %169 = arith.addf %165, %168 : vector<48x1xf32>
    %170 = math.rsqrt %169 : vector<48x1xf32>
    %171 = vector.broadcast %170 : vector<48x1xf32> to vector<48x64xf32>
    %172 = arith.mulf %167, %171 : vector<48x64xf32>
    %c0_66 = arith.constant 0 : index
    %c0_67 = arith.constant 0 : index
    %c0_68 = arith.constant 0 : index
    %173 = vector.load %arg11[%c0_66, %c0_67, %c0_68] : memref<2x64x128xbf16, #tpu.memory_space<vmem>>, vector<1x64x128xbf16>
    %174 = vector.shape_cast %173 : vector<1x64x128xbf16> to vector<64x128xbf16>
    %175 = arith.truncf %172 : vector<48x64xf32> to vector<48x64xbf16>
    %cst_69 = arith.constant dense<0.000000e+00> : vector<48x128xf32>
    %176 = tpu.matmul %175, %174, %cst_69 {dimension_numbers = #tpu.dot_dimension_numbers<[1], [0], [0], [1], [0, 0, 1, 1], [], []>} : vector<48x64xbf16>, vector<64x128xbf16>, vector<48x128xf32> -> vector<48x128xf32>
    %c0_70 = arith.constant 0 : index
    %c0_71 = arith.constant 0 : index
    %c0_72 = arith.constant 0 : index
    %177 = vector.load %arg12[%c0_70, %c0_71, %c0_72] : memref<2x1x128xf32, #tpu.memory_space<vmem>>, vector<1x1x128xf32>
    %178 = vector.shape_cast %177 : vector<1x1x128xf32> to vector<1x128xf32>
    %179 = vector.broadcast %178 : vector<1x128xf32> to vector<48x128xf32>
    %180 = arith.addf %176, %179 : vector<48x128xf32>
    %181 = arith.mulf %180, %180 : vector<48x128xf32>
    %182 = arith.mulf %180, %181 : vector<48x128xf32>
    %cst_73 = arith.constant 4.471500e-02 : f32
    %183 = vector.broadcast %cst_73 : f32 to vector<48x128xf32>
    %184 = arith.mulf %183, %182 : vector<48x128xf32>
    %185 = arith.addf %180, %184 : vector<48x128xf32>
    %cst_74 = arith.constant 0.797884583 : f32
    %186 = vector.broadcast %cst_74 : f32 to vector<48x128xf32>
    %187 = arith.mulf %186, %185 : vector<48x128xf32>
    %188 = math.tanh %187 : vector<48x128xf32>
    %cst_75 = arith.constant 1.000000e+00 : f32
    %189 = vector.broadcast %cst_75 : f32 to vector<48x128xf32>
    %190 = arith.addf %189, %188 : vector<48x128xf32>
    %cst_76 = arith.constant 5.000000e-01 : f32
    %191 = vector.broadcast %cst_76 : f32 to vector<48x128xf32>
    %192 = arith.mulf %191, %190 : vector<48x128xf32>
    %193 = arith.mulf %180, %192 : vector<48x128xf32>
    %c0_77 = arith.constant 0 : index
    %c0_78 = arith.constant 0 : index
    %c0_79 = arith.constant 0 : index
    %194 = vector.load %arg13[%c0_77, %c0_78, %c0_79] : memref<2x128x64xbf16, #tpu.memory_space<vmem>>, vector<1x128x64xbf16>
    %195 = vector.shape_cast %194 : vector<1x128x64xbf16> to vector<128x64xbf16>
    %196 = arith.truncf %193 : vector<48x128xf32> to vector<48x128xbf16>
    %cst_80 = arith.constant dense<0.000000e+00> : vector<48x64xf32>
    %197 = tpu.matmul %196, %195, %cst_80 {dimension_numbers = #tpu.dot_dimension_numbers<[1], [0], [0], [1], [0, 0, 1, 1], [], []>} : vector<48x128xbf16>, vector<128x64xbf16>, vector<48x64xf32> -> vector<48x64xf32>
    %198 = arith.addf %154, %197 : vector<48x64xf32>
    %c0_81 = arith.constant 0 : index
    %c0_82 = arith.constant 0 : index
    %c0_83 = arith.constant 0 : index
    %199 = vector.load %arg14[%c0_81, %c0_82, %c0_83] : memref<2x1x64xf32, #tpu.memory_space<vmem>>, vector<1x1x64xf32>
    %200 = vector.shape_cast %199 : vector<1x1x64xf32> to vector<1x64xf32>
    %201 = vector.broadcast %200 : vector<1x64xf32> to vector<48x64xf32>
    %202 = arith.addf %198, %201 : vector<48x64xf32>
    %cst_84 = arith.constant dense<0.000000e+00> : vector<48xf32>
    %203 = vector.multi_reduction <add>, %202, %cst_84 [1] : vector<48x64xf32> to vector<48xf32>
    %204 = vector.shape_cast %203 : vector<48xf32> to vector<48x1xf32>
    %cst_85 = arith.constant 6.400000e+01 : f32
    %205 = vector.broadcast %cst_85 : f32 to vector<48x1xf32>
    %206 = arith.divf %204, %205 : vector<48x1xf32>
    %207 = vector.broadcast %206 : vector<48x1xf32> to vector<48x64xf32>
    %208 = arith.subf %202, %207 : vector<48x64xf32>
    %209 = arith.mulf %208, %208 : vector<48x64xf32>
    %cst_86 = arith.constant dense<0.000000e+00> : vector<48xf32>
    %210 = vector.multi_reduction <add>, %209, %cst_86 [1] : vector<48x64xf32> to vector<48xf32>
    %211 = vector.shape_cast %210 : vector<48xf32> to vector<48x1xf32>
    %cst_87 = arith.constant 6.400000e+01 : f32
    %212 = vector.broadcast %cst_87 : f32 to vector<48x1xf32>
    %213 = arith.divf %211, %212 : vector<48x1xf32>
    %214 = vector.broadcast %206 : vector<48x1xf32> to vector<48x64xf32>
    %215 = arith.subf %202, %214 : vector<48x64xf32>
    %cst_88 = arith.constant 9.99999974E-6 : f32
    %216 = vector.broadcast %cst_88 : f32 to vector<48x1xf32>
    %217 = arith.addf %213, %216 : vector<48x1xf32>
    %218 = math.rsqrt %217 : vector<48x1xf32>
    %219 = vector.broadcast %218 : vector<48x1xf32> to vector<48x64xf32>
    %220 = arith.mulf %215, %219 : vector<48x64xf32>
    %c1 = arith.constant 1 : index
    %c0_89 = arith.constant 0 : index
    %c0_90 = arith.constant 0 : index
    %221 = vector.load %arg7[%c1, %c0_89, %c0_90] : memref<2x64x192xbf16, #tpu.memory_space<vmem>>, vector<1x64x192xbf16>
    %222 = vector.shape_cast %221 : vector<1x64x192xbf16> to vector<64x192xbf16>
    %223 = arith.truncf %220 : vector<48x64xf32> to vector<48x64xbf16>
    %cst_91 = arith.constant dense<0.000000e+00> : vector<48x192xf32>
    %224 = tpu.matmul %223, %222, %cst_91 {dimension_numbers = #tpu.dot_dimension_numbers<[1], [0], [0], [1], [0, 0, 1, 1], [], []>} : vector<48x64xbf16>, vector<64x192xbf16>, vector<48x192xf32> -> vector<48x192xf32>
    %c1_92 = arith.constant 1 : index
    %c0_93 = arith.constant 0 : index
    %c0_94 = arith.constant 0 : index
    %225 = vector.load %arg8[%c1_92, %c0_93, %c0_94] : memref<2x1x192xf32, #tpu.memory_space<vmem>>, vector<1x1x192xf32>
    %226 = vector.shape_cast %225 : vector<1x1x192xf32> to vector<1x192xf32>
    %227 = vector.broadcast %226 : vector<1x192xf32> to vector<48x192xf32>
    %228 = arith.addf %224, %227 : vector<48x192xf32>
    %229 = vector.extract_strided_slice %228 {offsets = [0, 0], sizes = [48, 16], strides = [1, 1]} : vector<48x192xf32> to vector<48x16xf32>
    %230 = vector.extract_strided_slice %228 {offsets = [0, 64], sizes = [48, 16], strides = [1, 1]} : vector<48x192xf32> to vector<48x16xf32>
    %231 = vector.extract_strided_slice %228 {offsets = [0, 128], sizes = [48, 16], strides = [1, 1]} : vector<48x192xf32> to vector<48x16xf32>
    %cst_95 = arith.constant dense<0.000000e+00> : vector<48x48xf32>
    %232 = tpu.matmul %229, %230, %cst_95 {dimension_numbers = #tpu.dot_dimension_numbers<[1], [1], [0], [0], [0, 0, 1, 0], [], []>} : vector<48x16xf32>, vector<48x16xf32>, vector<48x48xf32> -> vector<48x48xf32>
    %cst_96 = arith.constant 2.500000e-01 : f32
    %233 = vector.broadcast %cst_96 : f32 to vector<48x48xf32>
    %234 = arith.mulf %232, %233 : vector<48x48xf32>
    %235 = arith.addf %234, %46 : vector<48x48xf32>
    %cst_97 = arith.constant dense<0xFF800000> : vector<48xf32>
    %236 = vector.multi_reduction <maximumf>, %235, %cst_97 [1] : vector<48x48xf32> to vector<48xf32>
    %237 = vector.shape_cast %236 : vector<48xf32> to vector<48x1xf32>
    %238 = vector.broadcast %237 : vector<48x1xf32> to vector<48x48xf32>
    %239 = arith.subf %235, %238 : vector<48x48xf32>
    %240 = math.exp %239 : vector<48x48xf32>
    %cst_98 = arith.constant dense<0.000000e+00> : vector<48xf32>
    %241 = vector.multi_reduction <add>, %240, %cst_98 [1] : vector<48x48xf32> to vector<48xf32>
    %242 = vector.shape_cast %241 : vector<48xf32> to vector<48x1xf32>
    %243 = tpu.reciprocal %242 {approx = true} : vector<48x1xf32> -> vector<48x1xf32>
    %244 = vector.broadcast %243 : vector<48x1xf32> to vector<48x48xf32>
    %245 = arith.mulf %240, %244 : vector<48x48xf32>
    %cst_99 = arith.constant dense<0.000000e+00> : vector<48x16xf32>
    %246 = tpu.matmul %245, %231, %cst_99 {dimension_numbers = #tpu.dot_dimension_numbers<[1], [0], [0], [1], [0, 0, 1, 1], [], []>} : vector<48x48xf32>, vector<48x16xf32>, vector<48x16xf32> -> vector<48x16xf32>
    %247 = vector.extract_strided_slice %228 {offsets = [0, 16], sizes = [48, 16], strides = [1, 1]} : vector<48x192xf32> to vector<48x16xf32>
    %248 = vector.extract_strided_slice %228 {offsets = [0, 80], sizes = [48, 16], strides = [1, 1]} : vector<48x192xf32> to vector<48x16xf32>
    %249 = vector.extract_strided_slice %228 {offsets = [0, 144], sizes = [48, 16], strides = [1, 1]} : vector<48x192xf32> to vector<48x16xf32>
    %cst_100 = arith.constant dense<0.000000e+00> : vector<48x48xf32>
    %250 = tpu.matmul %247, %248, %cst_100 {dimension_numbers = #tpu.dot_dimension_numbers<[1], [1], [0], [0], [0, 0, 1, 0], [], []>} : vector<48x16xf32>, vector<48x16xf32>, vector<48x48xf32> -> vector<48x48xf32>
    %cst_101 = arith.constant 2.500000e-01 : f32
    %251 = vector.broadcast %cst_101 : f32 to vector<48x48xf32>
    %252 = arith.mulf %250, %251 : vector<48x48xf32>
    %253 = arith.addf %252, %46 : vector<48x48xf32>
    %cst_102 = arith.constant dense<0xFF800000> : vector<48xf32>
    %254 = vector.multi_reduction <maximumf>, %253, %cst_102 [1] : vector<48x48xf32> to vector<48xf32>
    %255 = vector.shape_cast %254 : vector<48xf32> to vector<48x1xf32>
    %256 = vector.broadcast %255 : vector<48x1xf32> to vector<48x48xf32>
    %257 = arith.subf %253, %256 : vector<48x48xf32>
    %258 = math.exp %257 : vector<48x48xf32>
    %cst_103 = arith.constant dense<0.000000e+00> : vector<48xf32>
    %259 = vector.multi_reduction <add>, %258, %cst_103 [1] : vector<48x48xf32> to vector<48xf32>
    %260 = vector.shape_cast %259 : vector<48xf32> to vector<48x1xf32>
    %261 = tpu.reciprocal %260 {approx = true} : vector<48x1xf32> -> vector<48x1xf32>
    %262 = vector.broadcast %261 : vector<48x1xf32> to vector<48x48xf32>
    %263 = arith.mulf %258, %262 : vector<48x48xf32>
    %cst_104 = arith.constant dense<0.000000e+00> : vector<48x16xf32>
    %264 = tpu.matmul %263, %249, %cst_104 {dimension_numbers = #tpu.dot_dimension_numbers<[1], [0], [0], [1], [0, 0, 1, 1], [], []>} : vector<48x48xf32>, vector<48x16xf32>, vector<48x16xf32> -> vector<48x16xf32>
    %265 = vector.extract_strided_slice %228 {offsets = [0, 32], sizes = [48, 16], strides = [1, 1]} : vector<48x192xf32> to vector<48x16xf32>
    %266 = vector.extract_strided_slice %228 {offsets = [0, 96], sizes = [48, 16], strides = [1, 1]} : vector<48x192xf32> to vector<48x16xf32>
    %267 = vector.extract_strided_slice %228 {offsets = [0, 160], sizes = [48, 16], strides = [1, 1]} : vector<48x192xf32> to vector<48x16xf32>
    %cst_105 = arith.constant dense<0.000000e+00> : vector<48x48xf32>
    %268 = tpu.matmul %265, %266, %cst_105 {dimension_numbers = #tpu.dot_dimension_numbers<[1], [1], [0], [0], [0, 0, 1, 0], [], []>} : vector<48x16xf32>, vector<48x16xf32>, vector<48x48xf32> -> vector<48x48xf32>
    %cst_106 = arith.constant 2.500000e-01 : f32
    %269 = vector.broadcast %cst_106 : f32 to vector<48x48xf32>
    %270 = arith.mulf %268, %269 : vector<48x48xf32>
    %271 = arith.addf %270, %46 : vector<48x48xf32>
    %cst_107 = arith.constant dense<0xFF800000> : vector<48xf32>
    %272 = vector.multi_reduction <maximumf>, %271, %cst_107 [1] : vector<48x48xf32> to vector<48xf32>
    %273 = vector.shape_cast %272 : vector<48xf32> to vector<48x1xf32>
    %274 = vector.broadcast %273 : vector<48x1xf32> to vector<48x48xf32>
    %275 = arith.subf %271, %274 : vector<48x48xf32>
    %276 = math.exp %275 : vector<48x48xf32>
    %cst_108 = arith.constant dense<0.000000e+00> : vector<48xf32>
    %277 = vector.multi_reduction <add>, %276, %cst_108 [1] : vector<48x48xf32> to vector<48xf32>
    %278 = vector.shape_cast %277 : vector<48xf32> to vector<48x1xf32>
    %279 = tpu.reciprocal %278 {approx = true} : vector<48x1xf32> -> vector<48x1xf32>
    %280 = vector.broadcast %279 : vector<48x1xf32> to vector<48x48xf32>
    %281 = arith.mulf %276, %280 : vector<48x48xf32>
    %cst_109 = arith.constant dense<0.000000e+00> : vector<48x16xf32>
    %282 = tpu.matmul %281, %267, %cst_109 {dimension_numbers = #tpu.dot_dimension_numbers<[1], [0], [0], [1], [0, 0, 1, 1], [], []>} : vector<48x48xf32>, vector<48x16xf32>, vector<48x16xf32> -> vector<48x16xf32>
    %283 = vector.extract_strided_slice %228 {offsets = [0, 48], sizes = [48, 16], strides = [1, 1]} : vector<48x192xf32> to vector<48x16xf32>
    %284 = vector.extract_strided_slice %228 {offsets = [0, 112], sizes = [48, 16], strides = [1, 1]} : vector<48x192xf32> to vector<48x16xf32>
    %285 = vector.extract_strided_slice %228 {offsets = [0, 176], sizes = [48, 16], strides = [1, 1]} : vector<48x192xf32> to vector<48x16xf32>
    %cst_110 = arith.constant dense<0.000000e+00> : vector<48x48xf32>
    %286 = tpu.matmul %283, %284, %cst_110 {dimension_numbers = #tpu.dot_dimension_numbers<[1], [1], [0], [0], [0, 0, 1, 0], [], []>} : vector<48x16xf32>, vector<48x16xf32>, vector<48x48xf32> -> vector<48x48xf32>
    %cst_111 = arith.constant 2.500000e-01 : f32
    %287 = vector.broadcast %cst_111 : f32 to vector<48x48xf32>
    %288 = arith.mulf %286, %287 : vector<48x48xf32>
    %289 = arith.addf %288, %46 : vector<48x48xf32>
    %cst_112 = arith.constant dense<0xFF800000> : vector<48xf32>
    %290 = vector.multi_reduction <maximumf>, %289, %cst_112 [1] : vector<48x48xf32> to vector<48xf32>
    %291 = vector.shape_cast %290 : vector<48xf32> to vector<48x1xf32>
    %292 = vector.broadcast %291 : vector<48x1xf32> to vector<48x48xf32>
    %293 = arith.subf %289, %292 : vector<48x48xf32>
    %294 = math.exp %293 : vector<48x48xf32>
    %cst_113 = arith.constant dense<0.000000e+00> : vector<48xf32>
    %295 = vector.multi_reduction <add>, %294, %cst_113 [1] : vector<48x48xf32> to vector<48xf32>
    %296 = vector.shape_cast %295 : vector<48xf32> to vector<48x1xf32>
    %297 = tpu.reciprocal %296 {approx = true} : vector<48x1xf32> -> vector<48x1xf32>
    %298 = vector.broadcast %297 : vector<48x1xf32> to vector<48x48xf32>
    %299 = arith.mulf %294, %298 : vector<48x48xf32>
    %cst_114 = arith.constant dense<0.000000e+00> : vector<48x16xf32>
    %300 = tpu.matmul %299, %285, %cst_114 {dimension_numbers = #tpu.dot_dimension_numbers<[1], [0], [0], [1], [0, 0, 1, 1], [], []>} : vector<48x48xf32>, vector<48x16xf32>, vector<48x16xf32> -> vector<48x16xf32>
    %301 = tpu.concatenate %246, %264, %282, %300 in 1 : vector<48x16xf32>, vector<48x16xf32>, vector<48x16xf32>, vector<48x16xf32> -> vector<48x64xf32>
    %c1_115 = arith.constant 1 : index
    %c0_116 = arith.constant 0 : index
    %c0_117 = arith.constant 0 : index
    %302 = vector.load %arg9[%c1_115, %c0_116, %c0_117] : memref<2x64x64xbf16, #tpu.memory_space<vmem>>, vector<1x64x64xbf16>
    %303 = vector.shape_cast %302 : vector<1x64x64xbf16> to vector<64x64xbf16>
    %304 = arith.truncf %301 : vector<48x64xf32> to vector<48x64xbf16>
    %cst_118 = arith.constant dense<0.000000e+00> : vector<48x64xf32>
    %305 = tpu.matmul %304, %303, %cst_118 {dimension_numbers = #tpu.dot_dimension_numbers<[1], [0], [0], [1], [0, 0, 1, 1], [], []>} : vector<48x64xbf16>, vector<64x64xbf16>, vector<48x64xf32> -> vector<48x64xf32>
    %306 = arith.addf %202, %305 : vector<48x64xf32>
    %c1_119 = arith.constant 1 : index
    %c0_120 = arith.constant 0 : index
    %c0_121 = arith.constant 0 : index
    %307 = vector.load %arg10[%c1_119, %c0_120, %c0_121] : memref<2x1x64xf32, #tpu.memory_space<vmem>>, vector<1x1x64xf32>
    %308 = vector.shape_cast %307 : vector<1x1x64xf32> to vector<1x64xf32>
    %309 = vector.broadcast %308 : vector<1x64xf32> to vector<48x64xf32>
    %310 = arith.addf %306, %309 : vector<48x64xf32>
    %cst_122 = arith.constant dense<0.000000e+00> : vector<48xf32>
    %311 = vector.multi_reduction <add>, %310, %cst_122 [1] : vector<48x64xf32> to vector<48xf32>
    %312 = vector.shape_cast %311 : vector<48xf32> to vector<48x1xf32>
    %cst_123 = arith.constant 6.400000e+01 : f32
    %313 = vector.broadcast %cst_123 : f32 to vector<48x1xf32>
    %314 = arith.divf %312, %313 : vector<48x1xf32>
    %315 = vector.broadcast %314 : vector<48x1xf32> to vector<48x64xf32>
    %316 = arith.subf %310, %315 : vector<48x64xf32>
    %317 = arith.mulf %316, %316 : vector<48x64xf32>
    %cst_124 = arith.constant dense<0.000000e+00> : vector<48xf32>
    %318 = vector.multi_reduction <add>, %317, %cst_124 [1] : vector<48x64xf32> to vector<48xf32>
    %319 = vector.shape_cast %318 : vector<48xf32> to vector<48x1xf32>
    %cst_125 = arith.constant 6.400000e+01 : f32
    %320 = vector.broadcast %cst_125 : f32 to vector<48x1xf32>
    %321 = arith.divf %319, %320 : vector<48x1xf32>
    %322 = vector.broadcast %314 : vector<48x1xf32> to vector<48x64xf32>
    %323 = arith.subf %310, %322 : vector<48x64xf32>
    %cst_126 = arith.constant 9.99999974E-6 : f32
    %324 = vector.broadcast %cst_126 : f32 to vector<48x1xf32>
    %325 = arith.addf %321, %324 : vector<48x1xf32>
    %326 = math.rsqrt %325 : vector<48x1xf32>
    %327 = vector.broadcast %326 : vector<48x1xf32> to vector<48x64xf32>
    %328 = arith.mulf %323, %327 : vector<48x64xf32>
    %c1_127 = arith.constant 1 : index
    %c0_128 = arith.constant 0 : index
    %c0_129 = arith.constant 0 : index
    %329 = vector.load %arg11[%c1_127, %c0_128, %c0_129] : memref<2x64x128xbf16, #tpu.memory_space<vmem>>, vector<1x64x128xbf16>
    %330 = vector.shape_cast %329 : vector<1x64x128xbf16> to vector<64x128xbf16>
    %331 = arith.truncf %328 : vector<48x64xf32> to vector<48x64xbf16>
    %cst_130 = arith.constant dense<0.000000e+00> : vector<48x128xf32>
    %332 = tpu.matmul %331, %330, %cst_130 {dimension_numbers = #tpu.dot_dimension_numbers<[1], [0], [0], [1], [0, 0, 1, 1], [], []>} : vector<48x64xbf16>, vector<64x128xbf16>, vector<48x128xf32> -> vector<48x128xf32>
    %c1_131 = arith.constant 1 : index
    %c0_132 = arith.constant 0 : index
    %c0_133 = arith.constant 0 : index
    %333 = vector.load %arg12[%c1_131, %c0_132, %c0_133] : memref<2x1x128xf32, #tpu.memory_space<vmem>>, vector<1x1x128xf32>
    %334 = vector.shape_cast %333 : vector<1x1x128xf32> to vector<1x128xf32>
    %335 = vector.broadcast %334 : vector<1x128xf32> to vector<48x128xf32>
    %336 = arith.addf %332, %335 : vector<48x128xf32>
    %337 = arith.mulf %336, %336 : vector<48x128xf32>
    %338 = arith.mulf %336, %337 : vector<48x128xf32>
    %cst_134 = arith.constant 4.471500e-02 : f32
    %339 = vector.broadcast %cst_134 : f32 to vector<48x128xf32>
    %340 = arith.mulf %339, %338 : vector<48x128xf32>
    %341 = arith.addf %336, %340 : vector<48x128xf32>
    %cst_135 = arith.constant 0.797884583 : f32
    %342 = vector.broadcast %cst_135 : f32 to vector<48x128xf32>
    %343 = arith.mulf %342, %341 : vector<48x128xf32>
    %344 = math.tanh %343 : vector<48x128xf32>
    %cst_136 = arith.constant 1.000000e+00 : f32
    %345 = vector.broadcast %cst_136 : f32 to vector<48x128xf32>
    %346 = arith.addf %345, %344 : vector<48x128xf32>
    %cst_137 = arith.constant 5.000000e-01 : f32
    %347 = vector.broadcast %cst_137 : f32 to vector<48x128xf32>
    %348 = arith.mulf %347, %346 : vector<48x128xf32>
    %349 = arith.mulf %336, %348 : vector<48x128xf32>
    %c1_138 = arith.constant 1 : index
    %c0_139 = arith.constant 0 : index
    %c0_140 = arith.constant 0 : index
    %350 = vector.load %arg13[%c1_138, %c0_139, %c0_140] : memref<2x128x64xbf16, #tpu.memory_space<vmem>>, vector<1x128x64xbf16>
    %351 = vector.shape_cast %350 : vector<1x128x64xbf16> to vector<128x64xbf16>
    %352 = arith.truncf %349 : vector<48x128xf32> to vector<48x128xbf16>
    %cst_141 = arith.constant dense<0.000000e+00> : vector<48x64xf32>
    %353 = tpu.matmul %352, %351, %cst_141 {dimension_numbers = #tpu.dot_dimension_numbers<[1], [0], [0], [1], [0, 0, 1, 1], [], []>} : vector<48x128xbf16>, vector<128x64xbf16>, vector<48x64xf32> -> vector<48x64xf32>
    %354 = arith.addf %310, %353 : vector<48x64xf32>
    %c1_142 = arith.constant 1 : index
    %c0_143 = arith.constant 0 : index
    %c0_144 = arith.constant 0 : index
    %355 = vector.load %arg14[%c1_142, %c0_143, %c0_144] : memref<2x1x64xf32, #tpu.memory_space<vmem>>, vector<1x1x64xf32>
    %356 = vector.shape_cast %355 : vector<1x1x64xf32> to vector<1x64xf32>
    %357 = vector.broadcast %356 : vector<1x64xf32> to vector<48x64xf32>
    %358 = arith.addf %354, %357 : vector<48x64xf32>
    %359 = vector.extract_strided_slice %358 {offsets = [0, 0], sizes = [16, 64], strides = [1, 1]} : vector<48x64xf32> to vector<16x64xf32>
    %cst_145 = arith.constant dense<0.000000e+00> : vector<16xf32>
    %360 = vector.multi_reduction <add>, %359, %cst_145 [1] : vector<16x64xf32> to vector<16xf32>
    %361 = vector.shape_cast %360 : vector<16xf32> to vector<16x1xf32>
    %cst_146 = arith.constant 6.400000e+01 : f32
    %362 = vector.broadcast %cst_146 : f32 to vector<16x1xf32>
    %363 = arith.divf %361, %362 : vector<16x1xf32>
    %364 = vector.broadcast %363 : vector<16x1xf32> to vector<16x64xf32>
    %365 = arith.subf %359, %364 : vector<16x64xf32>
    %366 = arith.mulf %365, %365 : vector<16x64xf32>
    %cst_147 = arith.constant dense<0.000000e+00> : vector<16xf32>
    %367 = vector.multi_reduction <add>, %366, %cst_147 [1] : vector<16x64xf32> to vector<16xf32>
    %368 = vector.shape_cast %367 : vector<16xf32> to vector<16x1xf32>
    %cst_148 = arith.constant 6.400000e+01 : f32
    %369 = vector.broadcast %cst_148 : f32 to vector<16x1xf32>
    %370 = arith.divf %368, %369 : vector<16x1xf32>
    %371 = vector.broadcast %363 : vector<16x1xf32> to vector<16x64xf32>
    %372 = arith.subf %359, %371 : vector<16x64xf32>
    %cst_149 = arith.constant 9.99999974E-6 : f32
    %373 = vector.broadcast %cst_149 : f32 to vector<16x1xf32>
    %374 = arith.addf %370, %373 : vector<16x1xf32>
    %375 = math.rsqrt %374 : vector<16x1xf32>
    %376 = vector.broadcast %375 : vector<16x1xf32> to vector<16x64xf32>
    %377 = arith.mulf %372, %376 : vector<16x64xf32>
    %c0_150 = arith.constant 0 : index
    %c0_151 = arith.constant 0 : index
    %378 = vector.load %arg15[%c0_150, %c0_151] : memref<64x128xbf16, #tpu.memory_space<vmem>>, vector<64x128xbf16>
    %379 = arith.truncf %377 : vector<16x64xf32> to vector<16x64xbf16>
    %cst_152 = arith.constant dense<0.000000e+00> : vector<16x128xf32>
    %380 = tpu.matmul %379, %378, %cst_152 {dimension_numbers = #tpu.dot_dimension_numbers<[1], [0], [0], [1], [0, 0, 1, 1], [], []>} : vector<16x64xbf16>, vector<64x128xbf16>, vector<16x128xf32> -> vector<16x128xf32>
    %c0_153 = arith.constant 0 : index
    %c0_154 = arith.constant 0 : index
    %381 = vector.load %arg16[%c0_153, %c0_154] : memref<1x128xf32, #tpu.memory_space<vmem>>, vector<1x128xf32>
    %382 = vector.broadcast %381 : vector<1x128xf32> to vector<16x128xf32>
    %383 = arith.addf %380, %382 : vector<16x128xf32>
    %cst_155 = arith.constant dense<0.000000e+00> : vector<16xf32>
    %384 = vector.multi_reduction <add>, %383, %cst_155 [1] : vector<16x128xf32> to vector<16xf32>
    %385 = vector.shape_cast %384 : vector<16xf32> to vector<16x1xf32>
    %cst_156 = arith.constant 1.280000e+02 : f32
    %386 = vector.broadcast %cst_156 : f32 to vector<16x1xf32>
    %387 = arith.divf %385, %386 : vector<16x1xf32>
    %388 = vector.broadcast %387 : vector<16x1xf32> to vector<16x128xf32>
    %389 = arith.subf %383, %388 : vector<16x128xf32>
    %390 = arith.mulf %389, %389 : vector<16x128xf32>
    %cst_157 = arith.constant dense<0.000000e+00> : vector<16xf32>
    %391 = vector.multi_reduction <add>, %390, %cst_157 [1] : vector<16x128xf32> to vector<16xf32>
    %392 = vector.shape_cast %391 : vector<16xf32> to vector<16x1xf32>
    %cst_158 = arith.constant 1.280000e+02 : f32
    %393 = vector.broadcast %cst_158 : f32 to vector<16x1xf32>
    %394 = arith.divf %392, %393 : vector<16x1xf32>
    %395 = vector.broadcast %387 : vector<16x1xf32> to vector<16x128xf32>
    %396 = arith.subf %383, %395 : vector<16x128xf32>
    %cst_159 = arith.constant 9.99999974E-6 : f32
    %397 = vector.broadcast %cst_159 : f32 to vector<16x1xf32>
    %398 = arith.addf %394, %397 : vector<16x1xf32>
    %399 = math.rsqrt %398 : vector<16x1xf32>
    %400 = vector.broadcast %399 : vector<16x1xf32> to vector<16x128xf32>
    %401 = arith.mulf %396, %400 : vector<16x128xf32>
    tpu.wait_dma2 semaphore(%arg21 : memref<!tpu.dma_semaphore, #tpu.memory_space<semaphore_mem>>) src(%arg18 : memref<128x1024xbf16, #tpu.memory_space<any>>) dst(%arg20 : memref<128x1024xbf16, #tpu.memory_space<vmem>>)
    %c0_160 = arith.constant 0 : index
    %c0_161 = arith.constant 0 : index
    %402 = vector.load %arg20[%c0_160, %c0_161] : memref<128x1024xbf16, #tpu.memory_space<vmem>>, vector<128x1024xbf16>
    %403 = arith.truncf %401 : vector<16x128xf32> to vector<16x128xbf16>
    %cst_162 = arith.constant dense<0.000000e+00> : vector<16x1024xf32>
    %404 = tpu.matmul %403, %402, %cst_162 {dimension_numbers = #tpu.dot_dimension_numbers<[1], [0], [0], [1], [0, 0, 1, 1], [], []>} : vector<16x128xbf16>, vector<128x1024xbf16>, vector<16x1024xf32> -> vector<16x1024xf32>
    %c0_163 = arith.constant 0 : index
    %c0_164 = arith.constant 0 : index
    %405 = vector.load %arg17[%c0_163, %c0_164] : memref<1x1024xf32, #tpu.memory_space<vmem>>, vector<1x1024xf32>
    %406 = vector.broadcast %405 : vector<1x1024xf32> to vector<16x1024xf32>
    %407 = arith.addf %404, %406 : vector<16x1024xf32>
    %c0_165 = arith.constant 0 : index
    %c0_166 = arith.constant 0 : index
    %408 = vector.load %arg19[%c0_165, %c0_166] : memref<16x1024xf32, #tpu.memory_space<vmem>>, vector<16x1024xf32>
    tpu.vector_store %arg19[%c0_165, %c0_166], %407 {strides = array<i32>} : memref<16x1024xf32, #tpu.memory_space<vmem>>, vector<16x1024xf32>,
    return
  }
}

</mosaic_0001>

<llo_original>
// kernel: token_pose_b_forward.1
$region0: #{token_pose_b_forward.1}
  #allocation0 [shape = 'u32[]', space=smem, size = 0x4, offset = 0x4, fixed_abs, tag = 'smem constant byte address 0x4 - core index']
  #allocation1 [shape = 'u32[144,128]{1,0:T(1,128)}', space=vmem, size = 0x12000, scoped, tag = 'internal scratch']
  #allocation2 [shape = 'bf16[128,1024]{1,0:T(16,128)(2,1)}', space=vmem, size = 0x40000, scoped, tag = 'scratch operand']
  #allocation3 [shape = 's32[1]{0}', space=sflag, size = 0x4, scoped, tag = 'scratch operand']
  #allocation4 [shape = 's32[]', space=sflag, size = 0x4, offset = 0, fixed_abs, tag = 'sflag constant byte address 0x0 - dummy sync flag']
  %s0 = inlined_call_operand.vmem [shape: bf16[128,192], index: 0, kind: input, shape index: {}]
  %s1 = inlined_call_operand.vmem [shape: bf16[192,128], index: 1, kind: input, shape index: {}]
  %s2 = inlined_call_operand.vmem [shape: f32[1,512], index: 2, kind: input, shape index: {}]
  %s3 = inlined_call_operand.vmem [shape: bf16[512,64], index: 3, kind: input, shape index: {}]
  %s4 = inlined_call_operand.vmem [shape: f32[1,64], index: 4, kind: input, shape index: {}]
  %s5 = inlined_call_operand.vmem [shape: f32[16,64], index: 5, kind: input, shape index: {}]
  %s6 = inlined_call_operand.vmem [shape: f32[32,64], index: 6, kind: input, shape index: {}]
  %s7 = inlined_call_operand.vmem [shape: bf16[2,64,192], index: 7, kind: input, shape index: {}]
  %s8 = inlined_call_operand.vmem [shape: f32[2,1,192], index: 8, kind: input, shape index: {}]
  %s9 = inlined_call_operand.vmem [shape: bf16[2,64,64], index: 9, kind: input, shape index: {}]
  %s10 = inlined_call_operand.vmem [shape: f32[2,1,64], index: 10, kind: input, shape index: {}]
  %s11 = inlined_call_operand.vmem [shape: bf16[2,64,128], index: 11, kind: input, shape index: {}]
  %s12 = inlined_call_operand.vmem [shape: f32[2,1,128], index: 12, kind: input, shape index: {}]
  %s13 = inlined_call_operand.vmem [shape: bf16[2,128,64], index: 13, kind: input, shape index: {}]
  %s14 = inlined_call_operand.vmem [shape: f32[2,1,64], index: 14, kind: input, shape index: {}]
  %s15 = inlined_call_operand.vmem [shape: bf16[64,128], index: 15, kind: input, shape index: {}]
  %s16 = inlined_call_operand.vmem [shape: f32[1,128], index: 16, kind: input, shape index: {}]
  %s17 = inlined_call_operand.vmem [shape: f32[1,1024], index: 17, kind: input, shape index: {}]
  %s18 = inlined_call_operand.vmem [shape: bf16[128,1024], index: 18, kind: input, shape index: {}]
  %s19 = inlined_call_operand.vmem [shape: f32[16,1024], index: 19, kind: output, shape index: {}]
  %s20 = sld [smem:[#allocation0]]
  $region119: #{token_pose_b_forward.1} parent=0
    _
  %s22 = ssub.s32 1, %s20
  %s23 = scalar_select 0, %s22, %s20
  // Predicated region
  $region2: #{token_pose_b_forward.1} parent=0 // pred_check
    _
  $region3: #{token_pose_b_forward.1} parent=0 // pred_check_branch
    %25 = sbr.rel (0) target = $region5
  $region4: #{token_pose_b_forward.1} parent=0 // pred_region
    _
  $region5: #{token_pose_b_forward.1} parent=0 // pred_fallthru
    _
  // Predicated region
  $region6: #{token_pose_b_forward.1} parent=0 // pred_check
    _
  $region7: #{token_pose_b_forward.1} parent=0 // pred_check_branch
    %27 = sbr.rel (0) target = $region9
  $region8: #{token_pose_b_forward.1} parent=0 // pred_region
    _
  $region9: #{token_pose_b_forward.1} parent=0 // pred_fallthru
    _
  // Predicated region
  $region10: #{token_pose_b_forward.1} parent=0 // pred_check
    _
  $region11: #{token_pose_b_forward.1} parent=0 // pred_check_branch
    %29 = sbr.rel (0) target = $region13
  $region12: #{token_pose_b_forward.1} parent=0 // pred_region
    _
  $region13: #{token_pose_b_forward.1} parent=0 // pred_fallthru
    _
  // Predicated region
  $region14: #{token_pose_b_forward.1} parent=0 // pred_check
    _
  $region15: #{token_pose_b_forward.1} parent=0 // pred_check_branch
    %31 = sbr.rel (0) target = $region17
  $region16: #{token_pose_b_forward.1} parent=0 // pred_region
    _
  $region17: #{token_pose_b_forward.1} parent=0 // pred_fallthru
    _
  // Predicated region
  $region18: #{token_pose_b_forward.1} parent=0 // pred_check
    _
  $region19: #{token_pose_b_forward.1} parent=0 // pred_check_branch
    %33 = sbr.rel (0) target = $region21
  $region20: #{token_pose_b_forward.1} parent=0 // pred_region
    _
  $region21: #{token_pose_b_forward.1} parent=0 // pred_fallthru
    _
  // Predicated region
  $region22: #{token_pose_b_forward.1} parent=0 // pred_check
    _
  $region23: #{token_pose_b_forward.1} parent=0 // pred_check_branch
    %35 = sbr.rel (0) target = $region25
  $region24: #{token_pose_b_forward.1} parent=0 // pred_region
    _
  $region25: #{token_pose_b_forward.1} parent=0 // pred_fallthru
    _
  // Predicated region
  $region26: #{token_pose_b_forward.1} parent=0 // pred_check
    _
  $region27: #{token_pose_b_forward.1} parent=0 // pred_check_branch
    %37 = sbr.rel (0) target = $region29
  $region28: #{token_pose_b_forward.1} parent=0 // pred_region
    _
  $region29: #{token_pose_b_forward.1} parent=0 // pred_fallthru
    _
  // Predicated region
  $region30: #{token_pose_b_forward.1} parent=0 // pred_check
    _
  $region31: #{token_pose_b_forward.1} parent=0 // pred_check_branch
    %39 = sbr.rel (0) target = $region33
  $region32: #{token_pose_b_forward.1} parent=0 // pred_region
    _
  $region33: #{token_pose_b_forward.1} parent=0 // pred_fallthru
    _
  // Predicated region
  $region34: #{token_pose_b_forward.1} parent=0 // pred_check
    _
  $region35: #{token_pose_b_forward.1} parent=0 // pred_check_branch
    %41 = sbr.rel (0) target = $region37
  $region36: #{token_pose_b_forward.1} parent=0 // pred_region
    _
  $region37: #{token_pose_b_forward.1} parent=0 // pred_fallthru
    _
  // Predicated region
  $region38: #{token_pose_b_forward.1} parent=0 // pred_check
    _
  $region39: #{token_pose_b_forward.1} parent=0 // pred_check_branch
    %43 = sbr.rel (0) target = $region41
  $region40: #{token_pose_b_forward.1} parent=0 // pred_region
    _
  $region41: #{token_pose_b_forward.1} parent=0 // pred_fallthru
    _
  // Predicated region
  $region42: #{token_pose_b_forward.1} parent=0 // pred_check
    _
  $region43: #{token_pose_b_forward.1} parent=0 // pred_check_branch
    %45 = sbr.rel (0) target = $region45
  $region44: #{token_pose_b_forward.1} parent=0 // pred_region
    _
  $region45: #{token_pose_b_forward.1} parent=0 // pred_fallthru
    _
  // Predicated region
  $region46: #{token_pose_b_forward.1} parent=0 // pred_check
    _
  $region47: #{token_pose_b_forward.1} parent=0 // pred_check_branch
    %47 = sbr.rel (0) target = $region49
  $region48: #{token_pose_b_forward.1} parent=0 // pred_region
    _
  $region49: #{token_pose_b_forward.1} parent=0 // pred_fallthru
    _
  // Predicated region
  $region50: #{token_pose_b_forward.1} parent=0 // pred_check
    _
  $region51: #{token_pose_b_forward.1} parent=0 // pred_check_branch
    %49 = sbr.rel (0) target = $region53
  $region52: #{token_pose_b_forward.1} parent=0 // pred_region
    _
  $region53: #{token_pose_b_forward.1} parent=0 // pred_fallthru
    _
  // Predicated region
  $region54: #{token_pose_b_forward.1} parent=0 // pred_check
    _
  $region55: #{token_pose_b_forward.1} parent=0 // pred_check_branch
    %51 = sbr.rel (0) target = $region57
  $region56: #{token_pose_b_forward.1} parent=0 // pred_region
    _
  $region57: #{token_pose_b_forward.1} parent=0 // pred_fallthru
    _
  // Predicated region
  $region58: #{token_pose_b_forward.1} parent=0 // pred_check
    _
  $region59: #{token_pose_b_forward.1} parent=0 // pred_check_branch
    %53 = sbr.rel (0) target = $region61
  $region60: #{token_pose_b_forward.1} parent=0 // pred_region
    _
  $region61: #{token_pose_b_forward.1} parent=0 // pred_fallthru
    _
  // Predicated region
  $region62: #{token_pose_b_forward.1} parent=0 // pred_check
    _
  $region63: #{token_pose_b_forward.1} parent=0 // pred_check_branch
    %55 = sbr.rel (0) target = $region65
  $region64: #{token_pose_b_forward.1} parent=0 // pred_region
    _
  $region65: #{token_pose_b_forward.1} parent=0 // pred_fallthru
    _
  // Predicated region
  $region66: #{token_pose_b_forward.1} parent=0 // pred_check
    _
  $region67: #{token_pose_b_forward.1} parent=0 // pred_check_branch
    %57 = sbr.rel (0) target = $region69
  $region68: #{token_pose_b_forward.1} parent=0 // pred_region
    _
  $region69: #{token_pose_b_forward.1} parent=0 // pred_fallthru
    _
  // Predicated region
  $region70: #{token_pose_b_forward.1} parent=0 // pred_check
    _
  $region71: #{token_pose_b_forward.1} parent=0 // pred_check_branch
    %59 = sbr.rel (0) target = $region73
  $region72: #{token_pose_b_forward.1} parent=0 // pred_region
    _
  $region73: #{token_pose_b_forward.1} parent=0 // pred_fallthru
    _
  %p62 = scmp.lt.u32.totalorder 4, 8
  %p63 = pneg %p62
  // Predicated region
  $region74: #{token_pose_b_forward.1} parent=0 // pred_check
    _
  $region75: #{token_pose_b_forward.1} parent=0 // pred_check_branch
    %65 = sbr.rel (%p62) target = $region77
  $region76: #{token_pose_b_forward.1} parent=0 // pred_region
    %s334 = sand.u32 4, 7
    %p335 = scmp.eq.s32.totalorder %s334, 0
    %p336 = pneg %p335
    // Predicated region
    $region89: #{token_pose_b_forward.1} parent=76 // pred_check
      _
    $region90: #{token_pose_b_forward.1} parent=76 // pred_check_branch
      %338 = sbr.rel (%p335) target = $region92
    $region91: #{token_pose_b_forward.1} parent=76 // pred_region
      %s339 = sand.u32 4, 7
      %s340 = ssub.s32 4, %s339
      %s341 = scalar_lea.vmem %s18, %s340
      %s342 = ssub.s32 4, %s339
      %s343 = scalar_lea.vmem [#allocation2], %s342
      loop: start=0, step=1, limit=1
      $region93: #{token_pose_b_forward.1} parent=91 // loop_pre_header
        _
      $region94: #{token_pose_b_forward.1} parent=91 // loop_header
        %s345 = sphi 0, %s349
        %p346 = scmp.ge.s32.totalorder %s345, 1
        %s350 = sphi %s18, %s18
        %s351 = sphi [#allocation2], [#allocation2]
      $region95: #{token_pose_b_forward.1} parent=91 // loop_header_branch
        %348 = sbr.rel (%p346) target = $region99
      $region96: #{token_pose_b_forward.1} parent=91 // loop_body
        _
      $region97: #{token_pose_b_forward.1} parent=91 // loop_footer
        %s349 = sadd.s32 1, %s345
      $region98: #{token_pose_b_forward.1} parent=91 // loop_footer_branch
        %344 = sbr.rel target = $region94
      $region99: #{token_pose_b_forward.1} parent=91 // loop_exit
        _
      %s352 = sshllo.u32 0, %s339
      loop: start=0, step=1, limit=1
      $region100: #{token_pose_b_forward.1} parent=91 // loop_pre_header
        _
      $region101: #{token_pose_b_forward.1} parent=91 // loop_header
        %s354 = sphi 0, %s358
        %p355 = scmp.ge.s32.totalorder %s354, 1
        %s359 = sphi %s341, %s341
        %s360 = sphi %s343, %s343
      $region102: #{token_pose_b_forward.1} parent=91 // loop_header_branch
        %357 = sbr.rel (%p355) target = $region106
      $region103: #{token_pose_b_forward.1} parent=91 // loop_body
        %v361 = vld [vmem:[%s359] sm:%s352]
        %362 = vst [vmem:[%s360] sm:%s352] %v361
        %v363 = vld [vmem:[%s359 + $0x20] sm:%s352]
        %364 = vst [vmem:[%s360 + $0x4] sm:%s352] %v363
        %v365 = vld [vmem:[%s359 + $0x4] sm:%s352]
        %366 = vst [vmem:[%s360 + $0x8] sm:%s352] %v365
        %v367 = vld [vmem:[%s359 + $0x24] sm:%s352]
        %368 = vst [vmem:[%s360 + $0xc] sm:%s352] %v367
        %v369 = vld [vmem:[%s359 + $0x8] sm:%s352]
        %370 = vst [vmem:[%s360 + $0x10] sm:%s352] %v369
        %v371 = vld [vmem:[%s359 + $0x28] sm:%s352]
        %372 = vst [vmem:[%s360 + $0x14] sm:%s352] %v371
        %v373 = vld [vmem:[%s359 + $0xc] sm:%s352]
        %374 = vst [vmem:[%s360 + $0x18] sm:%s352] %v373
        %v375 = vld [vmem:[%s359 + $0x2c] sm:%s352]
        %376 = vst [vmem:[%s360 + $0x1c] sm:%s352] %v375
        %v377 = vld [vmem:[%s359 + $0x10] sm:%s352]
        %378 = vst [vmem:[%s360 + $0x20] sm:%s352] %v377
        %v379 = vld [vmem:[%s359 + $0x30] sm:%s352]
        %380 = vst [vmem:[%s360 + $0x24] sm:%s352] %v379
        %v381 = vld [vmem:[%s359 + $0x14] sm:%s352]
        %382 = vst [vmem:[%s360 + $0x28] sm:%s352] %v381
        %v383 = vld [vmem:[%s359 + $0x34] sm:%s352]
        %384 = vst [vmem:[%s360 + $0x2c] sm:%s352] %v383
        %v385 = vld [vmem:[%s359 + $0x18] sm:%s352]
        %386 = vst [vmem:[%s360 + $0x30] sm:%s352] %v385
        %v387 = vld [vmem:[%s359 + $0x38] sm:%s352]
        %388 = vst [vmem:[%s360 + $0x34] sm:%s352] %v387
        %v389 = vld [vmem:[%s359 + $0x1c] sm:%s352]
        %390 = vst [vmem:[%s360 + $0x38] sm:%s352] %v389
        %v391 = vld [vmem:[%s359 + $0x3c] sm:%s352]
        %392 = vst [vmem:[%s360 + $0x3c] sm:%s352] %v391
        %v393 = vld [vmem:[%s359 + $0x40] sm:%s352]
        %394 = vst [vmem:[%s360 + $0x40] sm:%s352] %v393
        %v395 = vld [vmem:[%s359 + $0x60] sm:%s352]
        %396 = vst [vmem:[%s360 + $0x44] sm:%s352] %v395
        %v397 = vld [vmem:[%s359 + $0x44] sm:%s352]
        %398 = vst [vmem:[%s360 + $0x48] sm:%s352] %v397
        %v399 = vld [vmem:[%s359 + $0x64] sm:%s352]
        %400 = vst [vmem:[%s360 + $0x4c] sm:%s352] %v399
        %v401 = vld [vmem:[%s359 + $0x48] sm:%s352]
        %402 = vst [vmem:[%s360 + $0x50] sm:%s352] %v401
        %v403 = vld [vmem:[%s359 + $0x68] sm:%s352]
        %404 = vst [vmem:[%s360 + $0x54] sm:%s352] %v403
        %v405 = vld [vmem:[%s359 + $0x4c] sm:%s352]
        %406 = vst [vmem:[%s360 + $0x58] sm:%s352] %v405
        %v407 = vld [vmem:[%s359 + $0x6c] sm:%s352]
        %408 = vst [vmem:[%s360 + $0x5c] sm:%s352] %v407
        %v409 = vld [vmem:[%s359 + $0x50] sm:%s352]
        %410 = vst [vmem:[%s360 + $0x60] sm:%s352] %v409
        %v411 = vld [vmem:[%s359 + $0x70] sm:%s352]
        %412 = vst [vmem:[%s360 + $0x64] sm:%s352] %v411
        %v413 = vld [vmem:[%s359 + $0x54] sm:%s352]
        %414 = vst [vmem:[%s360 + $0x68] sm:%s352] %v413
        %v415 = vld [vmem:[%s359 + $0x74] sm:%s352]
        %416 = vst [vmem:[%s360 + $0x6c] sm:%s352] %v415
        %v417 = vld [vmem:[%s359 + $0x58] sm:%s352]
        %418 = vst [vmem:[%s360 + $0x70] sm:%s352] %v417
        %v419 = vld [vmem:[%s359 + $0x78] sm:%s352]
        %420 = vst [vmem:[%s360 + $0x74] sm:%s352] %v419
        %v421 = vld [vmem:[%s359 + $0x5c] sm:%s352]
        %422 = vst [vmem:[%s360 + $0x78] sm:%s352] %v421
        %v423 = vld [vmem:[%s359 + $0x7c] sm:%s352]
        %424 = vst [vmem:[%s360 + $0x7c] sm:%s352] %v423
        %v425 = vld [vmem:[%s359 + $0x80] sm:%s352]
        %426 = vst [vmem:[%s360 + $0x80] sm:%s352] %v425
        %v427 = vld [vmem:[%s359 + $0xa0] sm:%s352]
        %428 = vst [vmem:[%s360 + $0x84] sm:%s352] %v427
        %v429 = vld [vmem:[%s359 + $0x84] sm:%s352]
        %430 = vst [vmem:[%s360 + $0x88] sm:%s352] %v429
        %v431 = vld [vmem:[%s359 + $0xa4] sm:%s352]
        %432 = vst [vmem:[%s360 + $0x8c] sm:%s352] %v431
        %v433 = vld [vmem:[%s359 + $0x88] sm:%s352]
        %434 = vst [vmem:[%s360 + $0x90] sm:%s352] %v433
        %v435 = vld [vmem:[%s359 + $0xa8] sm:%s352]
        %436 = vst [vmem:[%s360 + $0x94] sm:%s352] %v435
        %v437 = vld [vmem:[%s359 + $0x8c] sm:%s352]
        %438 = vst [vmem:[%s360 + $0x98] sm:%s352] %v437
        %v439 = vld [vmem:[%s359 + $0xac] sm:%s352]
        %440 = vst [vmem:[%s360 + $0x9c] sm:%s352] %v439
        %v441 = vld [vmem:[%s359 + $0x90] sm:%s352]
        %442 = vst [vmem:[%s360 + $0xa0] sm:%s352] %v441
        %v443 = vld [vmem:[%s359 + $0xb0] sm:%s352]
        %444 = vst [vmem:[%s360 + $0xa4] sm:%s352] %v443
        %v445 = vld [vmem:[%s359 + $0x94] sm:%s352]
        %446 = vst [vmem:[%s360 + $0xa8] sm:%s352] %v445
        %v447 = vld [vmem:[%s359 + $0xb4] sm:%s352]
        %448 = vst [vmem:[%s360 + $0xac] sm:%s352] %v447
        %v449 = vld [vmem:[%s359 + $0x98] sm:%s352]
        %450 = vst [vmem:[%s360 + $0xb0] sm:%s352] %v449
        %v451 = vld [vmem:[%s359 + $0xb8] sm:%s352]
        %452 = vst [vmem:[%s360 + $0xb4] sm:%s352] %v451
        %v453 = vld [vmem:[%s359 + $0x9c] sm:%s352]
        %454 = vst [vmem:[%s360 + $0xb8] sm:%s352] %v453
        %v455 = vld [vmem:[%s359 + $0xbc] sm:%s352]
        %456 = vst [vmem:[%s360 + $0xbc] sm:%s352] %v455
        %v457 = vld [vmem:[%s359 + $0xc0] sm:%s352]
        %458 = vst [vmem:[%s360 + $0xc0] sm:%s352] %v457
        %v459 = vld [vmem:[%s359 + $0xe0] sm:%s352]
        %460 = vst [vmem:[%s360 + $0xc4] sm:%s352] %v459
        %v461 = vld [vmem:[%s359 + $0xc4] sm:%s352]
        %462 = vst [vmem:[%s360 + $0xc8] sm:%s352] %v461
        %v463 = vld [vmem:[%s359 + $0xe4] sm:%s352]
        %464 = vst [vmem:[%s360 + $0xcc] sm:%s352] %v463
        %v465 = vld [vmem:[%s359 + $0xc8] sm:%s352]
        %466 = vst [vmem:[%s360 + $0xd0] sm:%s352] %v465
        %v467 = vld [vmem:[%s359 + $0xe8] sm:%s352]
        %468 = vst [vmem:[%s360 + $0xd4] sm:%s352] %v467
        %v469 = vld [vmem:[%s359 + $0xcc] sm:%s352]
        %470 = vst [vmem:[%s360 + $0xd8] sm:%s352] %v469
        %v471 = vld [vmem:[%s359 + $0xec] sm:%s352]
        %472 = vst [vmem:[%s360 + $0xdc] sm:%s352] %v471
        %v473 = vld [vmem:[%s359 + $0xd0] sm:%s352]
        %474 = vst [vmem:[%s360 + $0xe0] sm:%s352] %v473
        %v475 = vld [vmem:[%s359 + $0xf0] sm:%s352]
        %476 = vst [vmem:[%s360 + $0xe4] sm:%s352] %v475
        %v477 = vld [vmem:[%s359 + $0xd4] sm:%s352]
        %478 = vst [vmem:[%s360 + $0xe8] sm:%s352] %v477
        %v479 = vld [vmem:[%s359 + $0xf4] sm:%s352]
        %480 = vst [vmem:[%s360 + $0xec] sm:%s352] %v479
        %v481 = vld [vmem:[%s359 + $0xd8] sm:%s352]
        %482 = vst [vmem:[%s360 + $0xf0] sm:%s352] %v481
        %v483 = vld [vmem:[%s359 + $0xf8] sm:%s352]
        %484 = vst [vmem:[%s360 + $0xf4] sm:%s352] %v483
        %v485 = vld [vmem:[%s359 + $0xdc] sm:%s352]
        %486 = vst [vmem:[%s360 + $0xf8] sm:%s352] %v485
        %v487 = vld [vmem:[%s359 + $0xfc] sm:%s352]
        %488 = vst [vmem:[%s360 + $0xfc] sm:%s352] %v487
        %v489 = vld [vmem:[%s359 + $0x100] sm:%s352]
        %490 = vst [vmem:[%s360 + $0x100] sm:%s352] %v489
        %v491 = vld [vmem:[%s359 + $0x120] sm:%s352]
        %492 = vst [vmem:[%s360 + $0x104] sm:%s352] %v491
        %v493 = vld [vmem:[%s359 + $0x104] sm:%s352]
        %494 = vst [vmem:[%s360 + $0x108] sm:%s352] %v493
        %v495 = vld [vmem:[%s359 + $0x124] sm:%s352]
        %496 = vst [vmem:[%s360 + $0x10c] sm:%s352] %v495
        %v497 = vld [vmem:[%s359 + $0x108] sm:%s352]
        %498 = vst [vmem:[%s360 + $0x110] sm:%s352] %v497
        %v499 = vld [vmem:[%s359 + $0x128] sm:%s352]
        %500 = vst [vmem:[%s360 + $0x114] sm:%s352] %v499
        %v501 = vld [vmem:[%s359 + $0x10c] sm:%s352]
        %502 = vst [vmem:[%s360 + $0x118] sm:%s352] %v501
        %v503 = vld [vmem:[%s359 + $0x12c] sm:%s352]
        %504 = vst [vmem:[%s360 + $0x11c] sm:%s352] %v503
        %v505 = vld [vmem:[%s359 + $0x110] sm:%s352]
        %506 = vst [vmem:[%s360 + $0x120] sm:%s352] %v505
        %v507 = vld [vmem:[%s359 + $0x130] sm:%s352]
        %508 = vst [vmem:[%s360 + $0x124] sm:%s352] %v507
        %v509 = vld [vmem:[%s359 + $0x114] sm:%s352]
        %510 = vst [vmem:[%s360 + $0x128] sm:%s352] %v509
        %v511 = vld [vmem:[%s359 + $0x134] sm:%s352]
        %512 = vst [vmem:[%s360 + $0x12c] sm:%s352] %v511
        %v513 = vld [vmem:[%s359 + $0x118] sm:%s352]
        %514 = vst [vmem:[%s360 + $0x130] sm:%s352] %v513
        %v515 = vld [vmem:[%s359 + $0x138] sm:%s352]
        %516 = vst [vmem:[%s360 + $0x134] sm:%s352] %v515
        %v517 = vld [vmem:[%s359 + $0x11c] sm:%s352]
        %518 = vst [vmem:[%s360 + $0x138] sm:%s352] %v517
        %v519 = vld [vmem:[%s359 + $0x13c] sm:%s352]
        %520 = vst [vmem:[%s360 + $0x13c] sm:%s352] %v519
        %v521 = vld [vmem:[%s359 + $0x140] sm:%s352]
        %522 = vst [vmem:[%s360 + $0x140] sm:%s352] %v521
        %v523 = vld [vmem:[%s359 + $0x160] sm:%s352]
        %524 = vst [vmem:[%s360 + $0x144] sm:%s352] %v523
        %v525 = vld [vmem:[%s359 + $0x144] sm:%s352]
        %526 = vst [vmem:[%s360 + $0x148] sm:%s352] %v525
        %v527 = vld [vmem:[%s359 + $0x164] sm:%s352]
        %528 = vst [vmem:[%s360 + $0x14c] sm:%s352] %v527
        %v529 = vld [vmem:[%s359 + $0x148] sm:%s352]
        %530 = vst [vmem:[%s360 + $0x150] sm:%s352] %v529
        %v531 = vld [vmem:[%s359 + $0x168] sm:%s352]
        %532 = vst [vmem:[%s360 + $0x154] sm:%s352] %v531
        %v533 = vld [vmem:[%s359 + $0x14c] sm:%s352]
        %534 = vst [vmem:[%s360 + $0x158] sm:%s352] %v533
        %v535 = vld [vmem:[%s359 + $0x16c] sm:%s352]
        %536 = vst [vmem:[%s360 + $0x15c] sm:%s352] %v535
        %v537 = vld [vmem:[%s359 + $0x150] sm:%s352]
        %538 = vst [vmem:[%s360 + $0x160] sm:%s352] %v537
        %v539 = vld [vmem:[%s359 + $0x170] sm:%s352]
        %540 = vst [vmem:[%s360 + $0x164] sm:%s352] %v539
        %v541 = vld [vmem:[%s359 + $0x154] sm:%s352]
        %542 = vst [vmem:[%s360 + $0x168] sm:%s352] %v541
        %v543 = vld [vmem:[%s359 + $0x174] sm:%s352]
        %544 = vst [vmem:[%s360 + $0x16c] sm:%s352] %v543
        %v545 = vld [vmem:[%s359 + $0x158] sm:%s352]
        %546 = vst [vmem:[%s360 + $0x170] sm:%s352] %v545
        %v547 = vld [vmem:[%s359 + $0x178] sm:%s352]
        %548 = vst [vmem:[%s360 + $0x174] sm:%s352] %v547
        %v549 = vld [vmem:[%s359 + $0x15c] sm:%s352]
        %550 = vst [vmem:[%s360 + $0x178] sm:%s352] %v549
        %v551 = vld [vmem:[%s359 + $0x17c] sm:%s352]
        %552 = vst [vmem:[%s360 + $0x17c] sm:%s352] %v551
        %v553 = vld [vmem:[%s359 + $0x180] sm:%s352]
        %554 = vst [vmem:[%s360 + $0x180] sm:%s352] %v553
        %v555 = vld [vmem:[%s359 + $0x1a0] sm:%s352]
        %556 = vst [vmem:[%s360 + $0x184] sm:%s352] %v555
        %v557 = vld [vmem:[%s359 + $0x184] sm:%s352]
        %558 = vst [vmem:[%s360 + $0x188] sm:%s352] %v557
        %v559 = vld [vmem:[%s359 + $0x1a4] sm:%s352]
        %560 = vst [vmem:[%s360 + $0x18c] sm:%s352] %v559
        %v561 = vld [vmem:[%s359 + $0x188] sm:%s352]
        %562 = vst [vmem:[%s360 + $0x190] sm:%s352] %v561
        %v563 = vld [vmem:[%s359 + $0x1a8] sm:%s352]
        %564 = vst [vmem:[%s360 + $0x194] sm:%s352] %v563
        %v565 = vld [vmem:[%s359 + $0x18c] sm:%s352]
        %566 = vst [vmem:[%s360 + $0x198] sm:%s352] %v565
        %v567 = vld [vmem:[%s359 + $0x1ac] sm:%s352]
        %568 = vst [vmem:[%s360 + $0x19c] sm:%s352] %v567
        %v569 = vld [vmem:[%s359 + $0x190] sm:%s352]
        %570 = vst [vmem:[%s360 + $0x1a0] sm:%s352] %v569
        %v571 = vld [vmem:[%s359 + $0x1b0] sm:%s352]
        %572 = vst [vmem:[%s360 + $0x1a4] sm:%s352] %v571
        %v573 = vld [vmem:[%s359 + $0x194] sm:%s352]
        %574 = vst [vmem:[%s360 + $0x1a8] sm:%s352] %v573
        %v575 = vld [vmem:[%s359 + $0x1b4] sm:%s352]
        %576 = vst [vmem:[%s360 + $0x1ac] sm:%s352] %v575
        %v577 = vld [vmem:[%s359 + $0x198] sm:%s352]
        %578 = vst [vmem:[%s360 + $0x1b0] sm:%s352] %v577
        %v579 = vld [vmem:[%s359 + $0x1b8] sm:%s352]
        %580 = vst [vmem:[%s360 + $0x1b4] sm:%s352] %v579
        %v581 = vld [vmem:[%s359 + $0x19c] sm:%s352]
        %582 = vst [vmem:[%s360 + $0x1b8] sm:%s352] %v581
        %v583 = vld [vmem:[%s359 + $0x1bc] sm:%s352]
        %584 = vst [vmem:[%s360 + $0x1bc] sm:%s352] %v583
        %v585 = vld [vmem:[%s359 + $0x1c0] sm:%s352]
        %586 = vst [vmem:[%s360 + $0x1c0] sm:%s352] %v585
        %v587 = vld [vmem:[%s359 + $0x1e0] sm:%s352]
        %588 = vst [vmem:[%s360 + $0x1c4] sm:%s352] %v587
        %v589 = vld [vmem:[%s359 + $0x1c4] sm:%s352]
        %590 = vst [vmem:[%s360 + $0x1c8] sm:%s352] %v589
        %v591 = vld [vmem:[%s359 + $0x1e4] sm:%s352]
        %592 = vst [vmem:[%s360 + $0x1cc] sm:%s352] %v591
        %v593 = vld [vmem:[%s359 + $0x1c8] sm:%s352]
        %594 = vst [vmem:[%s360 + $0x1d0] sm:%s352] %v593
        %v595 = vld [vmem:[%s359 + $0x1e8] sm:%s352]
        %596 = vst [vmem:[%s360 + $0x1d4] sm:%s352] %v595
        %v597 = vld [vmem:[%s359 + $0x1cc] sm:%s352]
        %598 = vst [vmem:[%s360 + $0x1d8] sm:%s352] %v597
        %v599 = vld [vmem:[%s359 + $0x1ec] sm:%s352]
        %600 = vst [vmem:[%s360 + $0x1dc] sm:%s352] %v599
        %v601 = vld [vmem:[%s359 + $0x1d0] sm:%s352]
        %602 = vst [vmem:[%s360 + $0x1e0] sm:%s352] %v601
        %v603 = vld [vmem:[%s359 + $0x1f0] sm:%s352]
        %604 = vst [vmem:[%s360 + $0x1e4] sm:%s352] %v603
        %v605 = vld [vmem:[%s359 + $0x1d4] sm:%s352]
        %606 = vst [vmem:[%s360 + $0x1e8] sm:%s352] %v605
        %v607 = vld [vmem:[%s359 + $0x1f4] sm:%s352]
        %608 = vst [vmem:[%s360 + $0x1ec] sm:%s352] %v607
        %v609 = vld [vmem:[%s359 + $0x1d8] sm:%s352]
        %610 = vst [vmem:[%s360 + $0x1f0] sm:%s352] %v609
        %v611 = vld [vmem:[%s359 + $0x1f8] sm:%s352]
        %612 = vst [vmem:[%s360 + $0x1f4] sm:%s352] %v611
        %v613 = vld [vmem:[%s359 + $0x1dc] sm:%s352]
        %614 = vst [vmem:[%s360 + $0x1f8] sm:%s352] %v613
        %v615 = vld [vmem:[%s359 + $0x1fc] sm:%s352]
        %616 = vst [vmem:[%s360 + $0x1fc] sm:%s352] %v615
      $region104: #{token_pose_b_forward.1} parent=91 // loop_footer
        %s358 = sadd.s32 1, %s354
      $region105: #{token_pose_b_forward.1} parent=91 // loop_footer_branch
        %353 = sbr.rel target = $region101
      $region106: #{token_pose_b_forward.1} parent=91 // loop_exit
        _
    $region92: #{token_pose_b_forward.1} parent=76 // pred_fallthru
      _
  $region77: #{token_pose_b_forward.1} parent=0 // pred_fallthru
    _
  // Predicated region
  $region78: #{token_pose_b_forward.1} parent=0 // pred_check
    %p66 = pneg %p62
  $region79: #{token_pose_b_forward.1} parent=0 // pred_check_branch
    %68 = sbr.rel (%p66) target = $region81
  $region80: #{token_pose_b_forward.1} parent=0 // pred_region
    %s69 = sshllo.u32 0, 4
    loop: start=0, step=1, limit=1
    $region82: #{token_pose_b_forward.1} parent=80 // loop_pre_header
      _
    $region83: #{token_pose_b_forward.1} parent=80 // loop_header
      %s71 = sphi 0, %s75
      %p72 = scmp.ge.s32.totalorder %s71, 1
      %s76 = sphi %s18, %s18
      %s77 = sphi [#allocation2], [#allocation2]
    $region84: #{token_pose_b_forward.1} parent=80 // loop_header_branch
      %74 = sbr.rel (%p72) target = $region88
    $region85: #{token_pose_b_forward.1} parent=80 // loop_body
      %v78 = vld [vmem:[%s76] sm:%s69]
      %79 = vst [vmem:[%s77] sm:%s69] %v78
      %v80 = vld [vmem:[%s76 + $0x20] sm:%s69]
      %81 = vst [vmem:[%s77 + $0x4] sm:%s69] %v80
      %v82 = vld [vmem:[%s76 + $0x4] sm:%s69]
      %83 = vst [vmem:[%s77 + $0x8] sm:%s69] %v82
      %v84 = vld [vmem:[%s76 + $0x24] sm:%s69]
      %85 = vst [vmem:[%s77 + $0xc] sm:%s69] %v84
      %v86 = vld [vmem:[%s76 + $0x8] sm:%s69]
      %87 = vst [vmem:[%s77 + $0x10] sm:%s69] %v86
      %v88 = vld [vmem:[%s76 + $0x28] sm:%s69]
      %89 = vst [vmem:[%s77 + $0x14] sm:%s69] %v88
      %v90 = vld [vmem:[%s76 + $0xc] sm:%s69]
      %91 = vst [vmem:[%s77 + $0x18] sm:%s69] %v90
      %v92 = vld [vmem:[%s76 + $0x2c] sm:%s69]
      %93 = vst [vmem:[%s77 + $0x1c] sm:%s69] %v92
      %v94 = vld [vmem:[%s76 + $0x10] sm:%s69]
      %95 = vst [vmem:[%s77 + $0x20] sm:%s69] %v94
      %v96 = vld [vmem:[%s76 + $0x30] sm:%s69]
      %97 = vst [vmem:[%s77 + $0x24] sm:%s69] %v96
      %v98 = vld [vmem:[%s76 + $0x14] sm:%s69]
      %99 = vst [vmem:[%s77 + $0x28] sm:%s69] %v98
      %v100 = vld [vmem:[%s76 + $0x34] sm:%s69]
      %101 = vst [vmem:[%s77 + $0x2c] sm:%s69] %v100
      %v102 = vld [vmem:[%s76 + $0x18] sm:%s69]
      %103 = vst [vmem:[%s77 + $0x30] sm:%s69] %v102
      %v104 = vld [vmem:[%s76 + $0x38] sm:%s69]
      %105 = vst [vmem:[%s77 + $0x34] sm:%s69] %v104
      %v106 = vld [vmem:[%s76 + $0x1c] sm:%s69]
      %107 = vst [vmem:[%s77 + $0x38] sm:%s69] %v106
      %v108 = vld [vmem:[%s76 + $0x3c] sm:%s69]
      %109 = vst [vmem:[%s77 + $0x3c] sm:%s69] %v108
      %v110 = vld [vmem:[%s76 + $0x40] sm:%s69]
      %111 = vst [vmem:[%s77 + $0x40] sm:%s69] %v110
      %v112 = vld [vmem:[%s76 + $0x60] sm:%s69]
      %113 = vst [vmem:[%s77 + $0x44] sm:%s69] %v112
      %v114 = vld [vmem:[%s76 + $0x44] sm:%s69]
      %115 = vst [vmem:[%s77 + $0x48] sm:%s69] %v114
      %v116 = vld [vmem:[%s76 + $0x64] sm:%s69]
      %117 = vst [vmem:[%s77 + $0x4c] sm:%s69] %v116
      %v118 = vld [vmem:[%s76 + $0x48] sm:%s69]
      %119 = vst [vmem:[%s77 + $0x50] sm:%s69] %v118
      %v120 = vld [vmem:[%s76 + $0x68] sm:%s69]
      %121 = vst [vmem:[%s77 + $0x54] sm:%s69] %v120
      %v122 = vld [vmem:[%s76 + $0x4c] sm:%s69]
      %123 = vst [vmem:[%s77 + $0x58] sm:%s69] %v122
      %v124 = vld [vmem:[%s76 + $0x6c] sm:%s69]
      %125 = vst [vmem:[%s77 + $0x5c] sm:%s69] %v124
      %v126 = vld [vmem:[%s76 + $0x50] sm:%s69]
      %127 = vst [vmem:[%s77 + $0x60] sm:%s69] %v126
      %v128 = vld [vmem:[%s76 + $0x70] sm:%s69]
      %129 = vst [vmem:[%s77 + $0x64] sm:%s69] %v128
      %v130 = vld [vmem:[%s76 + $0x54] sm:%s69]
      %131 = vst [vmem:[%s77 + $0x68] sm:%s69] %v130
      %v132 = vld [vmem:[%s76 + $0x74] sm:%s69]
      %133 = vst [vmem:[%s77 + $0x6c] sm:%s69] %v132
      %v134 = vld [vmem:[%s76 + $0x58] sm:%s69]
      %135 = vst [vmem:[%s77 + $0x70] sm:%s69] %v134
      %v136 = vld [vmem:[%s76 + $0x78] sm:%s69]
      %137 = vst [vmem:[%s77 + $0x74] sm:%s69] %v136
      %v138 = vld [vmem:[%s76 + $0x5c] sm:%s69]
      %139 = vst [vmem:[%s77 + $0x78] sm:%s69] %v138
      %v140 = vld [vmem:[%s76 + $0x7c] sm:%s69]
      %141 = vst [vmem:[%s77 + $0x7c] sm:%s69] %v140
      %v142 = vld [vmem:[%s76 + $0x80] sm:%s69]
      %143 = vst [vmem:[%s77 + $0x80] sm:%s69] %v142
      %v144 = vld [vmem:[%s76 + $0xa0] sm:%s69]
      %145 = vst [vmem:[%s77 + $0x84] sm:%s69] %v144
      %v146 = vld [vmem:[%s76 + $0x84] sm:%s69]
      %147 = vst [vmem:[%s77 + $0x88] sm:%s69] %v146
      %v148 = vld [vmem:[%s76 + $0xa4] sm:%s69]
      %149 = vst [vmem:[%s77 + $0x8c] sm:%s69] %v148
      %v150 = vld [vmem:[%s76 + $0x88] sm:%s69]
      %151 = vst [vmem:[%s77 + $0x90] sm:%s69] %v150
      %v152 = vld [vmem:[%s76 + $0xa8] sm:%s69]
      %153 = vst [vmem:[%s77 + $0x94] sm:%s69] %v152
      %v154 = vld [vmem:[%s76 + $0x8c] sm:%s69]
      %155 = vst [vmem:[%s77 + $0x98] sm:%s69] %v154
      %v156 = vld [vmem:[%s76 + $0xac] sm:%s69]
      %157 = vst [vmem:[%s77 + $0x9c] sm:%s69] %v156
      %v158 = vld [vmem:[%s76 + $0x90] sm:%s69]
      %159 = vst [vmem:[%s77 + $0xa0] sm:%s69] %v158
      %v160 = vld [vmem:[%s76 + $0xb0] sm:%s69]
      %161 = vst [vmem:[%s77 + $0xa4] sm:%s69] %v160
      %v162 = vld [vmem:[%s76 + $0x94] sm:%s69]
      %163 = vst [vmem:[%s77 + $0xa8] sm:%s69] %v162
      %v164 = vld [vmem:[%s76 + $0xb4] sm:%s69]
      %165 = vst [vmem:[%s77 + $0xac] sm:%s69] %v164
      %v166 = vld [vmem:[%s76 + $0x98] sm:%s69]
      %167 = vst [vmem:[%s77 + $0xb0] sm:%s69] %v166
      %v168 = vld [vmem:[%s76 + $0xb8] sm:%s69]
      %169 = vst [vmem:[%s77 + $0xb4] sm:%s69] %v168
      %v170 = vld [vmem:[%s76 + $0x9c] sm:%s69]
      %171 = vst [vmem:[%s77 + $0xb8] sm:%s69] %v170
      %v172 = vld [vmem:[%s76 + $0xbc] sm:%s69]
      %173 = vst [vmem:[%s77 + $0xbc] sm:%s69] %v172
      %v174 = vld [vmem:[%s76 + $0xc0] sm:%s69]
      %175 = vst [vmem:[%s77 + $0xc0] sm:%s69] %v174
      %v176 = vld [vmem:[%s76 + $0xe0] sm:%s69]
      %177 = vst [vmem:[%s77 + $0xc4] sm:%s69] %v176
      %v178 = vld [vmem:[%s76 + $0xc4] sm:%s69]
      %179 = vst [vmem:[%s77 + $0xc8] sm:%s69] %v178
      %v180 = vld [vmem:[%s76 + $0xe4] sm:%s69]
      %181 = vst [vmem:[%s77 + $0xcc] sm:%s69] %v180
      %v182 = vld [vmem:[%s76 + $0xc8] sm:%s69]
      %183 = vst [vmem:[%s77 + $0xd0] sm:%s69] %v182
      %v184 = vld [vmem:[%s76 + $0xe8] sm:%s69]
      %185 = vst [vmem:[%s77 + $0xd4] sm:%s69] %v184
      %v186 = vld [vmem:[%s76 + $0xcc] sm:%s69]
      %187 = vst [vmem:[%s77 + $0xd8] sm:%s69] %v186
      %v188 = vld [vmem:[%s76 + $0xec] sm:%s69]
      %189 = vst [vmem:[%s77 + $0xdc] sm:%s69] %v188
      %v190 = vld [vmem:[%s76 + $0xd0] sm:%s69]
      %191 = vst [vmem:[%s77 + $0xe0] sm:%s69] %v190
      %v192 = vld [vmem:[%s76 + $0xf0] sm:%s69]
      %193 = vst [vmem:[%s77 + $0xe4] sm:%s69] %v192
      %v194 = vld [vmem:[%s76 + $0xd4] sm:%s69]
      %195 = vst [vmem:[%s77 + $0xe8] sm:%s69] %v194
      %v196 = vld [vmem:[%s76 + $0xf4] sm:%s69]
      %197 = vst [vmem:[%s77 + $0xec] sm:%s69] %v196
      %v198 = vld [vmem:[%s76 + $0xd8] sm:%s69]
      %199 = vst [vmem:[%s77 + $0xf0] sm:%s69] %v198
      %v200 = vld [vmem:[%s76 + $0xf8] sm:%s69]
      %201 = vst [vmem:[%s77 + $0xf4] sm:%s69] %v200
      %v202 = vld [vmem:[%s76 + $0xdc] sm:%s69]
      %203 = vst [vmem:[%s77 + $0xf8] sm:%s69] %v202
      %v204 = vld [vmem:[%s76 + $0xfc] sm:%s69]
      %205 = vst [vmem:[%s77 + $0xfc] sm:%s69] %v204
      %v206 = vld [vmem:[%s76 + $0x100] sm:%s69]
      %207 = vst [vmem:[%s77 + $0x100] sm:%s69] %v206
      %v208 = vld [vmem:[%s76 + $0x120] sm:%s69]
      %209 = vst [vmem:[%s77 + $0x104] sm:%s69] %v208
      %v210 = vld [vmem:[%s76 + $0x104] sm:%s69]
      %211 = vst [vmem:[%s77 + $0x108] sm:%s69] %v210
      %v212 = vld [vmem:[%s76 + $0x124] sm:%s69]
      %213 = vst [vmem:[%s77 + $0x10c] sm:%s69] %v212
      %v214 = vld [vmem:[%s76 + $0x108] sm:%s69]
      %215 = vst [vmem:[%s77 + $0x110] sm:%s69] %v214
      %v216 = vld [vmem:[%s76 + $0x128] sm:%s69]
      %217 = vst [vmem:[%s77 + $0x114] sm:%s69] %v216
      %v218 = vld [vmem:[%s76 + $0x10c] sm:%s69]
      %219 = vst [vmem:[%s77 + $0x118] sm:%s69] %v218
      %v220 = vld [vmem:[%s76 + $0x12c] sm:%s69]
      %221 = vst [vmem:[%s77 + $0x11c] sm:%s69] %v220
      %v222 = vld [vmem:[%s76 + $0x110] sm:%s69]
      %223 = vst [vmem:[%s77 + $0x120] sm:%s69] %v222
      %v224 = vld [vmem:[%s76 + $0x130] sm:%s69]
      %225 = vst [vmem:[%s77 + $0x124] sm:%s69] %v224
      %v226 = vld [vmem:[%s76 + $0x114] sm:%s69]
      %227 = vst [vmem:[%s77 + $0x128] sm:%s69] %v226
      %v228 = vld [vmem:[%s76 + $0x134] sm:%s69]
      %229 = vst [vmem:[%s77 + $0x12c] sm:%s69] %v228
      %v230 = vld [vmem:[%s76 + $0x118] sm:%s69]
      %231 = vst [vmem:[%s77 + $0x130] sm:%s69] %v230
      %v232 = vld [vmem:[%s76 + $0x138] sm:%s69]
      %233 = vst [vmem:[%s77 + $0x134] sm:%s69] %v232
      %v234 = vld [vmem:[%s76 + $0x11c] sm:%s69]
      %235 = vst [vmem:[%s77 + $0x138] sm:%s69] %v234
      %v236 = vld [vmem:[%s76 + $0x13c] sm:%s69]
      %237 = vst [vmem:[%s77 + $0x13c] sm:%s69] %v236
      %v238 = vld [vmem:[%s76 + $0x140] sm:%s69]
      %239 = vst [vmem:[%s77 + $0x140] sm:%s69] %v238
      %v240 = vld [vmem:[%s76 + $0x160] sm:%s69]
      %241 = vst [vmem:[%s77 + $0x144] sm:%s69] %v240
      %v242 = vld [vmem:[%s76 + $0x144] sm:%s69]
      %243 = vst [vmem:[%s77 + $0x148] sm:%s69] %v242
      %v244 = vld [vmem:[%s76 + $0x164] sm:%s69]
      %245 = vst [vmem:[%s77 + $0x14c] sm:%s69] %v244
      %v246 = vld [vmem:[%s76 + $0x148] sm:%s69]
      %247 = vst [vmem:[%s77 + $0x150] sm:%s69] %v246
      %v248 = vld [vmem:[%s76 + $0x168] sm:%s69]
      %249 = vst [vmem:[%s77 + $0x154] sm:%s69] %v248
      %v250 = vld [vmem:[%s76 + $0x14c] sm:%s69]
      %251 = vst [vmem:[%s77 + $0x158] sm:%s69] %v250
      %v252 = vld [vmem:[%s76 + $0x16c] sm:%s69]
      %253 = vst [vmem:[%s77 + $0x15c] sm:%s69] %v252
      %v254 = vld [vmem:[%s76 + $0x150] sm:%s69]
      %255 = vst [vmem:[%s77 + $0x160] sm:%s69] %v254
      %v256 = vld [vmem:[%s76 + $0x170] sm:%s69]
      %257 = vst [vmem:[%s77 + $0x164] sm:%s69] %v256
      %v258 = vld [vmem:[%s76 + $0x154] sm:%s69]
      %259 = vst [vmem:[%s77 + $0x168] sm:%s69] %v258
      %v260 = vld [vmem:[%s76 + $0x174] sm:%s69]
      %261 = vst [vmem:[%s77 + $0x16c] sm:%s69] %v260
      %v262 = vld [vmem:[%s76 + $0x158] sm:%s69]
      %263 = vst [vmem:[%s77 + $0x170] sm:%s69] %v262
      %v264 = vld [vmem:[%s76 + $0x178] sm:%s69]
      %265 = vst [vmem:[%s77 + $0x174] sm:%s69] %v264
      %v266 = vld [vmem:[%s76 + $0x15c] sm:%s69]
      %267 = vst [vmem:[%s77 + $0x178] sm:%s69] %v266
      %v268 = vld [vmem:[%s76 + $0x17c] sm:%s69]
      %269 = vst [vmem:[%s77 + $0x17c] sm:%s69] %v268
      %v270 = vld [vmem:[%s76 + $0x180] sm:%s69]
      %271 = vst [vmem:[%s77 + $0x180] sm:%s69] %v270
      %v272 = vld [vmem:[%s76 + $0x1a0] sm:%s69]
      %273 = vst [vmem:[%s77 + $0x184] sm:%s69] %v272
      %v274 = vld [vmem:[%s76 + $0x184] sm:%s69]
      %275 = vst [vmem:[%s77 + $0x188] sm:%s69] %v274
      %v276 = vld [vmem:[%s76 + $0x1a4] sm:%s69]
      %277 = vst [vmem:[%s77 + $0x18c] sm:%s69] %v276
      %v278 = vld [vmem:[%s76 + $0x188] sm:%s69]
      %279 = vst [vmem:[%s77 + $0x190] sm:%s69] %v278
      %v280 = vld [vmem:[%s76 + $0x1a8] sm:%s69]
      %281 = vst [vmem:[%s77 + $0x194] sm:%s69] %v280
      %v282 = vld [vmem:[%s76 + $0x18c] sm:%s69]
      %283 = vst [vmem:[%s77 + $0x198] sm:%s69] %v282
      %v284 = vld [vmem:[%s76 + $0x1ac] sm:%s69]
      %285 = vst [vmem:[%s77 + $0x19c] sm:%s69] %v284
      %v286 = vld [vmem:[%s76 + $0x190] sm:%s69]
      %287 = vst [vmem:[%s77 + $0x1a0] sm:%s69] %v286
      %v288 = vld [vmem:[%s76 + $0x1b0] sm:%s69]
      %289 = vst [vmem:[%s77 + $0x1a4] sm:%s69] %v288
      %v290 = vld [vmem:[%s76 + $0x194] sm:%s69]
      %291 = vst [vmem:[%s77 + $0x1a8] sm:%s69] %v290
      %v292 = vld [vmem:[%s76 + $0x1b4] sm:%s69]
      %293 = vst [vmem:[%s77 + $0x1ac] sm:%s69] %v292
      %v294 = vld [vmem:[%s76 + $0x198] sm:%s69]
      %295 = vst [vmem:[%s77 + $0x1b0] sm:%s69] %v294
      %v296 = vld [vmem:[%s76 + $0x1b8] sm:%s69]
      %297 = vst [vmem:[%s77 + $0x1b4] sm:%s69] %v296
      %v298 = vld [vmem:[%s76 + $0x19c] sm:%s69]
      %299 = vst [vmem:[%s77 + $0x1b8] sm:%s69] %v298
      %v300 = vld [vmem:[%s76 + $0x1bc] sm:%s69]
      %301 = vst [vmem:[%s77 + $0x1bc] sm:%s69] %v300
      %v302 = vld [vmem:[%s76 + $0x1c0] sm:%s69]
      %303 = vst [vmem:[%s77 + $0x1c0] sm:%s69] %v302
      %v304 = vld [vmem:[%s76 + $0x1e0] sm:%s69]
      %305 = vst [vmem:[%s77 + $0x1c4] sm:%s69] %v304
      %v306 = vld [vmem:[%s76 + $0x1c4] sm:%s69]
      %307 = vst [vmem:[%s77 + $0x1c8] sm:%s69] %v306
      %v308 = vld [vmem:[%s76 + $0x1e4] sm:%s69]
      %309 = vst [vmem:[%s77 + $0x1cc] sm:%s69] %v308
      %v310 = vld [vmem:[%s76 + $0x1c8] sm:%s69]
      %311 = vst [vmem:[%s77 + $0x1d0] sm:%s69] %v310
      %v312 = vld [vmem:[%s76 + $0x1e8] sm:%s69]
      %313 = vst [vmem:[%s77 + $0x1d4] sm:%s69] %v312
      %v314 = vld [vmem:[%s76 + $0x1cc] sm:%s69]
      %315 = vst [vmem:[%s77 + $0x1d8] sm:%s69] %v314
      %v316 = vld [vmem:[%s76 + $0x1ec] sm:%s69]
      %317 = vst [vmem:[%s77 + $0x1dc] sm:%s69] %v316
      %v318 = vld [vmem:[%s76 + $0x1d0] sm:%s69]
      %319 = vst [vmem:[%s77 + $0x1e0] sm:%s69] %v318
      %v320 = vld [vmem:[%s76 + $0x1f0] sm:%s69]
      %321 = vst [vmem:[%s77 + $0x1e4] sm:%s69] %v320
      %v322 = vld [vmem:[%s76 + $0x1d4] sm:%s69]
      %323 = vst [vmem:[%s77 + $0x1e8] sm:%s69] %v322
      %v324 = vld [vmem:[%s76 + $0x1f4] sm:%s69]
      %325 = vst [vmem:[%s77 + $0x1ec] sm:%s69] %v324
      %v326 = vld [vmem:[%s76 + $0x1d8] sm:%s69]
      %327 = vst [vmem:[%s77 + $0x1f0] sm:%s69] %v326
      %v328 = vld [vmem:[%s76 + $0x1f8] sm:%s69]
      %329 = vst [vmem:[%s77 + $0x1f4] sm:%s69] %v328
      %v330 = vld [vmem:[%s76 + $0x1dc] sm:%s69]
      %331 = vst [vmem:[%s77 + $0x1f8] sm:%s69] %v330
      %v332 = vld [vmem:[%s76 + $0x1fc] sm:%s69]
      %333 = vst [vmem:[%s77 + $0x1fc] sm:%s69] %v332
    $region86: #{token_pose_b_forward.1} parent=80 // loop_footer
      %s75 = sadd.s32 1, %s71
    $region87: #{token_pose_b_forward.1} parent=80 // loop_footer_branch
      %70 = sbr.rel target = $region83
    $region88: #{token_pose_b_forward.1} parent=80 // loop_exit
      _
  $region81: #{token_pose_b_forward.1} parent=0 // pred_fallthru
    _
  // Predicated region
  $region107: #{token_pose_b_forward.1} parent=0 // pred_check
    _
  $region108: #{token_pose_b_forward.1} parent=0 // pred_check_branch
    %619 = sbr.rel (0) target = $region110
  $region109: #{token_pose_b_forward.1} parent=0 // pred_region
    %620 = vsyncadd [#allocation3], 8192
  $region110: #{token_pose_b_forward.1} parent=0 // pred_fallthru
    _
  %v621 = vld [vmem:[%s0] sm:$0xff]
  %v622 = vld [vmem:[%s0 + $0x8] sm:$0xff]
  %v623 = vld [vmem:[%s0 + $0x10] sm:$0xff]
  %v624 = vld [vmem:[%s0 + $0x18] sm:$0xff]
  %v625 = vld [vmem:[%s0 + $0x20] sm:$0xff]
  %v626 = vld [vmem:[%s0 + $0x28] sm:$0xff]
  %v627 = vld [vmem:[%s0 + $0x30] sm:$0xff]
  %v628 = vld [vmem:[%s0 + $0x38] sm:$0xff]
  %v629 = vld [vmem:[%s0 + $0x40] sm:$0xff]
  %v630 = vld [vmem:[%s0 + $0x48] sm:$0xff]
  %v631 = vld [vmem:[%s0 + $0x50] sm:$0xff]
  %v632 = vld [vmem:[%s0 + $0x58] sm:$0xff]
  %v633 = vld [vmem:[%s0 + $0x60] sm:$0xff]
  %v634 = vld [vmem:[%s0 + $0x68] sm:$0xff]
  %v635 = vld [vmem:[%s0 + $0x70] sm:$0xff]
  %v636 = vld [vmem:[%s0 + $0x78] sm:$0xff]
  %v637 = vld [vmem:[%s1] sm:$0xf]
  %v638 = vld [vmem:[%s1 + $0x4] sm:$0xf]
  %v639 = vld [vmem:[%s1 + $0x8] sm:$0xf]
  %v640 = vld [vmem:[%s1 + $0xc] sm:$0xf]
  %v641 = vld [vmem:[%s1 + $0x10] sm:$0xf]
  %v642 = vld [vmem:[%s1 + $0x14] sm:$0xf]
  %v643 = vld [vmem:[%s1 + $0x18] sm:$0xf]
  %v644 = vld [vmem:[%s1 + $0x1c] sm:$0xf]
  %v645 = vld [vmem:[%s1 + $0x20] sm:$0xf]
  %v646 = vld [vmem:[%s1 + $0x24] sm:$0xf]
  %v647 = vld [vmem:[%s1 + $0x28] sm:$0xf]
  %v648 = vld [vmem:[%s1 + $0x2c] sm:$0xf]
  %v649 = vld [vmem:[%s1 + $0x30] sm:$0xf]
  %v650 = vld [vmem:[%s1 + $0x34] sm:$0xf]
  %v651 = vld [vmem:[%s1 + $0x38] sm:$0xf]
  %v652 = vld [vmem:[%s1 + $0x3c] sm:$0xf]
  %v653 = vld [vmem:[%s1 + $0x40] sm:$0xf]
  %v654 = vld [vmem:[%s1 + $0x44] sm:$0xf]
  %v655 = vld [vmem:[%s1 + $0x48] sm:$0xf]
  %v656 = vld [vmem:[%s1 + $0x4c] sm:$0xf]
  %v657 = vld [vmem:[%s1 + $0x50] sm:$0xf]
  %v658 = vld [vmem:[%s1 + $0x54] sm:$0xf]
  %v659 = vld [vmem:[%s1 + $0x58] sm:$0xf]
  %v660 = vld [vmem:[%s1 + $0x5c] sm:$0xf]
  %v677 = vunpack.c.l.b16 %v621
  %v678 = vunpack.c.h.b16 %v621
  %v679 = vunpack.c.l.b16 %v622
  %v680 = vunpack.c.h.b16 %v622
  %v681 = vunpack.c.l.b16 %v623
  %v682 = vunpack.c.h.b16 %v623
  %v683 = vunpack.c.l.b16 %v624
  %v684 = vunpack.c.h.b16 %v624
  %v685 = vunpack.c.l.b16 %v625
  %v686 = vunpack.c.h.b16 %v625
  %v687 = vunpack.c.l.b16 %v626
  %v688 = vunpack.c.h.b16 %v626
  %v689 = vunpack.c.l.b16 %v627
  %v690 = vunpack.c.h.b16 %v627
  %v691 = vunpack.c.l.b16 %v628
  %v692 = vunpack.c.h.b16 %v628
  %v693 = vunpack.c.l.b16 %v629
  %v694 = vunpack.c.h.b16 %v629
  %v695 = vunpack.c.l.b16 %v630
  %v696 = vunpack.c.h.b16 %v630
  %v697 = vunpack.c.l.b16 %v631
  %v698 = vunpack.c.h.b16 %v631
  %v699 = vunpack.c.l.b16 %v632
  %v700 = vunpack.c.h.b16 %v632
  %v701 = vunpack.c.l.b16 %v633
  %v702 = vunpack.c.h.b16 %v633
  %v703 = vunpack.c.l.b16 %v634
  %v704 = vunpack.c.h.b16 %v634
  %v705 = vunpack.c.l.b16 %v635
  %v706 = vunpack.c.h.b16 %v635
  %v707 = vunpack.c.l.b16 %v636
  %v708 = vunpack.c.h.b16 %v636
  %v709 = vpack.c.b16 %v679, %v677
  %v710 = vpack.c.b16 %v680, %v678
  %v711 = vpack.c.b16 %v683, %v681
  %v712 = vpack.c.b16 %v684, %v682
  %v713 = vpack.c.b16 %v687, %v685
  %v714 = vpack.c.b16 %v688, %v686
  %v715 = vpack.c.b16 %v691, %v689
  %v716 = vpack.c.b16 %v692, %v690
  %v717 = vpack.c.b16 %v695, %v693
  %v718 = vpack.c.b16 %v696, %v694
  %v719 = vpack.c.b16 %v699, %v697
  %v720 = vpack.c.b16 %v700, %v698
  %v721 = vpack.c.b16 %v703, %v701
  %v722 = vpack.c.b16 %v704, %v702
  %v723 = vpack.c.b16 %v707, %v705
  %v724 = vpack.c.b16 %v708, %v706
  %v757 = vunpack.c.l.b16 %v637
  %v758 = vunpack.c.l.b16 %v638
  %v759 = vunpack.c.l.b16 %v639
  %v760 = vunpack.c.l.b16 %v640
  %v761 = vunpack.c.l.b16 %v641
  %v762 = vunpack.c.l.b16 %v642
  %v763 = vunpack.c.l.b16 %v643
  %v764 = vunpack.c.l.b16 %v644
  %v765 = vunpack.c.l.b16 %v645
  %v766 = vunpack.c.l.b16 %v646
  %v767 = vunpack.c.l.b16 %v647
  %v768 = vunpack.c.l.b16 %v648
  %v769 = vunpack.c.l.b16 %v649
  %v770 = vunpack.c.l.b16 %v650
  %v771 = vunpack.c.l.b16 %v651
  %v772 = vunpack.c.l.b16 %v652
  %v773 = vunpack.c.l.b16 %v653
  %v774 = vunpack.c.l.b16 %v654
  %v775 = vunpack.c.l.b16 %v655
  %v776 = vunpack.c.l.b16 %v656
  %v777 = vunpack.c.l.b16 %v657
  %v778 = vunpack.c.l.b16 %v658
  %v779 = vunpack.c.l.b16 %v659
  %v780 = vunpack.c.l.b16 %v660
  %v781 = vpack.c.b16 %v758, %v757
  %v782 = vpack.c.b16 %v760, %v759
  %v783 = vpack.c.b16 %v762, %v761
  %v784 = vpack.c.b16 %v764, %v763
  %v785 = vpack.c.b16 %v766, %v765
  %v786 = vpack.c.b16 %v768, %v767
  %v787 = vpack.c.b16 %v770, %v769
  %v788 = vpack.c.b16 %v772, %v771
  %v789 = vpack.c.b16 %v774, %v773
  %v790 = vpack.c.b16 %v776, %v775
  %v791 = vpack.c.b16 %v778, %v777
  %v792 = vpack.c.b16 %v780, %v779
  %vm805 = vcmask 523264
  %v807 = vsel %vm805, %v710, 0
  %v810 = vsel %vm805, %v712, 0
  %v813 = vsel %vm805, %v714, 0
  %v816 = vsel %vm805, %v716, 0
  %v819 = vsel %vm805, %v718, 0
  %v822 = vsel %vm805, %v720, 0
  %v825 = vsel %vm805, %v722, 0
  %v828 = vsel %vm805, %v724, 0
  %830 = vmatprep.subr.bf16.mxu0 0
  %831 = vmatpush1.bf16.msra.mxu0 %v781
  %832 = vmatprep.subr.bf16.mxu0 0
  %833 = vmatpush1.bf16.msra.mxu0 %v782
  %834 = vmatprep.subr.bf16.mxu0 0
  %835 = vmatpush1.bf16.msra.mxu0 %v783
  %836 = vmatprep.subr.bf16.mxu0 0
  %837 = vmatpush1.bf16.msra.mxu0 %v784
  %838 = vmatprep.subr.bf16.mxu0 0
  %839 = vmatpush1.bf16.msra.mxu0 %v785
  %840 = vmatprep.subr.bf16.mxu0 0
  %841 = vmatpush1.bf16.msra.mxu0 %v786
  %842 = vmatprep.subr.bf16.mxu0 0
  %843 = vmatpush1.bf16.msra.mxu0 %v787
  %844 = vmatprep.subr.bf16.mxu0 0
  %845 = vmatpush1.bf16.msra.mxu0 %v788
  %846 = vmatprep.subr.bf16.mxu0 0
  %847 = vmatpush1.bf16.msra.mxu0 %v789
  %848 = vmatprep.subr.bf16.mxu0 0
  %849 = vmatpush1.bf16.msra.mxu0 %v790
  %850 = vmatprep.subr.bf16.mxu0 0
  %851 = vmatpush1.bf16.msra.mxu0 %v791
  %852 = vmatprep.subr.bf16.mxu0 0
  %853 = vmatpush1.bf16.msra.mxu0 %v792
  %854 = vmatprep.subr.bf16.mxu0 0
  %855 = vmatpush1.bf16.msra.mxu0 0
  %856 = vmatprep.subr.bf16.mxu0 0
  %857 = vmatpush1.bf16.msra.mxu0 0
  %858 = vmatprep.subr.bf16.mxu0 0
  %859 = vmatpush1.bf16.msra.mxu0 0
  %860 = vmatprep.subr.bf16.mxu0 0
  %861 = vmatpush1.bf16.msra.mxu0 0
  %862 = vmatprep.mubr.bf16.mxu0 %v807
  %863 = vmatmul.mubr.bf16.gmra.mrb[0].mxu0 %v709
  %v864 = vpop.f32.mrb[0].mxu0
  %v865 = vadd.f32 0.0, %v864
  %v866 = vpop.f32.mrb[0].mxu0
  %v867 = vpop.f32.mrb[0].mxu0
  %v868 = vadd.f32 0.0, %v867
  %v869 = vpop.f32.mrb[0].mxu0
  %870 = vmatprep.mubr.bf16.mxu0 %v810
  %871 = vmatmul.mubr.bf16.gmra.mrb[0].mxu0 %v711
  %v872 = vpop.f32.mrb[0].mxu0
  %v873 = vadd.f32 0.0, %v872
  %v874 = vpop.f32.mrb[0].mxu0
  %v875 = vpop.f32.mrb[0].mxu0
  %v876 = vadd.f32 0.0, %v875
  %v877 = vpop.f32.mrb[0].mxu0
  %878 = vmatprep.mubr.bf16.mxu0 %v813
  %879 = vmatmul.mubr.bf16.gmra.mrb[0].mxu0 %v713
  %v880 = vpop.f32.mrb[0].mxu0
  %v881 = vadd.f32 0.0, %v880
  %v882 = vpop.f32.mrb[0].mxu0
  %v883 = vpop.f32.mrb[0].mxu0
  %v884 = vadd.f32 0.0, %v883
  %v885 = vpop.f32.mrb[0].mxu0
  %886 = vmatprep.mubr.bf16.mxu0 %v816
  %887 = vmatmul.mubr.bf16.gmra.mrb[0].mxu0 %v715
  %v888 = vpop.f32.mrb[0].mxu0
  %v889 = vadd.f32 0.0, %v888
  %v890 = vpop.f32.mrb[0].mxu0
  %v891 = vpop.f32.mrb[0].mxu0
  %v892 = vadd.f32 0.0, %v891
  %v893 = vpop.f32.mrb[0].mxu0
  %894 = vmatprep.mubr.bf16.mxu0 %v819
  %895 = vmatmul.mubr.bf16.gmra.mrb[0].mxu0 %v717
  %v896 = vpop.f32.mrb[0].mxu0
  %v897 = vadd.f32 0.0, %v896
  %v898 = vpop.f32.mrb[0].mxu0
  %v899 = vpop.f32.mrb[0].mxu0
  %v900 = vadd.f32 0.0, %v899
  %v901 = vpop.f32.mrb[0].mxu0
  %902 = vmatprep.mubr.bf16.mxu0 %v822
  %903 = vmatmul.mubr.bf16.gmra.mrb[0].mxu0 %v719
  %v904 = vpop.f32.mrb[0].mxu0
  %v905 = vadd.f32 0.0, %v904
  %v906 = vpop.f32.mrb[0].mxu0
  %v907 = vpop.f32.mrb[0].mxu0
  %v908 = vadd.f32 0.0, %v907
  %v909 = vpop.f32.mrb[0].mxu0
  %910 = vmatprep.mubr.bf16.mxu0 %v825
  %911 = vmatmul.mubr.bf16.gmra.mrb[0].mxu0 %v721
  %v912 = vpop.f32.mrb[0].mxu0
  %v913 = vadd.f32 0.0, %v912
  %v914 = vpop.f32.mrb[0].mxu0
  %v915 = vpop.f32.mrb[0].mxu0
  %v916 = vadd.f32 0.0, %v915
  %v917 = vpop.f32.mrb[0].mxu0
  %918 = vmatprep.mubr.bf16.mxu0 %v828
  %919 = vmatmul.mubr.bf16.gmra.mrb[0].mxu0 %v723
  %v920 = vpop.f32.mrb[0].mxu0
  %v921 = vadd.f32 0.0, %v920
  %v922 = vpop.f32.mrb[0].mxu0
  %v923 = vpop.f32.mrb[0].mxu0
  %v924 = vadd.f32 0.0, %v923
  %v925 = vpop.f32.mrb[0].mxu0
  %926 = vdwg.mxu0
  %v927 = vld [vmem:[%s2] sm:$0xf]
  %v929 = vlaneseq
  %v930 = vshrl.u32 %v929, 7
  %v931 = vsub.s32 0, %v930
  %v932 = vrot.slane %v927, %v931
  %v933 = vlaneseq
  %v934 = vshrl.u32 %v933, 7
  %v935 = vsub.s32 1, %v934
  %v936 = vrot.slane %v927, %v935
  %v937 = vlaneseq
  %v938 = vshrl.u32 %v937, 7
  %v939 = vsub.s32 2, %v938
  %v940 = vrot.slane %v927, %v939
  %v941 = vlaneseq
  %v942 = vshrl.u32 %v941, 7
  %v943 = vsub.s32 3, %v942
  %v944 = vrot.slane %v927, %v943
  %v949 = vadd.f32 %v865, %v932
  %v950 = vadd.f32 %v881, %v936
  %v951 = vadd.f32 %v897, %v940
  %v952 = vadd.f32 %v913, %v944
  %v953 = vadd.f32 %v868, %v932
  %v954 = vadd.f32 %v884, %v936
  %v955 = vadd.f32 %v900, %v940
  %v956 = vadd.f32 %v916, %v944
  %v957 = vadd.f32 %v873, %v932
  %v958 = vadd.f32 %v889, %v936
  %v959 = vadd.f32 %v905, %v940
  %v960 = vadd.f32 %v921, %v944
  %v961 = vadd.f32 %v876, %v932
  %v962 = vadd.f32 %v892, %v936
  %v963 = vadd.f32 %v908, %v940
  %v964 = vadd.f32 %v924, %v944
  %v965 = vmax.f32 %v949, 0.0
  %v966 = vmax.f32 %v950, 0.0
  %v967 = vmax.f32 %v951, 0.0
  %v968 = vmax.f32 %v952, 0.0
  %v969 = vmax.f32 %v953, 0.0
  %v970 = vmax.f32 %v954, 0.0
  %v971 = vmax.f32 %v955, 0.0
  %v972 = vmax.f32 %v956, 0.0
  %v973 = vmax.f32 %v957, 0.0
  %v974 = vmax.f32 %v958, 0.0
  %v975 = vmax.f32 %v959, 0.0
  %v976 = vmax.f32 %v960, 0.0
  %v977 = vmax.f32 %v961, 0.0
  %v978 = vmax.f32 %v962, 0.0
  %v979 = vmax.f32 %v963, 0.0
  %v980 = vmax.f32 %v964, 0.0
  %v981 = vld [vmem:[%s3] sm:$0xf]
  %v982 = vld [vmem:[%s3 + $0x4] sm:$0xf]
  %v983 = vld [vmem:[%s3 + $0x8] sm:$0xf]
  %v984 = vld [vmem:[%s3 + $0xc] sm:$0xf]
  %v985 = vld [vmem:[%s3 + $0x10] sm:$0xf]
  %v986 = vld [vmem:[%s3 + $0x14] sm:$0xf]
  %v987 = vld [vmem:[%s3 + $0x18] sm:$0xf]
  %v988 = vld [vmem:[%s3 + $0x1c] sm:$0xf]
  %v989 = vld [vmem:[%s3 + $0x20] sm:$0xf]
  %v990 = vld [vmem:[%s3 + $0x24] sm:$0xf]
  %v991 = vld [vmem:[%s3 + $0x28] sm:$0xf]
  %v992 = vld [vmem:[%s3 + $0x2c] sm:$0xf]
  %v993 = vld [vmem:[%s3 + $0x30] sm:$0xf]
  %v994 = vld [vmem:[%s3 + $0x34] sm:$0xf]
  %v995 = vld [vmem:[%s3 + $0x38] sm:$0xf]
  %v996 = vld [vmem:[%s3 + $0x3c] sm:$0xf]
  %v997 = vld [vmem:[%s3 + $0x40] sm:$0xf]
  %v998 = vld [vmem:[%s3 + $0x44] sm:$0xf]
  %v999 = vld [vmem:[%s3 + $0x48] sm:$0xf]
  %v1000 = vld [vmem:[%s3 + $0x4c] sm:$0xf]
  %v1001 = vld [vmem:[%s3 + $0x50] sm:$0xf]
  %v1002 = vld [vmem:[%s3 + $0x54] sm:$0xf]
  %v1003 = vld [vmem:[%s3 + $0x58] sm:$0xf]
  %v1004 = vld [vmem:[%s3 + $0x5c] sm:$0xf]
  %v1005 = vld [vmem:[%s3 + $0x60] sm:$0xf]
  %v1006 = vld [vmem:[%s3 + $0x64] sm:$0xf]
  %v1007 = vld [vmem:[%s3 + $0x68] sm:$0xf]
  %v1008 = vld [vmem:[%s3 + $0x6c] sm:$0xf]
  %v1009 = vld [vmem:[%s3 + $0x70] sm:$0xf]
  %v1010 = vld [vmem:[%s3 + $0x74] sm:$0xf]
  %v1011 = vld [vmem:[%s3 + $0x78] sm:$0xf]
  %v1012 = vld [vmem:[%s3 + $0x7c] sm:$0xf]
  %v1013 = vld [vmem:[%s3 + $0x80] sm:$0xf]
  %v1014 = vld [vmem:[%s3 + $0x84] sm:$0xf]
  %v1015 = vld [vmem:[%s3 + $0x88] sm:$0xf]
  %v1016 = vld [vmem:[%s3 + $0x8c] sm:$0xf]
  %v1017 = vld [vmem:[%s3 + $0x90] sm:$0xf]
  %v1018 = vld [vmem:[%s3 + $0x94] sm:$0xf]
  %v1019 = vld [vmem:[%s3 + $0x98] sm:$0xf]
  %v1020 = vld [vmem:[%s3 + $0x9c] sm:$0xf]
  %v1021 = vld [vmem:[%s3 + $0xa0] sm:$0xf]
  %v1022 = vld [vmem:[%s3 + $0xa4] sm:$0xf]
  %v1023 = vld [vmem:[%s3 + $0xa8] sm:$0xf]
  %v1024 = vld [vmem:[%s3 + $0xac] sm:$0xf]
  %v1025 = vld [vmem:[%s3 + $0xb0] sm:$0xf]
  %v1026 = vld [vmem:[%s3 + $0xb4] sm:$0xf]
  %v1027 = vld [vmem:[%s3 + $0xb8] sm:$0xf]
  %v1028 = vld [vmem:[%s3 + $0xbc] sm:$0xf]
  %v1029 = vld [vmem:[%s3 + $0xc0] sm:$0xf]
  %v1030 = vld [vmem:[%s3 + $0xc4] sm:$0xf]
  %v1031 = vld [vmem:[%s3 + $0xc8] sm:$0xf]
  %v1032 = vld [vmem:[%s3 + $0xcc] sm:$0xf]
  %v1033 = vld [vmem:[%s3 + $0xd0] sm:$0xf]
  %v1034 = vld [vmem:[%s3 + $0xd4] sm:$0xf]
  %v1035 = vld [vmem:[%s3 + $0xd8] sm:$0xf]
  %v1036 = vld [vmem:[%s3 + $0xdc] sm:$0xf]
  %v1037 = vld [vmem:[%s3 + $0xe0] sm:$0xf]
  %v1038 = vld [vmem:[%s3 + $0xe4] sm:$0xf]
  %v1039 = vld [vmem:[%s3 + $0xe8] sm:$0xf]
  %v1040 = vld [vmem:[%s3 + $0xec] sm:$0xf]
  %v1041 = vld [vmem:[%s3 + $0xf0] sm:$0xf]
  %v1042 = vld [vmem:[%s3 + $0xf4] sm:$0xf]
  %v1043 = vld [vmem:[%s3 + $0xf8] sm:$0xf]
  %v1044 = vld [vmem:[%s3 + $0xfc] sm:$0xf]
  %v1045 = vpack.c.bf16 %v969, %v965
  %v1046 = vpack.c.bf16 %v970, %v966
  %v1047 = vpack.c.bf16 %v971, %v967
  %v1048 = vpack.c.bf16 %v972, %v968
  %v1049 = vpack.c.bf16 %v977, %v973
  %v1050 = vpack.c.bf16 %v978, %v974
  %v1051 = vpack.c.bf16 %v979, %v975
  %v1052 = vpack.c.bf16 %v980, %v976
  %v1053 = vld [vmem:[%s4] sm:$0x1]
  %v1055 = vlaneseq
  %v1056 = vshrl.u32 %v1055, 7
  %v1057 = vsub.s32 0, %v1056
  %v1058 = vrot.slane %v1053, %v1057
  %v1124 = vunpack.c.l.b16 %v981
  %v1125 = vunpack.c.l.b16 %v982
  %v1126 = vunpack.c.l.b16 %v983
  %v1127 = vunpack.c.l.b16 %v984
  %v1128 = vunpack.c.l.b16 %v985
  %v1129 = vunpack.c.l.b16 %v986
  %v1130 = vunpack.c.l.b16 %v987
  %v1131 = vunpack.c.l.b16 %v988
  %v1132 = vunpack.c.l.b16 %v989
  %v1133 = vunpack.c.l.b16 %v990
  %v1134 = vunpack.c.l.b16 %v991
  %v1135 = vunpack.c.l.b16 %v992
  %v1136 = vunpack.c.l.b16 %v993
  %v1137 = vunpack.c.l.b16 %v994
  %v1138 = vunpack.c.l.b16 %v995
  %v1139 = vunpack.c.l.b16 %v996
  %v1140 = vunpack.c.l.b16 %v997
  %v1141 = vunpack.c.l.b16 %v998
  %v1142 = vunpack.c.l.b16 %v999
  %v1143 = vunpack.c.l.b16 %v1000
  %v1144 = vunpack.c.l.b16 %v1001
  %v1145 = vunpack.c.l.b16 %v1002
  %v1146 = vunpack.c.l.b16 %v1003
  %v1147 = vunpack.c.l.b16 %v1004
  %v1148 = vunpack.c.l.b16 %v1005
  %v1149 = vunpack.c.l.b16 %v1006
  %v1150 = vunpack.c.l.b16 %v1007
  %v1151 = vunpack.c.l.b16 %v1008
  %v1152 = vunpack.c.l.b16 %v1009
  %v1153 = vunpack.c.l.b16 %v1010
  %v1154 = vunpack.c.l.b16 %v1011
  %v1155 = vunpack.c.l.b16 %v1012
  %v1156 = vunpack.c.l.b16 %v1013
  %v1157 = vunpack.c.l.b16 %v1014
  %v1158 = vunpack.c.l.b16 %v1015
  %v1159 = vunpack.c.l.b16 %v1016
  %v1160 = vunpack.c.l.b16 %v1017
  %v1161 = vunpack.c.l.b16 %v1018
  %v1162 = vunpack.c.l.b16 %v1019
  %v1163 = vunpack.c.l.b16 %v1020
  %v1164 = vunpack.c.l.b16 %v1021
  %v1165 = vunpack.c.l.b16 %v1022
  %v1166 = vunpack.c.l.b16 %v1023
  %v1167 = vunpack.c.l.b16 %v1024
  %v1168 = vunpack.c.l.b16 %v1025
  %v1169 = vunpack.c.l.b16 %v1026
  %v1170 = vunpack.c.l.b16 %v1027
  %v1171 = vunpack.c.l.b16 %v1028
  %v1172 = vunpack.c.l.b16 %v1029
  %v1173 = vunpack.c.l.b16 %v1030
  %v1174 = vunpack.c.l.b16 %v1031
  %v1175 = vunpack.c.l.b16 %v1032
  %v1176 = vunpack.c.l.b16 %v1033
  %v1177 = vunpack.c.l.b16 %v1034
  %v1178 = vunpack.c.l.b16 %v1035
  %v1179 = vunpack.c.l.b16 %v1036
  %v1180 = vunpack.c.l.b16 %v1037
  %v1181 = vunpack.c.l.b16 %v1038
  %v1182 = vunpack.c.l.b16 %v1039
  %v1183 = vunpack.c.l.b16 %v1040
  %v1184 = vunpack.c.l.b16 %v1041
  %v1185 = vunpack.c.l.b16 %v1042
  %v1186 = vunpack.c.l.b16 %v1043
  %v1187 = vunpack.c.l.b16 %v1044
  %v1188 = vpack.c.b16 %v1125, %v1124
  %v1189 = vpack.c.b16 %v1127, %v1126
  %v1190 = vpack.c.b16 %v1129, %v1128
  %v1191 = vpack.c.b16 %v1131, %v1130
  %v1192 = vpack.c.b16 %v1133, %v1132
  %v1193 = vpack.c.b16 %v1135, %v1134
  %v1194 = vpack.c.b16 %v1137, %v1136
  %v1195 = vpack.c.b16 %v1139, %v1138
  %v1196 = vpack.c.b16 %v1141, %v1140
  %v1197 = vpack.c.b16 %v1143, %v1142
  %v1198 = vpack.c.b16 %v1145, %v1144
  %v1199 = vpack.c.b16 %v1147, %v1146
  %v1200 = vpack.c.b16 %v1149, %v1148
  %v1201 = vpack.c.b16 %v1151, %v1150
  %v1202 = vpack.c.b16 %v1153, %v1152
  %v1203 = vpack.c.b16 %v1155, %v1154
  %v1204 = vpack.c.b16 %v1157, %v1156
  %v1205 = vpack.c.b16 %v1159, %v1158
  %v1206 = vpack.c.b16 %v1161, %v1160
  %v1207 = vpack.c.b16 %v1163, %v1162
  %v1208 = vpack.c.b16 %v1165, %v1164
  %v1209 = vpack.c.b16 %v1167, %v1166
  %v1210 = vpack.c.b16 %v1169, %v1168
  %v1211 = vpack.c.b16 %v1171, %v1170
  %v1212 = vpack.c.b16 %v1173, %v1172
  %v1213 = vpack.c.b16 %v1175, %v1174
  %v1214 = vpack.c.b16 %v1177, %v1176
  %v1215 = vpack.c.b16 %v1179, %v1178
  %v1216 = vpack.c.b16 %v1181, %v1180
  %v1217 = vpack.c.b16 %v1183, %v1182
  %v1218 = vpack.c.b16 %v1185, %v1184
  %v1219 = vpack.c.b16 %v1187, %v1186
  %1252 = vmatprep.subr.bf16.mxu0 0
  %1253 = vmatpush1.bf16.msra.mxu0 %v1188
  %1254 = vmatprep.subr.bf16.mxu0 0
  %1255 = vmatpush1.bf16.msra.mxu0 %v1189
  %1256 = vmatprep.subr.bf16.mxu0 0
  %1257 = vmatpush1.bf16.msra.mxu0 %v1190
  %1258 = vmatprep.subr.bf16.mxu0 0
  %1259 = vmatpush1.bf16.msra.mxu0 %v1191
  %1260 = vmatprep.subr.bf16.mxu0 0
  %1261 = vmatpush1.bf16.msra.mxu0 %v1192
  %1262 = vmatprep.subr.bf16.mxu0 0
  %1263 = vmatpush1.bf16.msra.mxu0 %v1193
  %1264 = vmatprep.subr.bf16.mxu0 0
  %1265 = vmatpush1.bf16.msra.mxu0 %v1194
  %1266 = vmatprep.subr.bf16.mxu0 0
  %1267 = vmatpush1.bf16.msra.mxu0 %v1195
  %1268 = vmatprep.subr.bf16.mxu0 0
  %1269 = vmatpush1.bf16.msra.mxu0 %v1196
  %1270 = vmatprep.subr.bf16.mxu0 0
  %1271 = vmatpush1.bf16.msra.mxu0 %v1197
  %1272 = vmatprep.subr.bf16.mxu0 0
  %1273 = vmatpush1.bf16.msra.mxu0 %v1198
  %1274 = vmatprep.subr.bf16.mxu0 0
  %1275 = vmatpush1.bf16.msra.mxu0 %v1199
  %1276 = vmatprep.subr.bf16.mxu0 0
  %1277 = vmatpush1.bf16.msra.mxu0 %v1200
  %1278 = vmatprep.subr.bf16.mxu0 0
  %1279 = vmatpush1.bf16.msra.mxu0 %v1201
  %1280 = vmatprep.subr.bf16.mxu0 0
  %1281 = vmatpush1.bf16.msra.mxu0 %v1202
  %1282 = vmatprep.subr.bf16.mxu0 0
  %1283 = vmatpush1.bf16.msra.mxu0 %v1203
  %1284 = vmatprep.mubr.bf16.mxu0 %v1046
  %1285 = vmatmul.mubr.bf16.gmra.mrb[0].mxu0 %v1045
  %v1286 = vpop.f32.mrb[0].mxu0
  %v1287 = vadd.f32 %v1058, %v1286
  %v1288 = vpop.f32.mrb[0].mxu0
  %v1289 = vpop.f32.mrb[0].mxu0
  %v1290 = vadd.f32 %v1058, %v1289
  %v1291 = vpop.f32.mrb[0].mxu0
  %1292 = vmatprep.mubr.bf16.mxu0 %v1050
  %1293 = vmatmul.mubr.bf16.gmra.mrb[0].mxu0 %v1049
  %v1294 = vpop.f32.mrb[0].mxu0
  %v1295 = vadd.f32 %v1058, %v1294
  %v1296 = vpop.f32.mrb[0].mxu0
  %v1297 = vpop.f32.mrb[0].mxu0
  %v1298 = vadd.f32 %v1058, %v1297
  %v1299 = vpop.f32.mrb[0].mxu0
  %1300 = vdwg.mxu0
  %1301 = vmatprep.subr.bf16.mxu0 0
  %1302 = vmatpush1.bf16.msra.mxu0 %v1204
  %1303 = vmatprep.subr.bf16.mxu0 0
  %1304 = vmatpush1.bf16.msra.mxu0 %v1205
  %1305 = vmatprep.subr.bf16.mxu0 0
  %1306 = vmatpush1.bf16.msra.mxu0 %v1206
  %1307 = vmatprep.subr.bf16.mxu0 0
  %1308 = vmatpush1.bf16.msra.mxu0 %v1207
  %1309 = vmatprep.subr.bf16.mxu0 0
  %1310 = vmatpush1.bf16.msra.mxu0 %v1208
  %1311 = vmatprep.subr.bf16.mxu0 0
  %1312 = vmatpush1.bf16.msra.mxu0 %v1209
  %1313 = vmatprep.subr.bf16.mxu0 0
  %1314 = vmatpush1.bf16.msra.mxu0 %v1210
  %1315 = vmatprep.subr.bf16.mxu0 0
  %1316 = vmatpush1.bf16.msra.mxu0 %v1211
  %1317 = vmatprep.subr.bf16.mxu0 0
  %1318 = vmatpush1.bf16.msra.mxu0 %v1212
  %1319 = vmatprep.subr.bf16.mxu0 0
  %1320 = vmatpush1.bf16.msra.mxu0 %v1213
  %1321 = vmatprep.subr.bf16.mxu0 0
  %1322 = vmatpush1.bf16.msra.mxu0 %v1214
  %1323 = vmatprep.subr.bf16.mxu0 0
  %1324 = vmatpush1.bf16.msra.mxu0 %v1215
  %1325 = vmatprep.subr.bf16.mxu0 0
  %1326 = vmatpush1.bf16.msra.mxu0 %v1216
  %1327 = vmatprep.subr.bf16.mxu0 0
  %1328 = vmatpush1.bf16.msra.mxu0 %v1217
  %1329 = vmatprep.subr.bf16.mxu0 0
  %1330 = vmatpush1.bf16.msra.mxu0 %v1218
  %1331 = vmatprep.subr.bf16.mxu0 0
  %1332 = vmatpush1.bf16.msra.mxu0 %v1219
  %1333 = vmatprep.mubr.bf16.mxu0 %v1048
  %1334 = vmatmul.mubr.bf16.gmra.mrb[0].mxu0 %v1047
  %v1335 = vpop.f32.mrb[0].mxu0
  %v1336 = vadd.f32 %v1287, %v1335
  %v1337 = vpop.f32.mrb[0].mxu0
  %v1338 = vpop.f32.mrb[0].mxu0
  %v1339 = vadd.f32 %v1290, %v1338
  %v1340 = vpop.f32.mrb[0].mxu0
  %1341 = vmatprep.mubr.bf16.mxu0 %v1052
  %1342 = vmatmul.mubr.bf16.gmra.mrb[0].mxu0 %v1051
  %v1343 = vpop.f32.mrb[0].mxu0
  %v1344 = vadd.f32 %v1295, %v1343
  %v1345 = vpop.f32.mrb[0].mxu0
  %v1346 = vpop.f32.mrb[0].mxu0
  %v1347 = vadd.f32 %v1298, %v1346
  %v1348 = vpop.f32.mrb[0].mxu0
  %1349 = vdwg.mxu0
  %v1350 = vld [vmem:[%s5] sm:$0xff]
  %v1351 = vld [vmem:[%s5 + $0x8] sm:$0xff]
  %v1352 = vld [vmem:[%s6] sm:$0xff]
  %v1353 = vld [vmem:[%s6 + $0x8] sm:$0xff]
  %v1354 = vld [vmem:[%s6 + $0x10] sm:$0xff]
  %v1355 = vld [vmem:[%s6 + $0x18] sm:$0xff]
  %v1356 = vadd.f32 %v1336, %v1352
  %v1357 = vadd.f32 %v1339, %v1353
  %v1358 = vadd.f32 %v1344, %v1354
  %v1359 = vadd.f32 %v1347, %v1355
  %v1360 = vlaneseq
  %v1361 = vshrl.u32 %v1360, 7
  %v1362 = vadd.s32 %v1361, 8
  %v1363 = vadd.s32 %v1361, 16
  %v1364 = vadd.s32 %v1361, 24
  %v1365 = vadd.s32 %v1361, 32
  %v1366 = vadd.s32 %v1361, 40
  %v1367 = vlaneseq
  %v1368 = vand.u32 %v1367, 127
  %vm1369 = vcmp.lt.s32.totalorder %v1361, 16
  %vm1370 = vcmp.lt.s32.totalorder %v1362, 16
  %vm1371 = vcmp.lt.s32.totalorder %v1363, 16
  %vm1372 = vcmp.lt.s32.totalorder %v1364, 16
  %vm1373 = vcmp.lt.s32.totalorder %v1365, 16
  %vm1374 = vcmp.lt.s32.totalorder %v1366, 16
  %v1375 = vshra.s32 %v1361, 3
  %v1376 = vshra.s32 %v1362, 3
  %v1377 = vshra.s32 %v1363, 3
  %v1378 = vshra.s32 %v1364, 3
  %v1379 = vshra.s32 %v1365, 3
  %v1380 = vshra.s32 %v1366, 3
  %v1381 = vsub.s32 %v1361, 16
  %v1382 = vsub.s32 %v1362, 16
  %v1383 = vsub.s32 %v1364, 16
  %v1384 = vsub.s32 %v1365, 16
  %v1385 = vsub.s32 %v1366, 16
  %v1386 = vshra.s32 %v1381, 4
  %v1387 = vshra.s32 %v1382, 4
  %v1388 = vshra.s32 %v1361, 4
  %v1389 = vshra.s32 %v1383, 4
  %v1390 = vshra.s32 %v1384, 4
  %v1391 = vshra.s32 %v1385, 4
  %v1392 = vsel %vm1369, %v1375, %v1386
  %v1393 = vsel %vm1370, %v1376, %v1387
  %v1394 = vsel %vm1371, %v1377, %v1388
  %v1395 = vsel %vm1372, %v1378, %v1389
  %v1396 = vsel %vm1373, %v1379, %v1390
  %v1397 = vsel %vm1374, %v1380, %v1391
  %vm1398 = vcmp.lt.s32.totalorder %v1368, 16
  %v1399 = vshra.s32 %v1368, 3
  %v1400 = vsub.s32 %v1368, 16
  %v1401 = vshra.s32 %v1400, 4
  %v1402 = vsel %vm1398, %v1399, %v1401
  %vm1403 = vcmp.eq.s32.totalorder %v1392, %v1402
  %vm1404 = vcmp.eq.s32.totalorder %v1393, %v1402
  %vm1405 = vcmp.eq.s32.totalorder %v1394, %v1402
  %vm1406 = vcmp.eq.s32.totalorder %v1395, %v1402
  %vm1407 = vcmp.eq.s32.totalorder %v1396, %v1402
  %vm1408 = vcmp.eq.s32.totalorder %v1397, %v1402
  %v1409 = vsel %vm1403, 0.0, -1e+30
  %v1410 = vsel %vm1404, 0.0, -1e+30
  %v1411 = vsel %vm1405, 0.0, -1e+30
  %v1412 = vsel %vm1406, 0.0, -1e+30
  %v1413 = vsel %vm1407, 0.0, -1e+30
  %v1414 = vsel %vm1408, 0.0, -1e+30
  %v1415 = vsel %vm805, %v1350, 0.0
  %1416 = vadd.xlane.f32.xlu0 %v1415
  %v1417 = vpop.xlane.xlu0 %1416
  %v1418 = vsel %vm805, %v1351, 0.0
  %1419 = vadd.xlane.f32.xlu0 %v1418
  %v1420 = vpop.xlane.xlu0 %1419
  %v1421 = vsel %vm805, %v1356, 0.0
  %1422 = vadd.xlane.f32.xlu0 %v1421
  %v1423 = vpop.xlane.xlu0 %1422
  %v1424 = vsel %vm805, %v1357, 0.0
  %1425 = vadd.xlane.f32.xlu0 %v1424
  %v1426 = vpop.xlane.xlu0 %1425
  %v1427 = vsel %vm805, %v1358, 0.0
  %1428 = vadd.xlane.f32.xlu0 %v1427
  %v1429 = vpop.xlane.xlu0 %1428
  %v1430 = vsel %vm805, %v1359, 0.0
  %1431 = vadd.xlane.f32.xlu0 %v1430
  %v1432 = vpop.xlane.xlu0 %1431
  %v1433 = vrcp.pop 64.0
  %v1434 = vmul.f32 %v1417, %v1433
  %v1435 = vmul.f32 %v1420, %v1433
  %v1436 = vmul.f32 %v1423, %v1433
  %v1437 = vmul.f32 %v1426, %v1433
  %v1438 = vmul.f32 %v1429, %v1433
  %v1439 = vmul.f32 %v1432, %v1433
  %v1440 = vsub.f32 %v1350, %v1434
  %v1441 = vsub.f32 %v1351, %v1435
  %v1442 = vsub.f32 %v1356, %v1436
  %v1443 = vsub.f32 %v1357, %v1437
  %v1444 = vsub.f32 %v1358, %v1438
  %v1445 = vsub.f32 %v1359, %v1439
  %v1446 = vmul.f32 %v1440, %v1440
  %v1447 = vmul.f32 %v1441, %v1441
  %v1448 = vmul.f32 %v1442, %v1442
  %v1449 = vmul.f32 %v1443, %v1443
  %v1450 = vmul.f32 %v1444, %v1444
  %v1451 = vmul.f32 %v1445, %v1445
  %v1452 = vsel %vm805, %v1446, 0.0
  %1453 = vadd.xlane.f32.xlu0 %v1452
  %v1454 = vpop.xlane.xlu0 %1453
  %v1455 = vsel %vm805, %v1447, 0.0
  %1456 = vadd.xlane.f32.xlu0 %v1455
  %v1457 = vpop.xlane.xlu0 %1456
  %v1458 = vsel %vm805, %v1448, 0.0
  %1459 = vadd.xlane.f32.xlu0 %v1458
  %v1460 = vpop.xlane.xlu0 %1459
  %v1461 = vsel %vm805, %v1449, 0.0
  %1462 = vadd.xlane.f32.xlu0 %v1461
  %v1463 = vpop.xlane.xlu0 %1462
  %v1464 = vsel %vm805, %v1450, 0.0
  %1465 = vadd.xlane.f32.xlu0 %v1464
  %v1466 = vpop.xlane.xlu0 %1465
  %v1467 = vsel %vm805, %v1451, 0.0
  %1468 = vadd.xlane.f32.xlu0 %v1467
  %v1469 = vpop.xlane.xlu0 %1468
  %v1470 = vmul.f32 %v1454, %v1433
  %v1471 = vmul.f32 %v1457, %v1433
  %v1472 = vmul.f32 %v1460, %v1433
  %v1473 = vmul.f32 %v1463, %v1433
  %v1474 = vmul.f32 %v1466, %v1433
  %v1475 = vmul.f32 %v1469, %v1433
  %v1476 = vadd.f32 %v1470, 1e-05
  %v1477 = vadd.f32 %v1471, 1e-05
  %v1478 = vadd.f32 %v1472, 1e-05
  %v1479 = vadd.f32 %v1473, 1e-05
  %v1480 = vadd.f32 %v1474, 1e-05
  %v1481 = vadd.f32 %v1475, 1e-05
  %v1482 = vrsqrt.pop %v1476
  %v1483 = vrsqrt.pop %v1477
  %v1484 = vrsqrt.pop %v1478
  %v1485 = vrsqrt.pop %v1479
  %v1486 = vrsqrt.pop %v1480
  %v1487 = vrsqrt.pop %v1481
  %v1488 = vmul.f32 %v1440, %v1482
  %v1489 = vmul.f32 %v1441, %v1483
  %v1490 = vmul.f32 %v1442, %v1484
  %v1491 = vmul.f32 %v1443, %v1485
  %v1492 = vmul.f32 %v1444, %v1486
  %v1493 = vmul.f32 %v1445, %v1487
  %v1494 = vld [vmem:[%s7] sm:$0xff]
  %v1495 = vld [vmem:[%s7 + $0x8] sm:$0xff]
  %v1496 = vld [vmem:[%s7 + $0x10] sm:$0xff]
  %v1497 = vld [vmem:[%s7 + $0x18] sm:$0xff]
  %v1498 = vld [vmem:[%s7 + $0x20] sm:$0xff]
  %v1499 = vld [vmem:[%s7 + $0x28] sm:$0xff]
  %v1500 = vld [vmem:[%s7 + $0x30] sm:$0xff]
  %v1501 = vld [vmem:[%s7 + $0x38] sm:$0xff]
  %v1502 = vpack.c.bf16 %v1489, %v1488
  %v1503 = vpack.c.bf16 %v1491, %v1490
  %v1504 = vpack.c.bf16 %v1493, %v1492
  %v1505 = vld [vmem:[%s8] sm:$0x3]
  %v1507 = vlaneseq
  %v1508 = vshrl.u32 %v1507, 7
  %v1509 = vsub.s32 0, %v1508
  %v1510 = vrot.slane %v1505, %v1509
  %v1511 = vlaneseq
  %v1512 = vshrl.u32 %v1511, 7
  %v1513 = vsub.s32 1, %v1512
  %v1514 = vrot.slane %v1505, %v1513
  %v1525 = vunpack.c.l.b16 %v1494
  %v1526 = vunpack.c.h.b16 %v1494
  %v1527 = vunpack.c.l.b16 %v1495
  %v1528 = vunpack.c.h.b16 %v1495
  %v1529 = vunpack.c.l.b16 %v1496
  %v1530 = vunpack.c.h.b16 %v1496
  %v1531 = vunpack.c.l.b16 %v1497
  %v1532 = vunpack.c.h.b16 %v1497
  %v1533 = vunpack.c.l.b16 %v1498
  %v1534 = vunpack.c.h.b16 %v1498
  %v1535 = vunpack.c.l.b16 %v1499
  %v1536 = vunpack.c.h.b16 %v1499
  %v1537 = vunpack.c.l.b16 %v1500
  %v1538 = vunpack.c.h.b16 %v1500
  %v1539 = vunpack.c.l.b16 %v1501
  %v1540 = vunpack.c.h.b16 %v1501
  %v1541 = vpack.c.b16 %v1527, %v1525
  %v1542 = vpack.c.b16 %v1528, %v1526
  %v1543 = vpack.c.b16 %v1531, %v1529
  %v1544 = vpack.c.b16 %v1532, %v1530
  %v1545 = vpack.c.b16 %v1535, %v1533
  %v1546 = vpack.c.b16 %v1536, %v1534
  %v1547 = vpack.c.b16 %v1539, %v1537
  %v1548 = vpack.c.b16 %v1540, %v1538
  %v1558 = vsel %vm805, %v1502, 0
  %v1561 = vsel %vm805, %v1503, 0
  %v1564 = vsel %vm805, %v1504, 0
  %1566 = vmatprep.subr.bf16.mxu0 %v1542
  %1567 = vmatpush1.bf16.msra.mxu0 %v1541
  %1568 = vmatprep.subr.bf16.mxu0 %v1544
  %1569 = vmatpush1.bf16.msra.mxu0 %v1543
  %1570 = vmatprep.subr.bf16.mxu0 %v1546
  %1571 = vmatpush1.bf16.msra.mxu0 %v1545
  %1572 = vmatprep.subr.bf16.mxu0 %v1548
  %1573 = vmatpush1.bf16.msra.mxu0 %v1547
  %1574 = vmatprep.subr.bf16.mxu0 0
  %1575 = vmatpush1.bf16.msra.mxu0 0
  %1576 = vmatprep.subr.bf16.mxu0 0
  %1577 = vmatpush1.bf16.msra.mxu0 0
  %1578 = vmatprep.subr.bf16.mxu0 0
  %1579 = vmatpush1.bf16.msra.mxu0 0
  %1580 = vmatprep.subr.bf16.mxu0 0
  %1581 = vmatpush1.bf16.msra.mxu0 0
  %1582 = vmatprep.subr.bf16.mxu0 0
  %1583 = vmatpush1.bf16.msra.mxu0 0
  %1584 = vmatprep.subr.bf16.mxu0 0
  %1585 = vmatpush1.bf16.msra.mxu0 0
  %1586 = vmatprep.subr.bf16.mxu0 0
  %1587 = vmatpush1.bf16.msra.mxu0 0
  %1588 = vmatprep.subr.bf16.mxu0 0
  %1589 = vmatpush1.bf16.msra.mxu0 0
  %1590 = vmatprep.subr.bf16.mxu0 0
  %1591 = vmatpush1.bf16.msra.mxu0 0
  %1592 = vmatprep.subr.bf16.mxu0 0
  %1593 = vmatpush1.bf16.msra.mxu0 0
  %1594 = vmatprep.subr.bf16.mxu0 0
  %1595 = vmatpush1.bf16.msra.mxu0 0
  %1596 = vmatprep.subr.bf16.mxu0 0
  %1597 = vmatpush1.bf16.msra.mxu0 0
  %1598 = vmatprep.mubr.bf16.mxu0 0
  %1599 = vmatmul.mubr.bf16.gmra.mrb[0].mxu0 %v1558
  %v1600 = vpop.f32.mrb[0].mxu0
  %v1601 = vadd.f32 %v1510, %v1600
  %v1602 = vpop.f32.mrb[0].mxu0
  %v1603 = vadd.f32 %v1514, %v1602
  %v1604 = vpop.f32.mrb[0].mxu0
  %v1605 = vadd.f32 %v1510, %v1604
  %v1606 = vpop.f32.mrb[0].mxu0
  %v1607 = vadd.f32 %v1514, %v1606
  %1608 = vmatprep.mubr.bf16.mxu0 0
  %1609 = vmatmul.mubr.bf16.gmra.mrb[0].mxu0 %v1561
  %v1610 = vpop.f32.mrb[0].mxu0
  %v1611 = vadd.f32 %v1510, %v1610
  %v1612 = vpop.f32.mrb[0].mxu0
  %v1613 = vadd.f32 %v1514, %v1612
  %v1614 = vpop.f32.mrb[0].mxu0
  %v1615 = vadd.f32 %v1510, %v1614
  %v1616 = vpop.f32.mrb[0].mxu0
  %v1617 = vadd.f32 %v1514, %v1616
  %1618 = vmatprep.mubr.bf16.mxu0 0
  %1619 = vmatmul.mubr.bf16.gmra.mrb[0].mxu0 %v1564
  %v1620 = vpop.f32.mrb[0].mxu0
  %v1621 = vadd.f32 %v1510, %v1620
  %v1622 = vpop.f32.mrb[0].mxu0
  %v1623 = vadd.f32 %v1514, %v1622
  %v1624 = vpop.f32.mrb[0].mxu0
  %v1625 = vadd.f32 %v1510, %v1624
  %v1626 = vpop.f32.mrb[0].mxu0
  %v1627 = vadd.f32 %v1514, %v1626
  %1628 = vdwg.mxu0
  %1635 = vrot.lane.b32.xlu0 %v1601, 64
  %v1636 = vpop.permute.xlu0 %1635
  %1637 = vrot.lane.b32.xlu0 %v1605, 64
  %v1638 = vpop.permute.xlu0 %1637
  %1639 = vrot.lane.b32.xlu0 %v1611, 64
  %v1640 = vpop.permute.xlu0 %1639
  %1641 = vrot.lane.b32.xlu0 %v1615, 64
  %v1642 = vpop.permute.xlu0 %1641
  %1643 = vrot.lane.b32.xlu0 %v1621, 64
  %v1644 = vpop.permute.xlu0 %1643
  %1645 = vrot.lane.b32.xlu0 %v1625, 64
  %v1646 = vpop.permute.xlu0 %1645
  %vm1647 = vcmask 130048
  %v1648 = vsel %vm1647, %v1601, 0
  %v1650 = vsel %vm1647, %v1605, 0
  %v1652 = vsel %vm1647, %v1611, 0
  %v1654 = vsel %vm1647, %v1615, 0
  %v1656 = vsel %vm1647, %v1621, 0
  %v1658 = vsel %vm1647, %v1625, 0
  %v1660 = vsel %vm1647, %v1636, 0
  %v1662 = vsel %vm1647, %v1638, 0
  %v1664 = vsel %vm1647, %v1640, 0
  %v1666 = vsel %vm1647, %v1642, 0
  %v1668 = vsel %vm1647, %v1644, 0
  %v1670 = vsel %vm1647, %v1646, 0
  %1672 = vmatprep.subr.mxu0 0.0
  %1673 = vmatpush1.xpose.msra.mxu0 %v1660
  %1674 = vmatprep.subr.mxu0 0.0
  %1675 = vmatpush1.xpose.msra.mxu0 %v1662
  %1676 = vmatprep.subr.mxu0 0.0
  %1677 = vmatpush1.xpose.msra.mxu0 %v1664
  %1678 = vmatprep.subr.mxu0 0.0
  %1679 = vmatpush1.xpose.msra.mxu0 %v1666
  %1680 = vmatprep.subr.mxu0 0.0
  %1681 = vmatpush1.xpose.msra.mxu0 %v1668
  %1682 = vmatprep.subr.mxu0 0.0
  %1683 = vmatpush1.xpose.msra.mxu0 %v1670
  %1684 = vmatprep.subr.mxu0 0.0
  %1685 = vmatpush1.xpose.msra.mxu0 0.0
  %1686 = vmatprep.subr.mxu0 0.0
  %1687 = vmatpush1.xpose.msra.mxu0 0.0
  %1688 = vmatprep.subr.mxu0 0.0
  %1689 = vmatpush1.xpose.msra.mxu0 0.0
  %1690 = vmatprep.subr.mxu0 0.0
  %1691 = vmatpush1.xpose.msra.mxu0 0.0
  %1692 = vmatprep.subr.mxu0 0.0
  %1693 = vmatpush1.xpose.msra.mxu0 0.0
  %1694 = vmatprep.subr.mxu0 0.0
  %1695 = vmatpush1.xpose.msra.mxu0 0.0
  %1696 = vmatprep.subr.mxu0 0.0
  %1697 = vmatpush1.xpose.msra.mxu0 0.0
  %1698 = vmatprep.subr.mxu0 0.0
  %1699 = vmatpush1.xpose.msra.mxu0 0.0
  %1700 = vmatprep.subr.mxu0 0.0
  %1701 = vmatpush1.xpose.msra.mxu0 0.0
  %1702 = vmatprep.subr.mxu0 0.0
  %1703 = vmatpush1.xpose.msra.mxu0 0.0
  %1704 = vmatprep.subr.mxu0 0.0
  %1705 = vmatpush1.xpose.msra.mxu0 0.0
  %1706 = vmatprep.subr.mxu0 0.0
  %1707 = vmatpush1.xpose.msra.mxu0 0.0
  %1708 = vmatprep.subr.mxu0 0.0
  %1709 = vmatpush1.xpose.msra.mxu0 0.0
  %1710 = vmatprep.subr.mxu0 0.0
  %1711 = vmatpush1.xpose.msra.mxu0 0.0
  %1712 = vmatprep.subr.mxu0 0.0
  %1713 = vmatpush1.xpose.msra.mxu0 0.0
  %1714 = vmatprep.subr.mxu0 0.0
  %1715 = vmatpush1.xpose.msra.mxu0 0.0
  %1716 = vmatprep.subr.mxu0 0.0
  %1717 = vmatpush1.xpose.msra.mxu0 0.0
  %1718 = vmatprep.subr.mxu0 0.0
  %1719 = vmatpush1.xpose.msra.mxu0 0.0
  %1720 = vmatprep.subr.mxu0 0.0
  %1721 = vmatpush1.xpose.msra.mxu0 0.0
  %1722 = vmatprep.subr.mxu0 0.0
  %1723 = vmatpush1.xpose.msra.mxu0 0.0
  %1724 = vmatprep.subr.mxu0 0.0
  %1725 = vmatpush1.xpose.msra.mxu0 0.0
  %1726 = vmatprep.subr.mxu0 0.0
  %1727 = vmatpush1.xpose.msra.mxu0 0.0
  %1728 = vmatprep.subr.mxu0 0.0
  %1729 = vmatpush1.xpose.msra.mxu0 0.0
  %1730 = vmatprep.subr.mxu0 0.0
  %1731 = vmatpush1.xpose.msra.mxu0 0.0
  %1732 = vmatprep.subr.mxu0 0.0
  %1733 = vmatpush1.xpose.msra.mxu0 0.0
  %1734 = vmatprep.subr.mxu0 0.0
  %1735 = vmatpush1.xpose.msra.mxu0 0.0
  %1736 = vmatprep.mubr.f32.mxu0 0.0
  %1737 = vmatmul.mubr.f32.gmra.mrb[0].mxu0 %v1648
  %v1738 = vpop.f32.mrb[0].mxu0
  %v1739 = vadd.f32 0.0, %v1738
  %v1740 = vpop.f32.mrb[0].mxu0
  %1741 = vmatprep.mubr.f32.mxu0 0.0
  %1742 = vmatmul.mubr.f32.gmra.mrb[0].mxu0 %v1650
  %v1743 = vpop.f32.mrb[0].mxu0
  %v1744 = vadd.f32 0.0, %v1743
  %v1745 = vpop.f32.mrb[0].mxu0
  %1746 = vmatprep.mubr.f32.mxu0 0.0
  %1747 = vmatmul.mubr.f32.gmra.mrb[0].mxu0 %v1652
  %v1748 = vpop.f32.mrb[0].mxu0
  %v1749 = vadd.f32 0.0, %v1748
  %v1750 = vpop.f32.mrb[0].mxu0
  %1751 = vmatprep.mubr.f32.mxu0 0.0
  %1752 = vmatmul.mubr.f32.gmra.mrb[0].mxu0 %v1654
  %v1753 = vpop.f32.mrb[0].mxu0
  %v1754 = vadd.f32 0.0, %v1753
  %v1755 = vpop.f32.mrb[0].mxu0
  %1756 = vmatprep.mubr.f32.mxu0 0.0
  %1757 = vmatmul.mubr.f32.gmra.mrb[0].mxu0 %v1656
  %v1758 = vpop.f32.mrb[0].mxu0
  %v1759 = vadd.f32 0.0, %v1758
  %v1760 = vpop.f32.mrb[0].mxu0
  %1761 = vmatprep.mubr.f32.mxu0 0.0
  %1762 = vmatmul.mubr.f32.gmra.mrb[0].mxu0 %v1658
  %v1763 = vpop.f32.mrb[0].mxu0
  %v1764 = vadd.f32 0.0, %v1763
  %v1765 = vpop.f32.mrb[0].mxu0
  %1766 = vdwg.mxu0
  %v1767 = vmul.f32 %v1739, 0.25
  %v1768 = vmul.f32 %v1744, 0.25
  %v1769 = vmul.f32 %v1749, 0.25
  %v1770 = vmul.f32 %v1754, 0.25
  %v1771 = vmul.f32 %v1759, 0.25
  %v1772 = vmul.f32 %v1764, 0.25
  %v1773 = vadd.f32 %v1767, %v1409
  %v1774 = vadd.f32 %v1768, %v1410
  %v1775 = vadd.f32 %v1769, %v1411
  %v1776 = vadd.f32 %v1770, %v1412
  %v1777 = vadd.f32 %v1771, %v1413
  %v1778 = vadd.f32 %v1772, %v1414
  %vm1779 = vcmask 392192
  %v1780 = vsel %vm1779, %v1773, -inf
  %1781 = vmax.xlane.f32.xlu0 %v1780
  %v1782 = vpop.xlane.xlu0 %1781
  %v1783 = vsel %vm1779, %v1774, -inf
  %1784 = vmax.xlane.f32.xlu0 %v1783
  %v1785 = vpop.xlane.xlu0 %1784
  %v1786 = vsel %vm1779, %v1775, -inf
  %1787 = vmax.xlane.f32.xlu0 %v1786
  %v1788 = vpop.xlane.xlu0 %1787
  %v1789 = vsel %vm1779, %v1776, -inf
  %1790 = vmax.xlane.f32.xlu0 %v1789
  %v1791 = vpop.xlane.xlu0 %1790
  %v1792 = vsel %vm1779, %v1777, -inf
  %1793 = vmax.xlane.f32.xlu0 %v1792
  %v1794 = vpop.xlane.xlu0 %1793
  %v1795 = vsel %vm1779, %v1778, -inf
  %1796 = vmax.xlane.f32.xlu0 %v1795
  %v1797 = vpop.xlane.xlu0 %1796
  %v1798 = vsub.f32 %v1773, %v1782
  %v1799 = vsub.f32 %v1774, %v1785
  %v1800 = vsub.f32 %v1775, %v1788
  %v1801 = vsub.f32 %v1776, %v1791
  %v1802 = vsub.f32 %v1777, %v1794
  %v1803 = vsub.f32 %v1778, %v1797
  %v1804 = vmul.f32 %v1798, 1.442695
  %v1805 = vpow.pop %v1804
  %v1806 = vmul.f32 %v1799, 1.442695
  %v1807 = vpow.pop %v1806
  %v1808 = vmul.f32 %v1800, 1.442695
  %v1809 = vpow.pop %v1808
  %v1810 = vmul.f32 %v1801, 1.442695
  %v1811 = vpow.pop %v1810
  %v1812 = vmul.f32 %v1802, 1.442695
  %v1813 = vpow.pop %v1812
  %v1814 = vmul.f32 %v1803, 1.442695
  %v1815 = vpow.pop %v1814
  %v1816 = vsel %vm1779, %v1805, 0.0
  %1817 = vadd.xlane.f32.xlu0 %v1816
  %v1818 = vpop.xlane.xlu0 %1817
  %v1819 = vsel %vm1779, %v1807, 0.0
  %1820 = vadd.xlane.f32.xlu0 %v1819
  %v1821 = vpop.xlane.xlu0 %1820
  %v1822 = vsel %vm1779, %v1809, 0.0
  %1823 = vadd.xlane.f32.xlu0 %v1822
  %v1824 = vpop.xlane.xlu0 %1823
  %v1825 = vsel %vm1779, %v1811, 0.0
  %1826 = vadd.xlane.f32.xlu0 %v1825
  %v1827 = vpop.xlane.xlu0 %1826
  %v1828 = vsel %vm1779, %v1813, 0.0
  %1829 = vadd.xlane.f32.xlu0 %v1828
  %v1830 = vpop.xlane.xlu0 %1829
  %v1831 = vsel %vm1779, %v1815, 0.0
  %1832 = vadd.xlane.f32.xlu0 %v1831
  %v1833 = vpop.xlane.xlu0 %1832
  %v1834 = vrcp.pop %v1818
  %v1835 = vrcp.pop %v1821
  %v1836 = vrcp.pop %v1824
  %v1837 = vrcp.pop %v1827
  %v1838 = vrcp.pop %v1830
  %v1839 = vrcp.pop %v1833
  %v1840 = vmul.f32 %v1805, %v1834
  %v1841 = vmul.f32 %v1807, %v1835
  %v1842 = vmul.f32 %v1809, %v1836
  %v1843 = vmul.f32 %v1811, %v1837
  %v1844 = vmul.f32 %v1813, %v1838
  %v1845 = vmul.f32 %v1815, %v1839
  %v1847 = vsel %vm1779, %v1840, 0
  %v1850 = vsel %vm1779, %v1841, 0
  %v1853 = vsel %vm1779, %v1842, 0
  %v1856 = vsel %vm1779, %v1843, 0
  %v1859 = vsel %vm1779, %v1844, 0
  %v1862 = vsel %vm1779, %v1845, 0
  %1864 = vmatprep.subr.mxu0 0.0
  %1865 = vmatpush1.msra.mxu0 %v1603
  %1866 = vmatprep.subr.mxu0 0.0
  %1867 = vmatpush1.msra.mxu0 %v1607
  %1868 = vmatprep.subr.mxu0 0.0
  %1869 = vmatpush1.msra.mxu0 %v1613
  %1870 = vmatprep.subr.mxu0 0.0
  %1871 = vmatpush1.msra.mxu0 %v1617
  %1872 = vmatprep.subr.mxu0 0.0
  %1873 = vmatpush1.msra.mxu0 %v1623
  %1874 = vmatprep.subr.mxu0 0.0
  %1875 = vmatpush1.msra.mxu0 %v1627
  %1876 = vmatprep.subr.mxu0 0.0
  %1877 = vmatpush1.msra.mxu0 0.0
  %1878 = vmatprep.subr.mxu0 0.0
  %1879 = vmatpush1.msra.mxu0 0.0
  %1880 = vmatprep.subr.mxu0 0.0
  %1881 = vmatpush1.msra.mxu0 0.0
  %1882 = vmatprep.subr.mxu0 0.0
  %1883 = vmatpush1.msra.mxu0 0.0
  %1884 = vmatprep.subr.mxu0 0.0
  %1885 = vmatpush1.msra.mxu0 0.0
  %1886 = vmatprep.subr.mxu0 0.0
  %1887 = vmatpush1.msra.mxu0 0.0
  %1888 = vmatprep.subr.mxu0 0.0
  %1889 = vmatpush1.msra.mxu0 0.0
  %1890 = vmatprep.subr.mxu0 0.0
  %1891 = vmatpush1.msra.mxu0 0.0
  %1892 = vmatprep.subr.mxu0 0.0
  %1893 = vmatpush1.msra.mxu0 0.0
  %1894 = vmatprep.subr.mxu0 0.0
  %1895 = vmatpush1.msra.mxu0 0.0
  %1896 = vmatprep.subr.mxu0 0.0
  %1897 = vmatpush1.msra.mxu0 0.0
  %1898 = vmatprep.subr.mxu0 0.0
  %1899 = vmatpush1.msra.mxu0 0.0
  %1900 = vmatprep.subr.mxu0 0.0
  %1901 = vmatpush1.msra.mxu0 0.0
  %1902 = vmatprep.subr.mxu0 0.0
  %1903 = vmatpush1.msra.mxu0 0.0
  %1904 = vmatprep.subr.mxu0 0.0
  %1905 = vmatpush1.msra.mxu0 0.0
  %1906 = vmatprep.subr.mxu0 0.0
  %1907 = vmatpush1.msra.mxu0 0.0
  %1908 = vmatprep.subr.mxu0 0.0
  %1909 = vmatpush1.msra.mxu0 0.0
  %1910 = vmatprep.subr.mxu0 0.0
  %1911 = vmatpush1.msra.mxu0 0.0
  %1912 = vmatprep.subr.mxu0 0.0
  %1913 = vmatpush1.msra.mxu0 0.0
  %1914 = vmatprep.subr.mxu0 0.0
  %1915 = vmatpush1.msra.mxu0 0.0
  %1916 = vmatprep.subr.mxu0 0.0
  %1917 = vmatpush1.msra.mxu0 0.0
  %1918 = vmatprep.subr.mxu0 0.0
  %1919 = vmatpush1.msra.mxu0 0.0
  %1920 = vmatprep.subr.mxu0 0.0
  %1921 = vmatpush1.msra.mxu0 0.0
  %1922 = vmatprep.subr.mxu0 0.0
  %1923 = vmatpush1.msra.mxu0 0.0
  %1924 = vmatprep.subr.mxu0 0.0
  %1925 = vmatpush1.msra.mxu0 0.0
  %1926 = vmatprep.subr.mxu0 0.0
  %1927 = vmatpush1.msra.mxu0 0.0
  %1928 = vmatprep.mubr.f32.mxu0 0.0
  %1929 = vmatmul.mubr.f32.gmra.mrb[0].mxu0 %v1847
  %v1930 = vpop.f32.mrb[0].mxu0
  %v1931 = vadd.f32 0.0, %v1930
  %v1932 = vpop.f32.mrb[0].mxu0
  %1933 = vmatprep.mubr.f32.mxu0 0.0
  %1934 = vmatmul.mubr.f32.gmra.mrb[0].mxu0 %v1850
  %v1935 = vpop.f32.mrb[0].mxu0
  %v1936 = vadd.f32 0.0, %v1935
  %v1937 = vpop.f32.mrb[0].mxu0
  %1938 = vmatprep.mubr.f32.mxu0 0.0
  %1939 = vmatmul.mubr.f32.gmra.mrb[0].mxu0 %v1853
  %v1940 = vpop.f32.mrb[0].mxu0
  %v1941 = vadd.f32 0.0, %v1940
  %v1942 = vpop.f32.mrb[0].mxu0
  %1943 = vmatprep.mubr.f32.mxu0 0.0
  %1944 = vmatmul.mubr.f32.gmra.mrb[0].mxu0 %v1856
  %v1945 = vpop.f32.mrb[0].mxu0
  %v1946 = vadd.f32 0.0, %v1945
  %v1947 = vpop.f32.mrb[0].mxu0
  %1948 = vmatprep.mubr.f32.mxu0 0.0
  %1949 = vmatmul.mubr.f32.gmra.mrb[0].mxu0 %v1859
  %v1950 = vpop.f32.mrb[0].mxu0
  %v1951 = vadd.f32 0.0, %v1950
  %v1952 = vpop.f32.mrb[0].mxu0
  %1953 = vmatprep.mubr.f32.mxu0 0.0
  %1954 = vmatmul.mubr.f32.gmra.mrb[0].mxu0 %v1862
  %v1955 = vpop.f32.mrb[0].mxu0
  %v1956 = vadd.f32 0.0, %v1955
  %v1957 = vpop.f32.mrb[0].mxu0
  %1958 = vdwg.mxu0
  %1959 = vrot.lane.b32.xlu0 %v1601, 112
  %v1960 = vpop.permute.xlu0 %1959
  %1961 = vrot.lane.b32.xlu0 %v1605, 112
  %v1962 = vpop.permute.xlu0 %1961
  %1963 = vrot.lane.b32.xlu0 %v1611, 112
  %v1964 = vpop.permute.xlu0 %1963
  %1965 = vrot.lane.b32.xlu0 %v1615, 112
  %v1966 = vpop.permute.xlu0 %1965
  %1967 = vrot.lane.b32.xlu0 %v1621, 112
  %v1968 = vpop.permute.xlu0 %1967
  %1969 = vrot.lane.b32.xlu0 %v1625, 112
  %v1970 = vpop.permute.xlu0 %1969
  %1971 = vrot.lane.b32.xlu0 %v1601, 48
  %v1972 = vpop.permute.xlu0 %1971
  %1973 = vrot.lane.b32.xlu0 %v1605, 48
  %v1974 = vpop.permute.xlu0 %1973
  %1975 = vrot.lane.b32.xlu0 %v1611, 48
  %v1976 = vpop.permute.xlu0 %1975
  %1977 = vrot.lane.b32.xlu0 %v1615, 48
  %v1978 = vpop.permute.xlu0 %1977
  %1979 = vrot.lane.b32.xlu0 %v1621, 48
  %v1980 = vpop.permute.xlu0 %1979
  %1981 = vrot.lane.b32.xlu0 %v1625, 48
  %v1982 = vpop.permute.xlu0 %1981
  %v1983 = vsel %vm1647, %v1960, 0
  %v1985 = vsel %vm1647, %v1962, 0
  %v1987 = vsel %vm1647, %v1964, 0
  %v1989 = vsel %vm1647, %v1966, 0
  %v1991 = vsel %vm1647, %v1968, 0
  %v1993 = vsel %vm1647, %v1970, 0
  %v1995 = vsel %vm1647, %v1972, 0
  %v1997 = vsel %vm1647, %v1974, 0
  %v1999 = vsel %vm1647, %v1976, 0
  %v2001 = vsel %vm1647, %v1978, 0
  %v2003 = vsel %vm1647, %v1980, 0
  %v2005 = vsel %vm1647, %v1982, 0
  %2007 = vmatprep.subr.mxu0 0.0
  %2008 = vmatpush1.xpose.msra.mxu0 %v1995
  %2009 = vmatprep.subr.mxu0 0.0
  %2010 = vmatpush1.xpose.msra.mxu0 %v1997
  %2011 = vmatprep.subr.mxu0 0.0
  %2012 = vmatpush1.xpose.msra.mxu0 %v1999
  %2013 = vmatprep.subr.mxu0 0.0
  %2014 = vmatpush1.xpose.msra.mxu0 %v2001
  %2015 = vmatprep.subr.mxu0 0.0
  %2016 = vmatpush1.xpose.msra.mxu0 %v2003
  %2017 = vmatprep.subr.mxu0 0.0
  %2018 = vmatpush1.xpose.msra.mxu0 %v2005
  %2019 = vmatprep.subr.mxu0 0.0
  %2020 = vmatpush1.xpose.msra.mxu0 0.0
  %2021 = vmatprep.subr.mxu0 0.0
  %2022 = vmatpush1.xpose.msra.mxu0 0.0
  %2023 = vmatprep.subr.mxu0 0.0
  %2024 = vmatpush1.xpose.msra.mxu0 0.0
  %2025 = vmatprep.subr.mxu0 0.0
  %2026 = vmatpush1.xpose.msra.mxu0 0.0
  %2027 = vmatprep.subr.mxu0 0.0
  %2028 = vmatpush1.xpose.msra.mxu0 0.0
  %2029 = vmatprep.subr.mxu0 0.0
  %2030 = vmatpush1.xpose.msra.mxu0 0.0
  %2031 = vmatprep.subr.mxu0 0.0
  %2032 = vmatpush1.xpose.msra.mxu0 0.0
  %2033 = vmatprep.subr.mxu0 0.0
  %2034 = vmatpush1.xpose.msra.mxu0 0.0
  %2035 = vmatprep.subr.mxu0 0.0
  %2036 = vmatpush1.xpose.msra.mxu0 0.0
  %2037 = vmatprep.subr.mxu0 0.0
  %2038 = vmatpush1.xpose.msra.mxu0 0.0
  %2039 = vmatprep.subr.mxu0 0.0
  %2040 = vmatpush1.xpose.msra.mxu0 0.0
  %2041 = vmatprep.subr.mxu0 0.0
  %2042 = vmatpush1.xpose.msra.mxu0 0.0
  %2043 = vmatprep.subr.mxu0 0.0
  %2044 = vmatpush1.xpose.msra.mxu0 0.0
  %2045 = vmatprep.subr.mxu0 0.0
  %2046 = vmatpush1.xpose.msra.mxu0 0.0
  %2047 = vmatprep.subr.mxu0 0.0
  %2048 = vmatpush1.xpose.msra.mxu0 0.0
  %2049 = vmatprep.subr.mxu0 0.0
  %2050 = vmatpush1.xpose.msra.mxu0 0.0
  %2051 = vmatprep.subr.mxu0 0.0
  %2052 = vmatpush1.xpose.msra.mxu0 0.0
  %2053 = vmatprep.subr.mxu0 0.0
  %2054 = vmatpush1.xpose.msra.mxu0 0.0
  %2055 = vmatprep.subr.mxu0 0.0
  %2056 = vmatpush1.xpose.msra.mxu0 0.0
  %2057 = vmatprep.subr.mxu0 0.0
  %2058 = vmatpush1.xpose.msra.mxu0 0.0
  %2059 = vmatprep.subr.mxu0 0.0
  %2060 = vmatpush1.xpose.msra.mxu0 0.0
  %2061 = vmatprep.subr.mxu0 0.0
  %2062 = vmatpush1.xpose.msra.mxu0 0.0
  %2063 = vmatprep.subr.mxu0 0.0
  %2064 = vmatpush1.xpose.msra.mxu0 0.0
  %2065 = vmatprep.subr.mxu0 0.0
  %2066 = vmatpush1.xpose.msra.mxu0 0.0
  %2067 = vmatprep.subr.mxu0 0.0
  %2068 = vmatpush1.xpose.msra.mxu0 0.0
  %2069 = vmatprep.subr.mxu0 0.0
  %2070 = vmatpush1.xpose.msra.mxu0 0.0
  %2071 = vmatprep.mubr.f32.mxu0 0.0
  %2072 = vmatmul.mubr.f32.gmra.mrb[0].mxu0 %v1983
  %v2073 = vpop.f32.mrb[0].mxu0
  %v2074 = vadd.f32 0.0, %v2073
  %v2075 = vpop.f32.mrb[0].mxu0
  %2076 = vmatprep.mubr.f32.mxu0 0.0
  %2077 = vmatmul.mubr.f32.gmra.mrb[0].mxu0 %v1985
  %v2078 = vpop.f32.mrb[0].mxu0
  %v2079 = vadd.f32 0.0, %v2078
  %v2080 = vpop.f32.mrb[0].mxu0
  %2081 = vmatprep.mubr.f32.mxu0 0.0
  %2082 = vmatmul.mubr.f32.gmra.mrb[0].mxu0 %v1987
  %v2083 = vpop.f32.mrb[0].mxu0
  %v2084 = vadd.f32 0.0, %v2083
  %v2085 = vpop.f32.mrb[0].mxu0
  %2086 = vmatprep.mubr.f32.mxu0 0.0
  %2087 = vmatmul.mubr.f32.gmra.mrb[0].mxu0 %v1989
  %v2088 = vpop.f32.mrb[0].mxu0
  %v2089 = vadd.f32 0.0, %v2088
  %v2090 = vpop.f32.mrb[0].mxu0
  %2091 = vmatprep.mubr.f32.mxu0 0.0
  %2092 = vmatmul.mubr.f32.gmra.mrb[0].mxu0 %v1991
  %v2093 = vpop.f32.mrb[0].mxu0
  %v2094 = vadd.f32 0.0, %v2093
  %v2095 = vpop.f32.mrb[0].mxu0
  %2096 = vmatprep.mubr.f32.mxu0 0.0
  %2097 = vmatmul.mubr.f32.gmra.mrb[0].mxu0 %v1993
  %v2098 = vpop.f32.mrb[0].mxu0
  %v2099 = vadd.f32 0.0, %v2098
  %v2100 = vpop.f32.mrb[0].mxu0
  %2101 = vdwg.mxu0
  %v2102 = vmul.f32 %v2074, 0.25
  %v2103 = vmul.f32 %v2079, 0.25
  %v2104 = vmul.f32 %v2084, 0.25
  %v2105 = vmul.f32 %v2089, 0.25
  %v2106 = vmul.f32 %v2094, 0.25
  %v2107 = vmul.f32 %v2099, 0.25
  %v2108 = vadd.f32 %v2102, %v1409
  %v2109 = vadd.f32 %v2103, %v1410
  %v2110 = vadd.f32 %v2104, %v1411
  %v2111 = vadd.f32 %v2105, %v1412
  %v2112 = vadd.f32 %v2106, %v1413
  %v2113 = vadd.f32 %v2107, %v1414
  %v2114 = vsel %vm1779, %v2108, -inf
  %2115 = vmax.xlane.f32.xlu0 %v2114
  %v2116 = vpop.xlane.xlu0 %2115
  %v2117 = vsel %vm1779, %v2109, -inf
  %2118 = vmax.xlane.f32.xlu0 %v2117
  %v2119 = vpop.xlane.xlu0 %2118
  %v2120 = vsel %vm1779, %v2110, -inf
  %2121 = vmax.xlane.f32.xlu0 %v2120
  %v2122 = vpop.xlane.xlu0 %2121
  %v2123 = vsel %vm1779, %v2111, -inf
  %2124 = vmax.xlane.f32.xlu0 %v2123
  %v2125 = vpop.xlane.xlu0 %2124
  %v2126 = vsel %vm1779, %v2112, -inf
  %2127 = vmax.xlane.f32.xlu0 %v2126
  %v2128 = vpop.xlane.xlu0 %2127
  %v2129 = vsel %vm1779, %v2113, -inf
  %2130 = vmax.xlane.f32.xlu0 %v2129
  %v2131 = vpop.xlane.xlu0 %2130
  %v2132 = vsub.f32 %v2108, %v2116
  %v2133 = vsub.f32 %v2109, %v2119
  %v2134 = vsub.f32 %v2110, %v2122
  %v2135 = vsub.f32 %v2111, %v2125
  %v2136 = vsub.f32 %v2112, %v2128
  %v2137 = vsub.f32 %v2113, %v2131
  %v2138 = vmul.f32 %v2132, 1.442695
  %v2139 = vpow.pop %v2138
  %v2140 = vmul.f32 %v2133, 1.442695
  %v2141 = vpow.pop %v2140
  %v2142 = vmul.f32 %v2134, 1.442695
  %v2143 = vpow.pop %v2142
  %v2144 = vmul.f32 %v2135, 1.442695
  %v2145 = vpow.pop %v2144
  %v2146 = vmul.f32 %v2136, 1.442695
  %v2147 = vpow.pop %v2146
  %v2148 = vmul.f32 %v2137, 1.442695
  %v2149 = vpow.pop %v2148
  %v2150 = vsel %vm1779, %v2139, 0.0
  %2151 = vadd.xlane.f32.xlu0 %v2150
  %v2152 = vpop.xlane.xlu0 %2151
  %v2153 = vsel %vm1779, %v2141, 0.0
  %2154 = vadd.xlane.f32.xlu0 %v2153
  %v2155 = vpop.xlane.xlu0 %2154
  %v2156 = vsel %vm1779, %v2143, 0.0
  %2157 = vadd.xlane.f32.xlu0 %v2156
  %v2158 = vpop.xlane.xlu0 %2157
  %v2159 = vsel %vm1779, %v2145, 0.0
  %2160 = vadd.xlane.f32.xlu0 %v2159
  %v2161 = vpop.xlane.xlu0 %2160
  %v2162 = vsel %vm1779, %v2147, 0.0
  %2163 = vadd.xlane.f32.xlu0 %v2162
  %v2164 = vpop.xlane.xlu0 %2163
  %v2165 = vsel %vm1779, %v2149, 0.0
  %2166 = vadd.xlane.f32.xlu0 %v2165
  %v2167 = vpop.xlane.xlu0 %2166
  %v2168 = vrcp.pop %v2152
  %v2169 = vrcp.pop %v2155
  %v2170 = vrcp.pop %v2158
  %v2171 = vrcp.pop %v2161
  %v2172 = vrcp.pop %v2164
  %v2173 = vrcp.pop %v2167
  %v2174 = vmul.f32 %v2139, %v2168
  %v2175 = vmul.f32 %v2141, %v2169
  %v2176 = vmul.f32 %v2143, %v2170
  %v2177 = vmul.f32 %v2145, %v2171
  %v2178 = vmul.f32 %v2147, %v2172
  %v2179 = vmul.f32 %v2149, %v2173
  %2186 = vrot.lane.b32.xlu0 %v1603, 112
  %v2187 = vpop.permute.xlu0 %2186
  %2188 = vrot.lane.b32.xlu0 %v1607, 112
  %v2189 = vpop.permute.xlu0 %2188
  %2190 = vrot.lane.b32.xlu0 %v1613, 112
  %v2191 = vpop.permute.xlu0 %2190
  %2192 = vrot.lane.b32.xlu0 %v1617, 112
  %v2193 = vpop.permute.xlu0 %2192
  %2194 = vrot.lane.b32.xlu0 %v1623, 112
  %v2195 = vpop.permute.xlu0 %2194
  %2196 = vrot.lane.b32.xlu0 %v1627, 112
  %v2197 = vpop.permute.xlu0 %2196
  %v2205 = vsel %vm1779, %v2174, 0
  %v2208 = vsel %vm1779, %v2175, 0
  %v2211 = vsel %vm1779, %v2176, 0
  %v2214 = vsel %vm1779, %v2177, 0
  %v2217 = vsel %vm1779, %v2178, 0
  %v2220 = vsel %vm1779, %v2179, 0
  %2222 = vmatprep.subr.mxu0 0.0
  %2223 = vmatpush1.msra.mxu0 %v2187
  %2224 = vmatprep.subr.mxu0 0.0
  %2225 = vmatpush1.msra.mxu0 %v2189
  %2226 = vmatprep.subr.mxu0 0.0
  %2227 = vmatpush1.msra.mxu0 %v2191
  %2228 = vmatprep.subr.mxu0 0.0
  %2229 = vmatpush1.msra.mxu0 %v2193
  %2230 = vmatprep.subr.mxu0 0.0
  %2231 = vmatpush1.msra.mxu0 %v2195
  %2232 = vmatprep.subr.mxu0 0.0
  %2233 = vmatpush1.msra.mxu0 %v2197
  %2234 = vmatprep.subr.mxu0 0.0
  %2235 = vmatpush1.msra.mxu0 0.0
  %2236 = vmatprep.subr.mxu0 0.0
  %2237 = vmatpush1.msra.mxu0 0.0
  %2238 = vmatprep.subr.mxu0 0.0
  %2239 = vmatpush1.msra.mxu0 0.0
  %2240 = vmatprep.subr.mxu0 0.0
  %2241 = vmatpush1.msra.mxu0 0.0
  %2242 = vmatprep.subr.mxu0 0.0
  %2243 = vmatpush1.msra.mxu0 0.0
  %2244 = vmatprep.subr.mxu0 0.0
  %2245 = vmatpush1.msra.mxu0 0.0
  %2246 = vmatprep.subr.mxu0 0.0
  %2247 = vmatpush1.msra.mxu0 0.0
  %2248 = vmatprep.subr.mxu0 0.0
  %2249 = vmatpush1.msra.mxu0 0.0
  %2250 = vmatprep.subr.mxu0 0.0
  %2251 = vmatpush1.msra.mxu0 0.0
  %2252 = vmatprep.subr.mxu0 0.0
  %2253 = vmatpush1.msra.mxu0 0.0
  %2254 = vmatprep.subr.mxu0 0.0
  %2255 = vmatpush1.msra.mxu0 0.0
  %2256 = vmatprep.subr.mxu0 0.0
  %2257 = vmatpush1.msra.mxu0 0.0
  %2258 = vmatprep.subr.mxu0 0.0
  %2259 = vmatpush1.msra.mxu0 0.0
  %2260 = vmatprep.subr.mxu0 0.0
  %2261 = vmatpush1.msra.mxu0 0.0
  %2262 = vmatprep.subr.mxu0 0.0
  %2263 = vmatpush1.msra.mxu0 0.0
  %2264 = vmatprep.subr.mxu0 0.0
  %2265 = vmatpush1.msra.mxu0 0.0
  %2266 = vmatprep.subr.mxu0 0.0
  %2267 = vmatpush1.msra.mxu0 0.0
  %2268 = vmatprep.subr.mxu0 0.0
  %2269 = vmatpush1.msra.mxu0 0.0
  %2270 = vmatprep.subr.mxu0 0.0
  %2271 = vmatpush1.msra.mxu0 0.0
  %2272 = vmatprep.subr.mxu0 0.0
  %2273 = vmatpush1.msra.mxu0 0.0
  %2274 = vmatprep.subr.mxu0 0.0
  %2275 = vmatpush1.msra.mxu0 0.0
  %2276 = vmatprep.subr.mxu0 0.0
  %2277 = vmatpush1.msra.mxu0 0.0
  %2278 = vmatprep.subr.mxu0 0.0
  %2279 = vmatpush1.msra.mxu0 0.0
  %2280 = vmatprep.subr.mxu0 0.0
  %2281 = vmatpush1.msra.mxu0 0.0
  %2282 = vmatprep.subr.mxu0 0.0
  %2283 = vmatpush1.msra.mxu0 0.0
  %2284 = vmatprep.subr.mxu0 0.0
  %2285 = vmatpush1.msra.mxu0 0.0
  %2286 = vmatprep.mubr.f32.mxu0 0.0
  %2287 = vmatmul.mubr.f32.gmra.mrb[0].mxu0 %v2205
  %v2288 = vpop.f32.mrb[0].mxu0
  %v2289 = vadd.f32 0.0, %v2288
  %v2290 = vpop.f32.mrb[0].mxu0
  %2291 = vmatprep.mubr.f32.mxu0 0.0
  %2292 = vmatmul.mubr.f32.gmra.mrb[0].mxu0 %v2208
  %v2293 = vpop.f32.mrb[0].mxu0
  %v2294 = vadd.f32 0.0, %v2293
  %v2295 = vpop.f32.mrb[0].mxu0
  %2296 = vmatprep.mubr.f32.mxu0 0.0
  %2297 = vmatmul.mubr.f32.gmra.mrb[0].mxu0 %v2211
  %v2298 = vpop.f32.mrb[0].mxu0
  %v2299 = vadd.f32 0.0, %v2298
  %v2300 = vpop.f32.mrb[0].mxu0
  %2301 = vmatprep.mubr.f32.mxu0 0.0
  %2302 = vmatmul.mubr.f32.gmra.mrb[0].mxu0 %v2214
  %v2303 = vpop.f32.mrb[0].mxu0
  %v2304 = vadd.f32 0.0, %v2303
  %v2305 = vpop.f32.mrb[0].mxu0
  %2306 = vmatprep.mubr.f32.mxu0 0.0
  %2307 = vmatmul.mubr.f32.gmra.mrb[0].mxu0 %v2217
  %v2308 = vpop.f32.mrb[0].mxu0
  %v2309 = vadd.f32 0.0, %v2308
  %v2310 = vpop.f32.mrb[0].mxu0
  %2311 = vmatprep.mubr.f32.mxu0 0.0
  %2312 = vmatmul.mubr.f32.gmra.mrb[0].mxu0 %v2220
  %v2313 = vpop.f32.mrb[0].mxu0
  %v2314 = vadd.f32 0.0, %v2313
  %v2315 = vpop.f32.mrb[0].mxu0
  %2316 = vdwg.mxu0
  %2317 = vrot.lane.b32.xlu0 %v1601, 96
  %v2318 = vpop.permute.xlu0 %2317
  %2319 = vrot.lane.b32.xlu0 %v1605, 96
  %v2320 = vpop.permute.xlu0 %2319
  %2321 = vrot.lane.b32.xlu0 %v1611, 96
  %v2322 = vpop.permute.xlu0 %2321
  %2323 = vrot.lane.b32.xlu0 %v1615, 96
  %v2324 = vpop.permute.xlu0 %2323
  %2325 = vrot.lane.b32.xlu0 %v1621, 96
  %v2326 = vpop.permute.xlu0 %2325
  %2327 = vrot.lane.b32.xlu0 %v1625, 96
  %v2328 = vpop.permute.xlu0 %2327
  %2329 = vrot.lane.b32.xlu0 %v1601, 32
  %v2330 = vpop.permute.xlu0 %2329
  %2331 = vrot.lane.b32.xlu0 %v1605, 32
  %v2332 = vpop.permute.xlu0 %2331
  %2333 = vrot.lane.b32.xlu0 %v1611, 32
  %v2334 = vpop.permute.xlu0 %2333
  %2335 = vrot.lane.b32.xlu0 %v1615, 32
  %v2336 = vpop.permute.xlu0 %2335
  %2337 = vrot.lane.b32.xlu0 %v1621, 32
  %v2338 = vpop.permute.xlu0 %2337
  %2339 = vrot.lane.b32.xlu0 %v1625, 32
  %v2340 = vpop.permute.xlu0 %2339
  %v2341 = vsel %vm1647, %v2318, 0
  %v2343 = vsel %vm1647, %v2320, 0
  %v2345 = vsel %vm1647, %v2322, 0
  %v2347 = vsel %vm1647, %v2324, 0
  %v2349 = vsel %vm1647, %v2326, 0
  %v2351 = vsel %vm1647, %v2328, 0
  %v2353 = vsel %vm1647, %v2330, 0
  %v2355 = vsel %vm1647, %v2332, 0
  %v2357 = vsel %vm1647, %v2334, 0
  %v2359 = vsel %vm1647, %v2336, 0
  %v2361 = vsel %vm1647, %v2338, 0
  %v2363 = vsel %vm1647, %v2340, 0
  %2365 = vmatprep.subr.mxu0 0.0
  %2366 = vmatpush1.xpose.msra.mxu0 %v2353
  %2367 = vmatprep.subr.mxu0 0.0
  %2368 = vmatpush1.xpose.msra.mxu0 %v2355
  %2369 = vmatprep.subr.mxu0 0.0
  %2370 = vmatpush1.xpose.msra.mxu0 %v2357
  %2371 = vmatprep.subr.mxu0 0.0
  %2372 = vmatpush1.xpose.msra.mxu0 %v2359
  %2373 = vmatprep.subr.mxu0 0.0
  %2374 = vmatpush1.xpose.msra.mxu0 %v2361
  %2375 = vmatprep.subr.mxu0 0.0
  %2376 = vmatpush1.xpose.msra.mxu0 %v2363
  %2377 = vmatprep.subr.mxu0 0.0
  %2378 = vmatpush1.xpose.msra.mxu0 0.0
  %2379 = vmatprep.subr.mxu0 0.0
  %2380 = vmatpush1.xpose.msra.mxu0 0.0
  %2381 = vmatprep.subr.mxu0 0.0
  %2382 = vmatpush1.xpose.msra.mxu0 0.0
  %2383 = vmatprep.subr.mxu0 0.0
  %2384 = vmatpush1.xpose.msra.mxu0 0.0
  %2385 = vmatprep.subr.mxu0 0.0
  %2386 = vmatpush1.xpose.msra.mxu0 0.0
  %2387 = vmatprep.subr.mxu0 0.0
  %2388 = vmatpush1.xpose.msra.mxu0 0.0
  %2389 = vmatprep.subr.mxu0 0.0
  %2390 = vmatpush1.xpose.msra.mxu0 0.0
  %2391 = vmatprep.subr.mxu0 0.0
  %2392 = vmatpush1.xpose.msra.mxu0 0.0
  %2393 = vmatprep.subr.mxu0 0.0
  %2394 = vmatpush1.xpose.msra.mxu0 0.0
  %2395 = vmatprep.subr.mxu0 0.0
  %2396 = vmatpush1.xpose.msra.mxu0 0.0
  %2397 = vmatprep.subr.mxu0 0.0
  %2398 = vmatpush1.xpose.msra.mxu0 0.0
  %2399 = vmatprep.subr.mxu0 0.0
  %2400 = vmatpush1.xpose.msra.mxu0 0.0
  %2401 = vmatprep.subr.mxu0 0.0
  %2402 = vmatpush1.xpose.msra.mxu0 0.0
  %2403 = vmatprep.subr.mxu0 0.0
  %2404 = vmatpush1.xpose.msra.mxu0 0.0
  %2405 = vmatprep.subr.mxu0 0.0
  %2406 = vmatpush1.xpose.msra.mxu0 0.0
  %2407 = vmatprep.subr.mxu0 0.0
  %2408 = vmatpush1.xpose.msra.mxu0 0.0
  %2409 = vmatprep.subr.mxu0 0.0
  %2410 = vmatpush1.xpose.msra.mxu0 0.0
  %2411 = vmatprep.subr.mxu0 0.0
  %2412 = vmatpush1.xpose.msra.mxu0 0.0
  %2413 = vmatprep.subr.mxu0 0.0
  %2414 = vmatpush1.xpose.msra.mxu0 0.0
  %2415 = vmatprep.subr.mxu0 0.0
  %2416 = vmatpush1.xpose.msra.mxu0 0.0
  %2417 = vmatprep.subr.mxu0 0.0
  %2418 = vmatpush1.xpose.msra.mxu0 0.0
  %2419 = vmatprep.subr.mxu0 0.0
  %2420 = vmatpush1.xpose.msra.mxu0 0.0
  %2421 = vmatprep.subr.mxu0 0.0
  %2422 = vmatpush1.xpose.msra.mxu0 0.0
  %2423 = vmatprep.subr.mxu0 0.0
  %2424 = vmatpush1.xpose.msra.mxu0 0.0
  %2425 = vmatprep.subr.mxu0 0.0
  %2426 = vmatpush1.xpose.msra.mxu0 0.0
  %2427 = vmatprep.subr.mxu0 0.0
  %2428 = vmatpush1.xpose.msra.mxu0 0.0
  %2429 = vmatprep.mubr.f32.mxu0 0.0
  %2430 = vmatmul.mubr.f32.gmra.mrb[0].mxu0 %v2341
  %v2431 = vpop.f32.mrb[0].mxu0
  %v2432 = vadd.f32 0.0, %v2431
  %v2433 = vpop.f32.mrb[0].mxu0
  %2434 = vmatprep.mubr.f32.mxu0 0.0
  %2435 = vmatmul.mubr.f32.gmra.mrb[0].mxu0 %v2343
  %v2436 = vpop.f32.mrb[0].mxu0
  %v2437 = vadd.f32 0.0, %v2436
  %v2438 = vpop.f32.mrb[0].mxu0
  %2439 = vmatprep.mubr.f32.mxu0 0.0
  %2440 = vmatmul.mubr.f32.gmra.mrb[0].mxu0 %v2345
  %v2441 = vpop.f32.mrb[0].mxu0
  %v2442 = vadd.f32 0.0, %v2441
  %v2443 = vpop.f32.mrb[0].mxu0
  %2444 = vmatprep.mubr.f32.mxu0 0.0
  %2445 = vmatmul.mubr.f32.gmra.mrb[0].mxu0 %v2347
  %v2446 = vpop.f32.mrb[0].mxu0
  %v2447 = vadd.f32 0.0, %v2446
  %v2448 = vpop.f32.mrb[0].mxu0
  %2449 = vmatprep.mubr.f32.mxu0 0.0
  %2450 = vmatmul.mubr.f32.gmra.mrb[0].mxu0 %v2349
  %v2451 = vpop.f32.mrb[0].mxu0
  %v2452 = vadd.f32 0.0, %v2451
  %v2453 = vpop.f32.mrb[0].mxu0
  %2454 = vmatprep.mubr.f32.mxu0 0.0
  %2455 = vmatmul.mubr.f32.gmra.mrb[0].mxu0 %v2351
  %v2456 = vpop.f32.mrb[0].mxu0
  %v2457 = vadd.f32 0.0, %v2456
  %v2458 = vpop.f32.mrb[0].mxu0
  %2459 = vdwg.mxu0
  %v2460 = vmul.f32 %v2432, 0.25
  %v2461 = vmul.f32 %v2437, 0.25
  %v2462 = vmul.f32 %v2442, 0.25
  %v2463 = vmul.f32 %v2447, 0.25
  %v2464 = vmul.f32 %v2452, 0.25
  %v2465 = vmul.f32 %v2457, 0.25
  %v2466 = vadd.f32 %v2460, %v1409
  %v2467 = vadd.f32 %v2461, %v1410
  %v2468 = vadd.f32 %v2462, %v1411
  %v2469 = vadd.f32 %v2463, %v1412
  %v2470 = vadd.f32 %v2464, %v1413
  %v2471 = vadd.f32 %v2465, %v1414
  %v2472 = vsel %vm1779, %v2466, -inf
  %2473 = vmax.xlane.f32.xlu0 %v2472
  %v2474 = vpop.xlane.xlu0 %2473
  %v2475 = vsel %vm1779, %v2467, -inf
  %2476 = vmax.xlane.f32.xlu0 %v2475
  %v2477 = vpop.xlane.xlu0 %2476
  %v2478 = vsel %vm1779, %v2468, -inf
  %2479 = vmax.xlane.f32.xlu0 %v2478
  %v2480 = vpop.xlane.xlu0 %2479
  %v2481 = vsel %vm1779, %v2469, -inf
  %2482 = vmax.xlane.f32.xlu0 %v2481
  %v2483 = vpop.xlane.xlu0 %2482
  %v2484 = vsel %vm1779, %v2470, -inf
  %2485 = vmax.xlane.f32.xlu0 %v2484
  %v2486 = vpop.xlane.xlu0 %2485
  %v2487 = vsel %vm1779, %v2471, -inf
  %2488 = vmax.xlane.f32.xlu0 %v2487
  %v2489 = vpop.xlane.xlu0 %2488
  %v2490 = vsub.f32 %v2466, %v2474
  %v2491 = vsub.f32 %v2467, %v2477
  %v2492 = vsub.f32 %v2468, %v2480
  %v2493 = vsub.f32 %v2469, %v2483
  %v2494 = vsub.f32 %v2470, %v2486
  %v2495 = vsub.f32 %v2471, %v2489
  %v2496 = vmul.f32 %v2490, 1.442695
  %v2497 = vpow.pop %v2496
  %v2498 = vmul.f32 %v2491, 1.442695
  %v2499 = vpow.pop %v2498
  %v2500 = vmul.f32 %v2492, 1.442695
  %v2501 = vpow.pop %v2500
  %v2502 = vmul.f32 %v2493, 1.442695
  %v2503 = vpow.pop %v2502
  %v2504 = vmul.f32 %v2494, 1.442695
  %v2505 = vpow.pop %v2504
  %v2506 = vmul.f32 %v2495, 1.442695
  %v2507 = vpow.pop %v2506
  %v2508 = vsel %vm1779, %v2497, 0.0
  %2509 = vadd.xlane.f32.xlu0 %v2508
  %v2510 = vpop.xlane.xlu0 %2509
  %v2511 = vsel %vm1779, %v2499, 0.0
  %2512 = vadd.xlane.f32.xlu0 %v2511
  %v2513 = vpop.xlane.xlu0 %2512
  %v2514 = vsel %vm1779, %v2501, 0.0
  %2515 = vadd.xlane.f32.xlu0 %v2514
  %v2516 = vpop.xlane.xlu0 %2515
  %v2517 = vsel %vm1779, %v2503, 0.0
  %2518 = vadd.xlane.f32.xlu0 %v2517
  %v2519 = vpop.xlane.xlu0 %2518
  %v2520 = vsel %vm1779, %v2505, 0.0
  %2521 = vadd.xlane.f32.xlu0 %v2520
  %v2522 = vpop.xlane.xlu0 %2521
  %v2523 = vsel %vm1779, %v2507, 0.0
  %2524 = vadd.xlane.f32.xlu0 %v2523
  %v2525 = vpop.xlane.xlu0 %2524
  %v2526 = vrcp.pop %v2510
  %v2527 = vrcp.pop %v2513
  %v2528 = vrcp.pop %v2516
  %v2529 = vrcp.pop %v2519
  %v2530 = vrcp.pop %v2522
  %v2531 = vrcp.pop %v2525
  %v2532 = vmul.f32 %v2497, %v2526
  %v2533 = vmul.f32 %v2499, %v2527
  %v2534 = vmul.f32 %v2501, %v2528
  %v2535 = vmul.f32 %v2503, %v2529
  %v2536 = vmul.f32 %v2505, %v2530
  %v2537 = vmul.f32 %v2507, %v2531
  %2538 = vrot.lane.b32.xlu0 %v1603, 96
  %v2539 = vpop.permute.xlu0 %2538
  %2540 = vrot.lane.b32.xlu0 %v1607, 96
  %v2541 = vpop.permute.xlu0 %2540
  %2542 = vrot.lane.b32.xlu0 %v1613, 96
  %v2543 = vpop.permute.xlu0 %2542
  %2544 = vrot.lane.b32.xlu0 %v1617, 96
  %v2545 = vpop.permute.xlu0 %2544
  %2546 = vrot.lane.b32.xlu0 %v1623, 96
  %v2547 = vpop.permute.xlu0 %2546
  %2548 = vrot.lane.b32.xlu0 %v1627, 96
  %v2549 = vpop.permute.xlu0 %2548
  %v2557 = vsel %vm1779, %v2532, 0
  %v2560 = vsel %vm1779, %v2533, 0
  %v2563 = vsel %vm1779, %v2534, 0
  %v2566 = vsel %vm1779, %v2535, 0
  %v2569 = vsel %vm1779, %v2536, 0
  %v2572 = vsel %vm1779, %v2537, 0
  %2574 = vmatprep.subr.mxu0 0.0
  %2575 = vmatpush1.msra.mxu0 %v2539
  %2576 = vmatprep.subr.mxu0 0.0
  %2577 = vmatpush1.msra.mxu0 %v2541
  %2578 = vmatprep.subr.mxu0 0.0
  %2579 = vmatpush1.msra.mxu0 %v2543
  %2580 = vmatprep.subr.mxu0 0.0
  %2581 = vmatpush1.msra.mxu0 %v2545
  %2582 = vmatprep.subr.mxu0 0.0
  %2583 = vmatpush1.msra.mxu0 %v2547
  %2584 = vmatprep.subr.mxu0 0.0
  %2585 = vmatpush1.msra.mxu0 %v2549
  %2586 = vmatprep.subr.mxu0 0.0
  %2587 = vmatpush1.msra.mxu0 0.0
  %2588 = vmatprep.subr.mxu0 0.0
  %2589 = vmatpush1.msra.mxu0 0.0
  %2590 = vmatprep.subr.mxu0 0.0
  %2591 = vmatpush1.msra.mxu0 0.0
  %2592 = vmatprep.subr.mxu0 0.0
  %2593 = vmatpush1.msra.mxu0 0.0
  %2594 = vmatprep.subr.mxu0 0.0
  %2595 = vmatpush1.msra.mxu0 0.0
  %2596 = vmatprep.subr.mxu0 0.0
  %2597 = vmatpush1.msra.mxu0 0.0
  %2598 = vmatprep.subr.mxu0 0.0
  %2599 = vmatpush1.msra.mxu0 0.0
  %2600 = vmatprep.subr.mxu0 0.0
  %2601 = vmatpush1.msra.mxu0 0.0
  %2602 = vmatprep.subr.mxu0 0.0
  %2603 = vmatpush1.msra.mxu0 0.0
  %2604 = vmatprep.subr.mxu0 0.0
  %2605 = vmatpush1.msra.mxu0 0.0
  %2606 = vmatprep.subr.mxu0 0.0
  %2607 = vmatpush1.msra.mxu0 0.0
  %2608 = vmatprep.subr.mxu0 0.0
  %2609 = vmatpush1.msra.mxu0 0.0
  %2610 = vmatprep.subr.mxu0 0.0
  %2611 = vmatpush1.msra.mxu0 0.0
  %2612 = vmatprep.subr.mxu0 0.0
  %2613 = vmatpush1.msra.mxu0 0.0
  %2614 = vmatprep.subr.mxu0 0.0
  %2615 = vmatpush1.msra.mxu0 0.0
  %2616 = vmatprep.subr.mxu0 0.0
  %2617 = vmatpush1.msra.mxu0 0.0
  %2618 = vmatprep.subr.mxu0 0.0
  %2619 = vmatpush1.msra.mxu0 0.0
  %2620 = vmatprep.subr.mxu0 0.0
  %2621 = vmatpush1.msra.mxu0 0.0
  %2622 = vmatprep.subr.mxu0 0.0
  %2623 = vmatpush1.msra.mxu0 0.0
  %2624 = vmatprep.subr.mxu0 0.0
  %2625 = vmatpush1.msra.mxu0 0.0
  %2626 = vmatprep.subr.mxu0 0.0
  %2627 = vmatpush1.msra.mxu0 0.0
  %2628 = vmatprep.subr.mxu0 0.0
  %2629 = vmatpush1.msra.mxu0 0.0
  %2630 = vmatprep.subr.mxu0 0.0
  %2631 = vmatpush1.msra.mxu0 0.0
  %2632 = vmatprep.subr.mxu0 0.0
  %2633 = vmatpush1.msra.mxu0 0.0
  %2634 = vmatprep.subr.mxu0 0.0
  %2635 = vmatpush1.msra.mxu0 0.0
  %2636 = vmatprep.subr.mxu0 0.0
  %2637 = vmatpush1.msra.mxu0 0.0
  %2638 = vmatprep.mubr.f32.mxu0 0.0
  %2639 = vmatmul.mubr.f32.gmra.mrb[0].mxu0 %v2557
  %v2640 = vpop.f32.mrb[0].mxu0
  %v2641 = vadd.f32 0.0, %v2640
  %v2642 = vpop.f32.mrb[0].mxu0
  %2643 = vmatprep.mubr.f32.mxu0 0.0
  %2644 = vmatmul.mubr.f32.gmra.mrb[0].mxu0 %v2560
  %v2645 = vpop.f32.mrb[0].mxu0
  %v2646 = vadd.f32 0.0, %v2645
  %v2647 = vpop.f32.mrb[0].mxu0
  %2648 = vmatprep.mubr.f32.mxu0 0.0
  %2649 = vmatmul.mubr.f32.gmra.mrb[0].mxu0 %v2563
  %v2650 = vpop.f32.mrb[0].mxu0
  %v2651 = vadd.f32 0.0, %v2650
  %v2652 = vpop.f32.mrb[0].mxu0
  %2653 = vmatprep.mubr.f32.mxu0 0.0
  %2654 = vmatmul.mubr.f32.gmra.mrb[0].mxu0 %v2566
  %v2655 = vpop.f32.mrb[0].mxu0
  %v2656 = vadd.f32 0.0, %v2655
  %v2657 = vpop.f32.mrb[0].mxu0
  %2658 = vmatprep.mubr.f32.mxu0 0.0
  %2659 = vmatmul.mubr.f32.gmra.mrb[0].mxu0 %v2569
  %v2660 = vpop.f32.mrb[0].mxu0
  %v2661 = vadd.f32 0.0, %v2660
  %v2662 = vpop.f32.mrb[0].mxu0
  %2663 = vmatprep.mubr.f32.mxu0 0.0
  %2664 = vmatmul.mubr.f32.gmra.mrb[0].mxu0 %v2572
  %v2665 = vpop.f32.mrb[0].mxu0
  %v2666 = vadd.f32 0.0, %v2665
  %v2667 = vpop.f32.mrb[0].mxu0
  %2668 = vdwg.mxu0
  %2669 = vrot.lane.b32.xlu0 %v1601, 80
  %v2670 = vpop.permute.xlu0 %2669
  %2671 = vrot.lane.b32.xlu0 %v1605, 80
  %v2672 = vpop.permute.xlu0 %2671
  %2673 = vrot.lane.b32.xlu0 %v1611, 80
  %v2674 = vpop.permute.xlu0 %2673
  %2675 = vrot.lane.b32.xlu0 %v1615, 80
  %v2676 = vpop.permute.xlu0 %2675
  %2677 = vrot.lane.b32.xlu0 %v1621, 80
  %v2678 = vpop.permute.xlu0 %2677
  %2679 = vrot.lane.b32.xlu0 %v1625, 80
  %v2680 = vpop.permute.xlu0 %2679
  %2681 = vrot.lane.b32.xlu0 %v1601, 16
  %v2682 = vpop.permute.xlu0 %2681
  %2683 = vrot.lane.b32.xlu0 %v1605, 16
  %v2684 = vpop.permute.xlu0 %2683
  %2685 = vrot.lane.b32.xlu0 %v1611, 16
  %v2686 = vpop.permute.xlu0 %2685
  %2687 = vrot.lane.b32.xlu0 %v1615, 16
  %v2688 = vpop.permute.xlu0 %2687
  %2689 = vrot.lane.b32.xlu0 %v1621, 16
  %v2690 = vpop.permute.xlu0 %2689
  %2691 = vrot.lane.b32.xlu0 %v1625, 16
  %v2692 = vpop.permute.xlu0 %2691
  %v2693 = vsel %vm1647, %v2670, 0
  %v2695 = vsel %vm1647, %v2672, 0
  %v2697 = vsel %vm1647, %v2674, 0
  %v2699 = vsel %vm1647, %v2676, 0
  %v2701 = vsel %vm1647, %v2678, 0
  %v2703 = vsel %vm1647, %v2680, 0
  %v2705 = vsel %vm1647, %v2682, 0
  %v2707 = vsel %vm1647, %v2684, 0
  %v2709 = vsel %vm1647, %v2686, 0
  %v2711 = vsel %vm1647, %v2688, 0
  %v2713 = vsel %vm1647, %v2690, 0
  %v2715 = vsel %vm1647, %v2692, 0
  %2717 = vmatprep.subr.mxu0 0.0
  %2718 = vmatpush1.xpose.msra.mxu0 %v2705
  %2719 = vmatprep.subr.mxu0 0.0
  %2720 = vmatpush1.xpose.msra.mxu0 %v2707
  %2721 = vmatprep.subr.mxu0 0.0
  %2722 = vmatpush1.xpose.msra.mxu0 %v2709
  %2723 = vmatprep.subr.mxu0 0.0
  %2724 = vmatpush1.xpose.msra.mxu0 %v2711
  %2725 = vmatprep.subr.mxu0 0.0
  %2726 = vmatpush1.xpose.msra.mxu0 %v2713
  %2727 = vmatprep.subr.mxu0 0.0
  %2728 = vmatpush1.xpose.msra.mxu0 %v2715
  %2729 = vmatprep.subr.mxu0 0.0
  %2730 = vmatpush1.xpose.msra.mxu0 0.0
  %2731 = vmatprep.subr.mxu0 0.0
  %2732 = vmatpush1.xpose.msra.mxu0 0.0
  %2733 = vmatprep.subr.mxu0 0.0
  %2734 = vmatpush1.xpose.msra.mxu0 0.0
  %2735 = vmatprep.subr.mxu0 0.0
  %2736 = vmatpush1.xpose.msra.mxu0 0.0
  %2737 = vmatprep.subr.mxu0 0.0
  %2738 = vmatpush1.xpose.msra.mxu0 0.0
  %2739 = vmatprep.subr.mxu0 0.0
  %2740 = vmatpush1.xpose.msra.mxu0 0.0
  %2741 = vmatprep.subr.mxu0 0.0
  %2742 = vmatpush1.xpose.msra.mxu0 0.0
  %2743 = vmatprep.subr.mxu0 0.0
  %2744 = vmatpush1.xpose.msra.mxu0 0.0
  %2745 = vmatprep.subr.mxu0 0.0
  %2746 = vmatpush1.xpose.msra.mxu0 0.0
  %2747 = vmatprep.subr.mxu0 0.0
  %2748 = vmatpush1.xpose.msra.mxu0 0.0
  %2749 = vmatprep.subr.mxu0 0.0
  %2750 = vmatpush1.xpose.msra.mxu0 0.0
  %2751 = vmatprep.subr.mxu0 0.0
  %2752 = vmatpush1.xpose.msra.mxu0 0.0
  %2753 = vmatprep.subr.mxu0 0.0
  %2754 = vmatpush1.xpose.msra.mxu0 0.0
  %2755 = vmatprep.subr.mxu0 0.0
  %2756 = vmatpush1.xpose.msra.mxu0 0.0
  %2757 = vmatprep.subr.mxu0 0.0
  %2758 = vmatpush1.xpose.msra.mxu0 0.0
  %2759 = vmatprep.subr.mxu0 0.0
  %2760 = vmatpush1.xpose.msra.mxu0 0.0
  %2761 = vmatprep.subr.mxu0 0.0
  %2762 = vmatpush1.xpose.msra.mxu0 0.0
  %2763 = vmatprep.subr.mxu0 0.0
  %2764 = vmatpush1.xpose.msra.mxu0 0.0
  %2765 = vmatprep.subr.mxu0 0.0
  %2766 = vmatpush1.xpose.msra.mxu0 0.0
  %2767 = vmatprep.subr.mxu0 0.0
  %2768 = vmatpush1.xpose.msra.mxu0 0.0
  %2769 = vmatprep.subr.mxu0 0.0
  %2770 = vmatpush1.xpose.msra.mxu0 0.0
  %2771 = vmatprep.subr.mxu0 0.0
  %2772 = vmatpush1.xpose.msra.mxu0 0.0
  %2773 = vmatprep.subr.mxu0 0.0
  %2774 = vmatpush1.xpose.msra.mxu0 0.0
  %2775 = vmatprep.subr.mxu0 0.0
  %2776 = vmatpush1.xpose.msra.mxu0 0.0
  %2777 = vmatprep.subr.mxu0 0.0
  %2778 = vmatpush1.xpose.msra.mxu0 0.0
  %2779 = vmatprep.subr.mxu0 0.0
  %2780 = vmatpush1.xpose.msra.mxu0 0.0
  %2781 = vmatprep.mubr.f32.mxu0 0.0
  %2782 = vmatmul.mubr.f32.gmra.mrb[0].mxu0 %v2693
  %v2783 = vpop.f32.mrb[0].mxu0
  %v2784 = vadd.f32 0.0, %v2783
  %v2785 = vpop.f32.mrb[0].mxu0
  %2786 = vmatprep.mubr.f32.mxu0 0.0
  %2787 = vmatmul.mubr.f32.gmra.mrb[0].mxu0 %v2695
  %v2788 = vpop.f32.mrb[0].mxu0
  %v2789 = vadd.f32 0.0, %v2788
  %v2790 = vpop.f32.mrb[0].mxu0
  %2791 = vmatprep.mubr.f32.mxu0 0.0
  %2792 = vmatmul.mubr.f32.gmra.mrb[0].mxu0 %v2697
  %v2793 = vpop.f32.mrb[0].mxu0
  %v2794 = vadd.f32 0.0, %v2793
  %v2795 = vpop.f32.mrb[0].mxu0
  %2796 = vmatprep.mubr.f32.mxu0 0.0
  %2797 = vmatmul.mubr.f32.gmra.mrb[0].mxu0 %v2699
  %v2798 = vpop.f32.mrb[0].mxu0
  %v2799 = vadd.f32 0.0, %v2798
  %v2800 = vpop.f32.mrb[0].mxu0
  %2801 = vmatprep.mubr.f32.mxu0 0.0
  %2802 = vmatmul.mubr.f32.gmra.mrb[0].mxu0 %v2701
  %v2803 = vpop.f32.mrb[0].mxu0
  %v2804 = vadd.f32 0.0, %v2803
  %v2805 = vpop.f32.mrb[0].mxu0
  %2806 = vmatprep.mubr.f32.mxu0 0.0
  %2807 = vmatmul.mubr.f32.gmra.mrb[0].mxu0 %v2703
  %v2808 = vpop.f32.mrb[0].mxu0
  %v2809 = vadd.f32 0.0, %v2808
  %v2810 = vpop.f32.mrb[0].mxu0
  %2811 = vdwg.mxu0
  %v2812 = vmul.f32 %v2784, 0.25
  %v2813 = vmul.f32 %v2789, 0.25
  %v2814 = vmul.f32 %v2794, 0.25
  %v2815 = vmul.f32 %v2799, 0.25
  %v2816 = vmul.f32 %v2804, 0.25
  %v2817 = vmul.f32 %v2809, 0.25
  %v2818 = vadd.f32 %v2812, %v1409
  %v2819 = vadd.f32 %v2813, %v1410
  %v2820 = vadd.f32 %v2814, %v1411
  %v2821 = vadd.f32 %v2815, %v1412
  %v2822 = vadd.f32 %v2816, %v1413
  %v2823 = vadd.f32 %v2817, %v1414
  %v2824 = vsel %vm1779, %v2818, -inf
  %2825 = vmax.xlane.f32.xlu0 %v2824
  %v2826 = vpop.xlane.xlu0 %2825
  %v2827 = vsel %vm1779, %v2819, -inf
  %2828 = vmax.xlane.f32.xlu0 %v2827
  %v2829 = vpop.xlane.xlu0 %2828
  %v2830 = vsel %vm1779, %v2820, -inf
  %2831 = vmax.xlane.f32.xlu0 %v2830
  %v2832 = vpop.xlane.xlu0 %2831
  %v2833 = vsel %vm1779, %v2821, -inf
  %2834 = vmax.xlane.f32.xlu0 %v2833
  %v2835 = vpop.xlane.xlu0 %2834
  %v2836 = vsel %vm1779, %v2822, -inf
  %2837 = vmax.xlane.f32.xlu0 %v2836
  %v2838 = vpop.xlane.xlu0 %2837
  %v2839 = vsel %vm1779, %v2823, -inf
  %2840 = vmax.xlane.f32.xlu0 %v2839
  %v2841 = vpop.xlane.xlu0 %2840
  %v2842 = vsub.f32 %v2818, %v2826
  %v2843 = vsub.f32 %v2819, %v2829
  %v2844 = vsub.f32 %v2820, %v2832
  %v2845 = vsub.f32 %v2821, %v2835
  %v2846 = vsub.f32 %v2822, %v2838
  %v2847 = vsub.f32 %v2823, %v2841
  %v2848 = vmul.f32 %v2842, 1.442695
  %v2849 = vpow.pop %v2848
  %v2850 = vmul.f32 %v2843, 1.442695
  %v2851 = vpow.pop %v2850
  %v2852 = vmul.f32 %v2844, 1.442695
  %v2853 = vpow.pop %v2852
  %v2854 = vmul.f32 %v2845, 1.442695
  %v2855 = vpow.pop %v2854
  %v2856 = vmul.f32 %v2846, 1.442695
  %v2857 = vpow.pop %v2856
  %v2858 = vmul.f32 %v2847, 1.442695
  %v2859 = vpow.pop %v2858
  %v2860 = vsel %vm1779, %v2849, 0.0
  %2861 = vadd.xlane.f32.xlu0 %v2860
  %v2862 = vpop.xlane.xlu0 %2861
  %v2863 = vsel %vm1779, %v2851, 0.0
  %2864 = vadd.xlane.f32.xlu0 %v2863
  %v2865 = vpop.xlane.xlu0 %2864
  %v2866 = vsel %vm1779, %v2853, 0.0
  %2867 = vadd.xlane.f32.xlu0 %v2866
  %v2868 = vpop.xlane.xlu0 %2867
  %v2869 = vsel %vm1779, %v2855, 0.0
  %2870 = vadd.xlane.f32.xlu0 %v2869
  %v2871 = vpop.xlane.xlu0 %2870
  %v2872 = vsel %vm1779, %v2857, 0.0
  %2873 = vadd.xlane.f32.xlu0 %v2872
  %v2874 = vpop.xlane.xlu0 %2873
  %v2875 = vsel %vm1779, %v2859, 0.0
  %2876 = vadd.xlane.f32.xlu0 %v2875
  %v2877 = vpop.xlane.xlu0 %2876
  %v2878 = vrcp.pop %v2862
  %v2879 = vrcp.pop %v2865
  %v2880 = vrcp.pop %v2868
  %v2881 = vrcp.pop %v2871
  %v2882 = vrcp.pop %v2874
  %v2883 = vrcp.pop %v2877
  %v2884 = vmul.f32 %v2849, %v2878
  %v2885 = vmul.f32 %v2851, %v2879
  %v2886 = vmul.f32 %v2853, %v2880
  %v2887 = vmul.f32 %v2855, %v2881
  %v2888 = vmul.f32 %v2857, %v2882
  %v2889 = vmul.f32 %v2859, %v2883
  %2890 = vrot.lane.b32.xlu0 %v1603, 80
  %v2891 = vpop.permute.xlu0 %2890
  %2892 = vrot.lane.b32.xlu0 %v1607, 80
  %v2893 = vpop.permute.xlu0 %2892
  %2894 = vrot.lane.b32.xlu0 %v1613, 80
  %v2895 = vpop.permute.xlu0 %2894
  %2896 = vrot.lane.b32.xlu0 %v1617, 80
  %v2897 = vpop.permute.xlu0 %2896
  %2898 = vrot.lane.b32.xlu0 %v1623, 80
  %v2899 = vpop.permute.xlu0 %2898
  %2900 = vrot.lane.b32.xlu0 %v1627, 80
  %v2901 = vpop.permute.xlu0 %2900
  %v2909 = vsel %vm1779, %v2884, 0
  %v2912 = vsel %vm1779, %v2885, 0
  %v2915 = vsel %vm1779, %v2886, 0
  %v2918 = vsel %vm1779, %v2887, 0
  %v2921 = vsel %vm1779, %v2888, 0
  %v2924 = vsel %vm1779, %v2889, 0
  %2926 = vmatprep.subr.mxu0 0.0
  %2927 = vmatpush1.msra.mxu0 %v2891
  %2928 = vmatprep.subr.mxu0 0.0
  %2929 = vmatpush1.msra.mxu0 %v2893
  %2930 = vmatprep.subr.mxu0 0.0
  %2931 = vmatpush1.msra.mxu0 %v2895
  %2932 = vmatprep.subr.mxu0 0.0
  %2933 = vmatpush1.msra.mxu0 %v2897
  %2934 = vmatprep.subr.mxu0 0.0
  %2935 = vmatpush1.msra.mxu0 %v2899
  %2936 = vmatprep.subr.mxu0 0.0
  %2937 = vmatpush1.msra.mxu0 %v2901
  %2938 = vmatprep.subr.mxu0 0.0
  %2939 = vmatpush1.msra.mxu0 0.0
  %2940 = vmatprep.subr.mxu0 0.0
  %2941 = vmatpush1.msra.mxu0 0.0
  %2942 = vmatprep.subr.mxu0 0.0
  %2943 = vmatpush1.msra.mxu0 0.0
  %2944 = vmatprep.subr.mxu0 0.0
  %2945 = vmatpush1.msra.mxu0 0.0
  %2946 = vmatprep.subr.mxu0 0.0
  %2947 = vmatpush1.msra.mxu0 0.0
  %2948 = vmatprep.subr.mxu0 0.0
  %2949 = vmatpush1.msra.mxu0 0.0
  %2950 = vmatprep.subr.mxu0 0.0
  %2951 = vmatpush1.msra.mxu0 0.0
  %2952 = vmatprep.subr.mxu0 0.0
  %2953 = vmatpush1.msra.mxu0 0.0
  %2954 = vmatprep.subr.mxu0 0.0
  %2955 = vmatpush1.msra.mxu0 0.0
  %2956 = vmatprep.subr.mxu0 0.0
  %2957 = vmatpush1.msra.mxu0 0.0
  %2958 = vmatprep.subr.mxu0 0.0
  %2959 = vmatpush1.msra.mxu0 0.0
  %2960 = vmatprep.subr.mxu0 0.0
  %2961 = vmatpush1.msra.mxu0 0.0
  %2962 = vmatprep.subr.mxu0 0.0
  %2963 = vmatpush1.msra.mxu0 0.0
  %2964 = vmatprep.subr.mxu0 0.0
  %2965 = vmatpush1.msra.mxu0 0.0
  %2966 = vmatprep.subr.mxu0 0.0
  %2967 = vmatpush1.msra.mxu0 0.0
  %2968 = vmatprep.subr.mxu0 0.0
  %2969 = vmatpush1.msra.mxu0 0.0
  %2970 = vmatprep.subr.mxu0 0.0
  %2971 = vmatpush1.msra.mxu0 0.0
  %2972 = vmatprep.subr.mxu0 0.0
  %2973 = vmatpush1.msra.mxu0 0.0
  %2974 = vmatprep.subr.mxu0 0.0
  %2975 = vmatpush1.msra.mxu0 0.0
  %2976 = vmatprep.subr.mxu0 0.0
  %2977 = vmatpush1.msra.mxu0 0.0
  %2978 = vmatprep.subr.mxu0 0.0
  %2979 = vmatpush1.msra.mxu0 0.0
  %2980 = vmatprep.subr.mxu0 0.0
  %2981 = vmatpush1.msra.mxu0 0.0
  %2982 = vmatprep.subr.mxu0 0.0
  %2983 = vmatpush1.msra.mxu0 0.0
  %2984 = vmatprep.subr.mxu0 0.0
  %2985 = vmatpush1.msra.mxu0 0.0
  %2986 = vmatprep.subr.mxu0 0.0
  %2987 = vmatpush1.msra.mxu0 0.0
  %2988 = vmatprep.subr.mxu0 0.0
  %2989 = vmatpush1.msra.mxu0 0.0
  %2990 = vmatprep.mubr.f32.mxu0 0.0
  %2991 = vmatmul.mubr.f32.gmra.mrb[0].mxu0 %v2909
  %v2992 = vpop.f32.mrb[0].mxu0
  %v2993 = vadd.f32 0.0, %v2992
  %v2994 = vpop.f32.mrb[0].mxu0
  %2995 = vmatprep.mubr.f32.mxu0 0.0
  %2996 = vmatmul.mubr.f32.gmra.mrb[0].mxu0 %v2912
  %v2997 = vpop.f32.mrb[0].mxu0
  %v2998 = vadd.f32 0.0, %v2997
  %v2999 = vpop.f32.mrb[0].mxu0
  %3000 = vmatprep.mubr.f32.mxu0 0.0
  %3001 = vmatmul.mubr.f32.gmra.mrb[0].mxu0 %v2915
  %v3002 = vpop.f32.mrb[0].mxu0
  %v3003 = vadd.f32 0.0, %v3002
  %v3004 = vpop.f32.mrb[0].mxu0
  %3005 = vmatprep.mubr.f32.mxu0 0.0
  %3006 = vmatmul.mubr.f32.gmra.mrb[0].mxu0 %v2918
  %v3007 = vpop.f32.mrb[0].mxu0
  %v3008 = vadd.f32 0.0, %v3007
  %v3009 = vpop.f32.mrb[0].mxu0
  %3010 = vmatprep.mubr.f32.mxu0 0.0
  %3011 = vmatmul.mubr.f32.gmra.mrb[0].mxu0 %v2921
  %v3012 = vpop.f32.mrb[0].mxu0
  %v3013 = vadd.f32 0.0, %v3012
  %v3014 = vpop.f32.mrb[0].mxu0
  %3015 = vmatprep.mubr.f32.mxu0 0.0
  %3016 = vmatmul.mubr.f32.gmra.mrb[0].mxu0 %v2924
  %v3017 = vpop.f32.mrb[0].mxu0
  %v3018 = vadd.f32 0.0, %v3017
  %v3019 = vpop.f32.mrb[0].mxu0
  %3020 = vdwg.mxu0
  %3027 = vrot.lane.b32.xlu0 %v2289, 16
  %v3028 = vpop.permute.xlu0 %3027
  %3029 = vrot.lane.b32.xlu0 %v2294, 16
  %v3030 = vpop.permute.xlu0 %3029
  %3031 = vrot.lane.b32.xlu0 %v2299, 16
  %v3032 = vpop.permute.xlu0 %3031
  %3033 = vrot.lane.b32.xlu0 %v2304, 16
  %v3034 = vpop.permute.xlu0 %3033
  %3035 = vrot.lane.b32.xlu0 %v2309, 16
  %v3036 = vpop.permute.xlu0 %3035
  %3037 = vrot.lane.b32.xlu0 %v2314, 16
  %v3038 = vpop.permute.xlu0 %3037
  %3051 = vrot.lane.b32.xlu0 %v2641, 32
  %v3052 = vpop.permute.xlu0 %3051
  %3053 = vrot.lane.b32.xlu0 %v2646, 32
  %v3054 = vpop.permute.xlu0 %3053
  %3055 = vrot.lane.b32.xlu0 %v2651, 32
  %v3056 = vpop.permute.xlu0 %3055
  %3057 = vrot.lane.b32.xlu0 %v2656, 32
  %v3058 = vpop.permute.xlu0 %3057
  %3059 = vrot.lane.b32.xlu0 %v2661, 32
  %v3060 = vpop.permute.xlu0 %3059
  %3061 = vrot.lane.b32.xlu0 %v2666, 32
  %v3062 = vpop.permute.xlu0 %3061
  %3075 = vrot.lane.b32.xlu0 %v2993, 48
  %v3076 = vpop.permute.xlu0 %3075
  %3077 = vrot.lane.b32.xlu0 %v2998, 48
  %v3078 = vpop.permute.xlu0 %3077
  %3079 = vrot.lane.b32.xlu0 %v3003, 48
  %v3080 = vpop.permute.xlu0 %3079
  %3081 = vrot.lane.b32.xlu0 %v3008, 48
  %v3082 = vpop.permute.xlu0 %3081
  %3083 = vrot.lane.b32.xlu0 %v3013, 48
  %v3084 = vpop.permute.xlu0 %3083
  %3085 = vrot.lane.b32.xlu0 %v3018, 48
  %v3086 = vpop.permute.xlu0 %3085
  %v3093 = vsel %vm1647, %v1931, %v3028
  %v3094 = vsel %vm1647, %v1936, %v3030
  %v3095 = vsel %vm1647, %v1941, %v3032
  %v3096 = vsel %vm1647, %v1946, %v3034
  %v3097 = vsel %vm1647, %v1951, %v3036
  %v3098 = vsel %vm1647, %v1956, %v3038
  %vm3099 = vcmask 261120
  %v3100 = vsel %vm3099, %v3093, %v3052
  %v3101 = vsel %vm3099, %v3094, %v3054
  %v3102 = vsel %vm3099, %v3095, %v3056
  %v3103 = vsel %vm3099, %v3096, %v3058
  %v3104 = vsel %vm3099, %v3097, %v3060
  %v3105 = vsel %vm3099, %v3098, %v3062
  %v3106 = vsel %vm1779, %v3100, %v3076
  %v3107 = vsel %vm1779, %v3101, %v3078
  %v3108 = vsel %vm1779, %v3102, %v3080
  %v3109 = vsel %vm1779, %v3103, %v3082
  %v3110 = vsel %vm1779, %v3104, %v3084
  %v3111 = vsel %vm1779, %v3105, %v3086
  %v3112 = vld [vmem:[%s9] sm:$0xf]
  %v3113 = vld [vmem:[%s9 + $0x4] sm:$0xf]
  %v3114 = vld [vmem:[%s9 + $0x8] sm:$0xf]
  %v3115 = vld [vmem:[%s9 + $0xc] sm:$0xf]
  %v3116 = vld [vmem:[%s9 + $0x10] sm:$0xf]
  %v3117 = vld [vmem:[%s9 + $0x14] sm:$0xf]
  %v3118 = vld [vmem:[%s9 + $0x18] sm:$0xf]
  %v3119 = vld [vmem:[%s9 + $0x1c] sm:$0xf]
  %v3120 = vpack.c.bf16 %v3107, %v3106
  %v3121 = vpack.c.bf16 %v3109, %v3108
  %v3122 = vpack.c.bf16 %v3111, %v3110
  %v3131 = vunpack.c.l.b16 %v3112
  %v3132 = vunpack.c.l.b16 %v3113
  %v3133 = vunpack.c.l.b16 %v3114
  %v3134 = vunpack.c.l.b16 %v3115
  %v3135 = vunpack.c.l.b16 %v3116
  %v3136 = vunpack.c.l.b16 %v3117
  %v3137 = vunpack.c.l.b16 %v3118
  %v3138 = vunpack.c.l.b16 %v3119
  %v3139 = vpack.c.b16 %v3132, %v3131
  %v3140 = vpack.c.b16 %v3134, %v3133
  %v3141 = vpack.c.b16 %v3136, %v3135
  %v3142 = vpack.c.b16 %v3138, %v3137
  %v3148 = vsel %vm805, %v3120, 0
  %v3151 = vsel %vm805, %v3121, 0
  %v3154 = vsel %vm805, %v3122, 0
  %3156 = vmatprep.subr.bf16.mxu0 0
  %3157 = vmatpush1.bf16.msra.mxu0 %v3139
  %3158 = vmatprep.subr.bf16.mxu0 0
  %3159 = vmatpush1.bf16.msra.mxu0 %v3140
  %3160 = vmatprep.subr.bf16.mxu0 0
  %3161 = vmatpush1.bf16.msra.mxu0 %v3141
  %3162 = vmatprep.subr.bf16.mxu0 0
  %3163 = vmatpush1.bf16.msra.mxu0 %v3142
  %3164 = vmatprep.subr.bf16.mxu0 0
  %3165 = vmatpush1.bf16.msra.mxu0 0
  %3166 = vmatprep.subr.bf16.mxu0 0
  %3167 = vmatpush1.bf16.msra.mxu0 0
  %3168 = vmatprep.subr.bf16.mxu0 0
  %3169 = vmatpush1.bf16.msra.mxu0 0
  %3170 = vmatprep.subr.bf16.mxu0 0
  %3171 = vmatpush1.bf16.msra.mxu0 0
  %3172 = vmatprep.subr.bf16.mxu0 0
  %3173 = vmatpush1.bf16.msra.mxu0 0
  %3174 = vmatprep.subr.bf16.mxu0 0
  %3175 = vmatpush1.bf16.msra.mxu0 0
  %3176 = vmatprep.subr.bf16.mxu0 0
  %3177 = vmatpush1.bf16.msra.mxu0 0
  %3178 = vmatprep.subr.bf16.mxu0 0
  %3179 = vmatpush1.bf16.msra.mxu0 0
  %3180 = vmatprep.subr.bf16.mxu0 0
  %3181 = vmatpush1.bf16.msra.mxu0 0
  %3182 = vmatprep.subr.bf16.mxu0 0
  %3183 = vmatpush1.bf16.msra.mxu0 0
  %3184 = vmatprep.subr.bf16.mxu0 0
  %3185 = vmatpush1.bf16.msra.mxu0 0
  %3186 = vmatprep.subr.bf16.mxu0 0
  %3187 = vmatpush1.bf16.msra.mxu0 0
  %3188 = vmatprep.mubr.bf16.mxu0 0
  %3189 = vmatmul.mubr.bf16.gmra.mrb[0].mxu0 %v3148
  %v3190 = vpop.f32.mrb[0].mxu0
  %v3191 = vadd.f32 0.0, %v3190
  %v3192 = vpop.f32.mrb[0].mxu0
  %v3193 = vpop.f32.mrb[0].mxu0
  %v3194 = vadd.f32 0.0, %v3193
  %v3195 = vpop.f32.mrb[0].mxu0
  %3196 = vmatprep.mubr.bf16.mxu0 0
  %3197 = vmatmul.mubr.bf16.gmra.mrb[0].mxu0 %v3151
  %v3198 = vpop.f32.mrb[0].mxu0
  %v3199 = vadd.f32 0.0, %v3198
  %v3200 = vpop.f32.mrb[0].mxu0
  %v3201 = vpop.f32.mrb[0].mxu0
  %v3202 = vadd.f32 0.0, %v3201
  %v3203 = vpop.f32.mrb[0].mxu0
  %3204 = vmatprep.mubr.bf16.mxu0 0
  %3205 = vmatmul.mubr.bf16.gmra.mrb[0].mxu0 %v3154
  %v3206 = vpop.f32.mrb[0].mxu0
  %v3207 = vadd.f32 0.0, %v3206
  %v3208 = vpop.f32.mrb[0].mxu0
  %v3209 = vpop.f32.mrb[0].mxu0
  %v3210 = vadd.f32 0.0, %v3209
  %v3211 = vpop.f32.mrb[0].mxu0
  %3212 = vdwg.mxu0
  %v3213 = vadd.f32 %v1350, %v3191
  %v3214 = vadd.f32 %v1351, %v3194
  %v3215 = vadd.f32 %v1356, %v3199
  %v3216 = vadd.f32 %v1357, %v3202
  %v3217 = vadd.f32 %v1358, %v3207
  %v3218 = vadd.f32 %v1359, %v3210
  %v3219 = vld [vmem:[%s10] sm:$0x1]
  %v3221 = vlaneseq
  %v3222 = vshrl.u32 %v3221, 7
  %v3223 = vsub.s32 0, %v3222
  %v3224 = vrot.slane %v3219, %v3223
  %v3226 = vadd.f32 %v3213, %v3224
  %v3227 = vadd.f32 %v3214, %v3224
  %v3228 = vadd.f32 %v3215, %v3224
  %v3229 = vadd.f32 %v3216, %v3224
  %v3230 = vadd.f32 %v3217, %v3224
  %v3231 = vadd.f32 %v3218, %v3224
  %v3232 = vsel %vm805, %v3226, 0.0
  %3233 = vadd.xlane.f32.xlu0 %v3232
  %v3234 = vpop.xlane.xlu0 %3233
  %v3235 = vsel %vm805, %v3227, 0.0
  %3236 = vadd.xlane.f32.xlu0 %v3235
  %v3237 = vpop.xlane.xlu0 %3236
  %v3238 = vsel %vm805, %v3228, 0.0
  %3239 = vadd.xlane.f32.xlu0 %v3238
  %v3240 = vpop.xlane.xlu0 %3239
  %v3241 = vsel %vm805, %v3229, 0.0
  %3242 = vadd.xlane.f32.xlu0 %v3241
  %v3243 = vpop.xlane.xlu0 %3242
  %v3244 = vsel %vm805, %v3230, 0.0
  %3245 = vadd.xlane.f32.xlu0 %v3244
  %v3246 = vpop.xlane.xlu0 %3245
  %v3247 = vsel %vm805, %v3231, 0.0
  %3248 = vadd.xlane.f32.xlu0 %v3247
  %v3249 = vpop.xlane.xlu0 %3248
  %v3250 = vmul.f32 %v3234, %v1433
  %v3251 = vmul.f32 %v3237, %v1433
  %v3252 = vmul.f32 %v3240, %v1433
  %v3253 = vmul.f32 %v3243, %v1433
  %v3254 = vmul.f32 %v3246, %v1433
  %v3255 = vmul.f32 %v3249, %v1433
  %v3256 = vsub.f32 %v3226, %v3250
  %v3257 = vsub.f32 %v3227, %v3251
  %v3258 = vsub.f32 %v3228, %v3252
  %v3259 = vsub.f32 %v3229, %v3253
  %v3260 = vsub.f32 %v3230, %v3254
  %v3261 = vsub.f32 %v3231, %v3255
  %v3262 = vmul.f32 %v3256, %v3256
  %v3263 = vmul.f32 %v3257, %v3257
  %v3264 = vmul.f32 %v3258, %v3258
  %v3265 = vmul.f32 %v3259, %v3259
  %v3266 = vmul.f32 %v3260, %v3260
  %v3267 = vmul.f32 %v3261, %v3261
  %v3268 = vsel %vm805, %v3262, 0.0
  %3269 = vadd.xlane.f32.xlu0 %v3268
  %v3270 = vpop.xlane.xlu0 %3269
  %v3271 = vsel %vm805, %v3263, 0.0
  %3272 = vadd.xlane.f32.xlu0 %v3271
  %v3273 = vpop.xlane.xlu0 %3272
  %v3274 = vsel %vm805, %v3264, 0.0
  %3275 = vadd.xlane.f32.xlu0 %v3274
  %v3276 = vpop.xlane.xlu0 %3275
  %v3277 = vsel %vm805, %v3265, 0.0
  %3278 = vadd.xlane.f32.xlu0 %v3277
  %v3279 = vpop.xlane.xlu0 %3278
  %v3280 = vsel %vm805, %v3266, 0.0
  %3281 = vadd.xlane.f32.xlu0 %v3280
  %v3282 = vpop.xlane.xlu0 %3281
  %v3283 = vsel %vm805, %v3267, 0.0
  %3284 = vadd.xlane.f32.xlu0 %v3283
  %v3285 = vpop.xlane.xlu0 %3284
  %v3286 = vmul.f32 %v3270, %v1433
  %v3287 = vmul.f32 %v3273, %v1433
  %v3288 = vmul.f32 %v3276, %v1433
  %v3289 = vmul.f32 %v3279, %v1433
  %v3290 = vmul.f32 %v3282, %v1433
  %v3291 = vmul.f32 %v3285, %v1433
  %v3292 = vadd.f32 %v3286, 1e-05
  %v3293 = vadd.f32 %v3287, 1e-05
  %v3294 = vadd.f32 %v3288, 1e-05
  %v3295 = vadd.f32 %v3289, 1e-05
  %v3296 = vadd.f32 %v3290, 1e-05
  %v3297 = vadd.f32 %v3291, 1e-05
  %v3298 = vrsqrt.pop %v3292
  %v3299 = vrsqrt.pop %v3293
  %v3300 = vrsqrt.pop %v3294
  %v3301 = vrsqrt.pop %v3295
  %v3302 = vrsqrt.pop %v3296
  %v3303 = vrsqrt.pop %v3297
  %v3304 = vmul.f32 %v3256, %v3298
  %v3305 = vmul.f32 %v3257, %v3299
  %v3306 = vmul.f32 %v3258, %v3300
  %v3307 = vmul.f32 %v3259, %v3301
  %v3308 = vmul.f32 %v3260, %v3302
  %v3309 = vmul.f32 %v3261, %v3303
  %v3310 = vld [vmem:[%s11] sm:$0xf]
  %v3311 = vld [vmem:[%s11 + $0x4] sm:$0xf]
  %v3312 = vld [vmem:[%s11 + $0x8] sm:$0xf]
  %v3313 = vld [vmem:[%s11 + $0xc] sm:$0xf]
  %v3314 = vld [vmem:[%s11 + $0x10] sm:$0xf]
  %v3315 = vld [vmem:[%s11 + $0x14] sm:$0xf]
  %v3316 = vld [vmem:[%s11 + $0x18] sm:$0xf]
  %v3317 = vld [vmem:[%s11 + $0x1c] sm:$0xf]
  %v3318 = vpack.c.bf16 %v3305, %v3304
  %v3319 = vpack.c.bf16 %v3307, %v3306
  %v3320 = vpack.c.bf16 %v3309, %v3308
  %v3321 = vld [vmem:[%s12] sm:$0x1]
  %v3323 = vlaneseq
  %v3324 = vshrl.u32 %v3323, 7
  %v3325 = vsub.s32 0, %v3324
  %v3326 = vrot.slane %v3321, %v3325
  %v3336 = vunpack.c.l.b16 %v3310
  %v3337 = vunpack.c.l.b16 %v3311
  %v3338 = vunpack.c.l.b16 %v3312
  %v3339 = vunpack.c.l.b16 %v3313
  %v3340 = vunpack.c.l.b16 %v3314
  %v3341 = vunpack.c.l.b16 %v3315
  %v3342 = vunpack.c.l.b16 %v3316
  %v3343 = vunpack.c.l.b16 %v3317
  %v3344 = vpack.c.b16 %v3337, %v3336
  %v3345 = vpack.c.b16 %v3339, %v3338
  %v3346 = vpack.c.b16 %v3341, %v3340
  %v3347 = vpack.c.b16 %v3343, %v3342
  %v3353 = vsel %vm805, %v3318, 0
  %v3356 = vsel %vm805, %v3319, 0
  %v3359 = vsel %vm805, %v3320, 0
  %3361 = vmatprep.subr.bf16.mxu0 0
  %3362 = vmatpush1.bf16.msra.mxu0 %v3344
  %3363 = vmatprep.subr.bf16.mxu0 0
  %3364 = vmatpush1.bf16.msra.mxu0 %v3345
  %3365 = vmatprep.subr.bf16.mxu0 0
  %3366 = vmatpush1.bf16.msra.mxu0 %v3346
  %3367 = vmatprep.subr.bf16.mxu0 0
  %3368 = vmatpush1.bf16.msra.mxu0 %v3347
  %3369 = vmatprep.subr.bf16.mxu0 0
  %3370 = vmatpush1.bf16.msra.mxu0 0
  %3371 = vmatprep.subr.bf16.mxu0 0
  %3372 = vmatpush1.bf16.msra.mxu0 0
  %3373 = vmatprep.subr.bf16.mxu0 0
  %3374 = vmatpush1.bf16.msra.mxu0 0
  %3375 = vmatprep.subr.bf16.mxu0 0
  %3376 = vmatpush1.bf16.msra.mxu0 0
  %3377 = vmatprep.subr.bf16.mxu0 0
  %3378 = vmatpush1.bf16.msra.mxu0 0
  %3379 = vmatprep.subr.bf16.mxu0 0
  %3380 = vmatpush1.bf16.msra.mxu0 0
  %3381 = vmatprep.subr.bf16.mxu0 0
  %3382 = vmatpush1.bf16.msra.mxu0 0
  %3383 = vmatprep.subr.bf16.mxu0 0
  %3384 = vmatpush1.bf16.msra.mxu0 0
  %3385 = vmatprep.subr.bf16.mxu0 0
  %3386 = vmatpush1.bf16.msra.mxu0 0
  %3387 = vmatprep.subr.bf16.mxu0 0
  %3388 = vmatpush1.bf16.msra.mxu0 0
  %3389 = vmatprep.subr.bf16.mxu0 0
  %3390 = vmatpush1.bf16.msra.mxu0 0
  %3391 = vmatprep.subr.bf16.mxu0 0
  %3392 = vmatpush1.bf16.msra.mxu0 0
  %3393 = vmatprep.mubr.bf16.mxu0 0
  %3394 = vmatmul.mubr.bf16.gmra.mrb[0].mxu0 %v3353
  %v3395 = vpop.f32.mrb[0].mxu0
  %v3396 = vadd.f32 %v3326, %v3395
  %v3397 = vpop.f32.mrb[0].mxu0
  %v3398 = vpop.f32.mrb[0].mxu0
  %v3399 = vadd.f32 %v3326, %v3398
  %v3400 = vpop.f32.mrb[0].mxu0
  %3401 = vmatprep.mubr.bf16.mxu0 0
  %3402 = vmatmul.mubr.bf16.gmra.mrb[0].mxu0 %v3356
  %v3403 = vpop.f32.mrb[0].mxu0
  %v3404 = vadd.f32 %v3326, %v3403
  %v3405 = vpop.f32.mrb[0].mxu0
  %v3406 = vpop.f32.mrb[0].mxu0
  %v3407 = vadd.f32 %v3326, %v3406
  %v3408 = vpop.f32.mrb[0].mxu0
  %3409 = vmatprep.mubr.bf16.mxu0 0
  %3410 = vmatmul.mubr.bf16.gmra.mrb[0].mxu0 %v3359
  %v3411 = vpop.f32.mrb[0].mxu0
  %v3412 = vadd.f32 %v3326, %v3411
  %v3413 = vpop.f32.mrb[0].mxu0
  %v3414 = vpop.f32.mrb[0].mxu0
  %v3415 = vadd.f32 %v3326, %v3414
  %v3416 = vpop.f32.mrb[0].mxu0
  %3417 = vdwg.mxu0
  %v3418 = vmul.f32 %v3396, %v3396
  %v3419 = vmul.f32 %v3399, %v3399
  %v3420 = vmul.f32 %v3404, %v3404
  %v3421 = vmul.f32 %v3407, %v3407
  %v3422 = vmul.f32 %v3412, %v3412
  %v3423 = vmul.f32 %v3415, %v3415
  %v3424 = vmul.f32 %v3396, %v3418
  %v3425 = vmul.f32 %v3399, %v3419
  %v3426 = vmul.f32 %v3404, %v3420
  %v3427 = vmul.f32 %v3407, %v3421
  %v3428 = vmul.f32 %v3412, %v3422
  %v3429 = vmul.f32 %v3415, %v3423
  %v3430 = vmul.f32 %v3424, 0.044715
  %v3431 = vmul.f32 %v3425, 0.044715
  %v3432 = vmul.f32 %v3426, 0.044715
  %v3433 = vmul.f32 %v3427, 0.044715
  %v3434 = vmul.f32 %v3428, 0.044715
  %v3435 = vmul.f32 %v3429, 0.044715
  %v3436 = vadd.f32 %v3396, %v3430
  %v3437 = vadd.f32 %v3399, %v3431
  %v3438 = vadd.f32 %v3404, %v3432
  %v3439 = vadd.f32 %v3407, %v3433
  %v3440 = vadd.f32 %v3412, %v3434
  %v3441 = vadd.f32 %v3415, %v3435
  %v3442 = vmul.f32 %v3436, 0.7978846
  %v3443 = vmul.f32 %v3437, 0.7978846
  %v3444 = vmul.f32 %v3438, 0.7978846
  %v3445 = vmul.f32 %v3439, 0.7978846
  %v3446 = vmul.f32 %v3440, 0.7978846
  %v3447 = vmul.f32 %v3441, 0.7978846
  %v3448 = vtanh.pop %v3442
  %v3449 = vtanh.pop %v3443
  %v3450 = vtanh.pop %v3444
  %v3451 = vtanh.pop %v3445
  %v3452 = vtanh.pop %v3446
  %v3453 = vtanh.pop %v3447
  %v3454 = vadd.f32 %v3448, 1.0
  %v3455 = vadd.f32 %v3449, 1.0
  %v3456 = vadd.f32 %v3450, 1.0
  %v3457 = vadd.f32 %v3451, 1.0
  %v3458 = vadd.f32 %v3452, 1.0
  %v3459 = vadd.f32 %v3453, 1.0
  %v3460 = vmul.f32 %v3454, 0.5
  %v3461 = vmul.f32 %v3455, 0.5
  %v3462 = vmul.f32 %v3456, 0.5
  %v3463 = vmul.f32 %v3457, 0.5
  %v3464 = vmul.f32 %v3458, 0.5
  %v3465 = vmul.f32 %v3459, 0.5
  %v3466 = vmul.f32 %v3396, %v3460
  %v3467 = vmul.f32 %v3399, %v3461
  %v3468 = vmul.f32 %v3404, %v3462
  %v3469 = vmul.f32 %v3407, %v3463
  %v3470 = vmul.f32 %v3412, %v3464
  %v3471 = vmul.f32 %v3415, %v3465
  %v3472 = vld [vmem:[%s13] sm:$0xf]
  %v3473 = vld [vmem:[%s13 + $0x4] sm:$0xf]
  %v3474 = vld [vmem:[%s13 + $0x8] sm:$0xf]
  %v3475 = vld [vmem:[%s13 + $0xc] sm:$0xf]
  %v3476 = vld [vmem:[%s13 + $0x10] sm:$0xf]
  %v3477 = vld [vmem:[%s13 + $0x14] sm:$0xf]
  %v3478 = vld [vmem:[%s13 + $0x18] sm:$0xf]
  %v3479 = vld [vmem:[%s13 + $0x1c] sm:$0xf]
  %v3480 = vld [vmem:[%s13 + $0x20] sm:$0xf]
  %v3481 = vld [vmem:[%s13 + $0x24] sm:$0xf]
  %v3482 = vld [vmem:[%s13 + $0x28] sm:$0xf]
  %v3483 = vld [vmem:[%s13 + $0x2c] sm:$0xf]
  %v3484 = vld [vmem:[%s13 + $0x30] sm:$0xf]
  %v3485 = vld [vmem:[%s13 + $0x34] sm:$0xf]
  %v3486 = vld [vmem:[%s13 + $0x38] sm:$0xf]
  %v3487 = vld [vmem:[%s13 + $0x3c] sm:$0xf]
  %v3488 = vpack.c.bf16 %v3467, %v3466
  %v3489 = vpack.c.bf16 %v3469, %v3468
  %v3490 = vpack.c.bf16 %v3471, %v3470
  %v3507 = vunpack.c.l.b16 %v3472
  %v3508 = vunpack.c.l.b16 %v3473
  %v3509 = vunpack.c.l.b16 %v3474
  %v3510 = vunpack.c.l.b16 %v3475
  %v3511 = vunpack.c.l.b16 %v3476
  %v3512 = vunpack.c.l.b16 %v3477
  %v3513 = vunpack.c.l.b16 %v3478
  %v3514 = vunpack.c.l.b16 %v3479
  %v3515 = vunpack.c.l.b16 %v3480
  %v3516 = vunpack.c.l.b16 %v3481
  %v3517 = vunpack.c.l.b16 %v3482
  %v3518 = vunpack.c.l.b16 %v3483
  %v3519 = vunpack.c.l.b16 %v3484
  %v3520 = vunpack.c.l.b16 %v3485
  %v3521 = vunpack.c.l.b16 %v3486
  %v3522 = vunpack.c.l.b16 %v3487
  %v3523 = vpack.c.b16 %v3508, %v3507
  %v3524 = vpack.c.b16 %v3510, %v3509
  %v3525 = vpack.c.b16 %v3512, %v3511
  %v3526 = vpack.c.b16 %v3514, %v3513
  %v3527 = vpack.c.b16 %v3516, %v3515
  %v3528 = vpack.c.b16 %v3518, %v3517
  %v3529 = vpack.c.b16 %v3520, %v3519
  %v3530 = vpack.c.b16 %v3522, %v3521
  %3539 = vmatprep.subr.bf16.mxu0 0
  %3540 = vmatpush1.bf16.msra.mxu0 %v3523
  %3541 = vmatprep.subr.bf16.mxu0 0
  %3542 = vmatpush1.bf16.msra.mxu0 %v3524
  %3543 = vmatprep.subr.bf16.mxu0 0
  %3544 = vmatpush1.bf16.msra.mxu0 %v3525
  %3545 = vmatprep.subr.bf16.mxu0 0
  %3546 = vmatpush1.bf16.msra.mxu0 %v3526
  %3547 = vmatprep.subr.bf16.mxu0 0
  %3548 = vmatpush1.bf16.msra.mxu0 %v3527
  %3549 = vmatprep.subr.bf16.mxu0 0
  %3550 = vmatpush1.bf16.msra.mxu0 %v3528
  %3551 = vmatprep.subr.bf16.mxu0 0
  %3552 = vmatpush1.bf16.msra.mxu0 %v3529
  %3553 = vmatprep.subr.bf16.mxu0 0
  %3554 = vmatpush1.bf16.msra.mxu0 %v3530
  %3555 = vmatprep.subr.bf16.mxu0 0
  %3556 = vmatpush1.bf16.msra.mxu0 0
  %3557 = vmatprep.subr.bf16.mxu0 0
  %3558 = vmatpush1.bf16.msra.mxu0 0
  %3559 = vmatprep.subr.bf16.mxu0 0
  %3560 = vmatpush1.bf16.msra.mxu0 0
  %3561 = vmatprep.subr.bf16.mxu0 0
  %3562 = vmatpush1.bf16.msra.mxu0 0
  %3563 = vmatprep.subr.bf16.mxu0 0
  %3564 = vmatpush1.bf16.msra.mxu0 0
  %3565 = vmatprep.subr.bf16.mxu0 0
  %3566 = vmatpush1.bf16.msra.mxu0 0
  %3567 = vmatprep.subr.bf16.mxu0 0
  %3568 = vmatpush1.bf16.msra.mxu0 0
  %3569 = vmatprep.subr.bf16.mxu0 0
  %3570 = vmatpush1.bf16.msra.mxu0 0
  %3571 = vmatprep.mubr.bf16.mxu0 0
  %3572 = vmatmul.mubr.bf16.gmra.mrb[0].mxu0 %v3488
  %v3573 = vpop.f32.mrb[0].mxu0
  %v3574 = vadd.f32 0.0, %v3573
  %v3575 = vpop.f32.mrb[0].mxu0
  %v3576 = vpop.f32.mrb[0].mxu0
  %v3577 = vadd.f32 0.0, %v3576
  %v3578 = vpop.f32.mrb[0].mxu0
  %3579 = vmatprep.mubr.bf16.mxu0 0
  %3580 = vmatmul.mubr.bf16.gmra.mrb[0].mxu0 %v3489
  %v3581 = vpop.f32.mrb[0].mxu0
  %v3582 = vadd.f32 0.0, %v3581
  %v3583 = vpop.f32.mrb[0].mxu0
  %v3584 = vpop.f32.mrb[0].mxu0
  %v3585 = vadd.f32 0.0, %v3584
  %v3586 = vpop.f32.mrb[0].mxu0
  %3587 = vmatprep.mubr.bf16.mxu0 0
  %3588 = vmatmul.mubr.bf16.gmra.mrb[0].mxu0 %v3490
  %v3589 = vpop.f32.mrb[0].mxu0
  %v3590 = vadd.f32 0.0, %v3589
  %v3591 = vpop.f32.mrb[0].mxu0
  %v3592 = vpop.f32.mrb[0].mxu0
  %v3593 = vadd.f32 0.0, %v3592
  %v3594 = vpop.f32.mrb[0].mxu0
  %3595 = vdwg.mxu0
  %v3596 = vadd.f32 %v3226, %v3574
  %v3597 = vadd.f32 %v3227, %v3577
  %v3598 = vadd.f32 %v3228, %v3582
  %v3599 = vadd.f32 %v3229, %v3585
  %v3600 = vadd.f32 %v3230, %v3590
  %v3601 = vadd.f32 %v3231, %v3593
  %v3602 = vld [vmem:[%s14] sm:$0x1]
  %v3604 = vlaneseq
  %v3605 = vshrl.u32 %v3604, 7
  %v3606 = vsub.s32 0, %v3605
  %v3607 = vrot.slane %v3602, %v3606
  %v3609 = vadd.f32 %v3596, %v3607
  %v3610 = vadd.f32 %v3597, %v3607
  %v3611 = vadd.f32 %v3598, %v3607
  %v3612 = vadd.f32 %v3599, %v3607
  %v3613 = vadd.f32 %v3600, %v3607
  %v3614 = vadd.f32 %v3601, %v3607
  %v3615 = vsel %vm805, %v3609, 0.0
  %3616 = vadd.xlane.f32.xlu0 %v3615
  %v3617 = vpop.xlane.xlu0 %3616
  %v3618 = vsel %vm805, %v3610, 0.0
  %3619 = vadd.xlane.f32.xlu0 %v3618
  %v3620 = vpop.xlane.xlu0 %3619
  %v3621 = vsel %vm805, %v3611, 0.0
  %3622 = vadd.xlane.f32.xlu0 %v3621
  %v3623 = vpop.xlane.xlu0 %3622
  %v3624 = vsel %vm805, %v3612, 0.0
  %3625 = vadd.xlane.f32.xlu0 %v3624
  %v3626 = vpop.xlane.xlu0 %3625
  %v3627 = vsel %vm805, %v3613, 0.0
  %3628 = vadd.xlane.f32.xlu0 %v3627
  %v3629 = vpop.xlane.xlu0 %3628
  %v3630 = vsel %vm805, %v3614, 0.0
  %3631 = vadd.xlane.f32.xlu0 %v3630
  %v3632 = vpop.xlane.xlu0 %3631
  %v3633 = vmul.f32 %v3617, %v1433
  %v3634 = vmul.f32 %v3620, %v1433
  %v3635 = vmul.f32 %v3623, %v1433
  %v3636 = vmul.f32 %v3626, %v1433
  %v3637 = vmul.f32 %v3629, %v1433
  %v3638 = vmul.f32 %v3632, %v1433
  %v3639 = vsub.f32 %v3609, %v3633
  %v3640 = vsub.f32 %v3610, %v3634
  %v3641 = vsub.f32 %v3611, %v3635
  %v3642 = vsub.f32 %v3612, %v3636
  %v3643 = vsub.f32 %v3613, %v3637
  %v3644 = vsub.f32 %v3614, %v3638
  %v3645 = vmul.f32 %v3639, %v3639
  %v3646 = vmul.f32 %v3640, %v3640
  %v3647 = vmul.f32 %v3641, %v3641
  %v3648 = vmul.f32 %v3642, %v3642
  %v3649 = vmul.f32 %v3643, %v3643
  %v3650 = vmul.f32 %v3644, %v3644
  %v3651 = vsel %vm805, %v3645, 0.0
  %3652 = vadd.xlane.f32.xlu0 %v3651
  %v3653 = vpop.xlane.xlu0 %3652
  %v3654 = vsel %vm805, %v3646, 0.0
  %3655 = vadd.xlane.f32.xlu0 %v3654
  %v3656 = vpop.xlane.xlu0 %3655
  %v3657 = vsel %vm805, %v3647, 0.0
  %3658 = vadd.xlane.f32.xlu0 %v3657
  %v3659 = vpop.xlane.xlu0 %3658
  %v3660 = vsel %vm805, %v3648, 0.0
  %3661 = vadd.xlane.f32.xlu0 %v3660
  %v3662 = vpop.xlane.xlu0 %3661
  %v3663 = vsel %vm805, %v3649, 0.0
  %3664 = vadd.xlane.f32.xlu0 %v3663
  %v3665 = vpop.xlane.xlu0 %3664
  %v3666 = vsel %vm805, %v3650, 0.0
  %3667 = vadd.xlane.f32.xlu0 %v3666
  %v3668 = vpop.xlane.xlu0 %3667
  %v3669 = vmul.f32 %v3653, %v1433
  %v3670 = vmul.f32 %v3656, %v1433
  %v3671 = vmul.f32 %v3659, %v1433
  %v3672 = vmul.f32 %v3662, %v1433
  %v3673 = vmul.f32 %v3665, %v1433
  %v3674 = vmul.f32 %v3668, %v1433
  %v3675 = vadd.f32 %v3669, 1e-05
  %v3676 = vadd.f32 %v3670, 1e-05
  %v3677 = vadd.f32 %v3671, 1e-05
  %v3678 = vadd.f32 %v3672, 1e-05
  %v3679 = vadd.f32 %v3673, 1e-05
  %v3680 = vadd.f32 %v3674, 1e-05
  %v3681 = vrsqrt.pop %v3675
  %v3682 = vrsqrt.pop %v3676
  %v3683 = vrsqrt.pop %v3677
  %v3684 = vrsqrt.pop %v3678
  %v3685 = vrsqrt.pop %v3679
  %v3686 = vrsqrt.pop %v3680
  %v3687 = vmul.f32 %v3639, %v3681
  %v3688 = vmul.f32 %v3640, %v3682
  %v3689 = vmul.f32 %v3641, %v3683
  %v3690 = vmul.f32 %v3642, %v3684
  %v3691 = vmul.f32 %v3643, %v3685
  %v3692 = vmul.f32 %v3644, %v3686
  %s3693 = scalar_lea.vmem %s7, 64
  %v3694 = vld [vmem:[%s3693] sm:$0xff]
  %v3695 = vld [vmem:[%s3693 + $0x8] sm:$0xff]
  %v3696 = vld [vmem:[%s3693 + $0x10] sm:$0xff]
  %v3697 = vld [vmem:[%s3693 + $0x18] sm:$0xff]
  %v3698 = vld [vmem:[%s3693 + $0x20] sm:$0xff]
  %v3699 = vld [vmem:[%s3693 + $0x28] sm:$0xff]
  %v3700 = vld [vmem:[%s3693 + $0x30] sm:$0xff]
  %v3701 = vld [vmem:[%s3693 + $0x38] sm:$0xff]
  %v3702 = vpack.c.bf16 %v3688, %v3687
  %v3703 = vpack.c.bf16 %v3690, %v3689
  %v3704 = vpack.c.bf16 %v3692, %v3691
  %s3705 = scalar_lea.vmem %s8, 2
  %v3706 = vld [vmem:[%s3705] sm:$0x3]
  %v3708 = vlaneseq
  %v3709 = vshrl.u32 %v3708, 7
  %v3710 = vsub.s32 0, %v3709
  %v3711 = vrot.slane %v3706, %v3710
  %v3712 = vlaneseq
  %v3713 = vshrl.u32 %v3712, 7
  %v3714 = vsub.s32 1, %v3713
  %v3715 = vrot.slane %v3706, %v3714
  %v3726 = vunpack.c.l.b16 %v3694
  %v3727 = vunpack.c.h.b16 %v3694
  %v3728 = vunpack.c.l.b16 %v3695
  %v3729 = vunpack.c.h.b16 %v3695
  %v3730 = vunpack.c.l.b16 %v3696
  %v3731 = vunpack.c.h.b16 %v3696
  %v3732 = vunpack.c.l.b16 %v3697
  %v3733 = vunpack.c.h.b16 %v3697
  %v3734 = vunpack.c.l.b16 %v3698
  %v3735 = vunpack.c.h.b16 %v3698
  %v3736 = vunpack.c.l.b16 %v3699
  %v3737 = vunpack.c.h.b16 %v3699
  %v3738 = vunpack.c.l.b16 %v3700
  %v3739 = vunpack.c.h.b16 %v3700
  %v3740 = vunpack.c.l.b16 %v3701
  %v3741 = vunpack.c.h.b16 %v3701
  %v3742 = vpack.c.b16 %v3728, %v3726
  %v3743 = vpack.c.b16 %v3729, %v3727
  %v3744 = vpack.c.b16 %v3732, %v3730
  %v3745 = vpack.c.b16 %v3733, %v3731
  %v3746 = vpack.c.b16 %v3736, %v3734
  %v3747 = vpack.c.b16 %v3737, %v3735
  %v3748 = vpack.c.b16 %v3740, %v3738
  %v3749 = vpack.c.b16 %v3741, %v3739
  %v3759 = vsel %vm805, %v3702, 0
  %v3762 = vsel %vm805, %v3703, 0
  %v3765 = vsel %vm805, %v3704, 0
  %3767 = vmatprep.subr.bf16.mxu0 %v3743
  %3768 = vmatpush1.bf16.msra.mxu0 %v3742
  %3769 = vmatprep.subr.bf16.mxu0 %v3745
  %3770 = vmatpush1.bf16.msra.mxu0 %v3744
  %3771 = vmatprep.subr.bf16.mxu0 %v3747
  %3772 = vmatpush1.bf16.msra.mxu0 %v3746
  %3773 = vmatprep.subr.bf16.mxu0 %v3749
  %3774 = vmatpush1.bf16.msra.mxu0 %v3748
  %3775 = vmatprep.subr.bf16.mxu0 0
  %3776 = vmatpush1.bf16.msra.mxu0 0
  %3777 = vmatprep.subr.bf16.mxu0 0
  %3778 = vmatpush1.bf16.msra.mxu0 0
  %3779 = vmatprep.subr.bf16.mxu0 0
  %3780 = vmatpush1.bf16.msra.mxu0 0
  %3781 = vmatprep.subr.bf16.mxu0 0
  %3782 = vmatpush1.bf16.msra.mxu0 0
  %3783 = vmatprep.subr.bf16.mxu0 0
  %3784 = vmatpush1.bf16.msra.mxu0 0
  %3785 = vmatprep.subr.bf16.mxu0 0
  %3786 = vmatpush1.bf16.msra.mxu0 0
  %3787 = vmatprep.subr.bf16.mxu0 0
  %3788 = vmatpush1.bf16.msra.mxu0 0
  %3789 = vmatprep.subr.bf16.mxu0 0
  %3790 = vmatpush1.bf16.msra.mxu0 0
  %3791 = vmatprep.subr.bf16.mxu0 0
  %3792 = vmatpush1.bf16.msra.mxu0 0
  %3793 = vmatprep.subr.bf16.mxu0 0
  %3794 = vmatpush1.bf16.msra.mxu0 0
  %3795 = vmatprep.subr.bf16.mxu0 0
  %3796 = vmatpush1.bf16.msra.mxu0 0
  %3797 = vmatprep.subr.bf16.mxu0 0
  %3798 = vmatpush1.bf16.msra.mxu0 0
  %3799 = vmatprep.mubr.bf16.mxu0 0
  %3800 = vmatmul.mubr.bf16.gmra.mrb[0].mxu0 %v3759
  %v3801 = vpop.f32.mrb[0].mxu0
  %v3802 = vadd.f32 %v3711, %v3801
  %v3803 = vpop.f32.mrb[0].mxu0
  %v3804 = vadd.f32 %v3715, %v3803
  %v3805 = vpop.f32.mrb[0].mxu0
  %v3806 = vadd.f32 %v3711, %v3805
  %v3807 = vpop.f32.mrb[0].mxu0
  %v3808 = vadd.f32 %v3715, %v3807
  %3809 = vmatprep.mubr.bf16.mxu0 0
  %3810 = vmatmul.mubr.bf16.gmra.mrb[0].mxu0 %v3762
  %v3811 = vpop.f32.mrb[0].mxu0
  %v3812 = vadd.f32 %v3711, %v3811
  %v3813 = vpop.f32.mrb[0].mxu0
  %v3814 = vadd.f32 %v3715, %v3813
  %v3815 = vpop.f32.mrb[0].mxu0
  %v3816 = vadd.f32 %v3711, %v3815
  %v3817 = vpop.f32.mrb[0].mxu0
  %v3818 = vadd.f32 %v3715, %v3817
  %3819 = vmatprep.mubr.bf16.mxu0 0
  %3820 = vmatmul.mubr.bf16.gmra.mrb[0].mxu0 %v3765
  %v3821 = vpop.f32.mrb[0].mxu0
  %v3822 = vadd.f32 %v3711, %v3821
  %v3823 = vpop.f32.mrb[0].mxu0
  %v3824 = vadd.f32 %v3715, %v3823
  %v3825 = vpop.f32.mrb[0].mxu0
  %v3826 = vadd.f32 %v3711, %v3825
  %v3827 = vpop.f32.mrb[0].mxu0
  %v3828 = vadd.f32 %v3715, %v3827
  %3829 = vdwg.mxu0
  %3836 = vrot.lane.b32.xlu0 %v3802, 64
  %v3837 = vpop.permute.xlu0 %3836
  %3838 = vrot.lane.b32.xlu0 %v3806, 64
  %v3839 = vpop.permute.xlu0 %3838
  %3840 = vrot.lane.b32.xlu0 %v3812, 64
  %v3841 = vpop.permute.xlu0 %3840
  %3842 = vrot.lane.b32.xlu0 %v3816, 64
  %v3843 = vpop.permute.xlu0 %3842
  %3844 = vrot.lane.b32.xlu0 %v3822, 64
  %v3845 = vpop.permute.xlu0 %3844
  %3846 = vrot.lane.b32.xlu0 %v3826, 64
  %v3847 = vpop.permute.xlu0 %3846
  %v3848 = vsel %vm1647, %v3802, 0
  %v3850 = vsel %vm1647, %v3806, 0
  %v3852 = vsel %vm1647, %v3812, 0
  %v3854 = vsel %vm1647, %v3816, 0
  %v3856 = vsel %vm1647, %v3822, 0
  %v3858 = vsel %vm1647, %v3826, 0
  %v3860 = vsel %vm1647, %v3837, 0
  %v3862 = vsel %vm1647, %v3839, 0
  %v3864 = vsel %vm1647, %v3841, 0
  %v3866 = vsel %vm1647, %v3843, 0
  %v3868 = vsel %vm1647, %v3845, 0
  %v3870 = vsel %vm1647, %v3847, 0
  %3872 = vmatprep.subr.mxu0 0.0
  %3873 = vmatpush1.xpose.msra.mxu0 %v3860
  %3874 = vmatprep.subr.mxu0 0.0
  %3875 = vmatpush1.xpose.msra.mxu0 %v3862
  %3876 = vmatprep.subr.mxu0 0.0
  %3877 = vmatpush1.xpose.msra.mxu0 %v3864
  %3878 = vmatprep.subr.mxu0 0.0
  %3879 = vmatpush1.xpose.msra.mxu0 %v3866
  %3880 = vmatprep.subr.mxu0 0.0
  %3881 = vmatpush1.xpose.msra.mxu0 %v3868
  %3882 = vmatprep.subr.mxu0 0.0
  %3883 = vmatpush1.xpose.msra.mxu0 %v3870
  %3884 = vmatprep.subr.mxu0 0.0
  %3885 = vmatpush1.xpose.msra.mxu0 0.0
  %3886 = vmatprep.subr.mxu0 0.0
  %3887 = vmatpush1.xpose.msra.mxu0 0.0
  %3888 = vmatprep.subr.mxu0 0.0
  %3889 = vmatpush1.xpose.msra.mxu0 0.0
  %3890 = vmatprep.subr.mxu0 0.0
  %3891 = vmatpush1.xpose.msra.mxu0 0.0
  %3892 = vmatprep.subr.mxu0 0.0
  %3893 = vmatpush1.xpose.msra.mxu0 0.0
  %3894 = vmatprep.subr.mxu0 0.0
  %3895 = vmatpush1.xpose.msra.mxu0 0.0
  %3896 = vmatprep.subr.mxu0 0.0
  %3897 = vmatpush1.xpose.msra.mxu0 0.0
  %3898 = vmatprep.subr.mxu0 0.0
  %3899 = vmatpush1.xpose.msra.mxu0 0.0
  %3900 = vmatprep.subr.mxu0 0.0
  %3901 = vmatpush1.xpose.msra.mxu0 0.0
  %3902 = vmatprep.subr.mxu0 0.0
  %3903 = vmatpush1.xpose.msra.mxu0 0.0
  %3904 = vmatprep.subr.mxu0 0.0
  %3905 = vmatpush1.xpose.msra.mxu0 0.0
  %3906 = vmatprep.subr.mxu0 0.0
  %3907 = vmatpush1.xpose.msra.mxu0 0.0
  %3908 = vmatprep.subr.mxu0 0.0
  %3909 = vmatpush1.xpose.msra.mxu0 0.0
  %3910 = vmatprep.subr.mxu0 0.0
  %3911 = vmatpush1.xpose.msra.mxu0 0.0
  %3912 = vmatprep.subr.mxu0 0.0
  %3913 = vmatpush1.xpose.msra.mxu0 0.0
  %3914 = vmatprep.subr.mxu0 0.0
  %3915 = vmatpush1.xpose.msra.mxu0 0.0
  %3916 = vmatprep.subr.mxu0 0.0
  %3917 = vmatpush1.xpose.msra.mxu0 0.0
  %3918 = vmatprep.subr.mxu0 0.0
  %3919 = vmatpush1.xpose.msra.mxu0 0.0
  %3920 = vmatprep.subr.mxu0 0.0
  %3921 = vmatpush1.xpose.msra.mxu0 0.0
  %3922 = vmatprep.subr.mxu0 0.0
  %3923 = vmatpush1.xpose.msra.mxu0 0.0
  %3924 = vmatprep.subr.mxu0 0.0
  %3925 = vmatpush1.xpose.msra.mxu0 0.0
  %3926 = vmatprep.subr.mxu0 0.0
  %3927 = vmatpush1.xpose.msra.mxu0 0.0
  %3928 = vmatprep.subr.mxu0 0.0
  %3929 = vmatpush1.xpose.msra.mxu0 0.0
  %3930 = vmatprep.subr.mxu0 0.0
  %3931 = vmatpush1.xpose.msra.mxu0 0.0
  %3932 = vmatprep.subr.mxu0 0.0
  %3933 = vmatpush1.xpose.msra.mxu0 0.0
  %3934 = vmatprep.subr.mxu0 0.0
  %3935 = vmatpush1.xpose.msra.mxu0 0.0
  %3936 = vmatprep.mubr.f32.mxu0 0.0
  %3937 = vmatmul.mubr.f32.gmra.mrb[0].mxu0 %v3848
  %v3938 = vpop.f32.mrb[0].mxu0
  %v3939 = vadd.f32 0.0, %v3938
  %v3940 = vpop.f32.mrb[0].mxu0
  %3941 = vmatprep.mubr.f32.mxu0 0.0
  %3942 = vmatmul.mubr.f32.gmra.mrb[0].mxu0 %v3850
  %v3943 = vpop.f32.mrb[0].mxu0
  %v3944 = vadd.f32 0.0, %v3943
  %v3945 = vpop.f32.mrb[0].mxu0
  %3946 = vmatprep.mubr.f32.mxu0 0.0
  %3947 = vmatmul.mubr.f32.gmra.mrb[0].mxu0 %v3852
  %v3948 = vpop.f32.mrb[0].mxu0
  %v3949 = vadd.f32 0.0, %v3948
  %v3950 = vpop.f32.mrb[0].mxu0
  %3951 = vmatprep.mubr.f32.mxu0 0.0
  %3952 = vmatmul.mubr.f32.gmra.mrb[0].mxu0 %v3854
  %v3953 = vpop.f32.mrb[0].mxu0
  %v3954 = vadd.f32 0.0, %v3953
  %v3955 = vpop.f32.mrb[0].mxu0
  %3956 = vmatprep.mubr.f32.mxu0 0.0
  %3957 = vmatmul.mubr.f32.gmra.mrb[0].mxu0 %v3856
  %v3958 = vpop.f32.mrb[0].mxu0
  %v3959 = vadd.f32 0.0, %v3958
  %v3960 = vpop.f32.mrb[0].mxu0
  %3961 = vmatprep.mubr.f32.mxu0 0.0
  %3962 = vmatmul.mubr.f32.gmra.mrb[0].mxu0 %v3858
  %v3963 = vpop.f32.mrb[0].mxu0
  %v3964 = vadd.f32 0.0, %v3963
  %v3965 = vpop.f32.mrb[0].mxu0
  %3966 = vdwg.mxu0
  %v3967 = vmul.f32 %v3939, 0.25
  %v3968 = vmul.f32 %v3944, 0.25
  %v3969 = vmul.f32 %v3949, 0.25
  %v3970 = vmul.f32 %v3954, 0.25
  %v3971 = vmul.f32 %v3959, 0.25
  %v3972 = vmul.f32 %v3964, 0.25
  %v3973 = vadd.f32 %v3967, %v1409
  %v3974 = vadd.f32 %v3968, %v1410
  %v3975 = vadd.f32 %v3969, %v1411
  %v3976 = vadd.f32 %v3970, %v1412
  %v3977 = vadd.f32 %v3971, %v1413
  %v3978 = vadd.f32 %v3972, %v1414
  %v3979 = vsel %vm1779, %v3973, -inf
  %3980 = vmax.xlane.f32.xlu0 %v3979
  %v3981 = vpop.xlane.xlu0 %3980
  %v3982 = vsel %vm1779, %v3974, -inf
  %3983 = vmax.xlane.f32.xlu0 %v3982
  %v3984 = vpop.xlane.xlu0 %3983
  %v3985 = vsel %vm1779, %v3975, -inf
  %3986 = vmax.xlane.f32.xlu0 %v3985
  %v3987 = vpop.xlane.xlu0 %3986
  %v3988 = vsel %vm1779, %v3976, -inf
  %3989 = vmax.xlane.f32.xlu0 %v3988
  %v3990 = vpop.xlane.xlu0 %3989
  %v3991 = vsel %vm1779, %v3977, -inf
  %3992 = vmax.xlane.f32.xlu0 %v3991
  %v3993 = vpop.xlane.xlu0 %3992
  %v3994 = vsel %vm1779, %v3978, -inf
  %3995 = vmax.xlane.f32.xlu0 %v3994
  %v3996 = vpop.xlane.xlu0 %3995
  %v3997 = vsub.f32 %v3973, %v3981
  %v3998 = vsub.f32 %v3974, %v3984
  %v3999 = vsub.f32 %v3975, %v3987
  %v4000 = vsub.f32 %v3976, %v3990
  %v4001 = vsub.f32 %v3977, %v3993
  %v4002 = vsub.f32 %v3978, %v3996
  %v4003 = vmul.f32 %v3997, 1.442695
  %v4004 = vpow.pop %v4003
  %v4005 = vmul.f32 %v3998, 1.442695
  %v4006 = vpow.pop %v4005
  %v4007 = vmul.f32 %v3999, 1.442695
  %v4008 = vpow.pop %v4007
  %v4009 = vmul.f32 %v4000, 1.442695
  %v4010 = vpow.pop %v4009
  %v4011 = vmul.f32 %v4001, 1.442695
  %v4012 = vpow.pop %v4011
  %v4013 = vmul.f32 %v4002, 1.442695
  %v4014 = vpow.pop %v4013
  %v4015 = vsel %vm1779, %v4004, 0.0
  %4016 = vadd.xlane.f32.xlu0 %v4015
  %v4017 = vpop.xlane.xlu0 %4016
  %v4018 = vsel %vm1779, %v4006, 0.0
  %4019 = vadd.xlane.f32.xlu0 %v4018
  %v4020 = vpop.xlane.xlu0 %4019
  %v4021 = vsel %vm1779, %v4008, 0.0
  %4022 = vadd.xlane.f32.xlu0 %v4021
  %v4023 = vpop.xlane.xlu0 %4022
  %v4024 = vsel %vm1779, %v4010, 0.0
  %4025 = vadd.xlane.f32.xlu0 %v4024
  %v4026 = vpop.xlane.xlu0 %4025
  %v4027 = vsel %vm1779, %v4012, 0.0
  %4028 = vadd.xlane.f32.xlu0 %v4027
  %v4029 = vpop.xlane.xlu0 %4028
  %v4030 = vsel %vm1779, %v4014, 0.0
  %4031 = vadd.xlane.f32.xlu0 %v4030
  %v4032 = vpop.xlane.xlu0 %4031
  %v4033 = vrcp.pop %v4017
  %v4034 = vrcp.pop %v4020
  %v4035 = vrcp.pop %v4023
  %v4036 = vrcp.pop %v4026
  %v4037 = vrcp.pop %v4029
  %v4038 = vrcp.pop %v4032
  %v4039 = vmul.f32 %v4004, %v4033
  %v4040 = vmul.f32 %v4006, %v4034
  %v4041 = vmul.f32 %v4008, %v4035
  %v4042 = vmul.f32 %v4010, %v4036
  %v4043 = vmul.f32 %v4012, %v4037
  %v4044 = vmul.f32 %v4014, %v4038
  %v4046 = vsel %vm1779, %v4039, 0
  %v4049 = vsel %vm1779, %v4040, 0
  %v4052 = vsel %vm1779, %v4041, 0
  %v4055 = vsel %vm1779, %v4042, 0
  %v4058 = vsel %vm1779, %v4043, 0
  %v4061 = vsel %vm1779, %v4044, 0
  %4063 = vmatprep.subr.mxu0 0.0
  %4064 = vmatpush1.msra.mxu0 %v3804
  %4065 = vmatprep.subr.mxu0 0.0
  %4066 = vmatpush1.msra.mxu0 %v3808
  %4067 = vmatprep.subr.mxu0 0.0
  %4068 = vmatpush1.msra.mxu0 %v3814
  %4069 = vmatprep.subr.mxu0 0.0
  %4070 = vmatpush1.msra.mxu0 %v3818
  %4071 = vmatprep.subr.mxu0 0.0
  %4072 = vmatpush1.msra.mxu0 %v3824
  %4073 = vmatprep.subr.mxu0 0.0
  %4074 = vmatpush1.msra.mxu0 %v3828
  %4075 = vmatprep.subr.mxu0 0.0
  %4076 = vmatpush1.msra.mxu0 0.0
  %4077 = vmatprep.subr.mxu0 0.0
  %4078 = vmatpush1.msra.mxu0 0.0
  %4079 = vmatprep.subr.mxu0 0.0
  %4080 = vmatpush1.msra.mxu0 0.0
  %4081 = vmatprep.subr.mxu0 0.0
  %4082 = vmatpush1.msra.mxu0 0.0
  %4083 = vmatprep.subr.mxu0 0.0
  %4084 = vmatpush1.msra.mxu0 0.0
  %4085 = vmatprep.subr.mxu0 0.0
  %4086 = vmatpush1.msra.mxu0 0.0
  %4087 = vmatprep.subr.mxu0 0.0
  %4088 = vmatpush1.msra.mxu0 0.0
  %4089 = vmatprep.subr.mxu0 0.0
  %4090 = vmatpush1.msra.mxu0 0.0
  %4091 = vmatprep.subr.mxu0 0.0
  %4092 = vmatpush1.msra.mxu0 0.0
  %4093 = vmatprep.subr.mxu0 0.0
  %4094 = vmatpush1.msra.mxu0 0.0
  %4095 = vmatprep.subr.mxu0 0.0
  %4096 = vmatpush1.msra.mxu0 0.0
  %4097 = vmatprep.subr.mxu0 0.0
  %4098 = vmatpush1.msra.mxu0 0.0
  %4099 = vmatprep.subr.mxu0 0.0
  %4100 = vmatpush1.msra.mxu0 0.0
  %4101 = vmatprep.subr.mxu0 0.0
  %4102 = vmatpush1.msra.mxu0 0.0
  %4103 = vmatprep.subr.mxu0 0.0
  %4104 = vmatpush1.msra.mxu0 0.0
  %4105 = vmatprep.subr.mxu0 0.0
  %4106 = vmatpush1.msra.mxu0 0.0
  %4107 = vmatprep.subr.mxu0 0.0
  %4108 = vmatpush1.msra.mxu0 0.0
  %4109 = vmatprep.subr.mxu0 0.0
  %4110 = vmatpush1.msra.mxu0 0.0
  %4111 = vmatprep.subr.mxu0 0.0
  %4112 = vmatpush1.msra.mxu0 0.0
  %4113 = vmatprep.subr.mxu0 0.0
  %4114 = vmatpush1.msra.mxu0 0.0
  %4115 = vmatprep.subr.mxu0 0.0
  %4116 = vmatpush1.msra.mxu0 0.0
  %4117 = vmatprep.subr.mxu0 0.0
  %4118 = vmatpush1.msra.mxu0 0.0
  %4119 = vmatprep.subr.mxu0 0.0
  %4120 = vmatpush1.msra.mxu0 0.0
  %4121 = vmatprep.subr.mxu0 0.0
  %4122 = vmatpush1.msra.mxu0 0.0
  %4123 = vmatprep.subr.mxu0 0.0
  %4124 = vmatpush1.msra.mxu0 0.0
  %4125 = vmatprep.subr.mxu0 0.0
  %4126 = vmatpush1.msra.mxu0 0.0
  %4127 = vmatprep.mubr.f32.mxu0 0.0
  %4128 = vmatmul.mubr.f32.gmra.mrb[0].mxu0 %v4046
  %v4129 = vpop.f32.mrb[0].mxu0
  %v4130 = vadd.f32 0.0, %v4129
  %v4131 = vpop.f32.mrb[0].mxu0
  %4132 = vmatprep.mubr.f32.mxu0 0.0
  %4133 = vmatmul.mubr.f32.gmra.mrb[0].mxu0 %v4049
  %v4134 = vpop.f32.mrb[0].mxu0
  %v4135 = vadd.f32 0.0, %v4134
  %v4136 = vpop.f32.mrb[0].mxu0
  %4137 = vmatprep.mubr.f32.mxu0 0.0
  %4138 = vmatmul.mubr.f32.gmra.mrb[0].mxu0 %v4052
  %v4139 = vpop.f32.mrb[0].mxu0
  %v4140 = vadd.f32 0.0, %v4139
  %v4141 = vpop.f32.mrb[0].mxu0
  %4142 = vmatprep.mubr.f32.mxu0 0.0
  %4143 = vmatmul.mubr.f32.gmra.mrb[0].mxu0 %v4055
  %v4144 = vpop.f32.mrb[0].mxu0
  %v4145 = vadd.f32 0.0, %v4144
  %v4146 = vpop.f32.mrb[0].mxu0
  %4147 = vmatprep.mubr.f32.mxu0 0.0
  %4148 = vmatmul.mubr.f32.gmra.mrb[0].mxu0 %v4058
  %v4149 = vpop.f32.mrb[0].mxu0
  %v4150 = vadd.f32 0.0, %v4149
  %v4151 = vpop.f32.mrb[0].mxu0
  %4152 = vmatprep.mubr.f32.mxu0 0.0
  %4153 = vmatmul.mubr.f32.gmra.mrb[0].mxu0 %v4061
  %v4154 = vpop.f32.mrb[0].mxu0
  %v4155 = vadd.f32 0.0, %v4154
  %v4156 = vpop.f32.mrb[0].mxu0
  %4157 = vdwg.mxu0
  %4158 = vrot.lane.b32.xlu0 %v3802, 112
  %v4159 = vpop.permute.xlu0 %4158
  %4160 = vrot.lane.b32.xlu0 %v3806, 112
  %v4161 = vpop.permute.xlu0 %4160
  %4162 = vrot.lane.b32.xlu0 %v3812, 112
  %v4163 = vpop.permute.xlu0 %4162
  %4164 = vrot.lane.b32.xlu0 %v3816, 112
  %v4165 = vpop.permute.xlu0 %4164
  %4166 = vrot.lane.b32.xlu0 %v3822, 112
  %v4167 = vpop.permute.xlu0 %4166
  %4168 = vrot.lane.b32.xlu0 %v3826, 112
  %v4169 = vpop.permute.xlu0 %4168
  %4170 = vrot.lane.b32.xlu0 %v3802, 48
  %v4171 = vpop.permute.xlu0 %4170
  %4172 = vrot.lane.b32.xlu0 %v3806, 48
  %v4173 = vpop.permute.xlu0 %4172
  %4174 = vrot.lane.b32.xlu0 %v3812, 48
  %v4175 = vpop.permute.xlu0 %4174
  %4176 = vrot.lane.b32.xlu0 %v3816, 48
  %v4177 = vpop.permute.xlu0 %4176
  %4178 = vrot.lane.b32.xlu0 %v3822, 48
  %v4179 = vpop.permute.xlu0 %4178
  %4180 = vrot.lane.b32.xlu0 %v3826, 48
  %v4181 = vpop.permute.xlu0 %4180
  %v4182 = vsel %vm1647, %v4159, 0
  %v4184 = vsel %vm1647, %v4161, 0
  %v4186 = vsel %vm1647, %v4163, 0
  %v4188 = vsel %vm1647, %v4165, 0
  %v4190 = vsel %vm1647, %v4167, 0
  %v4192 = vsel %vm1647, %v4169, 0
  %v4194 = vsel %vm1647, %v4171, 0
  %v4196 = vsel %vm1647, %v4173, 0
  %v4198 = vsel %vm1647, %v4175, 0
  %v4200 = vsel %vm1647, %v4177, 0
  %v4202 = vsel %vm1647, %v4179, 0
  %v4204 = vsel %vm1647, %v4181, 0
  %4206 = vmatprep.subr.mxu0 0.0
  %4207 = vmatpush1.xpose.msra.mxu0 %v4194
  %4208 = vmatprep.subr.mxu0 0.0
  %4209 = vmatpush1.xpose.msra.mxu0 %v4196
  %4210 = vmatprep.subr.mxu0 0.0
  %4211 = vmatpush1.xpose.msra.mxu0 %v4198
  %4212 = vmatprep.subr.mxu0 0.0
  %4213 = vmatpush1.xpose.msra.mxu0 %v4200
  %4214 = vmatprep.subr.mxu0 0.0
  %4215 = vmatpush1.xpose.msra.mxu0 %v4202
  %4216 = vmatprep.subr.mxu0 0.0
  %4217 = vmatpush1.xpose.msra.mxu0 %v4204
  %4218 = vmatprep.subr.mxu0 0.0
  %4219 = vmatpush1.xpose.msra.mxu0 0.0
  %4220 = vmatprep.subr.mxu0 0.0
  %4221 = vmatpush1.xpose.msra.mxu0 0.0
  %4222 = vmatprep.subr.mxu0 0.0
  %4223 = vmatpush1.xpose.msra.mxu0 0.0
  %4224 = vmatprep.subr.mxu0 0.0
  %4225 = vmatpush1.xpose.msra.mxu0 0.0
  %4226 = vmatprep.subr.mxu0 0.0
  %4227 = vmatpush1.xpose.msra.mxu0 0.0
  %4228 = vmatprep.subr.mxu0 0.0
  %4229 = vmatpush1.xpose.msra.mxu0 0.0
  %4230 = vmatprep.subr.mxu0 0.0
  %4231 = vmatpush1.xpose.msra.mxu0 0.0
  %4232 = vmatprep.subr.mxu0 0.0
  %4233 = vmatpush1.xpose.msra.mxu0 0.0
  %4234 = vmatprep.subr.mxu0 0.0
  %4235 = vmatpush1.xpose.msra.mxu0 0.0
  %4236 = vmatprep.subr.mxu0 0.0
  %4237 = vmatpush1.xpose.msra.mxu0 0.0
  %4238 = vmatprep.subr.mxu0 0.0
  %4239 = vmatpush1.xpose.msra.mxu0 0.0
  %4240 = vmatprep.subr.mxu0 0.0
  %4241 = vmatpush1.xpose.msra.mxu0 0.0
  %4242 = vmatprep.subr.mxu0 0.0
  %4243 = vmatpush1.xpose.msra.mxu0 0.0
  %4244 = vmatprep.subr.mxu0 0.0
  %4245 = vmatpush1.xpose.msra.mxu0 0.0
  %4246 = vmatprep.subr.mxu0 0.0
  %4247 = vmatpush1.xpose.msra.mxu0 0.0
  %4248 = vmatprep.subr.mxu0 0.0
  %4249 = vmatpush1.xpose.msra.mxu0 0.0
  %4250 = vmatprep.subr.mxu0 0.0
  %4251 = vmatpush1.xpose.msra.mxu0 0.0
  %4252 = vmatprep.subr.mxu0 0.0
  %4253 = vmatpush1.xpose.msra.mxu0 0.0
  %4254 = vmatprep.subr.mxu0 0.0
  %4255 = vmatpush1.xpose.msra.mxu0 0.0
  %4256 = vmatprep.subr.mxu0 0.0
  %4257 = vmatpush1.xpose.msra.mxu0 0.0
  %4258 = vmatprep.subr.mxu0 0.0
  %4259 = vmatpush1.xpose.msra.mxu0 0.0
  %4260 = vmatprep.subr.mxu0 0.0
  %4261 = vmatpush1.xpose.msra.mxu0 0.0
  %4262 = vmatprep.subr.mxu0 0.0
  %4263 = vmatpush1.xpose.msra.mxu0 0.0
  %4264 = vmatprep.subr.mxu0 0.0
  %4265 = vmatpush1.xpose.msra.mxu0 0.0
  %4266 = vmatprep.subr.mxu0 0.0
  %4267 = vmatpush1.xpose.msra.mxu0 0.0
  %4268 = vmatprep.subr.mxu0 0.0
  %4269 = vmatpush1.xpose.msra.mxu0 0.0
  %4270 = vmatprep.mubr.f32.mxu0 0.0
  %4271 = vmatmul.mubr.f32.gmra.mrb[0].mxu0 %v4182
  %v4272 = vpop.f32.mrb[0].mxu0
  %v4273 = vadd.f32 0.0, %v4272
  %v4274 = vpop.f32.mrb[0].mxu0
  %4275 = vmatprep.mubr.f32.mxu0 0.0
  %4276 = vmatmul.mubr.f32.gmra.mrb[0].mxu0 %v4184
  %v4277 = vpop.f32.mrb[0].mxu0
  %v4278 = vadd.f32 0.0, %v4277
  %v4279 = vpop.f32.mrb[0].mxu0
  %4280 = vmatprep.mubr.f32.mxu0 0.0
  %4281 = vmatmul.mubr.f32.gmra.mrb[0].mxu0 %v4186
  %v4282 = vpop.f32.mrb[0].mxu0
  %v4283 = vadd.f32 0.0, %v4282
  %v4284 = vpop.f32.mrb[0].mxu0
  %4285 = vmatprep.mubr.f32.mxu0 0.0
  %4286 = vmatmul.mubr.f32.gmra.mrb[0].mxu0 %v4188
  %v4287 = vpop.f32.mrb[0].mxu0
  %v4288 = vadd.f32 0.0, %v4287
  %v4289 = vpop.f32.mrb[0].mxu0
  %4290 = vmatprep.mubr.f32.mxu0 0.0
  %4291 = vmatmul.mubr.f32.gmra.mrb[0].mxu0 %v4190
  %v4292 = vpop.f32.mrb[0].mxu0
  %v4293 = vadd.f32 0.0, %v4292
  %v4294 = vpop.f32.mrb[0].mxu0
  %4295 = vmatprep.mubr.f32.mxu0 0.0
  %4296 = vmatmul.mubr.f32.gmra.mrb[0].mxu0 %v4192
  %v4297 = vpop.f32.mrb[0].mxu0
  %v4298 = vadd.f32 0.0, %v4297
  %v4299 = vpop.f32.mrb[0].mxu0
  %4300 = vdwg.mxu0
  %v4301 = vmul.f32 %v4273, 0.25
  %v4302 = vmul.f32 %v4278, 0.25
  %v4303 = vmul.f32 %v4283, 0.25
  %v4304 = vmul.f32 %v4288, 0.25
  %v4305 = vmul.f32 %v4293, 0.25
  %v4306 = vmul.f32 %v4298, 0.25
  %v4307 = vadd.f32 %v4301, %v1409
  %v4308 = vadd.f32 %v4302, %v1410
  %v4309 = vadd.f32 %v4303, %v1411
  %v4310 = vadd.f32 %v4304, %v1412
  %v4311 = vadd.f32 %v4305, %v1413
  %v4312 = vadd.f32 %v4306, %v1414
  %v4313 = vsel %vm1779, %v4307, -inf
  %4314 = vmax.xlane.f32.xlu0 %v4313
  %v4315 = vpop.xlane.xlu0 %4314
  %v4316 = vsel %vm1779, %v4308, -inf
  %4317 = vmax.xlane.f32.xlu0 %v4316
  %v4318 = vpop.xlane.xlu0 %4317
  %v4319 = vsel %vm1779, %v4309, -inf
  %4320 = vmax.xlane.f32.xlu0 %v4319
  %v4321 = vpop.xlane.xlu0 %4320
  %v4322 = vsel %vm1779, %v4310, -inf
  %4323 = vmax.xlane.f32.xlu0 %v4322
  %v4324 = vpop.xlane.xlu0 %4323
  %v4325 = vsel %vm1779, %v4311, -inf
  %4326 = vmax.xlane.f32.xlu0 %v4325
  %v4327 = vpop.xlane.xlu0 %4326
  %v4328 = vsel %vm1779, %v4312, -inf
  %4329 = vmax.xlane.f32.xlu0 %v4328
  %v4330 = vpop.xlane.xlu0 %4329
  %v4331 = vsub.f32 %v4307, %v4315
  %v4332 = vsub.f32 %v4308, %v4318
  %v4333 = vsub.f32 %v4309, %v4321
  %v4334 = vsub.f32 %v4310, %v4324
  %v4335 = vsub.f32 %v4311, %v4327
  %v4336 = vsub.f32 %v4312, %v4330
  %v4337 = vmul.f32 %v4331, 1.442695
  %v4338 = vpow.pop %v4337
  %v4339 = vmul.f32 %v4332, 1.442695
  %v4340 = vpow.pop %v4339
  %v4341 = vmul.f32 %v4333, 1.442695
  %v4342 = vpow.pop %v4341
  %v4343 = vmul.f32 %v4334, 1.442695
  %v4344 = vpow.pop %v4343
  %v4345 = vmul.f32 %v4335, 1.442695
  %v4346 = vpow.pop %v4345
  %v4347 = vmul.f32 %v4336, 1.442695
  %v4348 = vpow.pop %v4347
  %v4349 = vsel %vm1779, %v4338, 0.0
  %4350 = vadd.xlane.f32.xlu0 %v4349
  %v4351 = vpop.xlane.xlu0 %4350
  %v4352 = vsel %vm1779, %v4340, 0.0
  %4353 = vadd.xlane.f32.xlu0 %v4352
  %v4354 = vpop.xlane.xlu0 %4353
  %v4355 = vsel %vm1779, %v4342, 0.0
  %4356 = vadd.xlane.f32.xlu0 %v4355
  %v4357 = vpop.xlane.xlu0 %4356
  %v4358 = vsel %vm1779, %v4344, 0.0
  %4359 = vadd.xlane.f32.xlu0 %v4358
  %v4360 = vpop.xlane.xlu0 %4359
  %v4361 = vsel %vm1779, %v4346, 0.0
  %4362 = vadd.xlane.f32.xlu0 %v4361
  %v4363 = vpop.xlane.xlu0 %4362
  %v4364 = vsel %vm1779, %v4348, 0.0
  %4365 = vadd.xlane.f32.xlu0 %v4364
  %v4366 = vpop.xlane.xlu0 %4365
  %v4367 = vrcp.pop %v4351
  %v4368 = vrcp.pop %v4354
  %v4369 = vrcp.pop %v4357
  %v4370 = vrcp.pop %v4360
  %v4371 = vrcp.pop %v4363
  %v4372 = vrcp.pop %v4366
  %v4373 = vmul.f32 %v4338, %v4367
  %v4374 = vmul.f32 %v4340, %v4368
  %v4375 = vmul.f32 %v4342, %v4369
  %v4376 = vmul.f32 %v4344, %v4370
  %v4377 = vmul.f32 %v4346, %v4371
  %v4378 = vmul.f32 %v4348, %v4372
  %4385 = vrot.lane.b32.xlu0 %v3804, 112
  %v4386 = vpop.permute.xlu0 %4385
  %4387 = vrot.lane.b32.xlu0 %v3808, 112
  %v4388 = vpop.permute.xlu0 %4387
  %4389 = vrot.lane.b32.xlu0 %v3814, 112
  %v4390 = vpop.permute.xlu0 %4389
  %4391 = vrot.lane.b32.xlu0 %v3818, 112
  %v4392 = vpop.permute.xlu0 %4391
  %4393 = vrot.lane.b32.xlu0 %v3824, 112
  %v4394 = vpop.permute.xlu0 %4393
  %4395 = vrot.lane.b32.xlu0 %v3828, 112
  %v4396 = vpop.permute.xlu0 %4395
  %v4404 = vsel %vm1779, %v4373, 0
  %v4407 = vsel %vm1779, %v4374, 0
  %v4410 = vsel %vm1779, %v4375, 0
  %v4413 = vsel %vm1779, %v4376, 0
  %v4416 = vsel %vm1779, %v4377, 0
  %v4419 = vsel %vm1779, %v4378, 0
  %4421 = vmatprep.subr.mxu0 0.0
  %4422 = vmatpush1.msra.mxu0 %v4386
  %4423 = vmatprep.subr.mxu0 0.0
  %4424 = vmatpush1.msra.mxu0 %v4388
  %4425 = vmatprep.subr.mxu0 0.0
  %4426 = vmatpush1.msra.mxu0 %v4390
  %4427 = vmatprep.subr.mxu0 0.0
  %4428 = vmatpush1.msra.mxu0 %v4392
  %4429 = vmatprep.subr.mxu0 0.0
  %4430 = vmatpush1.msra.mxu0 %v4394
  %4431 = vmatprep.subr.mxu0 0.0
  %4432 = vmatpush1.msra.mxu0 %v4396
  %4433 = vmatprep.subr.mxu0 0.0
  %4434 = vmatpush1.msra.mxu0 0.0
  %4435 = vmatprep.subr.mxu0 0.0
  %4436 = vmatpush1.msra.mxu0 0.0
  %4437 = vmatprep.subr.mxu0 0.0
  %4438 = vmatpush1.msra.mxu0 0.0
  %4439 = vmatprep.subr.mxu0 0.0
  %4440 = vmatpush1.msra.mxu0 0.0
  %4441 = vmatprep.subr.mxu0 0.0
  %4442 = vmatpush1.msra.mxu0 0.0
  %4443 = vmatprep.subr.mxu0 0.0
  %4444 = vmatpush1.msra.mxu0 0.0
  %4445 = vmatprep.subr.mxu0 0.0
  %4446 = vmatpush1.msra.mxu0 0.0
  %4447 = vmatprep.subr.mxu0 0.0
  %4448 = vmatpush1.msra.mxu0 0.0
  %4449 = vmatprep.subr.mxu0 0.0
  %4450 = vmatpush1.msra.mxu0 0.0
  %4451 = vmatprep.subr.mxu0 0.0
  %4452 = vmatpush1.msra.mxu0 0.0
  %4453 = vmatprep.subr.mxu0 0.0
  %4454 = vmatpush1.msra.mxu0 0.0
  %4455 = vmatprep.subr.mxu0 0.0
  %4456 = vmatpush1.msra.mxu0 0.0
  %4457 = vmatprep.subr.mxu0 0.0
  %4458 = vmatpush1.msra.mxu0 0.0
  %4459 = vmatprep.subr.mxu0 0.0
  %4460 = vmatpush1.msra.mxu0 0.0
  %4461 = vmatprep.subr.mxu0 0.0
  %4462 = vmatpush1.msra.mxu0 0.0
  %4463 = vmatprep.subr.mxu0 0.0
  %4464 = vmatpush1.msra.mxu0 0.0
  %4465 = vmatprep.subr.mxu0 0.0
  %4466 = vmatpush1.msra.mxu0 0.0
  %4467 = vmatprep.subr.mxu0 0.0
  %4468 = vmatpush1.msra.mxu0 0.0
  %4469 = vmatprep.subr.mxu0 0.0
  %4470 = vmatpush1.msra.mxu0 0.0
  %4471 = vmatprep.subr.mxu0 0.0
  %4472 = vmatpush1.msra.mxu0 0.0
  %4473 = vmatprep.subr.mxu0 0.0
  %4474 = vmatpush1.msra.mxu0 0.0
  %4475 = vmatprep.subr.mxu0 0.0
  %4476 = vmatpush1.msra.mxu0 0.0
  %4477 = vmatprep.subr.mxu0 0.0
  %4478 = vmatpush1.msra.mxu0 0.0
  %4479 = vmatprep.subr.mxu0 0.0
  %4480 = vmatpush1.msra.mxu0 0.0
  %4481 = vmatprep.subr.mxu0 0.0
  %4482 = vmatpush1.msra.mxu0 0.0
  %4483 = vmatprep.subr.mxu0 0.0
  %4484 = vmatpush1.msra.mxu0 0.0
  %4485 = vmatprep.mubr.f32.mxu0 0.0
  %4486 = vmatmul.mubr.f32.gmra.mrb[0].mxu0 %v4404
  %v4487 = vpop.f32.mrb[0].mxu0
  %v4488 = vadd.f32 0.0, %v4487
  %v4489 = vpop.f32.mrb[0].mxu0
  %4490 = vmatprep.mubr.f32.mxu0 0.0
  %4491 = vmatmul.mubr.f32.gmra.mrb[0].mxu0 %v4407
  %v4492 = vpop.f32.mrb[0].mxu0
  %v4493 = vadd.f32 0.0, %v4492
  %v4494 = vpop.f32.mrb[0].mxu0
  %4495 = vmatprep.mubr.f32.mxu0 0.0
  %4496 = vmatmul.mubr.f32.gmra.mrb[0].mxu0 %v4410
  %v4497 = vpop.f32.mrb[0].mxu0
  %v4498 = vadd.f32 0.0, %v4497
  %v4499 = vpop.f32.mrb[0].mxu0
  %4500 = vmatprep.mubr.f32.mxu0 0.0
  %4501 = vmatmul.mubr.f32.gmra.mrb[0].mxu0 %v4413
  %v4502 = vpop.f32.mrb[0].mxu0
  %v4503 = vadd.f32 0.0, %v4502
  %v4504 = vpop.f32.mrb[0].mxu0
  %4505 = vmatprep.mubr.f32.mxu0 0.0
  %4506 = vmatmul.mubr.f32.gmra.mrb[0].mxu0 %v4416
  %v4507 = vpop.f32.mrb[0].mxu0
  %v4508 = vadd.f32 0.0, %v4507
  %v4509 = vpop.f32.mrb[0].mxu0
  %4510 = vmatprep.mubr.f32.mxu0 0.0
  %4511 = vmatmul.mubr.f32.gmra.mrb[0].mxu0 %v4419
  %v4512 = vpop.f32.mrb[0].mxu0
  %v4513 = vadd.f32 0.0, %v4512
  %v4514 = vpop.f32.mrb[0].mxu0
  %4515 = vdwg.mxu0
  %4516 = vrot.lane.b32.xlu0 %v3802, 96
  %v4517 = vpop.permute.xlu0 %4516
  %4518 = vrot.lane.b32.xlu0 %v3806, 96
  %v4519 = vpop.permute.xlu0 %4518
  %4520 = vrot.lane.b32.xlu0 %v3812, 96
  %v4521 = vpop.permute.xlu0 %4520
  %4522 = vrot.lane.b32.xlu0 %v3816, 96
  %v4523 = vpop.permute.xlu0 %4522
  %4524 = vrot.lane.b32.xlu0 %v3822, 96
  %v4525 = vpop.permute.xlu0 %4524
  %4526 = vrot.lane.b32.xlu0 %v3826, 96
  %v4527 = vpop.permute.xlu0 %4526
  %4528 = vrot.lane.b32.xlu0 %v3802, 32
  %v4529 = vpop.permute.xlu0 %4528
  %4530 = vrot.lane.b32.xlu0 %v3806, 32
  %v4531 = vpop.permute.xlu0 %4530
  %4532 = vrot.lane.b32.xlu0 %v3812, 32
  %v4533 = vpop.permute.xlu0 %4532
  %4534 = vrot.lane.b32.xlu0 %v3816, 32
  %v4535 = vpop.permute.xlu0 %4534
  %4536 = vrot.lane.b32.xlu0 %v3822, 32
  %v4537 = vpop.permute.xlu0 %4536
  %4538 = vrot.lane.b32.xlu0 %v3826, 32
  %v4539 = vpop.permute.xlu0 %4538
  %v4540 = vsel %vm1647, %v4517, 0
  %v4542 = vsel %vm1647, %v4519, 0
  %v4544 = vsel %vm1647, %v4521, 0
  %v4546 = vsel %vm1647, %v4523, 0
  %v4548 = vsel %vm1647, %v4525, 0
  %v4550 = vsel %vm1647, %v4527, 0
  %v4552 = vsel %vm1647, %v4529, 0
  %v4554 = vsel %vm1647, %v4531, 0
  %v4556 = vsel %vm1647, %v4533, 0
  %v4558 = vsel %vm1647, %v4535, 0
  %v4560 = vsel %vm1647, %v4537, 0
  %v4562 = vsel %vm1647, %v4539, 0
  %4564 = vmatprep.subr.mxu0 0.0
  %4565 = vmatpush1.xpose.msra.mxu0 %v4552
  %4566 = vmatprep.subr.mxu0 0.0
  %4567 = vmatpush1.xpose.msra.mxu0 %v4554
  %4568 = vmatprep.subr.mxu0 0.0
  %4569 = vmatpush1.xpose.msra.mxu0 %v4556
  %4570 = vmatprep.subr.mxu0 0.0
  %4571 = vmatpush1.xpose.msra.mxu0 %v4558
  %4572 = vmatprep.subr.mxu0 0.0
  %4573 = vmatpush1.xpose.msra.mxu0 %v4560
  %4574 = vmatprep.subr.mxu0 0.0
  %4575 = vmatpush1.xpose.msra.mxu0 %v4562
  %4576 = vmatprep.subr.mxu0 0.0
  %4577 = vmatpush1.xpose.msra.mxu0 0.0
  %4578 = vmatprep.subr.mxu0 0.0
  %4579 = vmatpush1.xpose.msra.mxu0 0.0
  %4580 = vmatprep.subr.mxu0 0.0
  %4581 = vmatpush1.xpose.msra.mxu0 0.0
  %4582 = vmatprep.subr.mxu0 0.0
  %4583 = vmatpush1.xpose.msra.mxu0 0.0
  %4584 = vmatprep.subr.mxu0 0.0
  %4585 = vmatpush1.xpose.msra.mxu0 0.0
  %4586 = vmatprep.subr.mxu0 0.0
  %4587 = vmatpush1.xpose.msra.mxu0 0.0
  %4588 = vmatprep.subr.mxu0 0.0
  %4589 = vmatpush1.xpose.msra.mxu0 0.0
  %4590 = vmatprep.subr.mxu0 0.0
  %4591 = vmatpush1.xpose.msra.mxu0 0.0
  %4592 = vmatprep.subr.mxu0 0.0
  %4593 = vmatpush1.xpose.msra.mxu0 0.0
  %4594 = vmatprep.subr.mxu0 0.0
  %4595 = vmatpush1.xpose.msra.mxu0 0.0
  %4596 = vmatprep.subr.mxu0 0.0
  %4597 = vmatpush1.xpose.msra.mxu0 0.0
  %4598 = vmatprep.subr.mxu0 0.0
  %4599 = vmatpush1.xpose.msra.mxu0 0.0
  %4600 = vmatprep.subr.mxu0 0.0
  %4601 = vmatpush1.xpose.msra.mxu0 0.0
  %4602 = vmatprep.subr.mxu0 0.0
  %4603 = vmatpush1.xpose.msra.mxu0 0.0
  %4604 = vmatprep.subr.mxu0 0.0
  %4605 = vmatpush1.xpose.msra.mxu0 0.0
  %4606 = vmatprep.subr.mxu0 0.0
  %4607 = vmatpush1.xpose.msra.mxu0 0.0
  %4608 = vmatprep.subr.mxu0 0.0
  %4609 = vmatpush1.xpose.msra.mxu0 0.0
  %4610 = vmatprep.subr.mxu0 0.0
  %4611 = vmatpush1.xpose.msra.mxu0 0.0
  %4612 = vmatprep.subr.mxu0 0.0
  %4613 = vmatpush1.xpose.msra.mxu0 0.0
  %4614 = vmatprep.subr.mxu0 0.0
  %4615 = vmatpush1.xpose.msra.mxu0 0.0
  %4616 = vmatprep.subr.mxu0 0.0
  %4617 = vmatpush1.xpose.msra.mxu0 0.0
  %4618 = vmatprep.subr.mxu0 0.0
  %4619 = vmatpush1.xpose.msra.mxu0 0.0
  %4620 = vmatprep.subr.mxu0 0.0
  %4621 = vmatpush1.xpose.msra.mxu0 0.0
  %4622 = vmatprep.subr.mxu0 0.0
  %4623 = vmatpush1.xpose.msra.mxu0 0.0
  %4624 = vmatprep.subr.mxu0 0.0
  %4625 = vmatpush1.xpose.msra.mxu0 0.0
  %4626 = vmatprep.subr.mxu0 0.0
  %4627 = vmatpush1.xpose.msra.mxu0 0.0
  %4628 = vmatprep.mubr.f32.mxu0 0.0
  %4629 = vmatmul.mubr.f32.gmra.mrb[0].mxu0 %v4540
  %v4630 = vpop.f32.mrb[0].mxu0
  %v4631 = vadd.f32 0.0, %v4630
  %v4632 = vpop.f32.mrb[0].mxu0
  %4633 = vmatprep.mubr.f32.mxu0 0.0
  %4634 = vmatmul.mubr.f32.gmra.mrb[0].mxu0 %v4542
  %v4635 = vpop.f32.mrb[0].mxu0
  %v4636 = vadd.f32 0.0, %v4635
  %v4637 = vpop.f32.mrb[0].mxu0
  %4638 = vmatprep.mubr.f32.mxu0 0.0
  %4639 = vmatmul.mubr.f32.gmra.mrb[0].mxu0 %v4544
  %v4640 = vpop.f32.mrb[0].mxu0
  %v4641 = vadd.f32 0.0, %v4640
  %v4642 = vpop.f32.mrb[0].mxu0
  %4643 = vmatprep.mubr.f32.mxu0 0.0
  %4644 = vmatmul.mubr.f32.gmra.mrb[0].mxu0 %v4546
  %v4645 = vpop.f32.mrb[0].mxu0
  %v4646 = vadd.f32 0.0, %v4645
  %v4647 = vpop.f32.mrb[0].mxu0
  %4648 = vmatprep.mubr.f32.mxu0 0.0
  %4649 = vmatmul.mubr.f32.gmra.mrb[0].mxu0 %v4548
  %v4650 = vpop.f32.mrb[0].mxu0
  %v4651 = vadd.f32 0.0, %v4650
  %v4652 = vpop.f32.mrb[0].mxu0
  %4653 = vmatprep.mubr.f32.mxu0 0.0
  %4654 = vmatmul.mubr.f32.gmra.mrb[0].mxu0 %v4550
  %v4655 = vpop.f32.mrb[0].mxu0
  %v4656 = vadd.f32 0.0, %v4655
  %v4657 = vpop.f32.mrb[0].mxu0
  %4658 = vdwg.mxu0
  %v4659 = vmul.f32 %v4631, 0.25
  %v4660 = vmul.f32 %v4636, 0.25
  %v4661 = vmul.f32 %v4641, 0.25
  %v4662 = vmul.f32 %v4646, 0.25
  %v4663 = vmul.f32 %v4651, 0.25
  %v4664 = vmul.f32 %v4656, 0.25
  %v4665 = vadd.f32 %v4659, %v1409
  %v4666 = vadd.f32 %v4660, %v1410
  %v4667 = vadd.f32 %v4661, %v1411
  %v4668 = vadd.f32 %v4662, %v1412
  %v4669 = vadd.f32 %v4663, %v1413
  %v4670 = vadd.f32 %v4664, %v1414
  %v4671 = vsel %vm1779, %v4665, -inf
  %4672 = vmax.xlane.f32.xlu0 %v4671
  %v4673 = vpop.xlane.xlu0 %4672
  %v4674 = vsel %vm1779, %v4666, -inf
  %4675 = vmax.xlane.f32.xlu0 %v4674
  %v4676 = vpop.xlane.xlu0 %4675
  %v4677 = vsel %vm1779, %v4667, -inf
  %4678 = vmax.xlane.f32.xlu0 %v4677
  %v4679 = vpop.xlane.xlu0 %4678
  %v4680 = vsel %vm1779, %v4668, -inf
  %4681 = vmax.xlane.f32.xlu0 %v4680
  %v4682 = vpop.xlane.xlu0 %4681
  %v4683 = vsel %vm1779, %v4669, -inf
  %4684 = vmax.xlane.f32.xlu0 %v4683
  %v4685 = vpop.xlane.xlu0 %4684
  %v4686 = vsel %vm1779, %v4670, -inf
  %4687 = vmax.xlane.f32.xlu0 %v4686
  %v4688 = vpop.xlane.xlu0 %4687
  %v4689 = vsub.f32 %v4665, %v4673
  %v4690 = vsub.f32 %v4666, %v4676
  %v4691 = vsub.f32 %v4667, %v4679
  %v4692 = vsub.f32 %v4668, %v4682
  %v4693 = vsub.f32 %v4669, %v4685
  %v4694 = vsub.f32 %v4670, %v4688
  %v4695 = vmul.f32 %v4689, 1.442695
  %v4696 = vpow.pop %v4695
  %v4697 = vmul.f32 %v4690, 1.442695
  %v4698 = vpow.pop %v4697
  %v4699 = vmul.f32 %v4691, 1.442695
  %v4700 = vpow.pop %v4699
  %v4701 = vmul.f32 %v4692, 1.442695
  %v4702 = vpow.pop %v4701
  %v4703 = vmul.f32 %v4693, 1.442695
  %v4704 = vpow.pop %v4703
  %v4705 = vmul.f32 %v4694, 1.442695
  %v4706 = vpow.pop %v4705
  %v4707 = vsel %vm1779, %v4696, 0.0
  %4708 = vadd.xlane.f32.xlu0 %v4707
  %v4709 = vpop.xlane.xlu0 %4708
  %v4710 = vsel %vm1779, %v4698, 0.0
  %4711 = vadd.xlane.f32.xlu0 %v4710
  %v4712 = vpop.xlane.xlu0 %4711
  %v4713 = vsel %vm1779, %v4700, 0.0
  %4714 = vadd.xlane.f32.xlu0 %v4713
  %v4715 = vpop.xlane.xlu0 %4714
  %v4716 = vsel %vm1779, %v4702, 0.0
  %4717 = vadd.xlane.f32.xlu0 %v4716
  %v4718 = vpop.xlane.xlu0 %4717
  %v4719 = vsel %vm1779, %v4704, 0.0
  %4720 = vadd.xlane.f32.xlu0 %v4719
  %v4721 = vpop.xlane.xlu0 %4720
  %v4722 = vsel %vm1779, %v4706, 0.0
  %4723 = vadd.xlane.f32.xlu0 %v4722
  %v4724 = vpop.xlane.xlu0 %4723
  %v4725 = vrcp.pop %v4709
  %v4726 = vrcp.pop %v4712
  %v4727 = vrcp.pop %v4715
  %v4728 = vrcp.pop %v4718
  %v4729 = vrcp.pop %v4721
  %v4730 = vrcp.pop %v4724
  %v4731 = vmul.f32 %v4696, %v4725
  %v4732 = vmul.f32 %v4698, %v4726
  %v4733 = vmul.f32 %v4700, %v4727
  %v4734 = vmul.f32 %v4702, %v4728
  %v4735 = vmul.f32 %v4704, %v4729
  %v4736 = vmul.f32 %v4706, %v4730
  %4737 = vrot.lane.b32.xlu0 %v3804, 96
  %v4738 = vpop.permute.xlu0 %4737
  %4739 = vrot.lane.b32.xlu0 %v3808, 96
  %v4740 = vpop.permute.xlu0 %4739
  %4741 = vrot.lane.b32.xlu0 %v3814, 96
  %v4742 = vpop.permute.xlu0 %4741
  %4743 = vrot.lane.b32.xlu0 %v3818, 96
  %v4744 = vpop.permute.xlu0 %4743
  %4745 = vrot.lane.b32.xlu0 %v3824, 96
  %v4746 = vpop.permute.xlu0 %4745
  %4747 = vrot.lane.b32.xlu0 %v3828, 96
  %v4748 = vpop.permute.xlu0 %4747
  %v4756 = vsel %vm1779, %v4731, 0
  %v4759 = vsel %vm1779, %v4732, 0
  %v4762 = vsel %vm1779, %v4733, 0
  %v4765 = vsel %vm1779, %v4734, 0
  %v4768 = vsel %vm1779, %v4735, 0
  %v4771 = vsel %vm1779, %v4736, 0
  %4773 = vmatprep.subr.mxu0 0.0
  %4774 = vmatpush1.msra.mxu0 %v4738
  %4775 = vmatprep.subr.mxu0 0.0
  %4776 = vmatpush1.msra.mxu0 %v4740
  %4777 = vmatprep.subr.mxu0 0.0
  %4778 = vmatpush1.msra.mxu0 %v4742
  %4779 = vmatprep.subr.mxu0 0.0
  %4780 = vmatpush1.msra.mxu0 %v4744
  %4781 = vmatprep.subr.mxu0 0.0
  %4782 = vmatpush1.msra.mxu0 %v4746
  %4783 = vmatprep.subr.mxu0 0.0
  %4784 = vmatpush1.msra.mxu0 %v4748
  %4785 = vmatprep.subr.mxu0 0.0
  %4786 = vmatpush1.msra.mxu0 0.0
  %4787 = vmatprep.subr.mxu0 0.0
  %4788 = vmatpush1.msra.mxu0 0.0
  %4789 = vmatprep.subr.mxu0 0.0
  %4790 = vmatpush1.msra.mxu0 0.0
  %4791 = vmatprep.subr.mxu0 0.0
  %4792 = vmatpush1.msra.mxu0 0.0
  %4793 = vmatprep.subr.mxu0 0.0
  %4794 = vmatpush1.msra.mxu0 0.0
  %4795 = vmatprep.subr.mxu0 0.0
  %4796 = vmatpush1.msra.mxu0 0.0
  %4797 = vmatprep.subr.mxu0 0.0
  %4798 = vmatpush1.msra.mxu0 0.0
  %4799 = vmatprep.subr.mxu0 0.0
  %4800 = vmatpush1.msra.mxu0 0.0
  %4801 = vmatprep.subr.mxu0 0.0
  %4802 = vmatpush1.msra.mxu0 0.0
  %4803 = vmatprep.subr.mxu0 0.0
  %4804 = vmatpush1.msra.mxu0 0.0
  %4805 = vmatprep.subr.mxu0 0.0
  %4806 = vmatpush1.msra.mxu0 0.0
  %4807 = vmatprep.subr.mxu0 0.0
  %4808 = vmatpush1.msra.mxu0 0.0
  %4809 = vmatprep.subr.mxu0 0.0
  %4810 = vmatpush1.msra.mxu0 0.0
  %4811 = vmatprep.subr.mxu0 0.0
  %4812 = vmatpush1.msra.mxu0 0.0
  %4813 = vmatprep.subr.mxu0 0.0
  %4814 = vmatpush1.msra.mxu0 0.0
  %4815 = vmatprep.subr.mxu0 0.0
  %4816 = vmatpush1.msra.mxu0 0.0
  %4817 = vmatprep.subr.mxu0 0.0
  %4818 = vmatpush1.msra.mxu0 0.0
  %4819 = vmatprep.subr.mxu0 0.0
  %4820 = vmatpush1.msra.mxu0 0.0
  %4821 = vmatprep.subr.mxu0 0.0
  %4822 = vmatpush1.msra.mxu0 0.0
  %4823 = vmatprep.subr.mxu0 0.0
  %4824 = vmatpush1.msra.mxu0 0.0
  %4825 = vmatprep.subr.mxu0 0.0
  %4826 = vmatpush1.msra.mxu0 0.0
  %4827 = vmatprep.subr.mxu0 0.0
  %4828 = vmatpush1.msra.mxu0 0.0
  %4829 = vmatprep.subr.mxu0 0.0
  %4830 = vmatpush1.msra.mxu0 0.0
  %4831 = vmatprep.subr.mxu0 0.0
  %4832 = vmatpush1.msra.mxu0 0.0
  %4833 = vmatprep.subr.mxu0 0.0
  %4834 = vmatpush1.msra.mxu0 0.0
  %4835 = vmatprep.subr.mxu0 0.0
  %4836 = vmatpush1.msra.mxu0 0.0
  %4837 = vmatprep.mubr.f32.mxu0 0.0
  %4838 = vmatmul.mubr.f32.gmra.mrb[0].mxu0 %v4756
  %v4839 = vpop.f32.mrb[0].mxu0
  %v4840 = vadd.f32 0.0, %v4839
  %v4841 = vpop.f32.mrb[0].mxu0
  %4842 = vmatprep.mubr.f32.mxu0 0.0
  %4843 = vmatmul.mubr.f32.gmra.mrb[0].mxu0 %v4759
  %v4844 = vpop.f32.mrb[0].mxu0
  %v4845 = vadd.f32 0.0, %v4844
  %v4846 = vpop.f32.mrb[0].mxu0
  %4847 = vmatprep.mubr.f32.mxu0 0.0
  %4848 = vmatmul.mubr.f32.gmra.mrb[0].mxu0 %v4762
  %v4849 = vpop.f32.mrb[0].mxu0
  %v4850 = vadd.f32 0.0, %v4849
  %v4851 = vpop.f32.mrb[0].mxu0
  %4852 = vmatprep.mubr.f32.mxu0 0.0
  %4853 = vmatmul.mubr.f32.gmra.mrb[0].mxu0 %v4765
  %v4854 = vpop.f32.mrb[0].mxu0
  %v4855 = vadd.f32 0.0, %v4854
  %v4856 = vpop.f32.mrb[0].mxu0
  %4857 = vmatprep.mubr.f32.mxu0 0.0
  %4858 = vmatmul.mubr.f32.gmra.mrb[0].mxu0 %v4768
  %v4859 = vpop.f32.mrb[0].mxu0
  %v4860 = vadd.f32 0.0, %v4859
  %v4861 = vpop.f32.mrb[0].mxu0
  %4862 = vmatprep.mubr.f32.mxu0 0.0
  %4863 = vmatmul.mubr.f32.gmra.mrb[0].mxu0 %v4771
  %v4864 = vpop.f32.mrb[0].mxu0
  %v4865 = vadd.f32 0.0, %v4864
  %v4866 = vpop.f32.mrb[0].mxu0
  %4867 = vdwg.mxu0
  %4868 = vrot.lane.b32.xlu0 %v3802, 80
  %v4869 = vpop.permute.xlu0 %4868
  %4870 = vrot.lane.b32.xlu0 %v3806, 80
  %v4871 = vpop.permute.xlu0 %4870
  %4872 = vrot.lane.b32.xlu0 %v3812, 80
  %v4873 = vpop.permute.xlu0 %4872
  %4874 = vrot.lane.b32.xlu0 %v3816, 80
  %v4875 = vpop.permute.xlu0 %4874
  %4876 = vrot.lane.b32.xlu0 %v3822, 80
  %v4877 = vpop.permute.xlu0 %4876
  %4878 = vrot.lane.b32.xlu0 %v3826, 80
  %v4879 = vpop.permute.xlu0 %4878
  %4880 = vrot.lane.b32.xlu0 %v3802, 16
  %v4881 = vpop.permute.xlu0 %4880
  %4882 = vrot.lane.b32.xlu0 %v3806, 16
  %v4883 = vpop.permute.xlu0 %4882
  %4884 = vrot.lane.b32.xlu0 %v3812, 16
  %v4885 = vpop.permute.xlu0 %4884
  %4886 = vrot.lane.b32.xlu0 %v3816, 16
  %v4887 = vpop.permute.xlu0 %4886
  %4888 = vrot.lane.b32.xlu0 %v3822, 16
  %v4889 = vpop.permute.xlu0 %4888
  %4890 = vrot.lane.b32.xlu0 %v3826, 16
  %v4891 = vpop.permute.xlu0 %4890
  %v4892 = vsel %vm1647, %v4869, 0
  %v4894 = vsel %vm1647, %v4871, 0
  %v4896 = vsel %vm1647, %v4873, 0
  %v4898 = vsel %vm1647, %v4875, 0
  %v4900 = vsel %vm1647, %v4877, 0
  %v4902 = vsel %vm1647, %v4879, 0
  %v4904 = vsel %vm1647, %v4881, 0
  %v4906 = vsel %vm1647, %v4883, 0
  %v4908 = vsel %vm1647, %v4885, 0
  %v4910 = vsel %vm1647, %v4887, 0
  %v4912 = vsel %vm1647, %v4889, 0
  %v4914 = vsel %vm1647, %v4891, 0
  %4916 = vmatprep.subr.mxu0 0.0
  %4917 = vmatpush1.xpose.msra.mxu0 %v4904
  %4918 = vmatprep.subr.mxu0 0.0
  %4919 = vmatpush1.xpose.msra.mxu0 %v4906
  %4920 = vmatprep.subr.mxu0 0.0
  %4921 = vmatpush1.xpose.msra.mxu0 %v4908
  %4922 = vmatprep.subr.mxu0 0.0
  %4923 = vmatpush1.xpose.msra.mxu0 %v4910
  %4924 = vmatprep.subr.mxu0 0.0
  %4925 = vmatpush1.xpose.msra.mxu0 %v4912
  %4926 = vmatprep.subr.mxu0 0.0
  %4927 = vmatpush1.xpose.msra.mxu0 %v4914
  %4928 = vmatprep.subr.mxu0 0.0
  %4929 = vmatpush1.xpose.msra.mxu0 0.0
  %4930 = vmatprep.subr.mxu0 0.0
  %4931 = vmatpush1.xpose.msra.mxu0 0.0
  %4932 = vmatprep.subr.mxu0 0.0
  %4933 = vmatpush1.xpose.msra.mxu0 0.0
  %4934 = vmatprep.subr.mxu0 0.0
  %4935 = vmatpush1.xpose.msra.mxu0 0.0
  %4936 = vmatprep.subr.mxu0 0.0
  %4937 = vmatpush1.xpose.msra.mxu0 0.0
  %4938 = vmatprep.subr.mxu0 0.0
  %4939 = vmatpush1.xpose.msra.mxu0 0.0
  %4940 = vmatprep.subr.mxu0 0.0
  %4941 = vmatpush1.xpose.msra.mxu0 0.0
  %4942 = vmatprep.subr.mxu0 0.0
  %4943 = vmatpush1.xpose.msra.mxu0 0.0
  %4944 = vmatprep.subr.mxu0 0.0
  %4945 = vmatpush1.xpose.msra.mxu0 0.0
  %4946 = vmatprep.subr.mxu0 0.0
  %4947 = vmatpush1.xpose.msra.mxu0 0.0
  %4948 = vmatprep.subr.mxu0 0.0
  %4949 = vmatpush1.xpose.msra.mxu0 0.0
  %4950 = vmatprep.subr.mxu0 0.0
  %4951 = vmatpush1.xpose.msra.mxu0 0.0
  %4952 = vmatprep.subr.mxu0 0.0
  %4953 = vmatpush1.xpose.msra.mxu0 0.0
  %4954 = vmatprep.subr.mxu0 0.0
  %4955 = vmatpush1.xpose.msra.mxu0 0.0
  %4956 = vmatprep.subr.mxu0 0.0
  %4957 = vmatpush1.xpose.msra.mxu0 0.0
  %4958 = vmatprep.subr.mxu0 0.0
  %4959 = vmatpush1.xpose.msra.mxu0 0.0
  %4960 = vmatprep.subr.mxu0 0.0
  %4961 = vmatpush1.xpose.msra.mxu0 0.0
  %4962 = vmatprep.subr.mxu0 0.0
  %4963 = vmatpush1.xpose.msra.mxu0 0.0
  %4964 = vmatprep.subr.mxu0 0.0
  %4965 = vmatpush1.xpose.msra.mxu0 0.0
  %4966 = vmatprep.subr.mxu0 0.0
  %4967 = vmatpush1.xpose.msra.mxu0 0.0
  %4968 = vmatprep.subr.mxu0 0.0
  %4969 = vmatpush1.xpose.msra.mxu0 0.0
  %4970 = vmatprep.subr.mxu0 0.0
  %4971 = vmatpush1.xpose.msra.mxu0 0.0
  %4972 = vmatprep.subr.mxu0 0.0
  %4973 = vmatpush1.xpose.msra.mxu0 0.0
  %4974 = vmatprep.subr.mxu0 0.0
  %4975 = vmatpush1.xpose.msra.mxu0 0.0
  %4976 = vmatprep.subr.mxu0 0.0
  %4977 = vmatpush1.xpose.msra.mxu0 0.0
  %4978 = vmatprep.subr.mxu0 0.0
  %4979 = vmatpush1.xpose.msra.mxu0 0.0
  %4980 = vmatprep.mubr.f32.mxu0 0.0
  %4981 = vmatmul.mubr.f32.gmra.mrb[0].mxu0 %v4892
  %v4982 = vpop.f32.mrb[0].mxu0
  %v4983 = vadd.f32 0.0, %v4982
  %v4984 = vpop.f32.mrb[0].mxu0
  %4985 = vmatprep.mubr.f32.mxu0 0.0
  %4986 = vmatmul.mubr.f32.gmra.mrb[0].mxu0 %v4894
  %v4987 = vpop.f32.mrb[0].mxu0
  %v4988 = vadd.f32 0.0, %v4987
  %v4989 = vpop.f32.mrb[0].mxu0
  %4990 = vmatprep.mubr.f32.mxu0 0.0
  %4991 = vmatmul.mubr.f32.gmra.mrb[0].mxu0 %v4896
  %v4992 = vpop.f32.mrb[0].mxu0
  %v4993 = vadd.f32 0.0, %v4992
  %v4994 = vpop.f32.mrb[0].mxu0
  %4995 = vmatprep.mubr.f32.mxu0 0.0
  %4996 = vmatmul.mubr.f32.gmra.mrb[0].mxu0 %v4898
  %v4997 = vpop.f32.mrb[0].mxu0
  %v4998 = vadd.f32 0.0, %v4997
  %v4999 = vpop.f32.mrb[0].mxu0
  %5000 = vmatprep.mubr.f32.mxu0 0.0
  %5001 = vmatmul.mubr.f32.gmra.mrb[0].mxu0 %v4900
  %v5002 = vpop.f32.mrb[0].mxu0
  %v5003 = vadd.f32 0.0, %v5002
  %v5004 = vpop.f32.mrb[0].mxu0
  %5005 = vmatprep.mubr.f32.mxu0 0.0
  %5006 = vmatmul.mubr.f32.gmra.mrb[0].mxu0 %v4902
  %v5007 = vpop.f32.mrb[0].mxu0
  %v5008 = vadd.f32 0.0, %v5007
  %v5009 = vpop.f32.mrb[0].mxu0
  %5010 = vdwg.mxu0
  %v5011 = vmul.f32 %v4983, 0.25
  %v5012 = vmul.f32 %v4988, 0.25
  %v5013 = vmul.f32 %v4993, 0.25
  %v5014 = vmul.f32 %v4998, 0.25
  %v5015 = vmul.f32 %v5003, 0.25
  %v5016 = vmul.f32 %v5008, 0.25
  %v5017 = vadd.f32 %v5011, %v1409
  %v5018 = vadd.f32 %v5012, %v1410
  %v5019 = vadd.f32 %v5013, %v1411
  %v5020 = vadd.f32 %v5014, %v1412
  %v5021 = vadd.f32 %v5015, %v1413
  %v5022 = vadd.f32 %v5016, %v1414
  %v5023 = vsel %vm1779, %v5017, -inf
  %5024 = vmax.xlane.f32.xlu0 %v5023
  %v5025 = vpop.xlane.xlu0 %5024
  %v5026 = vsel %vm1779, %v5018, -inf
  %5027 = vmax.xlane.f32.xlu0 %v5026
  %v5028 = vpop.xlane.xlu0 %5027
  %v5029 = vsel %vm1779, %v5019, -inf
  %5030 = vmax.xlane.f32.xlu0 %v5029
  %v5031 = vpop.xlane.xlu0 %5030
  %v5032 = vsel %vm1779, %v5020, -inf
  %5033 = vmax.xlane.f32.xlu0 %v5032
  %v5034 = vpop.xlane.xlu0 %5033
  %v5035 = vsel %vm1779, %v5021, -inf
  %5036 = vmax.xlane.f32.xlu0 %v5035
  %v5037 = vpop.xlane.xlu0 %5036
  %v5038 = vsel %vm1779, %v5022, -inf
  %5039 = vmax.xlane.f32.xlu0 %v5038
  %v5040 = vpop.xlane.xlu0 %5039
  %v5041 = vsub.f32 %v5017, %v5025
  %v5042 = vsub.f32 %v5018, %v5028
  %v5043 = vsub.f32 %v5019, %v5031
  %v5044 = vsub.f32 %v5020, %v5034
  %v5045 = vsub.f32 %v5021, %v5037
  %v5046 = vsub.f32 %v5022, %v5040
  %v5047 = vmul.f32 %v5041, 1.442695
  %v5048 = vpow.pop %v5047
  %v5049 = vmul.f32 %v5042, 1.442695
  %v5050 = vpow.pop %v5049
  %v5051 = vmul.f32 %v5043, 1.442695
  %v5052 = vpow.pop %v5051
  %v5053 = vmul.f32 %v5044, 1.442695
  %v5054 = vpow.pop %v5053
  %v5055 = vmul.f32 %v5045, 1.442695
  %v5056 = vpow.pop %v5055
  %v5057 = vmul.f32 %v5046, 1.442695
  %v5058 = vpow.pop %v5057
  %v5059 = vsel %vm1779, %v5048, 0.0
  %5060 = vadd.xlane.f32.xlu0 %v5059
  %v5061 = vpop.xlane.xlu0 %5060
  %v5062 = vsel %vm1779, %v5050, 0.0
  %5063 = vadd.xlane.f32.xlu0 %v5062
  %v5064 = vpop.xlane.xlu0 %5063
  %v5065 = vsel %vm1779, %v5052, 0.0
  %5066 = vadd.xlane.f32.xlu0 %v5065
  %v5067 = vpop.xlane.xlu0 %5066
  %v5068 = vsel %vm1779, %v5054, 0.0
  %5069 = vadd.xlane.f32.xlu0 %v5068
  %v5070 = vpop.xlane.xlu0 %5069
  %v5071 = vsel %vm1779, %v5056, 0.0
  %5072 = vadd.xlane.f32.xlu0 %v5071
  %v5073 = vpop.xlane.xlu0 %5072
  %v5074 = vsel %vm1779, %v5058, 0.0
  %5075 = vadd.xlane.f32.xlu0 %v5074
  %v5076 = vpop.xlane.xlu0 %5075
  %v5077 = vrcp.pop %v5061
  %v5078 = vrcp.pop %v5064
  %v5079 = vrcp.pop %v5067
  %v5080 = vrcp.pop %v5070
  %v5081 = vrcp.pop %v5073
  %v5082 = vrcp.pop %v5076
  %v5083 = vmul.f32 %v5048, %v5077
  %v5084 = vmul.f32 %v5050, %v5078
  %v5085 = vmul.f32 %v5052, %v5079
  %v5086 = vmul.f32 %v5054, %v5080
  %v5087 = vmul.f32 %v5056, %v5081
  %v5088 = vmul.f32 %v5058, %v5082
  %5089 = vrot.lane.b32.xlu0 %v3804, 80
  %v5090 = vpop.permute.xlu0 %5089
  %5091 = vrot.lane.b32.xlu0 %v3808, 80
  %v5092 = vpop.permute.xlu0 %5091
  %5093 = vrot.lane.b32.xlu0 %v3814, 80
  %v5094 = vpop.permute.xlu0 %5093
  %5095 = vrot.lane.b32.xlu0 %v3818, 80
  %v5096 = vpop.permute.xlu0 %5095
  %5097 = vrot.lane.b32.xlu0 %v3824, 80
  %v5098 = vpop.permute.xlu0 %5097
  %5099 = vrot.lane.b32.xlu0 %v3828, 80
  %v5100 = vpop.permute.xlu0 %5099
  %v5108 = vsel %vm1779, %v5083, 0
  %v5111 = vsel %vm1779, %v5084, 0
  %v5114 = vsel %vm1779, %v5085, 0
  %v5117 = vsel %vm1779, %v5086, 0
  %v5120 = vsel %vm1779, %v5087, 0
  %v5123 = vsel %vm1779, %v5088, 0
  %5125 = vmatprep.subr.mxu0 0.0
  %5126 = vmatpush1.msra.mxu0 %v5090
  %5127 = vmatprep.subr.mxu0 0.0
  %5128 = vmatpush1.msra.mxu0 %v5092
  %5129 = vmatprep.subr.mxu0 0.0
  %5130 = vmatpush1.msra.mxu0 %v5094
  %5131 = vmatprep.subr.mxu0 0.0
  %5132 = vmatpush1.msra.mxu0 %v5096
  %5133 = vmatprep.subr.mxu0 0.0
  %5134 = vmatpush1.msra.mxu0 %v5098
  %5135 = vmatprep.subr.mxu0 0.0
  %5136 = vmatpush1.msra.mxu0 %v5100
  %5137 = vmatprep.subr.mxu0 0.0
  %5138 = vmatpush1.msra.mxu0 0.0
  %5139 = vmatprep.subr.mxu0 0.0
  %5140 = vmatpush1.msra.mxu0 0.0
  %5141 = vmatprep.subr.mxu0 0.0
  %5142 = vmatpush1.msra.mxu0 0.0
  %5143 = vmatprep.subr.mxu0 0.0
  %5144 = vmatpush1.msra.mxu0 0.0
  %5145 = vmatprep.subr.mxu0 0.0
  %5146 = vmatpush1.msra.mxu0 0.0
  %5147 = vmatprep.subr.mxu0 0.0
  %5148 = vmatpush1.msra.mxu0 0.0
  %5149 = vmatprep.subr.mxu0 0.0
  %5150 = vmatpush1.msra.mxu0 0.0
  %5151 = vmatprep.subr.mxu0 0.0
  %5152 = vmatpush1.msra.mxu0 0.0
  %5153 = vmatprep.subr.mxu0 0.0
  %5154 = vmatpush1.msra.mxu0 0.0
  %5155 = vmatprep.subr.mxu0 0.0
  %5156 = vmatpush1.msra.mxu0 0.0
  %5157 = vmatprep.subr.mxu0 0.0
  %5158 = vmatpush1.msra.mxu0 0.0
  %5159 = vmatprep.subr.mxu0 0.0
  %5160 = vmatpush1.msra.mxu0 0.0
  %5161 = vmatprep.subr.mxu0 0.0
  %5162 = vmatpush1.msra.mxu0 0.0
  %5163 = vmatprep.subr.mxu0 0.0
  %5164 = vmatpush1.msra.mxu0 0.0
  %5165 = vmatprep.subr.mxu0 0.0
  %5166 = vmatpush1.msra.mxu0 0.0
  %5167 = vmatprep.subr.mxu0 0.0
  %5168 = vmatpush1.msra.mxu0 0.0
  %5169 = vmatprep.subr.mxu0 0.0
  %5170 = vmatpush1.msra.mxu0 0.0
  %5171 = vmatprep.subr.mxu0 0.0
  %5172 = vmatpush1.msra.mxu0 0.0
  %5173 = vmatprep.subr.mxu0 0.0
  %5174 = vmatpush1.msra.mxu0 0.0
  %5175 = vmatprep.subr.mxu0 0.0
  %5176 = vmatpush1.msra.mxu0 0.0
  %5177 = vmatprep.subr.mxu0 0.0
  %5178 = vmatpush1.msra.mxu0 0.0
  %5179 = vmatprep.subr.mxu0 0.0
  %5180 = vmatpush1.msra.mxu0 0.0
  %5181 = vmatprep.subr.mxu0 0.0
  %5182 = vmatpush1.msra.mxu0 0.0
  %5183 = vmatprep.subr.mxu0 0.0
  %5184 = vmatpush1.msra.mxu0 0.0
  %5185 = vmatprep.subr.mxu0 0.0
  %5186 = vmatpush1.msra.mxu0 0.0
  %5187 = vmatprep.subr.mxu0 0.0
  %5188 = vmatpush1.msra.mxu0 0.0
  %5189 = vmatprep.mubr.f32.mxu0 0.0
  %5190 = vmatmul.mubr.f32.gmra.mrb[0].mxu0 %v5108
  %v5191 = vpop.f32.mrb[0].mxu0
  %v5192 = vadd.f32 0.0, %v5191
  %v5193 = vpop.f32.mrb[0].mxu0
  %5194 = vmatprep.mubr.f32.mxu0 0.0
  %5195 = vmatmul.mubr.f32.gmra.mrb[0].mxu0 %v5111
  %v5196 = vpop.f32.mrb[0].mxu0
  %v5197 = vadd.f32 0.0, %v5196
  %v5198 = vpop.f32.mrb[0].mxu0
  %5199 = vmatprep.mubr.f32.mxu0 0.0
  %5200 = vmatmul.mubr.f32.gmra.mrb[0].mxu0 %v5114
  %v5201 = vpop.f32.mrb[0].mxu0
  %v5202 = vadd.f32 0.0, %v5201
  %v5203 = vpop.f32.mrb[0].mxu0
  %5204 = vmatprep.mubr.f32.mxu0 0.0
  %5205 = vmatmul.mubr.f32.gmra.mrb[0].mxu0 %v5117
  %v5206 = vpop.f32.mrb[0].mxu0
  %v5207 = vadd.f32 0.0, %v5206
  %v5208 = vpop.f32.mrb[0].mxu0
  %5209 = vmatprep.mubr.f32.mxu0 0.0
  %5210 = vmatmul.mubr.f32.gmra.mrb[0].mxu0 %v5120
  %v5211 = vpop.f32.mrb[0].mxu0
  %v5212 = vadd.f32 0.0, %v5211
  %v5213 = vpop.f32.mrb[0].mxu0
  %5214 = vmatprep.mubr.f32.mxu0 0.0
  %5215 = vmatmul.mubr.f32.gmra.mrb[0].mxu0 %v5123
  %v5216 = vpop.f32.mrb[0].mxu0
  %v5217 = vadd.f32 0.0, %v5216
  %v5218 = vpop.f32.mrb[0].mxu0
  %5219 = vdwg.mxu0
  %5226 = vrot.lane.b32.xlu0 %v4488, 16
  %v5227 = vpop.permute.xlu0 %5226
  %5228 = vrot.lane.b32.xlu0 %v4493, 16
  %v5229 = vpop.permute.xlu0 %5228
  %5230 = vrot.lane.b32.xlu0 %v4498, 16
  %v5231 = vpop.permute.xlu0 %5230
  %5232 = vrot.lane.b32.xlu0 %v4503, 16
  %v5233 = vpop.permute.xlu0 %5232
  %5234 = vrot.lane.b32.xlu0 %v4508, 16
  %v5235 = vpop.permute.xlu0 %5234
  %5236 = vrot.lane.b32.xlu0 %v4513, 16
  %v5237 = vpop.permute.xlu0 %5236
  %5250 = vrot.lane.b32.xlu0 %v4840, 32
  %v5251 = vpop.permute.xlu0 %5250
  %5252 = vrot.lane.b32.xlu0 %v4845, 32
  %v5253 = vpop.permute.xlu0 %5252
  %5254 = vrot.lane.b32.xlu0 %v4850, 32
  %v5255 = vpop.permute.xlu0 %5254
  %5256 = vrot.lane.b32.xlu0 %v4855, 32
  %v5257 = vpop.permute.xlu0 %5256
  %5258 = vrot.lane.b32.xlu0 %v4860, 32
  %v5259 = vpop.permute.xlu0 %5258
  %5260 = vrot.lane.b32.xlu0 %v4865, 32
  %v5261 = vpop.permute.xlu0 %5260
  %5274 = vrot.lane.b32.xlu0 %v5192, 48
  %v5275 = vpop.permute.xlu0 %5274
  %5276 = vrot.lane.b32.xlu0 %v5197, 48
  %v5277 = vpop.permute.xlu0 %5276
  %5278 = vrot.lane.b32.xlu0 %v5202, 48
  %v5279 = vpop.permute.xlu0 %5278
  %5280 = vrot.lane.b32.xlu0 %v5207, 48
  %v5281 = vpop.permute.xlu0 %5280
  %5282 = vrot.lane.b32.xlu0 %v5212, 48
  %v5283 = vpop.permute.xlu0 %5282
  %5284 = vrot.lane.b32.xlu0 %v5217, 48
  %v5285 = vpop.permute.xlu0 %5284
  %v5292 = vsel %vm1647, %v4130, %v5227
  %v5293 = vsel %vm1647, %v4135, %v5229
  %v5294 = vsel %vm1647, %v4140, %v5231
  %v5295 = vsel %vm1647, %v4145, %v5233
  %v5296 = vsel %vm1647, %v4150, %v5235
  %v5297 = vsel %vm1647, %v4155, %v5237
  %v5298 = vsel %vm3099, %v5292, %v5251
  %v5299 = vsel %vm3099, %v5293, %v5253
  %v5300 = vsel %vm3099, %v5294, %v5255
  %v5301 = vsel %vm3099, %v5295, %v5257
  %v5302 = vsel %vm3099, %v5296, %v5259
  %v5303 = vsel %vm3099, %v5297, %v5261
  %v5304 = vsel %vm1779, %v5298, %v5275
  %v5305 = vsel %vm1779, %v5299, %v5277
  %v5306 = vsel %vm1779, %v5300, %v5279
  %v5307 = vsel %vm1779, %v5301, %v5281
  %v5308 = vsel %vm1779, %v5302, %v5283
  %v5309 = vsel %vm1779, %v5303, %v5285
  %s5310 = scalar_lea.vmem %s9, 32
  %v5311 = vld [vmem:[%s5310] sm:$0xf]
  %v5312 = vld [vmem:[%s5310 + $0x4] sm:$0xf]
  %v5313 = vld [vmem:[%s5310 + $0x8] sm:$0xf]
  %v5314 = vld [vmem:[%s5310 + $0xc] sm:$0xf]
  %v5315 = vld [vmem:[%s5310 + $0x10] sm:$0xf]
  %v5316 = vld [vmem:[%s5310 + $0x14] sm:$0xf]
  %v5317 = vld [vmem:[%s5310 + $0x18] sm:$0xf]
  %v5318 = vld [vmem:[%s5310 + $0x1c] sm:$0xf]
  %v5319 = vpack.c.bf16 %v5305, %v5304
  %v5320 = vpack.c.bf16 %v5307, %v5306
  %v5321 = vpack.c.bf16 %v5309, %v5308
  %v5330 = vunpack.c.l.b16 %v5311
  %v5331 = vunpack.c.l.b16 %v5312
  %v5332 = vunpack.c.l.b16 %v5313
  %v5333 = vunpack.c.l.b16 %v5314
  %v5334 = vunpack.c.l.b16 %v5315
  %v5335 = vunpack.c.l.b16 %v5316
  %v5336 = vunpack.c.l.b16 %v5317
  %v5337 = vunpack.c.l.b16 %v5318
  %v5338 = vpack.c.b16 %v5331, %v5330
  %v5339 = vpack.c.b16 %v5333, %v5332
  %v5340 = vpack.c.b16 %v5335, %v5334
  %v5341 = vpack.c.b16 %v5337, %v5336
  %v5347 = vsel %vm805, %v5319, 0
  %v5350 = vsel %vm805, %v5320, 0
  %v5353 = vsel %vm805, %v5321, 0
  %5355 = vmatprep.subr.bf16.mxu0 0
  %5356 = vmatpush1.bf16.msra.mxu0 %v5338
  %5357 = vmatprep.subr.bf16.mxu0 0
  %5358 = vmatpush1.bf16.msra.mxu0 %v5339
  %5359 = vmatprep.subr.bf16.mxu0 0
  %5360 = vmatpush1.bf16.msra.mxu0 %v5340
  %5361 = vmatprep.subr.bf16.mxu0 0
  %5362 = vmatpush1.bf16.msra.mxu0 %v5341
  %5363 = vmatprep.subr.bf16.mxu0 0
  %5364 = vmatpush1.bf16.msra.mxu0 0
  %5365 = vmatprep.subr.bf16.mxu0 0
  %5366 = vmatpush1.bf16.msra.mxu0 0
  %5367 = vmatprep.subr.bf16.mxu0 0
  %5368 = vmatpush1.bf16.msra.mxu0 0
  %5369 = vmatprep.subr.bf16.mxu0 0
  %5370 = vmatpush1.bf16.msra.mxu0 0
  %5371 = vmatprep.subr.bf16.mxu0 0
  %5372 = vmatpush1.bf16.msra.mxu0 0
  %5373 = vmatprep.subr.bf16.mxu0 0
  %5374 = vmatpush1.bf16.msra.mxu0 0
  %5375 = vmatprep.subr.bf16.mxu0 0
  %5376 = vmatpush1.bf16.msra.mxu0 0
  %5377 = vmatprep.subr.bf16.mxu0 0
  %5378 = vmatpush1.bf16.msra.mxu0 0
  %5379 = vmatprep.subr.bf16.mxu0 0
  %5380 = vmatpush1.bf16.msra.mxu0 0
  %5381 = vmatprep.subr.bf16.mxu0 0
  %5382 = vmatpush1.bf16.msra.mxu0 0
  %5383 = vmatprep.subr.bf16.mxu0 0
  %5384 = vmatpush1.bf16.msra.mxu0 0
  %5385 = vmatprep.subr.bf16.mxu0 0
  %5386 = vmatpush1.bf16.msra.mxu0 0
  %5387 = vmatprep.mubr.bf16.mxu0 0
  %5388 = vmatmul.mubr.bf16.gmra.mrb[0].mxu0 %v5347
  %v5389 = vpop.f32.mrb[0].mxu0
  %v5390 = vadd.f32 0.0, %v5389
  %v5391 = vpop.f32.mrb[0].mxu0
  %v5392 = vpop.f32.mrb[0].mxu0
  %v5393 = vadd.f32 0.0, %v5392
  %v5394 = vpop.f32.mrb[0].mxu0
  %5395 = vmatprep.mubr.bf16.mxu0 0
  %5396 = vmatmul.mubr.bf16.gmra.mrb[0].mxu0 %v5350
  %v5397 = vpop.f32.mrb[0].mxu0
  %v5398 = vadd.f32 0.0, %v5397
  %v5399 = vpop.f32.mrb[0].mxu0
  %v5400 = vpop.f32.mrb[0].mxu0
  %v5401 = vadd.f32 0.0, %v5400
  %v5402 = vpop.f32.mrb[0].mxu0
  %5403 = vmatprep.mubr.bf16.mxu0 0
  %5404 = vmatmul.mubr.bf16.gmra.mrb[0].mxu0 %v5353
  %v5405 = vpop.f32.mrb[0].mxu0
  %v5406 = vadd.f32 0.0, %v5405
  %v5407 = vpop.f32.mrb[0].mxu0
  %v5408 = vpop.f32.mrb[0].mxu0
  %v5409 = vadd.f32 0.0, %v5408
  %v5410 = vpop.f32.mrb[0].mxu0
  %5411 = vdwg.mxu0
  %v5412 = vadd.f32 %v3609, %v5390
  %v5413 = vadd.f32 %v3610, %v5393
  %v5414 = vadd.f32 %v3611, %v5398
  %v5415 = vadd.f32 %v3612, %v5401
  %v5416 = vadd.f32 %v3613, %v5406
  %v5417 = vadd.f32 %v3614, %v5409
  %s5418 = scalar_lea.vmem %s10, 1
  %v5419 = vld [vmem:[%s5418] sm:$0x1]
  %v5421 = vlaneseq
  %v5422 = vshrl.u32 %v5421, 7
  %v5423 = vsub.s32 0, %v5422
  %v5424 = vrot.slane %v5419, %v5423
  %v5426 = vadd.f32 %v5412, %v5424
  %v5427 = vadd.f32 %v5413, %v5424
  %v5428 = vadd.f32 %v5414, %v5424
  %v5429 = vadd.f32 %v5415, %v5424
  %v5430 = vadd.f32 %v5416, %v5424
  %v5431 = vadd.f32 %v5417, %v5424
  %v5432 = vsel %vm805, %v5426, 0.0
  %5433 = vadd.xlane.f32.xlu0 %v5432
  %v5434 = vpop.xlane.xlu0 %5433
  %v5435 = vsel %vm805, %v5427, 0.0
  %5436 = vadd.xlane.f32.xlu0 %v5435
  %v5437 = vpop.xlane.xlu0 %5436
  %v5438 = vsel %vm805, %v5428, 0.0
  %5439 = vadd.xlane.f32.xlu0 %v5438
  %v5440 = vpop.xlane.xlu0 %5439
  %v5441 = vsel %vm805, %v5429, 0.0
  %5442 = vadd.xlane.f32.xlu0 %v5441
  %v5443 = vpop.xlane.xlu0 %5442
  %v5444 = vsel %vm805, %v5430, 0.0
  %5445 = vadd.xlane.f32.xlu0 %v5444
  %v5446 = vpop.xlane.xlu0 %5445
  %v5447 = vsel %vm805, %v5431, 0.0
  %5448 = vadd.xlane.f32.xlu0 %v5447
  %v5449 = vpop.xlane.xlu0 %5448
  %v5450 = vmul.f32 %v5434, %v1433
  %v5451 = vmul.f32 %v5437, %v1433
  %v5452 = vmul.f32 %v5440, %v1433
  %v5453 = vmul.f32 %v5443, %v1433
  %v5454 = vmul.f32 %v5446, %v1433
  %v5455 = vmul.f32 %v5449, %v1433
  %v5456 = vsub.f32 %v5426, %v5450
  %v5457 = vsub.f32 %v5427, %v5451
  %v5458 = vsub.f32 %v5428, %v5452
  %v5459 = vsub.f32 %v5429, %v5453
  %v5460 = vsub.f32 %v5430, %v5454
  %v5461 = vsub.f32 %v5431, %v5455
  %v5462 = vmul.f32 %v5456, %v5456
  %v5463 = vmul.f32 %v5457, %v5457
  %v5464 = vmul.f32 %v5458, %v5458
  %v5465 = vmul.f32 %v5459, %v5459
  %v5466 = vmul.f32 %v5460, %v5460
  %v5467 = vmul.f32 %v5461, %v5461
  %v5468 = vsel %vm805, %v5462, 0.0
  %5469 = vadd.xlane.f32.xlu0 %v5468
  %v5470 = vpop.xlane.xlu0 %5469
  %v5471 = vsel %vm805, %v5463, 0.0
  %5472 = vadd.xlane.f32.xlu0 %v5471
  %v5473 = vpop.xlane.xlu0 %5472
  %v5474 = vsel %vm805, %v5464, 0.0
  %5475 = vadd.xlane.f32.xlu0 %v5474
  %v5476 = vpop.xlane.xlu0 %5475
  %v5477 = vsel %vm805, %v5465, 0.0
  %5478 = vadd.xlane.f32.xlu0 %v5477
  %v5479 = vpop.xlane.xlu0 %5478
  %v5480 = vsel %vm805, %v5466, 0.0
  %5481 = vadd.xlane.f32.xlu0 %v5480
  %v5482 = vpop.xlane.xlu0 %5481
  %v5483 = vsel %vm805, %v5467, 0.0
  %5484 = vadd.xlane.f32.xlu0 %v5483
  %v5485 = vpop.xlane.xlu0 %5484
  %v5486 = vmul.f32 %v5470, %v1433
  %v5487 = vmul.f32 %v5473, %v1433
  %v5488 = vmul.f32 %v5476, %v1433
  %v5489 = vmul.f32 %v5479, %v1433
  %v5490 = vmul.f32 %v5482, %v1433
  %v5491 = vmul.f32 %v5485, %v1433
  %v5492 = vadd.f32 %v5486, 1e-05
  %v5493 = vadd.f32 %v5487, 1e-05
  %v5494 = vadd.f32 %v5488, 1e-05
  %v5495 = vadd.f32 %v5489, 1e-05
  %v5496 = vadd.f32 %v5490, 1e-05
  %v5497 = vadd.f32 %v5491, 1e-05
  %v5498 = vrsqrt.pop %v5492
  %v5499 = vrsqrt.pop %v5493
  %v5500 = vrsqrt.pop %v5494
  %v5501 = vrsqrt.pop %v5495
  %v5502 = vrsqrt.pop %v5496
  %v5503 = vrsqrt.pop %v5497
  %v5504 = vmul.f32 %v5456, %v5498
  %v5505 = vmul.f32 %v5457, %v5499
  %v5506 = vmul.f32 %v5458, %v5500
  %v5507 = vmul.f32 %v5459, %v5501
  %v5508 = vmul.f32 %v5460, %v5502
  %v5509 = vmul.f32 %v5461, %v5503
  %s5510 = scalar_lea.vmem %s11, 32
  %v5511 = vld [vmem:[%s5510] sm:$0xf]
  %v5512 = vld [vmem:[%s5510 + $0x4] sm:$0xf]
  %v5513 = vld [vmem:[%s5510 + $0x8] sm:$0xf]
  %v5514 = vld [vmem:[%s5510 + $0xc] sm:$0xf]
  %v5515 = vld [vmem:[%s5510 + $0x10] sm:$0xf]
  %v5516 = vld [vmem:[%s5510 + $0x14] sm:$0xf]
  %v5517 = vld [vmem:[%s5510 + $0x18] sm:$0xf]
  %v5518 = vld [vmem:[%s5510 + $0x1c] sm:$0xf]
  %v5519 = vpack.c.bf16 %v5505, %v5504
  %v5520 = vpack.c.bf16 %v5507, %v5506
  %v5521 = vpack.c.bf16 %v5509, %v5508
  %s5522 = scalar_lea.vmem %s12, 1
  %v5523 = vld [vmem:[%s5522] sm:$0x1]
  %v5525 = vlaneseq
  %v5526 = vshrl.u32 %v5525, 7
  %v5527 = vsub.s32 0, %v5526
  %v5528 = vrot.slane %v5523, %v5527
  %v5538 = vunpack.c.l.b16 %v5511
  %v5539 = vunpack.c.l.b16 %v5512
  %v5540 = vunpack.c.l.b16 %v5513
  %v5541 = vunpack.c.l.b16 %v5514
  %v5542 = vunpack.c.l.b16 %v5515
  %v5543 = vunpack.c.l.b16 %v5516
  %v5544 = vunpack.c.l.b16 %v5517
  %v5545 = vunpack.c.l.b16 %v5518
  %v5546 = vpack.c.b16 %v5539, %v5538
  %v5547 = vpack.c.b16 %v5541, %v5540
  %v5548 = vpack.c.b16 %v5543, %v5542
  %v5549 = vpack.c.b16 %v5545, %v5544
  %v5555 = vsel %vm805, %v5519, 0
  %v5558 = vsel %vm805, %v5520, 0
  %v5561 = vsel %vm805, %v5521, 0
  %5563 = vmatprep.subr.bf16.mxu0 0
  %5564 = vmatpush1.bf16.msra.mxu0 %v5546
  %5565 = vmatprep.subr.bf16.mxu0 0
  %5566 = vmatpush1.bf16.msra.mxu0 %v5547
  %5567 = vmatprep.subr.bf16.mxu0 0
  %5568 = vmatpush1.bf16.msra.mxu0 %v5548
  %5569 = vmatprep.subr.bf16.mxu0 0
  %5570 = vmatpush1.bf16.msra.mxu0 %v5549
  %5571 = vmatprep.subr.bf16.mxu0 0
  %5572 = vmatpush1.bf16.msra.mxu0 0
  %5573 = vmatprep.subr.bf16.mxu0 0
  %5574 = vmatpush1.bf16.msra.mxu0 0
  %5575 = vmatprep.subr.bf16.mxu0 0
  %5576 = vmatpush1.bf16.msra.mxu0 0
  %5577 = vmatprep.subr.bf16.mxu0 0
  %5578 = vmatpush1.bf16.msra.mxu0 0
  %5579 = vmatprep.subr.bf16.mxu0 0
  %5580 = vmatpush1.bf16.msra.mxu0 0
  %5581 = vmatprep.subr.bf16.mxu0 0
  %5582 = vmatpush1.bf16.msra.mxu0 0
  %5583 = vmatprep.subr.bf16.mxu0 0
  %5584 = vmatpush1.bf16.msra.mxu0 0
  %5585 = vmatprep.subr.bf16.mxu0 0
  %5586 = vmatpush1.bf16.msra.mxu0 0
  %5587 = vmatprep.subr.bf16.mxu0 0
  %5588 = vmatpush1.bf16.msra.mxu0 0
  %5589 = vmatprep.subr.bf16.mxu0 0
  %5590 = vmatpush1.bf16.msra.mxu0 0
  %5591 = vmatprep.subr.bf16.mxu0 0
  %5592 = vmatpush1.bf16.msra.mxu0 0
  %5593 = vmatprep.subr.bf16.mxu0 0
  %5594 = vmatpush1.bf16.msra.mxu0 0
  %5595 = vmatprep.mubr.bf16.mxu0 0
  %5596 = vmatmul.mubr.bf16.gmra.mrb[0].mxu0 %v5555
  %v5597 = vpop.f32.mrb[0].mxu0
  %v5598 = vadd.f32 %v5528, %v5597
  %v5599 = vpop.f32.mrb[0].mxu0
  %v5600 = vpop.f32.mrb[0].mxu0
  %v5601 = vadd.f32 %v5528, %v5600
  %v5602 = vpop.f32.mrb[0].mxu0
  %5603 = vmatprep.mubr.bf16.mxu0 0
  %5604 = vmatmul.mubr.bf16.gmra.mrb[0].mxu0 %v5558
  %v5605 = vpop.f32.mrb[0].mxu0
  %v5606 = vadd.f32 %v5528, %v5605
  %v5607 = vpop.f32.mrb[0].mxu0
  %v5608 = vpop.f32.mrb[0].mxu0
  %v5609 = vadd.f32 %v5528, %v5608
  %v5610 = vpop.f32.mrb[0].mxu0
  %5611 = vmatprep.mubr.bf16.mxu0 0
  %5612 = vmatmul.mubr.bf16.gmra.mrb[0].mxu0 %v5561
  %v5613 = vpop.f32.mrb[0].mxu0
  %v5614 = vadd.f32 %v5528, %v5613
  %v5615 = vpop.f32.mrb[0].mxu0
  %v5616 = vpop.f32.mrb[0].mxu0
  %v5617 = vadd.f32 %v5528, %v5616
  %v5618 = vpop.f32.mrb[0].mxu0
  %5619 = vdwg.mxu0
  %v5620 = vmul.f32 %v5598, %v5598
  %v5621 = vmul.f32 %v5601, %v5601
  %v5622 = vmul.f32 %v5606, %v5606
  %v5623 = vmul.f32 %v5609, %v5609
  %v5624 = vmul.f32 %v5614, %v5614
  %v5625 = vmul.f32 %v5617, %v5617
  %v5626 = vmul.f32 %v5598, %v5620
  %v5627 = vmul.f32 %v5601, %v5621
  %v5628 = vmul.f32 %v5606, %v5622
  %v5629 = vmul.f32 %v5609, %v5623
  %v5630 = vmul.f32 %v5614, %v5624
  %v5631 = vmul.f32 %v5617, %v5625
  %v5632 = vmul.f32 %v5626, 0.044715
  %v5633 = vmul.f32 %v5627, 0.044715
  %v5634 = vmul.f32 %v5628, 0.044715
  %v5635 = vmul.f32 %v5629, 0.044715
  %v5636 = vmul.f32 %v5630, 0.044715
  %v5637 = vmul.f32 %v5631, 0.044715
  %v5638 = vadd.f32 %v5598, %v5632
  %v5639 = vadd.f32 %v5601, %v5633
  %v5640 = vadd.f32 %v5606, %v5634
  %v5641 = vadd.f32 %v5609, %v5635
  %v5642 = vadd.f32 %v5614, %v5636
  %v5643 = vadd.f32 %v5617, %v5637
  %v5644 = vmul.f32 %v5638, 0.7978846
  %v5645 = vmul.f32 %v5639, 0.7978846
  %v5646 = vmul.f32 %v5640, 0.7978846
  %v5647 = vmul.f32 %v5641, 0.7978846
  %v5648 = vmul.f32 %v5642, 0.7978846
  %v5649 = vmul.f32 %v5643, 0.7978846
  %v5650 = vtanh.pop %v5644
  %v5651 = vtanh.pop %v5645
  %v5652 = vtanh.pop %v5646
  %v5653 = vtanh.pop %v5647
  %v5654 = vtanh.pop %v5648
  %v5655 = vtanh.pop %v5649
  %v5656 = vadd.f32 %v5650, 1.0
  %v5657 = vadd.f32 %v5651, 1.0
  %v5658 = vadd.f32 %v5652, 1.0
  %v5659 = vadd.f32 %v5653, 1.0
  %v5660 = vadd.f32 %v5654, 1.0
  %v5661 = vadd.f32 %v5655, 1.0
  %v5662 = vmul.f32 %v5656, 0.5
  %v5663 = vmul.f32 %v5657, 0.5
  %v5664 = vmul.f32 %v5658, 0.5
  %v5665 = vmul.f32 %v5659, 0.5
  %v5666 = vmul.f32 %v5660, 0.5
  %v5667 = vmul.f32 %v5661, 0.5
  %v5668 = vmul.f32 %v5598, %v5662
  %v5669 = vmul.f32 %v5601, %v5663
  %v5670 = vmul.f32 %v5606, %v5664
  %v5671 = vmul.f32 %v5609, %v5665
  %v5672 = vmul.f32 %v5614, %v5666
  %v5673 = vmul.f32 %v5617, %v5667
  %s5674 = scalar_lea.vmem %s13, 64
  %v5675 = vld [vmem:[%s5674] sm:$0xf]
  %v5676 = vld [vmem:[%s5674 + $0x4] sm:$0xf]
  %v5677 = vld [vmem:[%s5674 + $0x8] sm:$0xf]
  %v5678 = vld [vmem:[%s5674 + $0xc] sm:$0xf]
  %v5679 = vld [vmem:[%s5674 + $0x10] sm:$0xf]
  %v5680 = vld [vmem:[%s5674 + $0x14] sm:$0xf]
  %v5681 = vld [vmem:[%s5674 + $0x18] sm:$0xf]
  %v5682 = vld [vmem:[%s5674 + $0x1c] sm:$0xf]
  %v5683 = vld [vmem:[%s5674 + $0x20] sm:$0xf]
  %v5684 = vld [vmem:[%s5674 + $0x24] sm:$0xf]
  %v5685 = vld [vmem:[%s5674 + $0x28] sm:$0xf]
  %v5686 = vld [vmem:[%s5674 + $0x2c] sm:$0xf]
  %v5687 = vld [vmem:[%s5674 + $0x30] sm:$0xf]
  %v5688 = vld [vmem:[%s5674 + $0x34] sm:$0xf]
  %v5689 = vld [vmem:[%s5674 + $0x38] sm:$0xf]
  %v5690 = vld [vmem:[%s5674 + $0x3c] sm:$0xf]
  %v5691 = vpack.c.bf16 %v5669, %v5668
  %v5692 = vpack.c.bf16 %v5671, %v5670
  %v5693 = vpack.c.bf16 %v5673, %v5672
  %v5710 = vunpack.c.l.b16 %v5675
  %v5711 = vunpack.c.l.b16 %v5676
  %v5712 = vunpack.c.l.b16 %v5677
  %v5713 = vunpack.c.l.b16 %v5678
  %v5714 = vunpack.c.l.b16 %v5679
  %v5715 = vunpack.c.l.b16 %v5680
  %v5716 = vunpack.c.l.b16 %v5681
  %v5717 = vunpack.c.l.b16 %v5682
  %v5718 = vunpack.c.l.b16 %v5683
  %v5719 = vunpack.c.l.b16 %v5684
  %v5720 = vunpack.c.l.b16 %v5685
  %v5721 = vunpack.c.l.b16 %v5686
  %v5722 = vunpack.c.l.b16 %v5687
  %v5723 = vunpack.c.l.b16 %v5688
  %v5724 = vunpack.c.l.b16 %v5689
  %v5725 = vunpack.c.l.b16 %v5690
  %v5726 = vpack.c.b16 %v5711, %v5710
  %v5727 = vpack.c.b16 %v5713, %v5712
  %v5728 = vpack.c.b16 %v5715, %v5714
  %v5729 = vpack.c.b16 %v5717, %v5716
  %v5730 = vpack.c.b16 %v5719, %v5718
  %v5731 = vpack.c.b16 %v5721, %v5720
  %v5732 = vpack.c.b16 %v5723, %v5722
  %v5733 = vpack.c.b16 %v5725, %v5724
  %5742 = vmatprep.subr.bf16.mxu0 0
  %5743 = vmatpush1.bf16.msra.mxu0 %v5726
  %5744 = vmatprep.subr.bf16.mxu0 0
  %5745 = vmatpush1.bf16.msra.mxu0 %v5727
  %5746 = vmatprep.subr.bf16.mxu0 0
  %5747 = vmatpush1.bf16.msra.mxu0 %v5728
  %5748 = vmatprep.subr.bf16.mxu0 0
  %5749 = vmatpush1.bf16.msra.mxu0 %v5729
  %5750 = vmatprep.subr.bf16.mxu0 0
  %5751 = vmatpush1.bf16.msra.mxu0 %v5730
  %5752 = vmatprep.subr.bf16.mxu0 0
  %5753 = vmatpush1.bf16.msra.mxu0 %v5731
  %5754 = vmatprep.subr.bf16.mxu0 0
  %5755 = vmatpush1.bf16.msra.mxu0 %v5732
  %5756 = vmatprep.subr.bf16.mxu0 0
  %5757 = vmatpush1.bf16.msra.mxu0 %v5733
  %5758 = vmatprep.subr.bf16.mxu0 0
  %5759 = vmatpush1.bf16.msra.mxu0 0
  %5760 = vmatprep.subr.bf16.mxu0 0
  %5761 = vmatpush1.bf16.msra.mxu0 0
  %5762 = vmatprep.subr.bf16.mxu0 0
  %5763 = vmatpush1.bf16.msra.mxu0 0
  %5764 = vmatprep.subr.bf16.mxu0 0
  %5765 = vmatpush1.bf16.msra.mxu0 0
  %5766 = vmatprep.subr.bf16.mxu0 0
  %5767 = vmatpush1.bf16.msra.mxu0 0
  %5768 = vmatprep.subr.bf16.mxu0 0
  %5769 = vmatpush1.bf16.msra.mxu0 0
  %5770 = vmatprep.subr.bf16.mxu0 0
  %5771 = vmatpush1.bf16.msra.mxu0 0
  %5772 = vmatprep.subr.bf16.mxu0 0
  %5773 = vmatpush1.bf16.msra.mxu0 0
  %5774 = vmatprep.mubr.bf16.mxu0 0
  %5775 = vmatmul.mubr.bf16.gmra.mrb[0].mxu0 %v5691
  %v5776 = vpop.f32.mrb[0].mxu0
  %v5777 = vadd.f32 0.0, %v5776
  %v5778 = vpop.f32.mrb[0].mxu0
  %v5779 = vpop.f32.mrb[0].mxu0
  %v5780 = vadd.f32 0.0, %v5779
  %v5781 = vpop.f32.mrb[0].mxu0
  %5782 = vmatprep.mubr.bf16.mxu0 0
  %5783 = vmatmul.mubr.bf16.gmra.mrb[0].mxu0 %v5692
  %v5784 = vpop.f32.mrb[0].mxu0
  %v5785 = vpop.f32.mrb[0].mxu0
  %v5786 = vpop.f32.mrb[0].mxu0
  %v5787 = vpop.f32.mrb[0].mxu0
  %5788 = vmatprep.mubr.bf16.mxu0 0
  %5789 = vmatmul.mubr.bf16.gmra.mrb[0].mxu0 %v5693
  %v5790 = vpop.f32.mrb[0].mxu0
  %v5791 = vpop.f32.mrb[0].mxu0
  %v5792 = vpop.f32.mrb[0].mxu0
  %v5793 = vpop.f32.mrb[0].mxu0
  %5794 = vdwg.mxu0
  %v5795 = vadd.f32 %v5426, %v5777
  %v5796 = vadd.f32 %v5427, %v5780
  %s5797 = scalar_lea.vmem %s14, 1
  %v5798 = vld [vmem:[%s5797] sm:$0x1]
  %v5800 = vlaneseq
  %v5801 = vshrl.u32 %v5800, 7
  %v5802 = vsub.s32 0, %v5801
  %v5803 = vrot.slane %v5798, %v5802
  %v5805 = vadd.f32 %v5795, %v5803
  %v5806 = vadd.f32 %v5796, %v5803
  %v5807 = vsel %vm805, %v5805, 0.0
  %5808 = vadd.xlane.f32.xlu0 %v5807
  %v5809 = vpop.xlane.xlu0 %5808
  %v5810 = vsel %vm805, %v5806, 0.0
  %5811 = vadd.xlane.f32.xlu0 %v5810
  %v5812 = vpop.xlane.xlu0 %5811
  %v5813 = vmul.f32 %v5809, %v1433
  %v5814 = vmul.f32 %v5812, %v1433
  %v5815 = vsub.f32 %v5805, %v5813
  %v5816 = vsub.f32 %v5806, %v5814
  %v5817 = vmul.f32 %v5815, %v5815
  %v5818 = vmul.f32 %v5816, %v5816
  %v5819 = vsel %vm805, %v5817, 0.0
  %5820 = vadd.xlane.f32.xlu0 %v5819
  %v5821 = vpop.xlane.xlu0 %5820
  %v5822 = vsel %vm805, %v5818, 0.0
  %5823 = vadd.xlane.f32.xlu0 %v5822
  %v5824 = vpop.xlane.xlu0 %5823
  %v5825 = vmul.f32 %v5821, %v1433
  %v5826 = vmul.f32 %v5824, %v1433
  %v5827 = vadd.f32 %v5825, 1e-05
  %v5828 = vadd.f32 %v5826, 1e-05
  %v5829 = vrsqrt.pop %v5827
  %v5830 = vrsqrt.pop %v5828
  %v5831 = vmul.f32 %v5815, %v5829
  %v5832 = vmul.f32 %v5816, %v5830
  %v5833 = vld [vmem:[%s15] sm:$0xf]
  %v5834 = vld [vmem:[%s15 + $0x4] sm:$0xf]
  %v5835 = vld [vmem:[%s15 + $0x8] sm:$0xf]
  %v5836 = vld [vmem:[%s15 + $0xc] sm:$0xf]
  %v5837 = vld [vmem:[%s15 + $0x10] sm:$0xf]
  %v5838 = vld [vmem:[%s15 + $0x14] sm:$0xf]
  %v5839 = vld [vmem:[%s15 + $0x18] sm:$0xf]
  %v5840 = vld [vmem:[%s15 + $0x1c] sm:$0xf]
  %v5841 = vpack.c.bf16 %v5832, %v5831
  %v5842 = vld [vmem:[%s16] sm:$0x1]
  %v5844 = vlaneseq
  %v5845 = vshrl.u32 %v5844, 7
  %v5846 = vsub.s32 0, %v5845
  %v5847 = vrot.slane %v5842, %v5846
  %v5857 = vunpack.c.l.b16 %v5833
  %v5858 = vunpack.c.l.b16 %v5834
  %v5859 = vunpack.c.l.b16 %v5835
  %v5860 = vunpack.c.l.b16 %v5836
  %v5861 = vunpack.c.l.b16 %v5837
  %v5862 = vunpack.c.l.b16 %v5838
  %v5863 = vunpack.c.l.b16 %v5839
  %v5864 = vunpack.c.l.b16 %v5840
  %v5865 = vpack.c.b16 %v5858, %v5857
  %v5866 = vpack.c.b16 %v5860, %v5859
  %v5867 = vpack.c.b16 %v5862, %v5861
  %v5868 = vpack.c.b16 %v5864, %v5863
  %v5874 = vsel %vm805, %v5841, 0
  %5876 = vmatprep.subr.bf16.mxu0 0
  %5877 = vmatpush1.bf16.msra.mxu0 %v5865
  %5878 = vmatprep.subr.bf16.mxu0 0
  %5879 = vmatpush1.bf16.msra.mxu0 %v5866
  %5880 = vmatprep.subr.bf16.mxu0 0
  %5881 = vmatpush1.bf16.msra.mxu0 %v5867
  %5882 = vmatprep.subr.bf16.mxu0 0
  %5883 = vmatpush1.bf16.msra.mxu0 %v5868
  %5884 = vmatprep.subr.bf16.mxu0 0
  %5885 = vmatpush1.bf16.msra.mxu0 0
  %5886 = vmatprep.subr.bf16.mxu0 0
  %5887 = vmatpush1.bf16.msra.mxu0 0
  %5888 = vmatprep.subr.bf16.mxu0 0
  %5889 = vmatpush1.bf16.msra.mxu0 0
  %5890 = vmatprep.subr.bf16.mxu0 0
  %5891 = vmatpush1.bf16.msra.mxu0 0
  %5892 = vmatprep.subr.bf16.mxu0 0
  %5893 = vmatpush1.bf16.msra.mxu0 0
  %5894 = vmatprep.subr.bf16.mxu0 0
  %5895 = vmatpush1.bf16.msra.mxu0 0
  %5896 = vmatprep.subr.bf16.mxu0 0
  %5897 = vmatpush1.bf16.msra.mxu0 0
  %5898 = vmatprep.subr.bf16.mxu0 0
  %5899 = vmatpush1.bf16.msra.mxu0 0
  %5900 = vmatprep.subr.bf16.mxu0 0
  %5901 = vmatpush1.bf16.msra.mxu0 0
  %5902 = vmatprep.subr.bf16.mxu0 0
  %5903 = vmatpush1.bf16.msra.mxu0 0
  %5904 = vmatprep.subr.bf16.mxu0 0
  %5905 = vmatpush1.bf16.msra.mxu0 0
  %5906 = vmatprep.subr.bf16.mxu0 0
  %5907 = vmatpush1.bf16.msra.mxu0 0
  %5908 = vmatprep.mubr.bf16.mxu0 0
  %5909 = vmatmul.mubr.bf16.gmra.mrb[0].mxu0 %v5874
  %v5910 = vpop.f32.mrb[0].mxu0
  %v5911 = vadd.f32 %v5847, %v5910
  %v5912 = vpop.f32.mrb[0].mxu0
  %v5913 = vpop.f32.mrb[0].mxu0
  %v5914 = vadd.f32 %v5847, %v5913
  %v5915 = vpop.f32.mrb[0].mxu0
  %5916 = vdwg.mxu0
  %5917 = vadd.xlane.f32.xlu0 %v5911
  %v5918 = vpop.xlane.xlu0 %5917
  %5919 = vadd.xlane.f32.xlu0 %v5914
  %v5920 = vpop.xlane.xlu0 %5919
  %v5921 = vrcp.pop 128.0
  %v5922 = vmul.f32 %v5918, %v5921
  %v5923 = vmul.f32 %v5920, %v5921
  %v5924 = vsub.f32 %v5911, %v5922
  %v5925 = vsub.f32 %v5914, %v5923
  %v5926 = vmul.f32 %v5924, %v5924
  %v5927 = vmul.f32 %v5925, %v5925
  %5928 = vadd.xlane.f32.xlu0 %v5926
  %v5929 = vpop.xlane.xlu0 %5928
  %5930 = vadd.xlane.f32.xlu0 %v5927
  %v5931 = vpop.xlane.xlu0 %5930
  %v5932 = vmul.f32 %v5929, %v5921
  %v5933 = vmul.f32 %v5931, %v5921
  %v5934 = vadd.f32 %v5932, 1e-05
  %v5935 = vadd.f32 %v5933, 1e-05
  %v5936 = vrsqrt.pop %v5934
  %v5937 = vrsqrt.pop %v5935
  %v5938 = vmul.f32 %v5924, %v5936
  %v5939 = vmul.f32 %v5925, %v5937
  %s5940 = smul.u32 4, 16
  %s5941 = smul.u32 %s5940, 8
  %s5942 = sshll.u32 %s5941, 4
  %5943 = dma.done [#allocation3], %s5942
  %v5944 = vld [vmem:[#allocation2] sm:$0xff]
  %v5945 = vld [vmem:[#allocation2 + $0x8] sm:$0xff]
  %v5946 = vld [vmem:[#allocation2 + $0x10] sm:$0xff]
  %v5947 = vld [vmem:[#allocation2 + $0x18] sm:$0xff]
  %v5948 = vld [vmem:[#allocation2 + $0x20] sm:$0xff]
  %v5949 = vld [vmem:[#allocation2 + $0x28] sm:$0xff]
  %v5950 = vld [vmem:[#allocation2 + $0x30] sm:$0xff]
  %v5951 = vld [vmem:[#allocation2 + $0x38] sm:$0xff]
  %v5952 = vld [vmem:[#allocation2 + $0x40] sm:$0xff]
  %v5953 = vld [vmem:[#allocation2 + $0x48] sm:$0xff]
  %v5954 = vld [vmem:[#allocation2 + $0x50] sm:$0xff]
  %v5955 = vld [vmem:[#allocation2 + $0x58] sm:$0xff]
  %v5956 = vld [vmem:[#allocation2 + $0x60] sm:$0xff]
  %v5957 = vld [vmem:[#allocation2 + $0x68] sm:$0xff]
  %v5958 = vld [vmem:[#allocation2 + $0x70] sm:$0xff]
  %v5959 = vld [vmem:[#allocation2 + $0x78] sm:$0xff]
  %v5960 = vld [vmem:[#allocation2 + $0x80] sm:$0xff]
  %v5961 = vld [vmem:[#allocation2 + $0x88] sm:$0xff]
  %v5962 = vld [vmem:[#allocation2 + $0x90] sm:$0xff]
  %v5963 = vld [vmem:[#allocation2 + $0x98] sm:$0xff]
  %v5964 = vld [vmem:[#allocation2 + $0xa0] sm:$0xff]
  %v5965 = vld [vmem:[#allocation2 + $0xa8] sm:$0xff]
  %v5966 = vld [vmem:[#allocation2 + $0xb0] sm:$0xff]
  %v5967 = vld [vmem:[#allocation2 + $0xb8] sm:$0xff]
  %v5968 = vld [vmem:[#allocation2 + $0xc0] sm:$0xff]
  %v5969 = vld [vmem:[#allocation2 + $0xc8] sm:$0xff]
  %v5970 = vld [vmem:[#allocation2 + $0xd0] sm:$0xff]
  %v5971 = vld [vmem:[#allocation2 + $0xd8] sm:$0xff]
  %v5972 = vld [vmem:[#allocation2 + $0xe0] sm:$0xff]
  %v5973 = vld [vmem:[#allocation2 + $0xe8] sm:$0xff]
  %v5974 = vld [vmem:[#allocation2 + $0xf0] sm:$0xff]
  %v5975 = vld [vmem:[#allocation2 + $0xf8] sm:$0xff]
  %v5976 = vld [vmem:[#allocation2 + $0x100] sm:$0xff]
  %v5977 = vld [vmem:[#allocation2 + $0x108] sm:$0xff]
  %v5978 = vld [vmem:[#allocation2 + $0x110] sm:$0xff]
  %v5979 = vld [vmem:[#allocation2 + $0x118] sm:$0xff]
  %v5980 = vld [vmem:[#allocation2 + $0x120] sm:$0xff]
  %v5981 = vld [vmem:[#allocation2 + $0x128] sm:$0xff]
  %v5982 = vld [vmem:[#allocation2 + $0x130] sm:$0xff]
  %v5983 = vld [vmem:[#allocation2 + $0x138] sm:$0xff]
  %v5984 = vld [vmem:[#allocation2 + $0x140] sm:$0xff]
  %v5985 = vld [vmem:[#allocation2 + $0x148] sm:$0xff]
  %v5986 = vld [vmem:[#allocation2 + $0x150] sm:$0xff]
  %v5987 = vld [vmem:[#allocation2 + $0x158] sm:$0xff]
  %v5988 = vld [vmem:[#allocation2 + $0x160] sm:$0xff]
  %v5989 = vld [vmem:[#allocation2 + $0x168] sm:$0xff]
  %v5990 = vld [vmem:[#allocation2 + $0x170] sm:$0xff]
  %v5991 = vld [vmem:[#allocation2 + $0x178] sm:$0xff]
  %v5992 = vld [vmem:[#allocation2 + $0x180] sm:$0xff]
  %v5993 = vld [vmem:[#allocation2 + $0x188] sm:$0xff]
  %v5994 = vld [vmem:[#allocation2 + $0x190] sm:$0xff]
  %v5995 = vld [vmem:[#allocation2 + $0x198] sm:$0xff]
  %v5996 = vld [vmem:[#allocation2 + $0x1a0] sm:$0xff]
  %v5997 = vld [vmem:[#allocation2 + $0x1a8] sm:$0xff]
  %v5998 = vld [vmem:[#allocation2 + $0x1b0] sm:$0xff]
  %v5999 = vld [vmem:[#allocation2 + $0x1b8] sm:$0xff]
  %v6000 = vld [vmem:[#allocation2 + $0x1c0] sm:$0xff]
  %v6001 = vld [vmem:[#allocation2 + $0x1c8] sm:$0xff]
  %v6002 = vld [vmem:[#allocation2 + $0x1d0] sm:$0xff]
  %v6003 = vld [vmem:[#allocation2 + $0x1d8] sm:$0xff]
  %v6004 = vld [vmem:[#allocation2 + $0x1e0] sm:$0xff]
  %v6005 = vld [vmem:[#allocation2 + $0x1e8] sm:$0xff]
  %v6006 = vld [vmem:[#allocation2 + $0x1f0] sm:$0xff]
  %v6007 = vld [vmem:[#allocation2 + $0x1f8] sm:$0xff]
  %v6008 = vpack.c.bf16 %v5939, %v5938
  %v6009 = vld [vmem:[%s17] sm:$0xff]
  %v6011 = vlaneseq
  %v6012 = vshrl.u32 %v6011, 7
  %v6013 = vsub.s32 0, %v6012
  %v6014 = vrot.slane %v6009, %v6013
  %v6015 = vlaneseq
  %v6016 = vshrl.u32 %v6015, 7
  %v6017 = vsub.s32 1, %v6016
  %v6018 = vrot.slane %v6009, %v6017
  %v6019 = vlaneseq
  %v6020 = vshrl.u32 %v6019, 7
  %v6021 = vsub.s32 2, %v6020
  %v6022 = vrot.slane %v6009, %v6021
  %v6023 = vlaneseq
  %v6024 = vshrl.u32 %v6023, 7
  %v6025 = vsub.s32 3, %v6024
  %v6026 = vrot.slane %v6009, %v6025
  %v6027 = vlaneseq
  %v6028 = vshrl.u32 %v6027, 7
  %v6029 = vsub.s32 4, %v6028
  %v6030 = vrot.slane %v6009, %v6029
  %v6031 = vlaneseq
  %v6032 = vshrl.u32 %v6031, 7
  %v6033 = vsub.s32 5, %v6032
  %v6034 = vrot.slane %v6009, %v6033
  %v6035 = vlaneseq
  %v6036 = vshrl.u32 %v6035, 7
  %v6037 = vsub.s32 6, %v6036
  %v6038 = vrot.slane %v6009, %v6037
  %v6039 = vlaneseq
  %v6040 = vshrl.u32 %v6039, 7
  %v6041 = vsub.s32 7, %v6040
  %v6042 = vrot.slane %v6009, %v6041
  %6051 = vmatprep.subr.bf16.mxu0 %v5945
  %6052 = vmatpush1.bf16.msra.mxu0 %v5944
  %6053 = vmatprep.subr.bf16.mxu0 %v5953
  %6054 = vmatpush1.bf16.msra.mxu0 %v5952
  %6055 = vmatprep.subr.bf16.mxu0 %v5961
  %6056 = vmatpush1.bf16.msra.mxu0 %v5960
  %6057 = vmatprep.subr.bf16.mxu0 %v5969
  %6058 = vmatpush1.bf16.msra.mxu0 %v5968
  %6059 = vmatprep.subr.bf16.mxu0 %v5977
  %6060 = vmatpush1.bf16.msra.mxu0 %v5976
  %6061 = vmatprep.subr.bf16.mxu0 %v5985
  %6062 = vmatpush1.bf16.msra.mxu0 %v5984
  %6063 = vmatprep.subr.bf16.mxu0 %v5993
  %6064 = vmatpush1.bf16.msra.mxu0 %v5992
  %6065 = vmatprep.subr.bf16.mxu0 %v6001
  %6066 = vmatpush1.bf16.msra.mxu0 %v6000
  %6067 = vmatprep.subr.bf16.mxu0 0
  %6068 = vmatpush1.bf16.msra.mxu0 0
  %6069 = vmatprep.subr.bf16.mxu0 0
  %6070 = vmatpush1.bf16.msra.mxu0 0
  %6071 = vmatprep.subr.bf16.mxu0 0
  %6072 = vmatpush1.bf16.msra.mxu0 0
  %6073 = vmatprep.subr.bf16.mxu0 0
  %6074 = vmatpush1.bf16.msra.mxu0 0
  %6075 = vmatprep.subr.bf16.mxu0 0
  %6076 = vmatpush1.bf16.msra.mxu0 0
  %6077 = vmatprep.subr.bf16.mxu0 0
  %6078 = vmatpush1.bf16.msra.mxu0 0
  %6079 = vmatprep.subr.bf16.mxu0 0
  %6080 = vmatpush1.bf16.msra.mxu0 0
  %6081 = vmatprep.subr.bf16.mxu0 0
  %6082 = vmatpush1.bf16.msra.mxu0 0
  %6083 = vmatprep.mubr.bf16.mxu0 0
  %6084 = vmatmul.mubr.bf16.gmra.mrb[0].mxu0 %v6008
  %v6085 = vpop.f32.mrb[0].mxu0
  %v6086 = vadd.f32 %v6014, %v6085
  %v6087 = vpop.f32.mrb[0].mxu0
  %v6088 = vadd.f32 %v6018, %v6087
  %v6089 = vpop.f32.mrb[0].mxu0
  %v6090 = vadd.f32 %v6014, %v6089
  %v6091 = vpop.f32.mrb[0].mxu0
  %v6092 = vadd.f32 %v6018, %v6091
  %6093 = vdwg.mxu0
  %6094 = vmatprep.subr.bf16.mxu0 %v5947
  %6095 = vmatpush1.bf16.msra.mxu0 %v5946
  %6096 = vmatprep.subr.bf16.mxu0 %v5955
  %6097 = vmatpush1.bf16.msra.mxu0 %v5954
  %6098 = vmatprep.subr.bf16.mxu0 %v5963
  %6099 = vmatpush1.bf16.msra.mxu0 %v5962
  %6100 = vmatprep.subr.bf16.mxu0 %v5971
  %6101 = vmatpush1.bf16.msra.mxu0 %v5970
  %6102 = vmatprep.subr.bf16.mxu0 %v5979
  %6103 = vmatpush1.bf16.msra.mxu0 %v5978
  %6104 = vmatprep.subr.bf16.mxu0 %v5987
  %6105 = vmatpush1.bf16.msra.mxu0 %v5986
  %6106 = vmatprep.subr.bf16.mxu0 %v5995
  %6107 = vmatpush1.bf16.msra.mxu0 %v5994
  %6108 = vmatprep.subr.bf16.mxu0 %v6003
  %6109 = vmatpush1.bf16.msra.mxu0 %v6002
  %6110 = vmatprep.subr.bf16.mxu0 0
  %6111 = vmatpush1.bf16.msra.mxu0 0
  %6112 = vmatprep.subr.bf16.mxu0 0
  %6113 = vmatpush1.bf16.msra.mxu0 0
  %6114 = vmatprep.subr.bf16.mxu0 0
  %6115 = vmatpush1.bf16.msra.mxu0 0
  %6116 = vmatprep.subr.bf16.mxu0 0
  %6117 = vmatpush1.bf16.msra.mxu0 0
  %6118 = vmatprep.subr.bf16.mxu0 0
  %6119 = vmatpush1.bf16.msra.mxu0 0
  %6120 = vmatprep.subr.bf16.mxu0 0
  %6121 = vmatpush1.bf16.msra.mxu0 0
  %6122 = vmatprep.subr.bf16.mxu0 0
  %6123 = vmatpush1.bf16.msra.mxu0 0
  %6124 = vmatprep.subr.bf16.mxu0 0
  %6125 = vmatpush1.bf16.msra.mxu0 0
  %6126 = vmatprep.mubr.bf16.mxu0 0
  %6127 = vmatmul.mubr.bf16.gmra.mrb[0].mxu0 %v6008
  %v6128 = vpop.f32.mrb[0].mxu0
  %v6129 = vadd.f32 %v6022, %v6128
  %v6130 = vpop.f32.mrb[0].mxu0
  %v6131 = vadd.f32 %v6026, %v6130
  %v6132 = vpop.f32.mrb[0].mxu0
  %v6133 = vadd.f32 %v6022, %v6132
  %v6134 = vpop.f32.mrb[0].mxu0
  %v6135 = vadd.f32 %v6026, %v6134
  %6136 = vdwg.mxu0
  %6137 = vmatprep.subr.bf16.mxu0 %v5949
  %6138 = vmatpush1.bf16.msra.mxu0 %v5948
  %6139 = vmatprep.subr.bf16.mxu0 %v5957
  %6140 = vmatpush1.bf16.msra.mxu0 %v5956
  %6141 = vmatprep.subr.bf16.mxu0 %v5965
  %6142 = vmatpush1.bf16.msra.mxu0 %v5964
  %6143 = vmatprep.subr.bf16.mxu0 %v5973
  %6144 = vmatpush1.bf16.msra.mxu0 %v5972
  %6145 = vmatprep.subr.bf16.mxu0 %v5981
  %6146 = vmatpush1.bf16.msra.mxu0 %v5980
  %6147 = vmatprep.subr.bf16.mxu0 %v5989
  %6148 = vmatpush1.bf16.msra.mxu0 %v5988
  %6149 = vmatprep.subr.bf16.mxu0 %v5997
  %6150 = vmatpush1.bf16.msra.mxu0 %v5996
  %6151 = vmatprep.subr.bf16.mxu0 %v6005
  %6152 = vmatpush1.bf16.msra.mxu0 %v6004
  %6153 = vmatprep.subr.bf16.mxu0 0
  %6154 = vmatpush1.bf16.msra.mxu0 0
  %6155 = vmatprep.subr.bf16.mxu0 0
  %6156 = vmatpush1.bf16.msra.mxu0 0
  %6157 = vmatprep.subr.bf16.mxu0 0
  %6158 = vmatpush1.bf16.msra.mxu0 0
  %6159 = vmatprep.subr.bf16.mxu0 0
  %6160 = vmatpush1.bf16.msra.mxu0 0
  %6161 = vmatprep.subr.bf16.mxu0 0
  %6162 = vmatpush1.bf16.msra.mxu0 0
  %6163 = vmatprep.subr.bf16.mxu0 0
  %6164 = vmatpush1.bf16.msra.mxu0 0
  %6165 = vmatprep.subr.bf16.mxu0 0
  %6166 = vmatpush1.bf16.msra.mxu0 0
  %6167 = vmatprep.subr.bf16.mxu0 0
  %6168 = vmatpush1.bf16.msra.mxu0 0
  %6169 = vmatprep.mubr.bf16.mxu0 0
  %6170 = vmatmul.mubr.bf16.gmra.mrb[0].mxu0 %v6008
  %v6171 = vpop.f32.mrb[0].mxu0
  %v6172 = vadd.f32 %v6030, %v6171
  %v6173 = vpop.f32.mrb[0].mxu0
  %v6174 = vadd.f32 %v6034, %v6173
  %v6175 = vpop.f32.mrb[0].mxu0
  %v6176 = vadd.f32 %v6030, %v6175
  %v6177 = vpop.f32.mrb[0].mxu0
  %v6178 = vadd.f32 %v6034, %v6177
  %6179 = vdwg.mxu0
  %6180 = vmatprep.subr.bf16.mxu0 %v5951
  %6181 = vmatpush1.bf16.msra.mxu0 %v5950
  %6182 = vmatprep.subr.bf16.mxu0 %v5959
  %6183 = vmatpush1.bf16.msra.mxu0 %v5958
  %6184 = vmatprep.subr.bf16.mxu0 %v5967
  %6185 = vmatpush1.bf16.msra.mxu0 %v5966
  %6186 = vmatprep.subr.bf16.mxu0 %v5975
  %6187 = vmatpush1.bf16.msra.mxu0 %v5974
  %6188 = vmatprep.subr.bf16.mxu0 %v5983
  %6189 = vmatpush1.bf16.msra.mxu0 %v5982
  %6190 = vmatprep.subr.bf16.mxu0 %v5991
  %6191 = vmatpush1.bf16.msra.mxu0 %v5990
  %6192 = vmatprep.subr.bf16.mxu0 %v5999
  %6193 = vmatpush1.bf16.msra.mxu0 %v5998
  %6194 = vmatprep.subr.bf16.mxu0 %v6007
  %6195 = vmatpush1.bf16.msra.mxu0 %v6006
  %6196 = vmatprep.subr.bf16.mxu0 0
  %6197 = vmatpush1.bf16.msra.mxu0 0
  %6198 = vmatprep.subr.bf16.mxu0 0
  %6199 = vmatpush1.bf16.msra.mxu0 0
  %6200 = vmatprep.subr.bf16.mxu0 0
  %6201 = vmatpush1.bf16.msra.mxu0 0
  %6202 = vmatprep.subr.bf16.mxu0 0
  %6203 = vmatpush1.bf16.msra.mxu0 0
  %6204 = vmatprep.subr.bf16.mxu0 0
  %6205 = vmatpush1.bf16.msra.mxu0 0
  %6206 = vmatprep.subr.bf16.mxu0 0
  %6207 = vmatpush1.bf16.msra.mxu0 0
  %6208 = vmatprep.subr.bf16.mxu0 0
  %6209 = vmatpush1.bf16.msra.mxu0 0
  %6210 = vmatprep.subr.bf16.mxu0 0
  %6211 = vmatpush1.bf16.msra.mxu0 0
  %6212 = vmatprep.mubr.bf16.mxu0 0
  %6213 = vmatmul.mubr.bf16.gmra.mrb[0].mxu0 %v6008
  %v6214 = vpop.f32.mrb[0].mxu0
  %v6215 = vadd.f32 %v6038, %v6214
  %v6216 = vpop.f32.mrb[0].mxu0
  %v6217 = vadd.f32 %v6042, %v6216
  %v6218 = vpop.f32.mrb[0].mxu0
  %v6219 = vadd.f32 %v6038, %v6218
  %v6220 = vpop.f32.mrb[0].mxu0
  %v6221 = vadd.f32 %v6042, %v6220
  %6222 = vdwg.mxu0
  %6223 = vst [vmem:[%s19] sm:$0xff] %v6086
  %6224 = vst [vmem:[%s19 + $0x8] sm:$0xff] %v6088
  %6225 = vst [vmem:[%s19 + $0x10] sm:$0xff] %v6129
  %6226 = vst [vmem:[%s19 + $0x18] sm:$0xff] %v6131
  %6227 = vst [vmem:[%s19 + $0x20] sm:$0xff] %v6172
  %6228 = vst [vmem:[%s19 + $0x28] sm:$0xff] %v6174
  %6229 = vst [vmem:[%s19 + $0x30] sm:$0xff] %v6215
  %6230 = vst [vmem:[%s19 + $0x38] sm:$0xff] %v6217
  %6231 = vst [vmem:[%s19 + $0x40] sm:$0xff] %v6090
  %6232 = vst [vmem:[%s19 + $0x48] sm:$0xff] %v6092
  %6233 = vst [vmem:[%s19 + $0x50] sm:$0xff] %v6133
  %6234 = vst [vmem:[%s19 + $0x58] sm:$0xff] %v6135
  %6235 = vst [vmem:[%s19 + $0x60] sm:$0xff] %v6176
  %6236 = vst [vmem:[%s19 + $0x68] sm:$0xff] %v6178
  %6237 = vst [vmem:[%s19 + $0x70] sm:$0xff] %v6219
  %6238 = vst [vmem:[%s19 + $0x78] sm:$0xff] %v6221
  // Predicated region
  $region111: #{token_pose_b_forward.1} parent=0 // pred_check
    _
  $region112: #{token_pose_b_forward.1} parent=0 // pred_check_branch
    %6240 = sbr.rel (0) target = $region114
  $region113: #{token_pose_b_forward.1} parent=0 // pred_region
    _
  $region114: #{token_pose_b_forward.1} parent=0 // pred_fallthru
    _
  // Predicated region
  $region115: #{token_pose_b_forward.1} parent=0 // pred_check
    _
  $region116: #{token_pose_b_forward.1} parent=0 // pred_check_branch
    %6242 = sbr.rel (0) target = $region118
  $region117: #{token_pose_b_forward.1} parent=0 // pred_region
    _
  $region118: #{token_pose_b_forward.1} parent=0 // pred_fallthru
    _
  %6243 = vsyncmov [#allocation3]
  %s6244 = vpop.sfrf %6243
  %p6245 = scmp.eq.s32.totalorder %s6244, 0
  %p6246 = pneg %p6245
  %6248 = shalt.err (%p6246)

</llo_original>
